<compile_context>
chip_gen: v7x
topology: tpu7x:2x2x1
jax: 0.10.0
libtpu: 0.0.40
codegen_flags: <defaults>
</compile_context>

<pallas_src>
import jax
import jax.numpy as jnp
from jax.experimental import pallas as pl
from jax.experimental.pallas import tpu as pltpu


# ------------------------------ Pallas kernel ------------------------------

def _lenet_kernel(x_ref, w1_ref, b1_ref, w2_ref, b2_ref,
                  wf1_ref, bf1_ref, wf2_ref, bf2_ref, wf3_ref, bf3_ref,
                  out_ref, a1_ref, a2_ref, c2_ref):
    f32 = jnp.float32

    # ---------------- conv1 (3->6, 5x5, valid) + bias + ReLU ----------------
    # Patch matrix P1[(h,w), i*40 + j*8 + c] = x[h+i, w+j, c], built with two
    # lane-axis concatenations of statically shifted slabs (in-kernel im2col).
    x = x_ref[0]                                                          # (36,36,8)
    q1 = jnp.concatenate([x[:, j:j + 32, :] for j in range(5)], axis=2)   # (36,32,40)
    p1 = jnp.concatenate([q1[i:i + 32, :, :] for i in range(5)], axis=2)  # (32,32,200)
    p1 = p1.reshape(32 * 32, 200)                                         # (1024,200)
    y1 = jnp.dot(p1, w1_ref[...], preferred_element_type=f32) + b1_ref[...]
    y1 = jnp.maximum(y1, 0.0)                                             # (1024,128)
    a1_ref[...] = y1.reshape(32, 32, 128)        # rows/cols >= 28 are don't-care

    # ---------------- 2x2 / stride-2 max pool (fused epilogue) --------------
    pool1 = jnp.maximum(
        jnp.maximum(a1_ref[pl.ds(0, 14, stride=2), pl.ds(0, 14, stride=2), :],
                    a1_ref[pl.ds(0, 14, stride=2), pl.ds(1, 14, stride=2), :]),
        jnp.maximum(a1_ref[pl.ds(1, 14, stride=2), pl.ds(0, 14, stride=2), :],
                    a1_ref[pl.ds(1, 14, stride=2), pl.ds(1, 14, stride=2), :]),
    )                                                                     # (14,14,128)

    # Stage conv2 input: (14,14,6) activation inside an (18,20,8) zero-padded
    # VMEM buffer (5x5 halo; W padded to 16+4 so the flatten below keeps a
    # sublane dim that is a multiple of 8).
    c2_ref[...] = jnp.zeros(c2_ref.shape, c2_ref.dtype)
    c2_ref[0:14, 0:14, :] = pool1[:, :, :8]

    # ---------------- conv2 (6->16, 5x5, valid) + bias + ReLU ---------------
    x2 = c2_ref[...]                                                      # (18,20,8)
    q2 = jnp.concatenate([x2[:, j:j + 16, :] for j in range(5)], axis=2)  # (18,16,40)
    p2 = jnp.concatenate([q2[i:i + 14, :, :] for i in range(5)], axis=2)  # (14,16,200)
    p2 = p2.reshape(14 * 16, 200)                                         # (224,200)
    y2 = jnp.dot(p2, w2_ref[...], preferred_element_type=f32) + b2_ref[...]
    y2 = jnp.maximum(y2, 0.0)                                             # (224,128)
    a2_ref[...] = y2.reshape(14, 16, 128)        # rows/cols >= 10 are don't-care

    pool2 = jnp.maximum(
        jnp.maximum(a2_ref[pl.ds(0, 5, stride=2), pl.ds(0, 5, stride=2), :],
                    a2_ref[pl.ds(0, 5, stride=2), pl.ds(1, 5, stride=2), :]),
        jnp.maximum(a2_ref[pl.ds(1, 5, stride=2), pl.ds(0, 5, stride=2), :],
                    a2_ref[pl.ds(1, 5, stride=2), pl.ds(1, 5, stride=2), :]),
    )                                                                     # (5,5,128)

    # ---------------- fc1 (400 -> 120) + ReLU -------------------------------
    # PyTorch's NCHW flatten is folded into the weight layout: wf1[r] is the
    # (16,128) block for spatial position r = h*5 + w, so no activation
    # transpose/flatten is needed in-kernel.
    h1 = bf1_ref[...]                                                     # (1,128)
    for r in range(25):
        hh, ww = divmod(r, 5)
        lhs = pool2[hh, ww:ww + 1, :16]                                   # (1,16)
        h1 = h1 + jnp.dot(lhs, wf1_ref[r], preferred_element_type=f32)
    h1 = jnp.maximum(h1, 0.0)

    # ---------------- fc2 (120 -> 84) + ReLU, fc3 (84 -> 10) ----------------
    h2 = jnp.dot(h1, wf2_ref[...], preferred_element_type=f32) + bf2_ref[...]
    h2 = jnp.maximum(h2, 0.0)
    logits = jnp.dot(h2, wf3_ref[...], preferred_element_type=f32) + bf3_ref[...]

    out_ref[0] = jnp.broadcast_to(logits, (8, 128))


# ------------------------------ host wrappers -------------------------------

def pack_params(p):
    """Repack PyTorch-layout LeNet params into padded, kernel-ready matrices."""
    f32 = jnp.float32

    def pack_conv(w, b):
        cout, cin, kh, kw = w.shape
        wt = jnp.transpose(w, (2, 3, 1, 0))                          # (kh,kw,cin,cout)
        wt = jnp.pad(wt, ((0, 0), (0, 0), (0, 8 - cin), (0, 128 - cout)))
        wm = wt.reshape(kh * kw * 8, 128).astype(f32)                # k = i*40 + j*8 + c
        bm = jnp.pad(b, (0, 128 - cout)).reshape(1, 128).astype(f32)
        return wm, bm

    w1, b1 = pack_conv(p["conv1_w"], p["conv1_b"])
    w2, b2 = pack_conv(p["conv2_w"], p["conv2_b"])

    # fc1: torch flatten index k = c*25 + h*5 + w  ->  per-position (16,128) blocks.
    wf1 = p["fc1_w"].reshape(120, 16, 5, 5).transpose(2, 3, 1, 0)    # (5,5,16,120)
    wf1 = jnp.pad(wf1.reshape(25, 16, 120), ((0, 0), (0, 0), (0, 8))).astype(f32)
    bf1 = jnp.pad(p["fc1_b"], (0, 8)).reshape(1, 128).astype(f32)

    wf2 = jnp.zeros((128, 128), f32).at[:120, :84].set(p["fc2_w"].T)
    bf2 = jnp.pad(p["fc2_b"], (0, 128 - 84)).reshape(1, 128).astype(f32)
    wf3 = jnp.zeros((128, 128), f32).at[:84, :10].set(p["fc3_w"].T)
    bf3 = jnp.pad(p["fc3_b"], (0, 128 - 10)).reshape(1, 128).astype(f32)

    return dict(w1=w1, b1=b1, w2=w2, b2=b2,
                wf1=wf1, bf1=bf1, wf2=wf2, bf2=bf2, wf3=wf3, bf3=bf3)


def lenet_forward(packed, x):
    """x: (N, 3, 32, 32) float32 -> logits (N, 10)."""
    n = x.shape[0]
    xh = jnp.transpose(x, (0, 2, 3, 1)).astype(jnp.float32)          # NHWC
    xh = jnp.pad(xh, ((0, 0), (0, 4), (0, 4), (0, 5)))               # (n,36,36,8)

    def full(shape):
        z = (0,) * len(shape)
        return pl.BlockSpec(shape, lambda b, _z=z: _z)

    out = pl.pallas_call(
        _lenet_kernel,
        out_shape=jax.ShapeDtypeStruct((n, 8, 128), jnp.float32),
        grid=(n,),
        in_specs=[
            pl.BlockSpec((1, 36, 36, 8), lambda b: (b, 0, 0, 0)),
            full(packed["w1"].shape), full(packed["b1"].shape),
            full(packed["w2"].shape), full(packed["b2"].shape),
            full(packed["wf1"].shape), full(packed["bf1"].shape),
            full(packed["wf2"].shape), full(packed["bf2"].shape),
            full(packed["wf3"].shape), full(packed["bf3"].shape),
        ],
        out_specs=pl.BlockSpec((1, 8, 128), lambda b: (b, 0, 0)),
        scratch_shapes=[
            pltpu.VMEM((32, 32, 128), jnp.float32),   # conv1+ReLU output
            pltpu.VMEM((14, 16, 128), jnp.float32),   # conv2+ReLU output
            pltpu.VMEM((18, 20, 8), jnp.float32),     # padded conv2 input
        ],
        compiler_params=pltpu.CompilerParams(
            dimension_semantics=("parallel",),
            vmem_limit_bytes=32 * 1024 * 1024,
        ),
    )(xh, packed["w1"], packed["b1"], packed["w2"], packed["b2"],
      packed["wf1"], packed["bf1"], packed["wf2"], packed["bf2"],
      packed["wf3"], packed["bf3"])
    return out[:, 0, :10]


# --------------------------- init & pure-JAX reference ----------------------

def init_lenet_params(key):
    def u(k, shape, fan_in):
        b = 1.0 / (fan_in ** 0.5)
        return jax.random.uniform(k, shape, jnp.float32, -b, b)

    ks = jax.random.split(key, 10)
    return {
        "conv1_w": u(ks[0], (6, 3, 5, 5), 75), "conv1_b": u(ks[1], (6,), 75),
        "conv2_w": u(ks[2], (16, 6, 5, 5), 150), "conv2_b": u(ks[3], (16,), 150),
        "fc1_w": u(ks[4], (120, 400), 400), "fc1_b": u(ks[5], (120,), 400),
        "fc2_w": u(ks[6], (84, 120), 120), "fc2_b": u(ks[7], (84,), 120),
        "fc3_w": u(ks[8], (10, 84), 84), "fc3_b": u(ks[9], (10,), 84),
    }


def _pool_ref(y):
    return jnp.maximum(jnp.maximum(y[:, :, 0::2, 0::2], y[:, :, 0::2, 1::2]),
                       jnp.maximum(y[:, :, 1::2, 0::2], y[:, :, 1::2, 1::2]))


def lenet_reference(params, x):
    dn = ("NCHW", "OIHW", "NCHW")
    hi = jax.lax.Precision.HIGHEST
    y = jax.lax.conv_general_dilated(x, params["conv1_w"], (1, 1), "VALID",
                                     dimension_numbers=dn, precision=hi)
    y = _pool_ref(jnp.maximum(y + params["conv1_b"][None, :, None, None], 0.0))
    y = jax.lax.conv_general_dilated(y, params["conv2_w"], (1, 1), "VALID",
                                     dimension_numbers=dn, precision=hi)
    y = _pool_ref(jnp.maximum(y + params["conv2_b"][None, :, None, None], 0.0))
    y = y.reshape(y.shape[0], -1)
    y = jnp.maximum(jnp.dot(y, params["fc1_w"].T, precision=hi) + params["fc1_b"], 0.0)
    y = jnp.maximum(jnp.dot(y, params["fc2_w"].T, precision=hi) + params["fc2_b"], 0.0)
    return jnp.dot(y, params["fc3_w"].T, precision=hi) + params["fc3_b"]


# ------------------------------------ main ----------------------------------

if __name__ == "__main__":
    key = jax.random.PRNGKey(0)
    pkey, xkey = jax.random.split(key)
    params = init_lenet_params(pkey)
    packed = pack_params(params)
    x = jax.random.normal(xkey, (2, 3, 32, 32), jnp.float32)

    fwd = jax.jit(lenet_forward)
    out = jax.block_until_ready(fwd(packed, x))
    assert out.shape == (2, 10), out.shape

    ref = lenet_reference(params, x)
    err = float(jnp.max(jnp.abs(out - ref)))
    assert err < 2e-3, f"max abs error vs reference: {err}"
    print("KERNEL_OK")
</pallas_src>

<mosaic_0001>
module attributes {stable_mosaic.version = 11 : i64} {
  func.func @_lenet_kernel(%arg0: i32, %arg1: memref<1x36x36x8xf32, #tpu.memory_space<vmem>>, %arg2: memref<200x128xf32, #tpu.memory_space<vmem>>, %arg3: memref<1x128xf32, #tpu.memory_space<vmem>>, %arg4: memref<200x128xf32, #tpu.memory_space<vmem>>, %arg5: memref<1x128xf32, #tpu.memory_space<vmem>>, %arg6: memref<25x16x128xf32, #tpu.memory_space<vmem>>, %arg7: memref<1x128xf32, #tpu.memory_space<vmem>>, %arg8: memref<128x128xf32, #tpu.memory_space<vmem>>, %arg9: memref<1x128xf32, #tpu.memory_space<vmem>>, %arg10: memref<128x128xf32, #tpu.memory_space<vmem>>, %arg11: memref<1x128xf32, #tpu.memory_space<vmem>>, %arg12: memref<1x8x128xf32, #tpu.memory_space<vmem>>, %arg13: memref<32x32x128xf32, #tpu.memory_space<vmem>>, %arg14: memref<14x16x128xf32, #tpu.memory_space<vmem>>, %arg15: memref<18x20x8xf32, #tpu.memory_space<vmem>>) attributes {dimension_semantics = [#tpu.dimension_semantics<parallel>], iteration_bounds = array<i64: 2>, scalar_prefetch = 0 : i64, scratch_operands = 3 : i64, tpu.core_type = #tpu.core_type<tc>, window_params = [{transform_indices = @transform_0, window_bounds = array<i64: 1, 36, 36, 8>}, {pipeline_mode = #tpu.pipeline_mode<synchronous>, transform_indices = @transform_1, window_bounds = array<i64: 200, 128>}, {pipeline_mode = #tpu.pipeline_mode<synchronous>, transform_indices = @transform_2, window_bounds = array<i64: 1, 128>}, {pipeline_mode = #tpu.pipeline_mode<synchronous>, transform_indices = @transform_3, window_bounds = array<i64: 200, 128>}, {pipeline_mode = #tpu.pipeline_mode<synchronous>, transform_indices = @transform_4, window_bounds = array<i64: 1, 128>}, {pipeline_mode = #tpu.pipeline_mode<synchronous>, transform_indices = @transform_5, window_bounds = array<i64: 25, 16, 128>}, {pipeline_mode = #tpu.pipeline_mode<synchronous>, transform_indices = @transform_6, window_bounds = array<i64: 1, 128>}, {pipeline_mode = #tpu.pipeline_mode<synchronous>, transform_indices = @transform_7, window_bounds = array<i64: 128, 128>}, {pipeline_mode = #tpu.pipeline_mode<synchronous>, transform_indices = @transform_8, window_bounds = array<i64: 1, 128>}, {pipeline_mode = #tpu.pipeline_mode<synchronous>, transform_indices = @transform_9, window_bounds = array<i64: 128, 128>}, {pipeline_mode = #tpu.pipeline_mode<synchronous>, transform_indices = @transform_10, window_bounds = array<i64: 1, 128>}, {transform_indices = @transform_11, window_bounds = array<i64: 1, 8, 128>}]} {
    %c0 = arith.constant 0 : index
    %c0_0 = arith.constant 0 : index
    %c0_1 = arith.constant 0 : index
    %c0_2 = arith.constant 0 : index
    %0 = vector.load %arg1[%c0, %c0_0, %c0_1, %c0_2] : memref<1x36x36x8xf32, #tpu.memory_space<vmem>>, vector<1x36x36x8xf32>
    %1 = vector.shape_cast %0 : vector<1x36x36x8xf32> to vector<36x36x8xf32>
    %2 = vector.extract_strided_slice %1 {offsets = [0, 0, 0], sizes = [36, 32, 8], strides = [1, 1, 1]} : vector<36x36x8xf32> to vector<36x32x8xf32>
    %3 = vector.extract_strided_slice %1 {offsets = [0, 1, 0], sizes = [36, 32, 8], strides = [1, 1, 1]} : vector<36x36x8xf32> to vector<36x32x8xf32>
    %4 = vector.extract_strided_slice %1 {offsets = [0, 2, 0], sizes = [36, 32, 8], strides = [1, 1, 1]} : vector<36x36x8xf32> to vector<36x32x8xf32>
    %5 = vector.extract_strided_slice %1 {offsets = [0, 3, 0], sizes = [36, 32, 8], strides = [1, 1, 1]} : vector<36x36x8xf32> to vector<36x32x8xf32>
    %6 = vector.extract_strided_slice %1 {offsets = [0, 4, 0], sizes = [36, 32, 8], strides = [1, 1, 1]} : vector<36x36x8xf32> to vector<36x32x8xf32>
    %7 = tpu.concatenate %2, %3, %4, %5, %6 in 2 : vector<36x32x8xf32>, vector<36x32x8xf32>, vector<36x32x8xf32>, vector<36x32x8xf32>, vector<36x32x8xf32> -> vector<36x32x40xf32>
    %8 = vector.extract_strided_slice %7 {offsets = [0, 0, 0], sizes = [32, 32, 40], strides = [1, 1, 1]} : vector<36x32x40xf32> to vector<32x32x40xf32>
    %9 = vector.extract_strided_slice %7 {offsets = [1, 0, 0], sizes = [32, 32, 40], strides = [1, 1, 1]} : vector<36x32x40xf32> to vector<32x32x40xf32>
    %10 = vector.extract_strided_slice %7 {offsets = [2, 0, 0], sizes = [32, 32, 40], strides = [1, 1, 1]} : vector<36x32x40xf32> to vector<32x32x40xf32>
    %11 = vector.extract_strided_slice %7 {offsets = [3, 0, 0], sizes = [32, 32, 40], strides = [1, 1, 1]} : vector<36x32x40xf32> to vector<32x32x40xf32>
    %12 = vector.extract_strided_slice %7 {offsets = [4, 0, 0], sizes = [32, 32, 40], strides = [1, 1, 1]} : vector<36x32x40xf32> to vector<32x32x40xf32>
    %13 = tpu.concatenate %8, %9, %10, %11, %12 in 2 : vector<32x32x40xf32>, vector<32x32x40xf32>, vector<32x32x40xf32>, vector<32x32x40xf32>, vector<32x32x40xf32> -> vector<32x32x200xf32>
    %14 = vector.shape_cast %13 : vector<32x32x200xf32> to vector<1024x200xf32>
    %c0_3 = arith.constant 0 : index
    %c0_4 = arith.constant 0 : index
    %15 = vector.load %arg2[%c0_3, %c0_4] : memref<200x128xf32, #tpu.memory_space<vmem>>, vector<200x128xf32>
    %cst = arith.constant dense<0.000000e+00> : vector<1024x128xf32>
    %16 = tpu.matmul %14, %15, %cst {dimension_numbers = #tpu.dot_dimension_numbers<[1], [0], [0], [1], [0, 0, 1, 1], [], []>} : vector<1024x200xf32>, vector<200x128xf32>, vector<1024x128xf32> -> vector<1024x128xf32>
    %c0_5 = arith.constant 0 : index
    %c0_6 = arith.constant 0 : index
    %17 = vector.load %arg3[%c0_5, %c0_6] : memref<1x128xf32, #tpu.memory_space<vmem>>, vector<1x128xf32>
    %18 = vector.broadcast %17 : vector<1x128xf32> to vector<1024x128xf32>
    %19 = arith.addf %16, %18 : vector<1024x128xf32>
    %cst_7 = arith.constant 0.000000e+00 : f32
    %20 = vector.broadcast %cst_7 : f32 to vector<1024x128xf32>
    %21 = arith.maximumf %19, %20 : vector<1024x128xf32>
    %22 = vector.shape_cast %21 : vector<1024x128xf32> to vector<32x32x128xf32>
    %c0_8 = arith.constant 0 : index
    %c0_9 = arith.constant 0 : index
    %c0_10 = arith.constant 0 : index
    %23 = vector.load %arg13[%c0_8, %c0_9, %c0_10] : memref<32x32x128xf32, #tpu.memory_space<vmem>>, vector<32x32x128xf32>
    tpu.vector_store %arg13[%c0_8, %c0_9, %c0_10], %22 {strides = array<i32>} : memref<32x32x128xf32, #tpu.memory_space<vmem>>, vector<32x32x128xf32>,
    %c0_11 = arith.constant 0 : index
    %c0_12 = arith.constant 0 : index
    %c0_13 = arith.constant 0 : index
    %24 = tpu.strided_load %arg13[%c0_11, %c0_12, %c0_13] {strides = array<i32: 2, 2, 1>} : memref<32x32x128xf32, #tpu.memory_space<vmem>>, vector<14x14x128xf32>
    %c0_14 = arith.constant 0 : index
    %c1 = arith.constant 1 : index
    %c0_15 = arith.constant 0 : index
    %25 = tpu.strided_load %arg13[%c0_14, %c1, %c0_15] {strides = array<i32: 2, 2, 1>} : memref<32x32x128xf32, #tpu.memory_space<vmem>>, vector<14x14x128xf32>
    %26 = arith.maximumf %24, %25 : vector<14x14x128xf32>
    %c1_16 = arith.constant 1 : index
    %c0_17 = arith.constant 0 : index
    %c0_18 = arith.constant 0 : index
    %27 = tpu.strided_load %arg13[%c1_16, %c0_17, %c0_18] {strides = array<i32: 2, 2, 1>} : memref<32x32x128xf32, #tpu.memory_space<vmem>>, vector<14x14x128xf32>
    %c1_19 = arith.constant 1 : index
    %c1_20 = arith.constant 1 : index
    %c0_21 = arith.constant 0 : index
    %28 = tpu.strided_load %arg13[%c1_19, %c1_20, %c0_21] {strides = array<i32: 2, 2, 1>} : memref<32x32x128xf32, #tpu.memory_space<vmem>>, vector<14x14x128xf32>
    %29 = arith.maximumf %27, %28 : vector<14x14x128xf32>
    %30 = arith.maximumf %26, %29 : vector<14x14x128xf32>
    %cst_22 = arith.constant 0.000000e+00 : f32
    %31 = vector.broadcast %cst_22 : f32 to vector<18x20x8xf32>
    %c0_23 = arith.constant 0 : index
    %c0_24 = arith.constant 0 : index
    %c0_25 = arith.constant 0 : index
    %32 = vector.load %arg15[%c0_23, %c0_24, %c0_25] : memref<18x20x8xf32, #tpu.memory_space<vmem>>, vector<18x20x8xf32>
    tpu.vector_store %arg15[%c0_23, %c0_24, %c0_25], %31 {strides = array<i32>} : memref<18x20x8xf32, #tpu.memory_space<vmem>>, vector<18x20x8xf32>,
    %33 = vector.extract_strided_slice %30 {offsets = [0, 0, 0], sizes = [14, 14, 8], strides = [1, 1, 1]} : vector<14x14x128xf32> to vector<14x14x8xf32>
    %c0_26 = arith.constant 0 : index
    %c0_27 = arith.constant 0 : index
    %c0_28 = arith.constant 0 : index
    %34 = vector.load %arg15[%c0_26, %c0_27, %c0_28] : memref<18x20x8xf32, #tpu.memory_space<vmem>>, vector<14x14x8xf32>
    tpu.vector_store %arg15[%c0_26, %c0_27, %c0_28], %33 {strides = array<i32>} : memref<18x20x8xf32, #tpu.memory_space<vmem>>, vector<14x14x8xf32>,
    %c0_29 = arith.constant 0 : index
    %c0_30 = arith.constant 0 : index
    %c0_31 = arith.constant 0 : index
    %35 = vector.load %arg15[%c0_29, %c0_30, %c0_31] : memref<18x20x8xf32, #tpu.memory_space<vmem>>, vector<18x20x8xf32>
    %36 = vector.extract_strided_slice %35 {offsets = [0, 0, 0], sizes = [18, 16, 8], strides = [1, 1, 1]} : vector<18x20x8xf32> to vector<18x16x8xf32>
    %37 = vector.extract_strided_slice %35 {offsets = [0, 1, 0], sizes = [18, 16, 8], strides = [1, 1, 1]} : vector<18x20x8xf32> to vector<18x16x8xf32>
    %38 = vector.extract_strided_slice %35 {offsets = [0, 2, 0], sizes = [18, 16, 8], strides = [1, 1, 1]} : vector<18x20x8xf32> to vector<18x16x8xf32>
    %39 = vector.extract_strided_slice %35 {offsets = [0, 3, 0], sizes = [18, 16, 8], strides = [1, 1, 1]} : vector<18x20x8xf32> to vector<18x16x8xf32>
    %40 = vector.extract_strided_slice %35 {offsets = [0, 4, 0], sizes = [18, 16, 8], strides = [1, 1, 1]} : vector<18x20x8xf32> to vector<18x16x8xf32>
    %41 = tpu.concatenate %36, %37, %38, %39, %40 in 2 : vector<18x16x8xf32>, vector<18x16x8xf32>, vector<18x16x8xf32>, vector<18x16x8xf32>, vector<18x16x8xf32> -> vector<18x16x40xf32>
    %42 = vector.extract_strided_slice %41 {offsets = [0, 0, 0], sizes = [14, 16, 40], strides = [1, 1, 1]} : vector<18x16x40xf32> to vector<14x16x40xf32>
    %43 = vector.extract_strided_slice %41 {offsets = [1, 0, 0], sizes = [14, 16, 40], strides = [1, 1, 1]} : vector<18x16x40xf32> to vector<14x16x40xf32>
    %44 = vector.extract_strided_slice %41 {offsets = [2, 0, 0], sizes = [14, 16, 40], strides = [1, 1, 1]} : vector<18x16x40xf32> to vector<14x16x40xf32>
    %45 = vector.extract_strided_slice %41 {offsets = [3, 0, 0], sizes = [14, 16, 40], strides = [1, 1, 1]} : vector<18x16x40xf32> to vector<14x16x40xf32>
    %46 = vector.extract_strided_slice %41 {offsets = [4, 0, 0], sizes = [14, 16, 40], strides = [1, 1, 1]} : vector<18x16x40xf32> to vector<14x16x40xf32>
    %47 = tpu.concatenate %42, %43, %44, %45, %46 in 2 : vector<14x16x40xf32>, vector<14x16x40xf32>, vector<14x16x40xf32>, vector<14x16x40xf32>, vector<14x16x40xf32> -> vector<14x16x200xf32>
    %48 = vector.shape_cast %47 : vector<14x16x200xf32> to vector<224x200xf32>
    %c0_32 = arith.constant 0 : index
    %c0_33 = arith.constant 0 : index
    %49 = vector.load %arg4[%c0_32, %c0_33] : memref<200x128xf32, #tpu.memory_space<vmem>>, vector<200x128xf32>
    %cst_34 = arith.constant dense<0.000000e+00> : vector<224x128xf32>
    %50 = tpu.matmul %48, %49, %cst_34 {dimension_numbers = #tpu.dot_dimension_numbers<[1], [0], [0], [1], [0, 0, 1, 1], [], []>} : vector<224x200xf32>, vector<200x128xf32>, vector<224x128xf32> -> vector<224x128xf32>
    %c0_35 = arith.constant 0 : index
    %c0_36 = arith.constant 0 : index
    %51 = vector.load %arg5[%c0_35, %c0_36] : memref<1x128xf32, #tpu.memory_space<vmem>>, vector<1x128xf32>
    %52 = vector.broadcast %51 : vector<1x128xf32> to vector<224x128xf32>
    %53 = arith.addf %50, %52 : vector<224x128xf32>
    %cst_37 = arith.constant 0.000000e+00 : f32
    %54 = vector.broadcast %cst_37 : f32 to vector<224x128xf32>
    %55 = arith.maximumf %53, %54 : vector<224x128xf32>
    %56 = vector.shape_cast %55 : vector<224x128xf32> to vector<14x16x128xf32>
    %c0_38 = arith.constant 0 : index
    %c0_39 = arith.constant 0 : index
    %c0_40 = arith.constant 0 : index
    %57 = vector.load %arg14[%c0_38, %c0_39, %c0_40] : memref<14x16x128xf32, #tpu.memory_space<vmem>>, vector<14x16x128xf32>
    tpu.vector_store %arg14[%c0_38, %c0_39, %c0_40], %56 {strides = array<i32>} : memref<14x16x128xf32, #tpu.memory_space<vmem>>, vector<14x16x128xf32>,
    %c0_41 = arith.constant 0 : index
    %c0_42 = arith.constant 0 : index
    %c0_43 = arith.constant 0 : index
    %58 = tpu.strided_load %arg14[%c0_41, %c0_42, %c0_43] {strides = array<i32: 2, 2, 1>} : memref<14x16x128xf32, #tpu.memory_space<vmem>>, vector<5x5x128xf32>
    %c0_44 = arith.constant 0 : index
    %c1_45 = arith.constant 1 : index
    %c0_46 = arith.constant 0 : index
    %59 = tpu.strided_load %arg14[%c0_44, %c1_45, %c0_46] {strides = array<i32: 2, 2, 1>} : memref<14x16x128xf32, #tpu.memory_space<vmem>>, vector<5x5x128xf32>
    %60 = arith.maximumf %58, %59 : vector<5x5x128xf32>
    %c1_47 = arith.constant 1 : index
    %c0_48 = arith.constant 0 : index
    %c0_49 = arith.constant 0 : index
    %61 = tpu.strided_load %arg14[%c1_47, %c0_48, %c0_49] {strides = array<i32: 2, 2, 1>} : memref<14x16x128xf32, #tpu.memory_space<vmem>>, vector<5x5x128xf32>
    %c1_50 = arith.constant 1 : index
    %c1_51 = arith.constant 1 : index
    %c0_52 = arith.constant 0 : index
    %62 = tpu.strided_load %arg14[%c1_50, %c1_51, %c0_52] {strides = array<i32: 2, 2, 1>} : memref<14x16x128xf32, #tpu.memory_space<vmem>>, vector<5x5x128xf32>
    %63 = arith.maximumf %61, %62 : vector<5x5x128xf32>
    %64 = arith.maximumf %60, %63 : vector<5x5x128xf32>
    %c0_53 = arith.constant 0 : index
    %c0_54 = arith.constant 0 : index
    %65 = vector.load %arg7[%c0_53, %c0_54] : memref<1x128xf32, #tpu.memory_space<vmem>>, vector<1x128xf32>
    %66 = vector.extract_strided_slice %64 {offsets = [0, 0, 0], sizes = [1, 1, 16], strides = [1, 1, 1]} : vector<5x5x128xf32> to vector<1x1x16xf32>
    %67 = vector.shape_cast %66 : vector<1x1x16xf32> to vector<1x16xf32>
    %c0_55 = arith.constant 0 : index
    %c0_56 = arith.constant 0 : index
    %c0_57 = arith.constant 0 : index
    %68 = vector.load %arg6[%c0_55, %c0_56, %c0_57] : memref<25x16x128xf32, #tpu.memory_space<vmem>>, vector<1x16x128xf32>
    %69 = vector.shape_cast %68 : vector<1x16x128xf32> to vector<16x128xf32>
    %cst_58 = arith.constant dense<0.000000e+00> : vector<1x128xf32>
    %70 = tpu.matmul %67, %69, %cst_58 {dimension_numbers = #tpu.dot_dimension_numbers<[1], [0], [0], [1], [0, 0, 1, 1], [], []>} : vector<1x16xf32>, vector<16x128xf32>, vector<1x128xf32> -> vector<1x128xf32>
    %71 = arith.addf %65, %70 : vector<1x128xf32>
    %72 = vector.extract_strided_slice %64 {offsets = [0, 1, 0], sizes = [1, 1, 16], strides = [1, 1, 1]} : vector<5x5x128xf32> to vector<1x1x16xf32>
    %73 = vector.shape_cast %72 : vector<1x1x16xf32> to vector<1x16xf32>
    %c1_59 = arith.constant 1 : index
    %c0_60 = arith.constant 0 : index
    %c0_61 = arith.constant 0 : index
    %74 = vector.load %arg6[%c1_59, %c0_60, %c0_61] : memref<25x16x128xf32, #tpu.memory_space<vmem>>, vector<1x16x128xf32>
    %75 = vector.shape_cast %74 : vector<1x16x128xf32> to vector<16x128xf32>
    %cst_62 = arith.constant dense<0.000000e+00> : vector<1x128xf32>
    %76 = tpu.matmul %73, %75, %cst_62 {dimension_numbers = #tpu.dot_dimension_numbers<[1], [0], [0], [1], [0, 0, 1, 1], [], []>} : vector<1x16xf32>, vector<16x128xf32>, vector<1x128xf32> -> vector<1x128xf32>
    %77 = arith.addf %71, %76 : vector<1x128xf32>
    %78 = vector.extract_strided_slice %64 {offsets = [0, 2, 0], sizes = [1, 1, 16], strides = [1, 1, 1]} : vector<5x5x128xf32> to vector<1x1x16xf32>
    %79 = vector.shape_cast %78 : vector<1x1x16xf32> to vector<1x16xf32>
    %c2 = arith.constant 2 : index
    %c0_63 = arith.constant 0 : index
    %c0_64 = arith.constant 0 : index
    %80 = vector.load %arg6[%c2, %c0_63, %c0_64] : memref<25x16x128xf32, #tpu.memory_space<vmem>>, vector<1x16x128xf32>
    %81 = vector.shape_cast %80 : vector<1x16x128xf32> to vector<16x128xf32>
    %cst_65 = arith.constant dense<0.000000e+00> : vector<1x128xf32>
    %82 = tpu.matmul %79, %81, %cst_65 {dimension_numbers = #tpu.dot_dimension_numbers<[1], [0], [0], [1], [0, 0, 1, 1], [], []>} : vector<1x16xf32>, vector<16x128xf32>, vector<1x128xf32> -> vector<1x128xf32>
    %83 = arith.addf %77, %82 : vector<1x128xf32>
    %84 = vector.extract_strided_slice %64 {offsets = [0, 3, 0], sizes = [1, 1, 16], strides = [1, 1, 1]} : vector<5x5x128xf32> to vector<1x1x16xf32>
    %85 = vector.shape_cast %84 : vector<1x1x16xf32> to vector<1x16xf32>
    %c3 = arith.constant 3 : index
    %c0_66 = arith.constant 0 : index
    %c0_67 = arith.constant 0 : index
    %86 = vector.load %arg6[%c3, %c0_66, %c0_67] : memref<25x16x128xf32, #tpu.memory_space<vmem>>, vector<1x16x128xf32>
    %87 = vector.shape_cast %86 : vector<1x16x128xf32> to vector<16x128xf32>
    %cst_68 = arith.constant dense<0.000000e+00> : vector<1x128xf32>
    %88 = tpu.matmul %85, %87, %cst_68 {dimension_numbers = #tpu.dot_dimension_numbers<[1], [0], [0], [1], [0, 0, 1, 1], [], []>} : vector<1x16xf32>, vector<16x128xf32>, vector<1x128xf32> -> vector<1x128xf32>
    %89 = arith.addf %83, %88 : vector<1x128xf32>
    %90 = vector.extract_strided_slice %64 {offsets = [0, 4, 0], sizes = [1, 1, 16], strides = [1, 1, 1]} : vector<5x5x128xf32> to vector<1x1x16xf32>
    %91 = vector.shape_cast %90 : vector<1x1x16xf32> to vector<1x16xf32>
    %c4 = arith.constant 4 : index
    %c0_69 = arith.constant 0 : index
    %c0_70 = arith.constant 0 : index
    %92 = vector.load %arg6[%c4, %c0_69, %c0_70] : memref<25x16x128xf32, #tpu.memory_space<vmem>>, vector<1x16x128xf32>
    %93 = vector.shape_cast %92 : vector<1x16x128xf32> to vector<16x128xf32>
    %cst_71 = arith.constant dense<0.000000e+00> : vector<1x128xf32>
    %94 = tpu.matmul %91, %93, %cst_71 {dimension_numbers = #tpu.dot_dimension_numbers<[1], [0], [0], [1], [0, 0, 1, 1], [], []>} : vector<1x16xf32>, vector<16x128xf32>, vector<1x128xf32> -> vector<1x128xf32>
    %95 = arith.addf %89, %94 : vector<1x128xf32>
    %96 = vector.extract_strided_slice %64 {offsets = [1, 0, 0], sizes = [1, 1, 16], strides = [1, 1, 1]} : vector<5x5x128xf32> to vector<1x1x16xf32>
    %97 = vector.shape_cast %96 : vector<1x1x16xf32> to vector<1x16xf32>
    %c5 = arith.constant 5 : index
    %c0_72 = arith.constant 0 : index
    %c0_73 = arith.constant 0 : index
    %98 = vector.load %arg6[%c5, %c0_72, %c0_73] : memref<25x16x128xf32, #tpu.memory_space<vmem>>, vector<1x16x128xf32>
    %99 = vector.shape_cast %98 : vector<1x16x128xf32> to vector<16x128xf32>
    %cst_74 = arith.constant dense<0.000000e+00> : vector<1x128xf32>
    %100 = tpu.matmul %97, %99, %cst_74 {dimension_numbers = #tpu.dot_dimension_numbers<[1], [0], [0], [1], [0, 0, 1, 1], [], []>} : vector<1x16xf32>, vector<16x128xf32>, vector<1x128xf32> -> vector<1x128xf32>
    %101 = arith.addf %95, %100 : vector<1x128xf32>
    %102 = vector.extract_strided_slice %64 {offsets = [1, 1, 0], sizes = [1, 1, 16], strides = [1, 1, 1]} : vector<5x5x128xf32> to vector<1x1x16xf32>
    %103 = vector.shape_cast %102 : vector<1x1x16xf32> to vector<1x16xf32>
    %c6 = arith.constant 6 : index
    %c0_75 = arith.constant 0 : index
    %c0_76 = arith.constant 0 : index
    %104 = vector.load %arg6[%c6, %c0_75, %c0_76] : memref<25x16x128xf32, #tpu.memory_space<vmem>>, vector<1x16x128xf32>
    %105 = vector.shape_cast %104 : vector<1x16x128xf32> to vector<16x128xf32>
    %cst_77 = arith.constant dense<0.000000e+00> : vector<1x128xf32>
    %106 = tpu.matmul %103, %105, %cst_77 {dimension_numbers = #tpu.dot_dimension_numbers<[1], [0], [0], [1], [0, 0, 1, 1], [], []>} : vector<1x16xf32>, vector<16x128xf32>, vector<1x128xf32> -> vector<1x128xf32>
    %107 = arith.addf %101, %106 : vector<1x128xf32>
    %108 = vector.extract_strided_slice %64 {offsets = [1, 2, 0], sizes = [1, 1, 16], strides = [1, 1, 1]} : vector<5x5x128xf32> to vector<1x1x16xf32>
    %109 = vector.shape_cast %108 : vector<1x1x16xf32> to vector<1x16xf32>
    %c7 = arith.constant 7 : index
    %c0_78 = arith.constant 0 : index
    %c0_79 = arith.constant 0 : index
    %110 = vector.load %arg6[%c7, %c0_78, %c0_79] : memref<25x16x128xf32, #tpu.memory_space<vmem>>, vector<1x16x128xf32>
    %111 = vector.shape_cast %110 : vector<1x16x128xf32> to vector<16x128xf32>
    %cst_80 = arith.constant dense<0.000000e+00> : vector<1x128xf32>
    %112 = tpu.matmul %109, %111, %cst_80 {dimension_numbers = #tpu.dot_dimension_numbers<[1], [0], [0], [1], [0, 0, 1, 1], [], []>} : vector<1x16xf32>, vector<16x128xf32>, vector<1x128xf32> -> vector<1x128xf32>
    %113 = arith.addf %107, %112 : vector<1x128xf32>
    %114 = vector.extract_strided_slice %64 {offsets = [1, 3, 0], sizes = [1, 1, 16], strides = [1, 1, 1]} : vector<5x5x128xf32> to vector<1x1x16xf32>
    %115 = vector.shape_cast %114 : vector<1x1x16xf32> to vector<1x16xf32>
    %c8 = arith.constant 8 : index
    %c0_81 = arith.constant 0 : index
    %c0_82 = arith.constant 0 : index
    %116 = vector.load %arg6[%c8, %c0_81, %c0_82] : memref<25x16x128xf32, #tpu.memory_space<vmem>>, vector<1x16x128xf32>
    %117 = vector.shape_cast %116 : vector<1x16x128xf32> to vector<16x128xf32>
    %cst_83 = arith.constant dense<0.000000e+00> : vector<1x128xf32>
    %118 = tpu.matmul %115, %117, %cst_83 {dimension_numbers = #tpu.dot_dimension_numbers<[1], [0], [0], [1], [0, 0, 1, 1], [], []>} : vector<1x16xf32>, vector<16x128xf32>, vector<1x128xf32> -> vector<1x128xf32>
    %119 = arith.addf %113, %118 : vector<1x128xf32>
    %120 = vector.extract_strided_slice %64 {offsets = [1, 4, 0], sizes = [1, 1, 16], strides = [1, 1, 1]} : vector<5x5x128xf32> to vector<1x1x16xf32>
    %121 = vector.shape_cast %120 : vector<1x1x16xf32> to vector<1x16xf32>
    %c9 = arith.constant 9 : index
    %c0_84 = arith.constant 0 : index
    %c0_85 = arith.constant 0 : index
    %122 = vector.load %arg6[%c9, %c0_84, %c0_85] : memref<25x16x128xf32, #tpu.memory_space<vmem>>, vector<1x16x128xf32>
    %123 = vector.shape_cast %122 : vector<1x16x128xf32> to vector<16x128xf32>
    %cst_86 = arith.constant dense<0.000000e+00> : vector<1x128xf32>
    %124 = tpu.matmul %121, %123, %cst_86 {dimension_numbers = #tpu.dot_dimension_numbers<[1], [0], [0], [1], [0, 0, 1, 1], [], []>} : vector<1x16xf32>, vector<16x128xf32>, vector<1x128xf32> -> vector<1x128xf32>
    %125 = arith.addf %119, %124 : vector<1x128xf32>
    %126 = vector.extract_strided_slice %64 {offsets = [2, 0, 0], sizes = [1, 1, 16], strides = [1, 1, 1]} : vector<5x5x128xf32> to vector<1x1x16xf32>
    %127 = vector.shape_cast %126 : vector<1x1x16xf32> to vector<1x16xf32>
    %c10 = arith.constant 10 : index
    %c0_87 = arith.constant 0 : index
    %c0_88 = arith.constant 0 : index
    %128 = vector.load %arg6[%c10, %c0_87, %c0_88] : memref<25x16x128xf32, #tpu.memory_space<vmem>>, vector<1x16x128xf32>
    %129 = vector.shape_cast %128 : vector<1x16x128xf32> to vector<16x128xf32>
    %cst_89 = arith.constant dense<0.000000e+00> : vector<1x128xf32>
    %130 = tpu.matmul %127, %129, %cst_89 {dimension_numbers = #tpu.dot_dimension_numbers<[1], [0], [0], [1], [0, 0, 1, 1], [], []>} : vector<1x16xf32>, vector<16x128xf32>, vector<1x128xf32> -> vector<1x128xf32>
    %131 = arith.addf %125, %130 : vector<1x128xf32>
    %132 = vector.extract_strided_slice %64 {offsets = [2, 1, 0], sizes = [1, 1, 16], strides = [1, 1, 1]} : vector<5x5x128xf32> to vector<1x1x16xf32>
    %133 = vector.shape_cast %132 : vector<1x1x16xf32> to vector<1x16xf32>
    %c11 = arith.constant 11 : index
    %c0_90 = arith.constant 0 : index
    %c0_91 = arith.constant 0 : index
    %134 = vector.load %arg6[%c11, %c0_90, %c0_91] : memref<25x16x128xf32, #tpu.memory_space<vmem>>, vector<1x16x128xf32>
    %135 = vector.shape_cast %134 : vector<1x16x128xf32> to vector<16x128xf32>
    %cst_92 = arith.constant dense<0.000000e+00> : vector<1x128xf32>
    %136 = tpu.matmul %133, %135, %cst_92 {dimension_numbers = #tpu.dot_dimension_numbers<[1], [0], [0], [1], [0, 0, 1, 1], [], []>} : vector<1x16xf32>, vector<16x128xf32>, vector<1x128xf32> -> vector<1x128xf32>
    %137 = arith.addf %131, %136 : vector<1x128xf32>
    %138 = vector.extract_strided_slice %64 {offsets = [2, 2, 0], sizes = [1, 1, 16], strides = [1, 1, 1]} : vector<5x5x128xf32> to vector<1x1x16xf32>
    %139 = vector.shape_cast %138 : vector<1x1x16xf32> to vector<1x16xf32>
    %c12 = arith.constant 12 : index
    %c0_93 = arith.constant 0 : index
    %c0_94 = arith.constant 0 : index
    %140 = vector.load %arg6[%c12, %c0_93, %c0_94] : memref<25x16x128xf32, #tpu.memory_space<vmem>>, vector<1x16x128xf32>
    %141 = vector.shape_cast %140 : vector<1x16x128xf32> to vector<16x128xf32>
    %cst_95 = arith.constant dense<0.000000e+00> : vector<1x128xf32>
    %142 = tpu.matmul %139, %141, %cst_95 {dimension_numbers = #tpu.dot_dimension_numbers<[1], [0], [0], [1], [0, 0, 1, 1], [], []>} : vector<1x16xf32>, vector<16x128xf32>, vector<1x128xf32> -> vector<1x128xf32>
    %143 = arith.addf %137, %142 : vector<1x128xf32>
    %144 = vector.extract_strided_slice %64 {offsets = [2, 3, 0], sizes = [1, 1, 16], strides = [1, 1, 1]} : vector<5x5x128xf32> to vector<1x1x16xf32>
    %145 = vector.shape_cast %144 : vector<1x1x16xf32> to vector<1x16xf32>
    %c13 = arith.constant 13 : index
    %c0_96 = arith.constant 0 : index
    %c0_97 = arith.constant 0 : index
    %146 = vector.load %arg6[%c13, %c0_96, %c0_97] : memref<25x16x128xf32, #tpu.memory_space<vmem>>, vector<1x16x128xf32>
    %147 = vector.shape_cast %146 : vector<1x16x128xf32> to vector<16x128xf32>
    %cst_98 = arith.constant dense<0.000000e+00> : vector<1x128xf32>
    %148 = tpu.matmul %145, %147, %cst_98 {dimension_numbers = #tpu.dot_dimension_numbers<[1], [0], [0], [1], [0, 0, 1, 1], [], []>} : vector<1x16xf32>, vector<16x128xf32>, vector<1x128xf32> -> vector<1x128xf32>
    %149 = arith.addf %143, %148 : vector<1x128xf32>
    %150 = vector.extract_strided_slice %64 {offsets = [2, 4, 0], sizes = [1, 1, 16], strides = [1, 1, 1]} : vector<5x5x128xf32> to vector<1x1x16xf32>
    %151 = vector.shape_cast %150 : vector<1x1x16xf32> to vector<1x16xf32>
    %c14 = arith.constant 14 : index
    %c0_99 = arith.constant 0 : index
    %c0_100 = arith.constant 0 : index
    %152 = vector.load %arg6[%c14, %c0_99, %c0_100] : memref<25x16x128xf32, #tpu.memory_space<vmem>>, vector<1x16x128xf32>
    %153 = vector.shape_cast %152 : vector<1x16x128xf32> to vector<16x128xf32>
    %cst_101 = arith.constant dense<0.000000e+00> : vector<1x128xf32>
    %154 = tpu.matmul %151, %153, %cst_101 {dimension_numbers = #tpu.dot_dimension_numbers<[1], [0], [0], [1], [0, 0, 1, 1], [], []>} : vector<1x16xf32>, vector<16x128xf32>, vector<1x128xf32> -> vector<1x128xf32>
    %155 = arith.addf %149, %154 : vector<1x128xf32>
    %156 = vector.extract_strided_slice %64 {offsets = [3, 0, 0], sizes = [1, 1, 16], strides = [1, 1, 1]} : vector<5x5x128xf32> to vector<1x1x16xf32>
    %157 = vector.shape_cast %156 : vector<1x1x16xf32> to vector<1x16xf32>
    %c15 = arith.constant 15 : index
    %c0_102 = arith.constant 0 : index
    %c0_103 = arith.constant 0 : index
    %158 = vector.load %arg6[%c15, %c0_102, %c0_103] : memref<25x16x128xf32, #tpu.memory_space<vmem>>, vector<1x16x128xf32>
    %159 = vector.shape_cast %158 : vector<1x16x128xf32> to vector<16x128xf32>
    %cst_104 = arith.constant dense<0.000000e+00> : vector<1x128xf32>
    %160 = tpu.matmul %157, %159, %cst_104 {dimension_numbers = #tpu.dot_dimension_numbers<[1], [0], [0], [1], [0, 0, 1, 1], [], []>} : vector<1x16xf32>, vector<16x128xf32>, vector<1x128xf32> -> vector<1x128xf32>
    %161 = arith.addf %155, %160 : vector<1x128xf32>
    %162 = vector.extract_strided_slice %64 {offsets = [3, 1, 0], sizes = [1, 1, 16], strides = [1, 1, 1]} : vector<5x5x128xf32> to vector<1x1x16xf32>
    %163 = vector.shape_cast %162 : vector<1x1x16xf32> to vector<1x16xf32>
    %c16 = arith.constant 16 : index
    %c0_105 = arith.constant 0 : index
    %c0_106 = arith.constant 0 : index
    %164 = vector.load %arg6[%c16, %c0_105, %c0_106] : memref<25x16x128xf32, #tpu.memory_space<vmem>>, vector<1x16x128xf32>
    %165 = vector.shape_cast %164 : vector<1x16x128xf32> to vector<16x128xf32>
    %cst_107 = arith.constant dense<0.000000e+00> : vector<1x128xf32>
    %166 = tpu.matmul %163, %165, %cst_107 {dimension_numbers = #tpu.dot_dimension_numbers<[1], [0], [0], [1], [0, 0, 1, 1], [], []>} : vector<1x16xf32>, vector<16x128xf32>, vector<1x128xf32> -> vector<1x128xf32>
    %167 = arith.addf %161, %166 : vector<1x128xf32>
    %168 = vector.extract_strided_slice %64 {offsets = [3, 2, 0], sizes = [1, 1, 16], strides = [1, 1, 1]} : vector<5x5x128xf32> to vector<1x1x16xf32>
    %169 = vector.shape_cast %168 : vector<1x1x16xf32> to vector<1x16xf32>
    %c17 = arith.constant 17 : index
    %c0_108 = arith.constant 0 : index
    %c0_109 = arith.constant 0 : index
    %170 = vector.load %arg6[%c17, %c0_108, %c0_109] : memref<25x16x128xf32, #tpu.memory_space<vmem>>, vector<1x16x128xf32>
    %171 = vector.shape_cast %170 : vector<1x16x128xf32> to vector<16x128xf32>
    %cst_110 = arith.constant dense<0.000000e+00> : vector<1x128xf32>
    %172 = tpu.matmul %169, %171, %cst_110 {dimension_numbers = #tpu.dot_dimension_numbers<[1], [0], [0], [1], [0, 0, 1, 1], [], []>} : vector<1x16xf32>, vector<16x128xf32>, vector<1x128xf32> -> vector<1x128xf32>
    %173 = arith.addf %167, %172 : vector<1x128xf32>
    %174 = vector.extract_strided_slice %64 {offsets = [3, 3, 0], sizes = [1, 1, 16], strides = [1, 1, 1]} : vector<5x5x128xf32> to vector<1x1x16xf32>
    %175 = vector.shape_cast %174 : vector<1x1x16xf32> to vector<1x16xf32>
    %c18 = arith.constant 18 : index
    %c0_111 = arith.constant 0 : index
    %c0_112 = arith.constant 0 : index
    %176 = vector.load %arg6[%c18, %c0_111, %c0_112] : memref<25x16x128xf32, #tpu.memory_space<vmem>>, vector<1x16x128xf32>
    %177 = vector.shape_cast %176 : vector<1x16x128xf32> to vector<16x128xf32>
    %cst_113 = arith.constant dense<0.000000e+00> : vector<1x128xf32>
    %178 = tpu.matmul %175, %177, %cst_113 {dimension_numbers = #tpu.dot_dimension_numbers<[1], [0], [0], [1], [0, 0, 1, 1], [], []>} : vector<1x16xf32>, vector<16x128xf32>, vector<1x128xf32> -> vector<1x128xf32>
    %179 = arith.addf %173, %178 : vector<1x128xf32>
    %180 = vector.extract_strided_slice %64 {offsets = [3, 4, 0], sizes = [1, 1, 16], strides = [1, 1, 1]} : vector<5x5x128xf32> to vector<1x1x16xf32>
    %181 = vector.shape_cast %180 : vector<1x1x16xf32> to vector<1x16xf32>
    %c19 = arith.constant 19 : index
    %c0_114 = arith.constant 0 : index
    %c0_115 = arith.constant 0 : index
    %182 = vector.load %arg6[%c19, %c0_114, %c0_115] : memref<25x16x128xf32, #tpu.memory_space<vmem>>, vector<1x16x128xf32>
    %183 = vector.shape_cast %182 : vector<1x16x128xf32> to vector<16x128xf32>
    %cst_116 = arith.constant dense<0.000000e+00> : vector<1x128xf32>
    %184 = tpu.matmul %181, %183, %cst_116 {dimension_numbers = #tpu.dot_dimension_numbers<[1], [0], [0], [1], [0, 0, 1, 1], [], []>} : vector<1x16xf32>, vector<16x128xf32>, vector<1x128xf32> -> vector<1x128xf32>
    %185 = arith.addf %179, %184 : vector<1x128xf32>
    %186 = vector.extract_strided_slice %64 {offsets = [4, 0, 0], sizes = [1, 1, 16], strides = [1, 1, 1]} : vector<5x5x128xf32> to vector<1x1x16xf32>
    %187 = vector.shape_cast %186 : vector<1x1x16xf32> to vector<1x16xf32>
    %c20 = arith.constant 20 : index
    %c0_117 = arith.constant 0 : index
    %c0_118 = arith.constant 0 : index
    %188 = vector.load %arg6[%c20, %c0_117, %c0_118] : memref<25x16x128xf32, #tpu.memory_space<vmem>>, vector<1x16x128xf32>
    %189 = vector.shape_cast %188 : vector<1x16x128xf32> to vector<16x128xf32>
    %cst_119 = arith.constant dense<0.000000e+00> : vector<1x128xf32>
    %190 = tpu.matmul %187, %189, %cst_119 {dimension_numbers = #tpu.dot_dimension_numbers<[1], [0], [0], [1], [0, 0, 1, 1], [], []>} : vector<1x16xf32>, vector<16x128xf32>, vector<1x128xf32> -> vector<1x128xf32>
    %191 = arith.addf %185, %190 : vector<1x128xf32>
    %192 = vector.extract_strided_slice %64 {offsets = [4, 1, 0], sizes = [1, 1, 16], strides = [1, 1, 1]} : vector<5x5x128xf32> to vector<1x1x16xf32>
    %193 = vector.shape_cast %192 : vector<1x1x16xf32> to vector<1x16xf32>
    %c21 = arith.constant 21 : index
    %c0_120 = arith.constant 0 : index
    %c0_121 = arith.constant 0 : index
    %194 = vector.load %arg6[%c21, %c0_120, %c0_121] : memref<25x16x128xf32, #tpu.memory_space<vmem>>, vector<1x16x128xf32>
    %195 = vector.shape_cast %194 : vector<1x16x128xf32> to vector<16x128xf32>
    %cst_122 = arith.constant dense<0.000000e+00> : vector<1x128xf32>
    %196 = tpu.matmul %193, %195, %cst_122 {dimension_numbers = #tpu.dot_dimension_numbers<[1], [0], [0], [1], [0, 0, 1, 1], [], []>} : vector<1x16xf32>, vector<16x128xf32>, vector<1x128xf32> -> vector<1x128xf32>
    %197 = arith.addf %191, %196 : vector<1x128xf32>
    %198 = vector.extract_strided_slice %64 {offsets = [4, 2, 0], sizes = [1, 1, 16], strides = [1, 1, 1]} : vector<5x5x128xf32> to vector<1x1x16xf32>
    %199 = vector.shape_cast %198 : vector<1x1x16xf32> to vector<1x16xf32>
    %c22 = arith.constant 22 : index
    %c0_123 = arith.constant 0 : index
    %c0_124 = arith.constant 0 : index
    %200 = vector.load %arg6[%c22, %c0_123, %c0_124] : memref<25x16x128xf32, #tpu.memory_space<vmem>>, vector<1x16x128xf32>
    %201 = vector.shape_cast %200 : vector<1x16x128xf32> to vector<16x128xf32>
    %cst_125 = arith.constant dense<0.000000e+00> : vector<1x128xf32>
    %202 = tpu.matmul %199, %201, %cst_125 {dimension_numbers = #tpu.dot_dimension_numbers<[1], [0], [0], [1], [0, 0, 1, 1], [], []>} : vector<1x16xf32>, vector<16x128xf32>, vector<1x128xf32> -> vector<1x128xf32>
    %203 = arith.addf %197, %202 : vector<1x128xf32>
    %204 = vector.extract_strided_slice %64 {offsets = [4, 3, 0], sizes = [1, 1, 16], strides = [1, 1, 1]} : vector<5x5x128xf32> to vector<1x1x16xf32>
    %205 = vector.shape_cast %204 : vector<1x1x16xf32> to vector<1x16xf32>
    %c23 = arith.constant 23 : index
    %c0_126 = arith.constant 0 : index
    %c0_127 = arith.constant 0 : index
    %206 = vector.load %arg6[%c23, %c0_126, %c0_127] : memref<25x16x128xf32, #tpu.memory_space<vmem>>, vector<1x16x128xf32>
    %207 = vector.shape_cast %206 : vector<1x16x128xf32> to vector<16x128xf32>
    %cst_128 = arith.constant dense<0.000000e+00> : vector<1x128xf32>
    %208 = tpu.matmul %205, %207, %cst_128 {dimension_numbers = #tpu.dot_dimension_numbers<[1], [0], [0], [1], [0, 0, 1, 1], [], []>} : vector<1x16xf32>, vector<16x128xf32>, vector<1x128xf32> -> vector<1x128xf32>
    %209 = arith.addf %203, %208 : vector<1x128xf32>
    %210 = vector.extract_strided_slice %64 {offsets = [4, 4, 0], sizes = [1, 1, 16], strides = [1, 1, 1]} : vector<5x5x128xf32> to vector<1x1x16xf32>
    %211 = vector.shape_cast %210 : vector<1x1x16xf32> to vector<1x16xf32>
    %c24 = arith.constant 24 : index
    %c0_129 = arith.constant 0 : index
    %c0_130 = arith.constant 0 : index
    %212 = vector.load %arg6[%c24, %c0_129, %c0_130] : memref<25x16x128xf32, #tpu.memory_space<vmem>>, vector<1x16x128xf32>
    %213 = vector.shape_cast %212 : vector<1x16x128xf32> to vector<16x128xf32>
    %cst_131 = arith.constant dense<0.000000e+00> : vector<1x128xf32>
    %214 = tpu.matmul %211, %213, %cst_131 {dimension_numbers = #tpu.dot_dimension_numbers<[1], [0], [0], [1], [0, 0, 1, 1], [], []>} : vector<1x16xf32>, vector<16x128xf32>, vector<1x128xf32> -> vector<1x128xf32>
    %215 = arith.addf %209, %214 : vector<1x128xf32>
    %cst_132 = arith.constant 0.000000e+00 : f32
    %216 = vector.broadcast %cst_132 : f32 to vector<1x128xf32>
    %217 = arith.maximumf %215, %216 : vector<1x128xf32>
    %c0_133 = arith.constant 0 : index
    %c0_134 = arith.constant 0 : index
    %218 = vector.load %arg8[%c0_133, %c0_134] : memref<128x128xf32, #tpu.memory_space<vmem>>, vector<128x128xf32>
    %cst_135 = arith.constant dense<0.000000e+00> : vector<1x128xf32>
    %219 = tpu.matmul %217, %218, %cst_135 {dimension_numbers = #tpu.dot_dimension_numbers<[1], [0], [0], [1], [0, 0, 1, 1], [], []>} : vector<1x128xf32>, vector<128x128xf32>, vector<1x128xf32> -> vector<1x128xf32>
    %c0_136 = arith.constant 0 : index
    %c0_137 = arith.constant 0 : index
    %220 = vector.load %arg9[%c0_136, %c0_137] : memref<1x128xf32, #tpu.memory_space<vmem>>, vector<1x128xf32>
    %221 = arith.addf %219, %220 : vector<1x128xf32>
    %cst_138 = arith.constant 0.000000e+00 : f32
    %222 = vector.broadcast %cst_138 : f32 to vector<1x128xf32>
    %223 = arith.maximumf %221, %222 : vector<1x128xf32>
    %c0_139 = arith.constant 0 : index
    %c0_140 = arith.constant 0 : index
    %224 = vector.load %arg10[%c0_139, %c0_140] : memref<128x128xf32, #tpu.memory_space<vmem>>, vector<128x128xf32>
    %cst_141 = arith.constant dense<0.000000e+00> : vector<1x128xf32>
    %225 = tpu.matmul %223, %224, %cst_141 {dimension_numbers = #tpu.dot_dimension_numbers<[1], [0], [0], [1], [0, 0, 1, 1], [], []>} : vector<1x128xf32>, vector<128x128xf32>, vector<1x128xf32> -> vector<1x128xf32>
    %c0_142 = arith.constant 0 : index
    %c0_143 = arith.constant 0 : index
    %226 = vector.load %arg11[%c0_142, %c0_143] : memref<1x128xf32, #tpu.memory_space<vmem>>, vector<1x128xf32>
    %227 = arith.addf %225, %226 : vector<1x128xf32>
    %228 = vector.shape_cast %227 : vector<1x128xf32> to vector<1x128xf32>
    %229 = vector.broadcast %228 : vector<1x128xf32> to vector<8x128xf32>
    %c0_144 = arith.constant 0 : index
    %c0_145 = arith.constant 0 : index
    %c0_146 = arith.constant 0 : index
    %230 = vector.load %arg12[%c0_144, %c0_145, %c0_146] : memref<1x8x128xf32, #tpu.memory_space<vmem>>, vector<1x8x128xf32>
    %231 = vector.shape_cast %230 : vector<1x8x128xf32> to vector<8x128xf32>
    %232 = vector.shape_cast %229 : vector<8x128xf32> to vector<1x8x128xf32>
    tpu.vector_store %arg12[%c0_144, %c0_145, %c0_146], %232 {strides = array<i32>} : memref<1x8x128xf32, #tpu.memory_space<vmem>>, vector<1x8x128xf32>,
    return
  }
  func.func @transform_0(%arg0: i32) -> (i32, i32, i32, i32) {
    %c0_i32 = arith.constant 0 : i32
    %c0_i32_0 = arith.constant 0 : i32
    %c0_i32_1 = arith.constant 0 : i32
    %c0_i32_2 = arith.constant 0 : i32
    return %arg0, %c0_i32, %c0_i32_0, %c0_i32_1 : i32, i32, i32, i32
  }
  func.func @transform_1(%arg0: i32) -> (i32, i32) {
    %c0_i32 = arith.constant 0 : i32
    %c0_i32_0 = arith.constant 0 : i32
    %c0_i32_1 = arith.constant 0 : i32
    return %c0_i32, %c0_i32_0 : i32, i32
  }
  func.func @transform_2(%arg0: i32) -> (i32, i32) {
    %c0_i32 = arith.constant 0 : i32
    %c0_i32_0 = arith.constant 0 : i32
    %c0_i32_1 = arith.constant 0 : i32
    return %c0_i32, %c0_i32_0 : i32, i32
  }
  func.func @transform_3(%arg0: i32) -> (i32, i32) {
    %c0_i32 = arith.constant 0 : i32
    %c0_i32_0 = arith.constant 0 : i32
    %c0_i32_1 = arith.constant 0 : i32
    return %c0_i32, %c0_i32_0 : i32, i32
  }
  func.func @transform_4(%arg0: i32) -> (i32, i32) {
    %c0_i32 = arith.constant 0 : i32
    %c0_i32_0 = arith.constant 0 : i32
    %c0_i32_1 = arith.constant 0 : i32
    return %c0_i32, %c0_i32_0 : i32, i32
  }
  func.func @transform_5(%arg0: i32) -> (i32, i32, i32) {
    %c0_i32 = arith.constant 0 : i32
    %c0_i32_0 = arith.constant 0 : i32
    %c0_i32_1 = arith.constant 0 : i32
    %c0_i32_2 = arith.constant 0 : i32
    return %c0_i32, %c0_i32_0, %c0_i32_1 : i32, i32, i32
  }
  func.func @transform_6(%arg0: i32) -> (i32, i32) {
    %c0_i32 = arith.constant 0 : i32
    %c0_i32_0 = arith.constant 0 : i32
    %c0_i32_1 = arith.constant 0 : i32
    return %c0_i32, %c0_i32_0 : i32, i32
  }
  func.func @transform_7(%arg0: i32) -> (i32, i32) {
    %c0_i32 = arith.constant 0 : i32
    %c0_i32_0 = arith.constant 0 : i32
    %c0_i32_1 = arith.constant 0 : i32
    return %c0_i32, %c0_i32_0 : i32, i32
  }
  func.func @transform_8(%arg0: i32) -> (i32, i32) {
    %c0_i32 = arith.constant 0 : i32
    %c0_i32_0 = arith.constant 0 : i32
    %c0_i32_1 = arith.constant 0 : i32
    return %c0_i32, %c0_i32_0 : i32, i32
  }
  func.func @transform_9(%arg0: i32) -> (i32, i32) {
    %c0_i32 = arith.constant 0 : i32
    %c0_i32_0 = arith.constant 0 : i32
    %c0_i32_1 = arith.constant 0 : i32
    return %c0_i32, %c0_i32_0 : i32, i32
  }
  func.func @transform_10(%arg0: i32) -> (i32, i32) {
    %c0_i32 = arith.constant 0 : i32
    %c0_i32_0 = arith.constant 0 : i32
    %c0_i32_1 = arith.constant 0 : i32
    return %c0_i32, %c0_i32_0 : i32, i32
  }
  func.func @transform_11(%arg0: i32) -> (i32, i32, i32) {
    %c0_i32 = arith.constant 0 : i32
    %c0_i32_0 = arith.constant 0 : i32
    %c0_i32_1 = arith.constant 0 : i32
    return %arg0, %c0_i32, %c0_i32_0 : i32, i32, i32
  }
}

</mosaic_0001>

<llo_original>
// kernel: lenet_forward.1
$region0: #{lenet_forward.1}
  #allocation0 [shape = 'u32[]', space=smem, size = 0x4, offset = 0x4, fixed_abs, tag = 'smem constant byte address 0x4 - core index']
  #allocation1 [shape = 'u32[144,128]{1,0:T(1,128)}', space=vmem, size = 0x12000, scoped, tag = 'internal scratch']
  #allocation2 [shape = 'f32[32,32,128]{2,1,0:T(8,128)}', space=vmem, size = 0x80000, scoped, tag = 'scratch operand']
  #allocation3 [shape = 'f32[14,16,128]{2,1,0:T(8,128)}', space=vmem, size = 0x1c000, scoped, tag = 'scratch operand']
  #allocation4 [shape = 'f32[18,20,8]{2,1,0:T(8,128)}', space=vmem, size = 0x36000, scoped, tag = 'scratch operand']
  %s0 = inlined_call_operand.vmem [shape: f32[2,36,36,8], index: 0, kind: input, shape index: {}]
  %s1 = inlined_call_operand.vmem [shape: f32[200,128], index: 1, kind: input, shape index: {}]
  %s2 = inlined_call_operand.vmem [shape: f32[1,128], index: 2, kind: input, shape index: {}]
  %s3 = inlined_call_operand.vmem [shape: f32[200,128], index: 3, kind: input, shape index: {}]
  %s4 = inlined_call_operand.vmem [shape: f32[1,128], index: 4, kind: input, shape index: {}]
  %s5 = inlined_call_operand.vmem [shape: f32[25,16,128], index: 5, kind: input, shape index: {}]
  %s6 = inlined_call_operand.vmem [shape: f32[1,128], index: 6, kind: input, shape index: {}]
  %s7 = inlined_call_operand.vmem [shape: f32[128,128], index: 7, kind: input, shape index: {}]
  %s8 = inlined_call_operand.vmem [shape: f32[1,128], index: 8, kind: input, shape index: {}]
  %s9 = inlined_call_operand.vmem [shape: f32[128,128], index: 9, kind: input, shape index: {}]
  %s10 = inlined_call_operand.vmem [shape: f32[1,128], index: 10, kind: input, shape index: {}]
  %s11 = inlined_call_operand.vmem [shape: f32[2,8,128], index: 11, kind: output, shape index: {}]
  %s12 = sld [smem:[#allocation0]]
  $region77: #{lenet_forward.1} parent=0
    _
  %s14 = ssub.s32 1, %s12
  %s15 = scalar_select 0, %s14, %s12
  loop: start=0, step=1, limit=4
  $region2: #{lenet_forward.1} parent=0 // loop_pre_header
    _
  $region3: #{lenet_forward.1} parent=0 // loop_header
    %s17 = sphi 0, %s21
    %p18 = scmp.ge.s32.totalorder %s17, 4
    %s27 = sphi 0, %s29
    %s30 = sphi 0, %s27
    %s31 = sphi 0, %s30
    %s47 = sphi 0, %s31
    %s51 = sphi 0, %s51
    %s53 = sphi 0, %s51
    %s54 = sphi 0, %s53
    %s68 = sphi 0, %s54
    %s72 = sphi 0, %s72
    %s74 = sphi 0, %s72
    %s75 = sphi 0, %s74
    %s89 = sphi 0, %s75
    %s93 = sphi 0, %s93
    %s95 = sphi 0, %s93
    %s96 = sphi 0, %s95
    %s110 = sphi 0, %s96
    %s114 = sphi 0, %s114
    %s116 = sphi 0, %s114
    %s117 = sphi 0, %s116
    %s131 = sphi 0, %s117
    %s135 = sphi 0, %s135
    %s137 = sphi 0, %s135
    %s138 = sphi 0, %s137
    %s152 = sphi 0, %s138
    %s156 = sphi 0, %s156
    %s158 = sphi 0, %s156
    %s159 = sphi 0, %s158
    %s173 = sphi 0, %s159
    %s177 = sphi 0, %s177
    %s179 = sphi 0, %s177
    %s180 = sphi 0, %s179
    %s194 = sphi 0, %s180
    %s198 = sphi 0, %s198
    %s200 = sphi 0, %s198
    %s201 = sphi 0, %s200
    %s215 = sphi 0, %s201
    %s219 = sphi 0, %s219
    %s221 = sphi 0, %s219
    %s222 = sphi 0, %s221
    %s236 = sphi 0, %s222
    %s240 = sphi 0, %s240
    %s242 = sphi 0, %s240
    %s243 = sphi 0, %s242
    %s257 = sphi 0, %s243
    %s263 = sphi 0, %s265
    %s266 = sphi 0, %s263
    %s267 = sphi 0, %s266
    %s283 = sphi 0, %s267
  $region4: #{lenet_forward.1} parent=0 // loop_header_branch
    %20 = sbr.rel (%p18) target = $region8
  $region5: #{lenet_forward.1} parent=0 // loop_body
    %s22 = ssub.s32 %s17, 1
    %s23 = ssub.s32 %s17, 2
    %s24 = sadd.s32 %s17, 1
    %s25 = ssub.s32 %s17, %s24
    %p26 = scmp.eq.s32.totalorder %s25, 0
    %s28 = sadd.s32 %s27, 1
    %s29 = scalar_select %p26, %s27, %s28
    %p32 = pneg %p26
    %p33 = scmp.eq.s32.totalorder %s17, 1
    %p34 = por %p32, %p33
    %p35 = scmp.ne.s32.totalorder %s27, %s30
    %p36 = scmp.eq.s32.totalorder %s17, 0
    %p37 = por %p35, %p36
    %p38 = scmp.ne.s32.totalorder %s27, %s30
    %p39 = scmp.eq.s32.totalorder %s22, 1
    %p40 = por %p38, %p39
    %p41 = scmp.ne.s32.totalorder %s30, %s31
    %p42 = scmp.eq.s32.totalorder %s22, 0
    %p43 = por %p41, %p42
    %p44 = scmp.ne.s32.totalorder %s30, %s31
    %p45 = scmp.eq.s32.totalorder %s23, 1
    %p46 = por %p44, %p45
    %p48 = scmp.ne.s32.totalorder %s31, %s47
    %p49 = scmp.eq.s32.totalorder %s23, 0
    %p50 = por %p48, %p49
    %s52 = sadd.s32 %s51, 1
    %p55 = scmp.eq.s32.totalorder %s17, 1
    %p56 = scmp.ne.s32.totalorder %s51, %s53
    %p57 = scmp.eq.s32.totalorder %s17, 0
    %p58 = por %p56, %p57
    %p59 = scmp.ne.s32.totalorder %s51, %s53
    %p60 = scmp.eq.s32.totalorder %s22, 1
    %p61 = por %p59, %p60
    %p62 = scmp.ne.s32.totalorder %s53, %s54
    %p63 = scmp.eq.s32.totalorder %s22, 0
    %p64 = por %p62, %p63
    %p65 = scmp.ne.s32.totalorder %s53, %s54
    %p66 = scmp.eq.s32.totalorder %s23, 1
    %p67 = por %p65, %p66
    %p69 = scmp.ne.s32.totalorder %s54, %s68
    %p70 = scmp.eq.s32.totalorder %s23, 0
    %p71 = por %p69, %p70
    %s73 = sadd.s32 %s72, 1
    %p76 = scmp.eq.s32.totalorder %s17, 1
    %p77 = scmp.ne.s32.totalorder %s72, %s74
    %p78 = scmp.eq.s32.totalorder %s17, 0
    %p79 = por %p77, %p78
    %p80 = scmp.ne.s32.totalorder %s72, %s74
    %p81 = scmp.eq.s32.totalorder %s22, 1
    %p82 = por %p80, %p81
    %p83 = scmp.ne.s32.totalorder %s74, %s75
    %p84 = scmp.eq.s32.totalorder %s22, 0
    %p85 = por %p83, %p84
    %p86 = scmp.ne.s32.totalorder %s74, %s75
    %p87 = scmp.eq.s32.totalorder %s23, 1
    %p88 = por %p86, %p87
    %p90 = scmp.ne.s32.totalorder %s75, %s89
    %p91 = scmp.eq.s32.totalorder %s23, 0
    %p92 = por %p90, %p91
    %s94 = sadd.s32 %s93, 1
    %p97 = scmp.eq.s32.totalorder %s17, 1
    %p98 = scmp.ne.s32.totalorder %s93, %s95
    %p99 = scmp.eq.s32.totalorder %s17, 0
    %p100 = por %p98, %p99
    %p101 = scmp.ne.s32.totalorder %s93, %s95
    %p102 = scmp.eq.s32.totalorder %s22, 1
    %p103 = por %p101, %p102
    %p104 = scmp.ne.s32.totalorder %s95, %s96
    %p105 = scmp.eq.s32.totalorder %s22, 0
    %p106 = por %p104, %p105
    %p107 = scmp.ne.s32.totalorder %s95, %s96
    %p108 = scmp.eq.s32.totalorder %s23, 1
    %p109 = por %p107, %p108
    %p111 = scmp.ne.s32.totalorder %s96, %s110
    %p112 = scmp.eq.s32.totalorder %s23, 0
    %p113 = por %p111, %p112
    %s115 = sadd.s32 %s114, 1
    %p118 = scmp.eq.s32.totalorder %s17, 1
    %p119 = scmp.ne.s32.totalorder %s114, %s116
    %p120 = scmp.eq.s32.totalorder %s17, 0
    %p121 = por %p119, %p120
    %p122 = scmp.ne.s32.totalorder %s114, %s116
    %p123 = scmp.eq.s32.totalorder %s22, 1
    %p124 = por %p122, %p123
    %p125 = scmp.ne.s32.totalorder %s116, %s117
    %p126 = scmp.eq.s32.totalorder %s22, 0
    %p127 = por %p125, %p126
    %p128 = scmp.ne.s32.totalorder %s116, %s117
    %p129 = scmp.eq.s32.totalorder %s23, 1
    %p130 = por %p128, %p129
    %p132 = scmp.ne.s32.totalorder %s117, %s131
    %p133 = scmp.eq.s32.totalorder %s23, 0
    %p134 = por %p132, %p133
    %s136 = sadd.s32 %s135, 1
    %p139 = scmp.eq.s32.totalorder %s17, 1
    %p140 = scmp.ne.s32.totalorder %s135, %s137
    %p141 = scmp.eq.s32.totalorder %s17, 0
    %p142 = por %p140, %p141
    %p143 = scmp.ne.s32.totalorder %s135, %s137
    %p144 = scmp.eq.s32.totalorder %s22, 1
    %p145 = por %p143, %p144
    %p146 = scmp.ne.s32.totalorder %s137, %s138
    %p147 = scmp.eq.s32.totalorder %s22, 0
    %p148 = por %p146, %p147
    %p149 = scmp.ne.s32.totalorder %s137, %s138
    %p150 = scmp.eq.s32.totalorder %s23, 1
    %p151 = por %p149, %p150
    %p153 = scmp.ne.s32.totalorder %s138, %s152
    %p154 = scmp.eq.s32.totalorder %s23, 0
    %p155 = por %p153, %p154
    %s157 = sadd.s32 %s156, 1
    %p160 = scmp.eq.s32.totalorder %s17, 1
    %p161 = scmp.ne.s32.totalorder %s156, %s158
    %p162 = scmp.eq.s32.totalorder %s17, 0
    %p163 = por %p161, %p162
    %p164 = scmp.ne.s32.totalorder %s156, %s158
    %p165 = scmp.eq.s32.totalorder %s22, 1
    %p166 = por %p164, %p165
    %p167 = scmp.ne.s32.totalorder %s158, %s159
    %p168 = scmp.eq.s32.totalorder %s22, 0
    %p169 = por %p167, %p168
    %p170 = scmp.ne.s32.totalorder %s158, %s159
    %p171 = scmp.eq.s32.totalorder %s23, 1
    %p172 = por %p170, %p171
    %p174 = scmp.ne.s32.totalorder %s159, %s173
    %p175 = scmp.eq.s32.totalorder %s23, 0
    %p176 = por %p174, %p175
    %s178 = sadd.s32 %s177, 1
    %p181 = scmp.eq.s32.totalorder %s17, 1
    %p182 = scmp.ne.s32.totalorder %s177, %s179
    %p183 = scmp.eq.s32.totalorder %s17, 0
    %p184 = por %p182, %p183
    %p185 = scmp.ne.s32.totalorder %s177, %s179
    %p186 = scmp.eq.s32.totalorder %s22, 1
    %p187 = por %p185, %p186
    %p188 = scmp.ne.s32.totalorder %s179, %s180
    %p189 = scmp.eq.s32.totalorder %s22, 0
    %p190 = por %p188, %p189
    %p191 = scmp.ne.s32.totalorder %s179, %s180
    %p192 = scmp.eq.s32.totalorder %s23, 1
    %p193 = por %p191, %p192
    %p195 = scmp.ne.s32.totalorder %s180, %s194
    %p196 = scmp.eq.s32.totalorder %s23, 0
    %p197 = por %p195, %p196
    %s199 = sadd.s32 %s198, 1
    %p202 = scmp.eq.s32.totalorder %s17, 1
    %p203 = scmp.ne.s32.totalorder %s198, %s200
    %p204 = scmp.eq.s32.totalorder %s17, 0
    %p205 = por %p203, %p204
    %p206 = scmp.ne.s32.totalorder %s198, %s200
    %p207 = scmp.eq.s32.totalorder %s22, 1
    %p208 = por %p206, %p207
    %p209 = scmp.ne.s32.totalorder %s200, %s201
    %p210 = scmp.eq.s32.totalorder %s22, 0
    %p211 = por %p209, %p210
    %p212 = scmp.ne.s32.totalorder %s200, %s201
    %p213 = scmp.eq.s32.totalorder %s23, 1
    %p214 = por %p212, %p213
    %p216 = scmp.ne.s32.totalorder %s201, %s215
    %p217 = scmp.eq.s32.totalorder %s23, 0
    %p218 = por %p216, %p217
    %s220 = sadd.s32 %s219, 1
    %p223 = scmp.eq.s32.totalorder %s17, 1
    %p224 = scmp.ne.s32.totalorder %s219, %s221
    %p225 = scmp.eq.s32.totalorder %s17, 0
    %p226 = por %p224, %p225
    %p227 = scmp.ne.s32.totalorder %s219, %s221
    %p228 = scmp.eq.s32.totalorder %s22, 1
    %p229 = por %p227, %p228
    %p230 = scmp.ne.s32.totalorder %s221, %s222
    %p231 = scmp.eq.s32.totalorder %s22, 0
    %p232 = por %p230, %p231
    %p233 = scmp.ne.s32.totalorder %s221, %s222
    %p234 = scmp.eq.s32.totalorder %s23, 1
    %p235 = por %p233, %p234
    %p237 = scmp.ne.s32.totalorder %s222, %s236
    %p238 = scmp.eq.s32.totalorder %s23, 0
    %p239 = por %p237, %p238
    %s241 = sadd.s32 %s240, 1
    %p244 = scmp.eq.s32.totalorder %s17, 1
    %p245 = scmp.ne.s32.totalorder %s240, %s242
    %p246 = scmp.eq.s32.totalorder %s17, 0
    %p247 = por %p245, %p246
    %p248 = scmp.ne.s32.totalorder %s240, %s242
    %p249 = scmp.eq.s32.totalorder %s22, 1
    %p250 = por %p248, %p249
    %p251 = scmp.ne.s32.totalorder %s242, %s243
    %p252 = scmp.eq.s32.totalorder %s22, 0
    %p253 = por %p251, %p252
    %p254 = scmp.ne.s32.totalorder %s242, %s243
    %p255 = scmp.eq.s32.totalorder %s23, 1
    %p256 = por %p254, %p255
    %p258 = scmp.ne.s32.totalorder %s243, %s257
    %p259 = scmp.eq.s32.totalorder %s23, 0
    %p260 = por %p258, %p259
    %s261 = ssub.s32 %s17, %s24
    %p262 = scmp.eq.s32.totalorder %s261, 0
    %s264 = sadd.s32 %s263, 1
    %s265 = scalar_select %p262, %s263, %s264
    %p268 = pneg %p262
    %p269 = scmp.eq.s32.totalorder %s17, 1
    %p270 = por %p268, %p269
    %p271 = scmp.ne.s32.totalorder %s263, %s266
    %p272 = scmp.eq.s32.totalorder %s17, 0
    %p273 = por %p271, %p272
    %p274 = scmp.ne.s32.totalorder %s263, %s266
    %p275 = scmp.eq.s32.totalorder %s22, 1
    %p276 = por %p274, %p275
    %p277 = scmp.ne.s32.totalorder %s266, %s267
    %p278 = scmp.eq.s32.totalorder %s22, 0
    %p279 = por %p277, %p278
    %p280 = scmp.ne.s32.totalorder %s266, %s267
    %p281 = scmp.eq.s32.totalorder %s23, 1
    %p282 = por %p280, %p281
    %p284 = scmp.ne.s32.totalorder %s267, %s283
    %p285 = scmp.eq.s32.totalorder %s23, 0
    %p286 = por %p284, %p285
    %p287 = scmp.le.s32.totalorder 1, %s17
    %p288 = scmp.lt.s32.totalorder %s17, 3
    %p289 = pnand %p287, %p288
    %p290 = pneg %p289
    // Predicated region
    $region9: #{lenet_forward.1} parent=5 // pred_check
      _
    $region10: #{lenet_forward.1} parent=5 // pred_check_branch
      %292 = sbr.rel (%p289) target = $region12
    $region11: #{lenet_forward.1} parent=5 // pred_region
      %s293 = ssub.s32 %s17, 1
      // Predicated region
      $region13: #{lenet_forward.1} parent=11 // pred_check
        %p294 = pneg %p64
      $region14: #{lenet_forward.1} parent=11 // pred_check_branch
        %296 = sbr.rel (%p294) target = $region16
      $region15: #{lenet_forward.1} parent=11 // pred_region
        _
      $region16: #{lenet_forward.1} parent=11 // pred_fallthru
        _
      // Predicated region
      $region17: #{lenet_forward.1} parent=11 // pred_check
        %p297 = pneg %p85
      $region18: #{lenet_forward.1} parent=11 // pred_check_branch
        %299 = sbr.rel (%p297) target = $region20
      $region19: #{lenet_forward.1} parent=11 // pred_region
        _
      $region20: #{lenet_forward.1} parent=11 // pred_fallthru
        _
      // Predicated region
      $region21: #{lenet_forward.1} parent=11 // pred_check
        %p300 = pneg %p106
      $region22: #{lenet_forward.1} parent=11 // pred_check_branch
        %302 = sbr.rel (%p300) target = $region24
      $region23: #{lenet_forward.1} parent=11 // pred_region
        _
      $region24: #{lenet_forward.1} parent=11 // pred_fallthru
        _
      // Predicated region
      $region25: #{lenet_forward.1} parent=11 // pred_check
        %p303 = pneg %p127
      $region26: #{lenet_forward.1} parent=11 // pred_check_branch
        %305 = sbr.rel (%p303) target = $region28
      $region27: #{lenet_forward.1} parent=11 // pred_region
        _
      $region28: #{lenet_forward.1} parent=11 // pred_fallthru
        _
      // Predicated region
      $region29: #{lenet_forward.1} parent=11 // pred_check
        %p306 = pneg %p148
      $region30: #{lenet_forward.1} parent=11 // pred_check_branch
        %308 = sbr.rel (%p306) target = $region32
      $region31: #{lenet_forward.1} parent=11 // pred_region
        _
      $region32: #{lenet_forward.1} parent=11 // pred_fallthru
        _
      // Predicated region
      $region33: #{lenet_forward.1} parent=11 // pred_check
        %p309 = pneg %p169
      $region34: #{lenet_forward.1} parent=11 // pred_check_branch
        %311 = sbr.rel (%p309) target = $region36
      $region35: #{lenet_forward.1} parent=11 // pred_region
        _
      $region36: #{lenet_forward.1} parent=11 // pred_fallthru
        _
      // Predicated region
      $region37: #{lenet_forward.1} parent=11 // pred_check
        %p312 = pneg %p190
      $region38: #{lenet_forward.1} parent=11 // pred_check_branch
        %314 = sbr.rel (%p312) target = $region40
      $region39: #{lenet_forward.1} parent=11 // pred_region
        _
      $region40: #{lenet_forward.1} parent=11 // pred_fallthru
        _
      // Predicated region
      $region41: #{lenet_forward.1} parent=11 // pred_check
        %p315 = pneg %p211
      $region42: #{lenet_forward.1} parent=11 // pred_check_branch
        %317 = sbr.rel (%p315) target = $region44
      $region43: #{lenet_forward.1} parent=11 // pred_region
        _
      $region44: #{lenet_forward.1} parent=11 // pred_fallthru
        _
      // Predicated region
      $region45: #{lenet_forward.1} parent=11 // pred_check
        %p318 = pneg %p232
      $region46: #{lenet_forward.1} parent=11 // pred_check_branch
        %320 = sbr.rel (%p318) target = $region48
      $region47: #{lenet_forward.1} parent=11 // pred_region
        _
      $region48: #{lenet_forward.1} parent=11 // pred_fallthru
        _
      // Predicated region
      $region49: #{lenet_forward.1} parent=11 // pred_check
        %p321 = pneg %p253
      $region50: #{lenet_forward.1} parent=11 // pred_check_branch
        %323 = sbr.rel (%p321) target = $region52
      $region51: #{lenet_forward.1} parent=11 // pred_region
        _
      $region52: #{lenet_forward.1} parent=11 // pred_fallthru
        _
    $region12: #{lenet_forward.1} parent=5 // pred_fallthru
      _
    %p324 = scmp.lt.s32.totalorder %s17, 2
    // Predicated region
    $region53: #{lenet_forward.1} parent=5 // pred_check
      %p325 = pneg %p324
    $region54: #{lenet_forward.1} parent=5 // pred_check_branch
      %327 = sbr.rel (%p325) target = $region56
    $region55: #{lenet_forward.1} parent=5 // pred_region
      // Predicated region
      $region57: #{lenet_forward.1} parent=55 // pred_check
        %p328 = pneg %p37
      $region58: #{lenet_forward.1} parent=55 // pred_check_branch
        %330 = sbr.rel (%p328) target = $region60
      $region59: #{lenet_forward.1} parent=55 // pred_region
        %p331 = scmp.lt.s32.totalorder %s17, 1
        %s332 = scalar_select %p331, %s17, 1
        %s333 = smul.addr %s332, 180
        %s334 = smul.addr %s333, 8
        %s335 = scalar_lea.vmem %s0, %s334
      $region60: #{lenet_forward.1} parent=55 // pred_fallthru
        _
    $region56: #{lenet_forward.1} parent=5 // pred_fallthru
      _
    %p336 = scmp.le.s32.totalorder 1, %s17
    %p337 = scmp.lt.s32.totalorder %s17, 3
    %p338 = pnand %p336, %p337
    %p339 = pneg %p338
    // Predicated region
    $region61: #{lenet_forward.1} parent=5 // pred_check
      _
    $region62: #{lenet_forward.1} parent=5 // pred_check_branch
      %341 = sbr.rel (%p338) target = $region64
    $region63: #{lenet_forward.1} parent=5 // pred_region
      %s342 = ssub.s32 %s17, 1
      %p343 = scmp.lt.s32.totalorder %s22, 1
      %s344 = scalar_select %p343, %s22, 1
      %s345 = smul.addr %s344, 180
      %s346 = smul.addr %s345, 8
      %s347 = scalar_lea.vmem %s0, %s346
      %p348 = pneg %p43
      %p349 = pneg %p40
      %p350 = pneg %p64
      %p351 = pneg %p61
      %p352 = pneg %p85
      %p353 = pneg %p82
      %p354 = pneg %p106
      %p355 = pneg %p103
      %p356 = pneg %p127
      %p357 = pneg %p124
      %p358 = pneg %p148
      %p359 = pneg %p145
      %p360 = pneg %p169
      %p361 = pneg %p166
      %p362 = pneg %p190
      %p363 = pneg %p187
      %p364 = pneg %p211
      %p365 = pneg %p208
      %p366 = pneg %p232
      %p367 = pneg %p229
      %p368 = pneg %p253
      %p369 = pneg %p250
      %p370 = pneg %p279
      %p371 = pneg %p276
      %p372 = scmp.lt.s32.totalorder %s22, 1
      %s373 = scalar_select %p372, %s22, 1
      %s374 = smul.addr %s373, 8
      %s375 = scalar_lea.vmem %s11, %s374
      %p376 = scmp.lt.s32.totalorder %s22, 1
      %s377 = scalar_select %p376, %s22, 1
      %s378 = smul.addr %s377, 180
      %s379 = smul.addr %s378, 8
      %s380 = scalar_lea.vmem %s0, %s379
      %p381 = scmp.lt.s32.totalorder %s22, 1
      %s382 = scalar_select %p381, %s22, 1
      %s383 = smul.addr %s382, 8
      %s384 = scalar_lea.vmem %s11, %s383
      %v385 = vld [vmem:[%s380] sm:$0xff]
      %v386 = vld [vmem:[%s380 + $0x8] sm:$0xff]
      %v387 = vld [vmem:[%s380 + $0x10] sm:$0xff]
      %v388 = vld [vmem:[%s380 + $0x18] sm:$0xff]
      %v389 = vld [vmem:[%s380 + $0x20] sm:$0xf]
      %v390 = vld [vmem:[%s380 + $0x28] sm:$0xff]
      %v391 = vld [vmem:[%s380 + $0x30] sm:$0xff]
      %v392 = vld [vmem:[%s380 + $0x38] sm:$0xff]
      %v393 = vld [vmem:[%s380 + $0x40] sm:$0xff]
      %v394 = vld [vmem:[%s380 + $0x48] sm:$0xf]
      %v395 = vld [vmem:[%s380 + $0x50] sm:$0xff]
      %v396 = vld [vmem:[%s380 + $0x58] sm:$0xff]
      %v397 = vld [vmem:[%s380 + $0x60] sm:$0xff]
      %v398 = vld [vmem:[%s380 + $0x68] sm:$0xff]
      %v399 = vld [vmem:[%s380 + $0x70] sm:$0xf]
      %v400 = vld [vmem:[%s380 + $0x78] sm:$0xff]
      %v401 = vld [vmem:[%s380 + $0x80] sm:$0xff]
      %v402 = vld [vmem:[%s380 + $0x88] sm:$0xff]
      %v403 = vld [vmem:[%s380 + $0x90] sm:$0xff]
      %v404 = vld [vmem:[%s380 + $0x98] sm:$0xf]
      %v405 = vld [vmem:[%s380 + $0xa0] sm:$0xff]
      %v406 = vld [vmem:[%s380 + $0xa8] sm:$0xff]
      %v407 = vld [vmem:[%s380 + $0xb0] sm:$0xff]
      %v408 = vld [vmem:[%s380 + $0xb8] sm:$0xff]
      %v409 = vld [vmem:[%s380 + $0xc0] sm:$0xf]
      %v410 = vld [vmem:[%s380 + $0xc8] sm:$0xff]
      %v411 = vld [vmem:[%s380 + $0xd0] sm:$0xff]
      %v412 = vld [vmem:[%s380 + $0xd8] sm:$0xff]
      %v413 = vld [vmem:[%s380 + $0xe0] sm:$0xff]
      %v414 = vld [vmem:[%s380 + $0xe8] sm:$0xf]
      %v415 = vld [vmem:[%s380 + $0xf0] sm:$0xff]
      %v416 = vld [vmem:[%s380 + $0xf8] sm:$0xff]
      %v417 = vld [vmem:[%s380 + $0x100] sm:$0xff]
      %v418 = vld [vmem:[%s380 + $0x108] sm:$0xff]
      %v419 = vld [vmem:[%s380 + $0x110] sm:$0xf]
      %v420 = vld [vmem:[%s380 + $0x118] sm:$0xff]
      %v421 = vld [vmem:[%s380 + $0x120] sm:$0xff]
      %v422 = vld [vmem:[%s380 + $0x128] sm:$0xff]
      %v423 = vld [vmem:[%s380 + $0x130] sm:$0xff]
      %v424 = vld [vmem:[%s380 + $0x138] sm:$0xf]
      %v425 = vld [vmem:[%s380 + $0x140] sm:$0xff]
      %v426 = vld [vmem:[%s380 + $0x148] sm:$0xff]
      %v427 = vld [vmem:[%s380 + $0x150] sm:$0xff]
      %v428 = vld [vmem:[%s380 + $0x158] sm:$0xff]
      %v429 = vld [vmem:[%s380 + $0x160] sm:$0xf]
      %v430 = vld [vmem:[%s380 + $0x168] sm:$0xff]
      %v431 = vld [vmem:[%s380 + $0x170] sm:$0xff]
      %v432 = vld [vmem:[%s380 + $0x178] sm:$0xff]
      %v433 = vld [vmem:[%s380 + $0x180] sm:$0xff]
      %v434 = vld [vmem:[%s380 + $0x188] sm:$0xf]
      %v435 = vld [vmem:[%s380 + $0x190] sm:$0xff]
      %v436 = vld [vmem:[%s380 + $0x198] sm:$0xff]
      %v437 = vld [vmem:[%s380 + $0x1a0] sm:$0xff]
      %v438 = vld [vmem:[%s380 + $0x1a8] sm:$0xff]
      %v439 = vld [vmem:[%s380 + $0x1b0] sm:$0xf]
      %v440 = vld [vmem:[%s380 + $0x1b8] sm:$0xff]
      %v441 = vld [vmem:[%s380 + $0x1c0] sm:$0xff]
      %v442 = vld [vmem:[%s380 + $0x1c8] sm:$0xff]
      %v443 = vld [vmem:[%s380 + $0x1d0] sm:$0xff]
      %v444 = vld [vmem:[%s380 + $0x1d8] sm:$0xf]
      %v445 = vld [vmem:[%s380 + $0x1e0] sm:$0xff]
      %v446 = vld [vmem:[%s380 + $0x1e8] sm:$0xff]
      %v447 = vld [vmem:[%s380 + $0x1f0] sm:$0xff]
      %v448 = vld [vmem:[%s380 + $0x1f8] sm:$0xff]
      %v449 = vld [vmem:[%s380 + $0x200] sm:$0xf]
      %v450 = vld [vmem:[%s380 + $0x208] sm:$0xff]
      %v451 = vld [vmem:[%s380 + $0x210] sm:$0xff]
      %v452 = vld [vmem:[%s380 + $0x218] sm:$0xff]
      %v453 = vld [vmem:[%s380 + $0x220] sm:$0xff]
      %v454 = vld [vmem:[%s380 + $0x228] sm:$0xf]
      %v455 = vld [vmem:[%s380 + $0x230] sm:$0xff]
      %v456 = vld [vmem:[%s380 + $0x238] sm:$0xff]
      %v457 = vld [vmem:[%s380 + $0x240] sm:$0xff]
      %v458 = vld [vmem:[%s380 + $0x248] sm:$0xff]
      %v459 = vld [vmem:[%s380 + $0x250] sm:$0xf]
      %v460 = vld [vmem:[%s380 + $0x258] sm:$0xff]
      %v461 = vld [vmem:[%s380 + $0x260] sm:$0xff]
      %v462 = vld [vmem:[%s380 + $0x268] sm:$0xff]
      %v463 = vld [vmem:[%s380 + $0x270] sm:$0xff]
      %v464 = vld [vmem:[%s380 + $0x278] sm:$0xf]
      %v465 = vld [vmem:[%s380 + $0x280] sm:$0xff]
      %v466 = vld [vmem:[%s380 + $0x288] sm:$0xff]
      %v467 = vld [vmem:[%s380 + $0x290] sm:$0xff]
      %v468 = vld [vmem:[%s380 + $0x298] sm:$0xff]
      %v469 = vld [vmem:[%s380 + $0x2a0] sm:$0xf]
      %v470 = vld [vmem:[%s380 + $0x2a8] sm:$0xff]
      %v471 = vld [vmem:[%s380 + $0x2b0] sm:$0xff]
      %v472 = vld [vmem:[%s380 + $0x2b8] sm:$0xff]
      %v473 = vld [vmem:[%s380 + $0x2c0] sm:$0xff]
      %v474 = vld [vmem:[%s380 + $0x2c8] sm:$0xf]
      %v475 = vld [vmem:[%s380 + $0x2d0] sm:$0xff]
      %v476 = vld [vmem:[%s380 + $0x2d8] sm:$0xff]
      %v477 = vld [vmem:[%s380 + $0x2e0] sm:$0xff]
      %v478 = vld [vmem:[%s380 + $0x2e8] sm:$0xff]
      %v479 = vld [vmem:[%s380 + $0x2f0] sm:$0xf]
      %v480 = vld [vmem:[%s380 + $0x2f8] sm:$0xff]
      %v481 = vld [vmem:[%s380 + $0x300] sm:$0xff]
      %v482 = vld [vmem:[%s380 + $0x308] sm:$0xff]
      %v483 = vld [vmem:[%s380 + $0x310] sm:$0xff]
      %v484 = vld [vmem:[%s380 + $0x318] sm:$0xf]
      %v485 = vld [vmem:[%s380 + $0x320] sm:$0xff]
      %v486 = vld [vmem:[%s380 + $0x328] sm:$0xff]
      %v487 = vld [vmem:[%s380 + $0x330] sm:$0xff]
      %v488 = vld [vmem:[%s380 + $0x338] sm:$0xff]
      %v489 = vld [vmem:[%s380 + $0x340] sm:$0xf]
      %v490 = vld [vmem:[%s380 + $0x348] sm:$0xff]
      %v491 = vld [vmem:[%s380 + $0x350] sm:$0xff]
      %v492 = vld [vmem:[%s380 + $0x358] sm:$0xff]
      %v493 = vld [vmem:[%s380 + $0x360] sm:$0xff]
      %v494 = vld [vmem:[%s380 + $0x368] sm:$0xf]
      %v495 = vld [vmem:[%s380 + $0x370] sm:$0xff]
      %v496 = vld [vmem:[%s380 + $0x378] sm:$0xff]
      %v497 = vld [vmem:[%s380 + $0x380] sm:$0xff]
      %v498 = vld [vmem:[%s380 + $0x388] sm:$0xff]
      %v499 = vld [vmem:[%s380 + $0x390] sm:$0xf]
      %v500 = vld [vmem:[%s380 + $0x398] sm:$0xff]
      %v501 = vld [vmem:[%s380 + $0x3a0] sm:$0xff]
      %v502 = vld [vmem:[%s380 + $0x3a8] sm:$0xff]
      %v503 = vld [vmem:[%s380 + $0x3b0] sm:$0xff]
      %v504 = vld [vmem:[%s380 + $0x3b8] sm:$0xf]
      %v505 = vld [vmem:[%s380 + $0x3c0] sm:$0xff]
      %v506 = vld [vmem:[%s380 + $0x3c8] sm:$0xff]
      %v507 = vld [vmem:[%s380 + $0x3d0] sm:$0xff]
      %v508 = vld [vmem:[%s380 + $0x3d8] sm:$0xff]
      %v509 = vld [vmem:[%s380 + $0x3e0] sm:$0xf]
      %v510 = vld [vmem:[%s380 + $0x3e8] sm:$0xff]
      %v511 = vld [vmem:[%s380 + $0x3f0] sm:$0xff]
      %v512 = vld [vmem:[%s380 + $0x3f8] sm:$0xff]
      %v513 = vld [vmem:[%s380 + $0x400] sm:$0xff]
      %v514 = vld [vmem:[%s380 + $0x408] sm:$0xf]
      %v515 = vld [vmem:[%s380 + $0x410] sm:$0xff]
      %v516 = vld [vmem:[%s380 + $0x418] sm:$0xff]
      %v517 = vld [vmem:[%s380 + $0x420] sm:$0xff]
      %v518 = vld [vmem:[%s380 + $0x428] sm:$0xff]
      %v519 = vld [vmem:[%s380 + $0x430] sm:$0xf]
      %v520 = vld [vmem:[%s380 + $0x438] sm:$0xff]
      %v521 = vld [vmem:[%s380 + $0x440] sm:$0xff]
      %v522 = vld [vmem:[%s380 + $0x448] sm:$0xff]
      %v523 = vld [vmem:[%s380 + $0x450] sm:$0xff]
      %v524 = vld [vmem:[%s380 + $0x458] sm:$0xf]
      %v525 = vld [vmem:[%s380 + $0x460] sm:$0xff]
      %v526 = vld [vmem:[%s380 + $0x468] sm:$0xff]
      %v527 = vld [vmem:[%s380 + $0x470] sm:$0xff]
      %v528 = vld [vmem:[%s380 + $0x478] sm:$0xff]
      %v529 = vld [vmem:[%s380 + $0x480] sm:$0xf]
      %v530 = vld [vmem:[%s380 + $0x488] sm:$0xff]
      %v531 = vld [vmem:[%s380 + $0x490] sm:$0xff]
      %v532 = vld [vmem:[%s380 + $0x498] sm:$0xff]
      %v533 = vld [vmem:[%s380 + $0x4a0] sm:$0xff]
      %v534 = vld [vmem:[%s380 + $0x4a8] sm:$0xf]
      %v535 = vld [vmem:[%s380 + $0x4b0] sm:$0xff]
      %v536 = vld [vmem:[%s380 + $0x4b8] sm:$0xff]
      %v537 = vld [vmem:[%s380 + $0x4c0] sm:$0xff]
      %v538 = vld [vmem:[%s380 + $0x4c8] sm:$0xff]
      %v539 = vld [vmem:[%s380 + $0x4d0] sm:$0xf]
      %v540 = vld [vmem:[%s380 + $0x4d8] sm:$0xff]
      %v541 = vld [vmem:[%s380 + $0x4e0] sm:$0xff]
      %v542 = vld [vmem:[%s380 + $0x4e8] sm:$0xff]
      %v543 = vld [vmem:[%s380 + $0x4f0] sm:$0xff]
      %v544 = vld [vmem:[%s380 + $0x4f8] sm:$0xf]
      %v545 = vld [vmem:[%s380 + $0x500] sm:$0xff]
      %v546 = vld [vmem:[%s380 + $0x508] sm:$0xff]
      %v547 = vld [vmem:[%s380 + $0x510] sm:$0xff]
      %v548 = vld [vmem:[%s380 + $0x518] sm:$0xff]
      %v549 = vld [vmem:[%s380 + $0x520] sm:$0xf]
      %v550 = vld [vmem:[%s380 + $0x528] sm:$0xff]
      %v551 = vld [vmem:[%s380 + $0x530] sm:$0xff]
      %v552 = vld [vmem:[%s380 + $0x538] sm:$0xff]
      %v553 = vld [vmem:[%s380 + $0x540] sm:$0xff]
      %v554 = vld [vmem:[%s380 + $0x548] sm:$0xf]
      %v555 = vld [vmem:[%s380 + $0x550] sm:$0xff]
      %v556 = vld [vmem:[%s380 + $0x558] sm:$0xff]
      %v557 = vld [vmem:[%s380 + $0x560] sm:$0xff]
      %v558 = vld [vmem:[%s380 + $0x568] sm:$0xff]
      %v559 = vld [vmem:[%s380 + $0x570] sm:$0xf]
      %v560 = vld [vmem:[%s380 + $0x578] sm:$0xff]
      %v561 = vld [vmem:[%s380 + $0x580] sm:$0xff]
      %v562 = vld [vmem:[%s380 + $0x588] sm:$0xff]
      %v563 = vld [vmem:[%s380 + $0x590] sm:$0xff]
      %v564 = vld [vmem:[%s380 + $0x598] sm:$0xf]
      %vm745 = vcmask 1046528
      %v746 = vrot.slane %v385, 1
      %v747 = vrot.slane %v386, 1
      %v748 = vsel %vm745, %v746, %v747
      %v749 = vrot.slane %v387, 1
      %v750 = vsel %vm745, %v747, %v749
      %v751 = vrot.slane %v388, 1
      %v752 = vsel %vm745, %v749, %v751
      %v753 = vrot.slane %v389, 1
      %v754 = vsel %vm745, %v751, %v753
      %v755 = vrot.slane %v390, 1
      %v756 = vrot.slane %v391, 1
      %v757 = vsel %vm745, %v755, %v756
      %v758 = vrot.slane %v392, 1
      %v759 = vsel %vm745, %v756, %v758
      %v760 = vrot.slane %v393, 1
      %v761 = vsel %vm745, %v758, %v760
      %v762 = vrot.slane %v394, 1
      %v763 = vsel %vm745, %v760, %v762
      %v764 = vrot.slane %v395, 1
      %v765 = vrot.slane %v396, 1
      %v766 = vsel %vm745, %v764, %v765
      %v767 = vrot.slane %v397, 1
      %v768 = vsel %vm745, %v765, %v767
      %v769 = vrot.slane %v398, 1
      %v770 = vsel %vm745, %v767, %v769
      %v771 = vrot.slane %v399, 1
      %v772 = vsel %vm745, %v769, %v771
      %v773 = vrot.slane %v400, 1
      %v774 = vrot.slane %v401, 1
      %v775 = vsel %vm745, %v773, %v774
      %v776 = vrot.slane %v402, 1
      %v777 = vsel %vm745, %v774, %v776
      %v778 = vrot.slane %v403, 1
      %v779 = vsel %vm745, %v776, %v778
      %v780 = vrot.slane %v404, 1
      %v781 = vsel %vm745, %v778, %v780
      %v782 = vrot.slane %v405, 1
      %v783 = vrot.slane %v406, 1
      %v784 = vsel %vm745, %v782, %v783
      %v785 = vrot.slane %v407, 1
      %v786 = vsel %vm745, %v783, %v785
      %v787 = vrot.slane %v408, 1
      %v788 = vsel %vm745, %v785, %v787
      %v789 = vrot.slane %v409, 1
      %v790 = vsel %vm745, %v787, %v789
      %v791 = vrot.slane %v410, 1
      %v792 = vrot.slane %v411, 1
      %v793 = vsel %vm745, %v791, %v792
      %v794 = vrot.slane %v412, 1
      %v795 = vsel %vm745, %v792, %v794
      %v796 = vrot.slane %v413, 1
      %v797 = vsel %vm745, %v794, %v796
      %v798 = vrot.slane %v414, 1
      %v799 = vsel %vm745, %v796, %v798
      %v800 = vrot.slane %v415, 1
      %v801 = vrot.slane %v416, 1
      %v802 = vsel %vm745, %v800, %v801
      %v803 = vrot.slane %v417, 1
      %v804 = vsel %vm745, %v801, %v803
      %v805 = vrot.slane %v418, 1
      %v806 = vsel %vm745, %v803, %v805
      %v807 = vrot.slane %v419, 1
      %v808 = vsel %vm745, %v805, %v807
      %v809 = vrot.slane %v420, 1
      %v810 = vrot.slane %v421, 1
      %v811 = vsel %vm745, %v809, %v810
      %v812 = vrot.slane %v422, 1
      %v813 = vsel %vm745, %v810, %v812
      %v814 = vrot.slane %v423, 1
      %v815 = vsel %vm745, %v812, %v814
      %v816 = vrot.slane %v424, 1
      %v817 = vsel %vm745, %v814, %v816
      %v818 = vrot.slane %v425, 1
      %v819 = vrot.slane %v426, 1
      %v820 = vsel %vm745, %v818, %v819
      %v821 = vrot.slane %v427, 1
      %v822 = vsel %vm745, %v819, %v821
      %v823 = vrot.slane %v428, 1
      %v824 = vsel %vm745, %v821, %v823
      %v825 = vrot.slane %v429, 1
      %v826 = vsel %vm745, %v823, %v825
      %v827 = vrot.slane %v430, 1
      %v828 = vrot.slane %v431, 1
      %v829 = vsel %vm745, %v827, %v828
      %v830 = vrot.slane %v432, 1
      %v831 = vsel %vm745, %v828, %v830
      %v832 = vrot.slane %v433, 1
      %v833 = vsel %vm745, %v830, %v832
      %v834 = vrot.slane %v434, 1
      %v835 = vsel %vm745, %v832, %v834
      %v836 = vrot.slane %v435, 1
      %v837 = vrot.slane %v436, 1
      %v838 = vsel %vm745, %v836, %v837
      %v839 = vrot.slane %v437, 1
      %v840 = vsel %vm745, %v837, %v839
      %v841 = vrot.slane %v438, 1
      %v842 = vsel %vm745, %v839, %v841
      %v843 = vrot.slane %v439, 1
      %v844 = vsel %vm745, %v841, %v843
      %v845 = vrot.slane %v440, 1
      %v846 = vrot.slane %v441, 1
      %v847 = vsel %vm745, %v845, %v846
      %v848 = vrot.slane %v442, 1
      %v849 = vsel %vm745, %v846, %v848
      %v850 = vrot.slane %v443, 1
      %v851 = vsel %vm745, %v848, %v850
      %v852 = vrot.slane %v444, 1
      %v853 = vsel %vm745, %v850, %v852
      %v854 = vrot.slane %v445, 1
      %v855 = vrot.slane %v446, 1
      %v856 = vsel %vm745, %v854, %v855
      %v857 = vrot.slane %v447, 1
      %v858 = vsel %vm745, %v855, %v857
      %v859 = vrot.slane %v448, 1
      %v860 = vsel %vm745, %v857, %v859
      %v861 = vrot.slane %v449, 1
      %v862 = vsel %vm745, %v859, %v861
      %v863 = vrot.slane %v450, 1
      %v864 = vrot.slane %v451, 1
      %v865 = vsel %vm745, %v863, %v864
      %v866 = vrot.slane %v452, 1
      %v867 = vsel %vm745, %v864, %v866
      %v868 = vrot.slane %v453, 1
      %v869 = vsel %vm745, %v866, %v868
      %v870 = vrot.slane %v454, 1
      %v871 = vsel %vm745, %v868, %v870
      %v872 = vrot.slane %v455, 1
      %v873 = vrot.slane %v456, 1
      %v874 = vsel %vm745, %v872, %v873
      %v875 = vrot.slane %v457, 1
      %v876 = vsel %vm745, %v873, %v875
      %v877 = vrot.slane %v458, 1
      %v878 = vsel %vm745, %v875, %v877
      %v879 = vrot.slane %v459, 1
      %v880 = vsel %vm745, %v877, %v879
      %v881 = vrot.slane %v460, 1
      %v882 = vrot.slane %v461, 1
      %v883 = vsel %vm745, %v881, %v882
      %v884 = vrot.slane %v462, 1
      %v885 = vsel %vm745, %v882, %v884
      %v886 = vrot.slane %v463, 1
      %v887 = vsel %vm745, %v884, %v886
      %v888 = vrot.slane %v464, 1
      %v889 = vsel %vm745, %v886, %v888
      %v890 = vrot.slane %v465, 1
      %v891 = vrot.slane %v466, 1
      %v892 = vsel %vm745, %v890, %v891
      %v893 = vrot.slane %v467, 1
      %v894 = vsel %vm745, %v891, %v893
      %v895 = vrot.slane %v468, 1
      %v896 = vsel %vm745, %v893, %v895
      %v897 = vrot.slane %v469, 1
      %v898 = vsel %vm745, %v895, %v897
      %v899 = vrot.slane %v470, 1
      %v900 = vrot.slane %v471, 1
      %v901 = vsel %vm745, %v899, %v900
      %v902 = vrot.slane %v472, 1
      %v903 = vsel %vm745, %v900, %v902
      %v904 = vrot.slane %v473, 1
      %v905 = vsel %vm745, %v902, %v904
      %v906 = vrot.slane %v474, 1
      %v907 = vsel %vm745, %v904, %v906
      %v908 = vrot.slane %v475, 1
      %v909 = vrot.slane %v476, 1
      %v910 = vsel %vm745, %v908, %v909
      %v911 = vrot.slane %v477, 1
      %v912 = vsel %vm745, %v909, %v911
      %v913 = vrot.slane %v478, 1
      %v914 = vsel %vm745, %v911, %v913
      %v915 = vrot.slane %v479, 1
      %v916 = vsel %vm745, %v913, %v915
      %v917 = vrot.slane %v480, 1
      %v918 = vrot.slane %v481, 1
      %v919 = vsel %vm745, %v917, %v918
      %v920 = vrot.slane %v482, 1
      %v921 = vsel %vm745, %v918, %v920
      %v922 = vrot.slane %v483, 1
      %v923 = vsel %vm745, %v920, %v922
      %v924 = vrot.slane %v484, 1
      %v925 = vsel %vm745, %v922, %v924
      %v926 = vrot.slane %v485, 1
      %v927 = vrot.slane %v486, 1
      %v928 = vsel %vm745, %v926, %v927
      %v929 = vrot.slane %v487, 1
      %v930 = vsel %vm745, %v927, %v929
      %v931 = vrot.slane %v488, 1
      %v932 = vsel %vm745, %v929, %v931
      %v933 = vrot.slane %v489, 1
      %v934 = vsel %vm745, %v931, %v933
      %v935 = vrot.slane %v490, 1
      %v936 = vrot.slane %v491, 1
      %v937 = vsel %vm745, %v935, %v936
      %v938 = vrot.slane %v492, 1
      %v939 = vsel %vm745, %v936, %v938
      %v940 = vrot.slane %v493, 1
      %v941 = vsel %vm745, %v938, %v940
      %v942 = vrot.slane %v494, 1
      %v943 = vsel %vm745, %v940, %v942
      %v944 = vrot.slane %v495, 1
      %v945 = vrot.slane %v496, 1
      %v946 = vsel %vm745, %v944, %v945
      %v947 = vrot.slane %v497, 1
      %v948 = vsel %vm745, %v945, %v947
      %v949 = vrot.slane %v498, 1
      %v950 = vsel %vm745, %v947, %v949
      %v951 = vrot.slane %v499, 1
      %v952 = vsel %vm745, %v949, %v951
      %v953 = vrot.slane %v500, 1
      %v954 = vrot.slane %v501, 1
      %v955 = vsel %vm745, %v953, %v954
      %v956 = vrot.slane %v502, 1
      %v957 = vsel %vm745, %v954, %v956
      %v958 = vrot.slane %v503, 1
      %v959 = vsel %vm745, %v956, %v958
      %v960 = vrot.slane %v504, 1
      %v961 = vsel %vm745, %v958, %v960
      %v962 = vrot.slane %v505, 1
      %v963 = vrot.slane %v506, 1
      %v964 = vsel %vm745, %v962, %v963
      %v965 = vrot.slane %v507, 1
      %v966 = vsel %vm745, %v963, %v965
      %v967 = vrot.slane %v508, 1
      %v968 = vsel %vm745, %v965, %v967
      %v969 = vrot.slane %v509, 1
      %v970 = vsel %vm745, %v967, %v969
      %v971 = vrot.slane %v510, 1
      %v972 = vrot.slane %v511, 1
      %v973 = vsel %vm745, %v971, %v972
      %v974 = vrot.slane %v512, 1
      %v975 = vsel %vm745, %v972, %v974
      %v976 = vrot.slane %v513, 1
      %v977 = vsel %vm745, %v974, %v976
      %v978 = vrot.slane %v514, 1
      %v979 = vsel %vm745, %v976, %v978
      %v980 = vrot.slane %v515, 1
      %v981 = vrot.slane %v516, 1
      %v982 = vsel %vm745, %v980, %v981
      %v983 = vrot.slane %v517, 1
      %v984 = vsel %vm745, %v981, %v983
      %v985 = vrot.slane %v518, 1
      %v986 = vsel %vm745, %v983, %v985
      %v987 = vrot.slane %v519, 1
      %v988 = vsel %vm745, %v985, %v987
      %v989 = vrot.slane %v520, 1
      %v990 = vrot.slane %v521, 1
      %v991 = vsel %vm745, %v989, %v990
      %v992 = vrot.slane %v522, 1
      %v993 = vsel %vm745, %v990, %v992
      %v994 = vrot.slane %v523, 1
      %v995 = vsel %vm745, %v992, %v994
      %v996 = vrot.slane %v524, 1
      %v997 = vsel %vm745, %v994, %v996
      %v998 = vrot.slane %v525, 1
      %v999 = vrot.slane %v526, 1
      %v1000 = vsel %vm745, %v998, %v999
      %v1001 = vrot.slane %v527, 1
      %v1002 = vsel %vm745, %v999, %v1001
      %v1003 = vrot.slane %v528, 1
      %v1004 = vsel %vm745, %v1001, %v1003
      %v1005 = vrot.slane %v529, 1
      %v1006 = vsel %vm745, %v1003, %v1005
      %v1007 = vrot.slane %v530, 1
      %v1008 = vrot.slane %v531, 1
      %v1009 = vsel %vm745, %v1007, %v1008
      %v1010 = vrot.slane %v532, 1
      %v1011 = vsel %vm745, %v1008, %v1010
      %v1012 = vrot.slane %v533, 1
      %v1013 = vsel %vm745, %v1010, %v1012
      %v1014 = vrot.slane %v534, 1
      %v1015 = vsel %vm745, %v1012, %v1014
      %v1016 = vrot.slane %v535, 1
      %v1017 = vrot.slane %v536, 1
      %v1018 = vsel %vm745, %v1016, %v1017
      %v1019 = vrot.slane %v537, 1
      %v1020 = vsel %vm745, %v1017, %v1019
      %v1021 = vrot.slane %v538, 1
      %v1022 = vsel %vm745, %v1019, %v1021
      %v1023 = vrot.slane %v539, 1
      %v1024 = vsel %vm745, %v1021, %v1023
      %v1025 = vrot.slane %v540, 1
      %v1026 = vrot.slane %v541, 1
      %v1027 = vsel %vm745, %v1025, %v1026
      %v1028 = vrot.slane %v542, 1
      %v1029 = vsel %vm745, %v1026, %v1028
      %v1030 = vrot.slane %v543, 1
      %v1031 = vsel %vm745, %v1028, %v1030
      %v1032 = vrot.slane %v544, 1
      %v1033 = vsel %vm745, %v1030, %v1032
      %v1034 = vrot.slane %v545, 1
      %v1035 = vrot.slane %v546, 1
      %v1036 = vsel %vm745, %v1034, %v1035
      %v1037 = vrot.slane %v547, 1
      %v1038 = vsel %vm745, %v1035, %v1037
      %v1039 = vrot.slane %v548, 1
      %v1040 = vsel %vm745, %v1037, %v1039
      %v1041 = vrot.slane %v549, 1
      %v1042 = vsel %vm745, %v1039, %v1041
      %v1043 = vrot.slane %v550, 1
      %v1044 = vrot.slane %v551, 1
      %v1045 = vsel %vm745, %v1043, %v1044
      %v1046 = vrot.slane %v552, 1
      %v1047 = vsel %vm745, %v1044, %v1046
      %v1048 = vrot.slane %v553, 1
      %v1049 = vsel %vm745, %v1046, %v1048
      %v1050 = vrot.slane %v554, 1
      %v1051 = vsel %vm745, %v1048, %v1050
      %v1052 = vrot.slane %v555, 1
      %v1053 = vrot.slane %v556, 1
      %v1054 = vsel %vm745, %v1052, %v1053
      %v1055 = vrot.slane %v557, 1
      %v1056 = vsel %vm745, %v1053, %v1055
      %v1057 = vrot.slane %v558, 1
      %v1058 = vsel %vm745, %v1055, %v1057
      %v1059 = vrot.slane %v559, 1
      %v1060 = vsel %vm745, %v1057, %v1059
      %v1061 = vrot.slane %v560, 1
      %v1062 = vrot.slane %v561, 1
      %v1063 = vsel %vm745, %v1061, %v1062
      %v1064 = vrot.slane %v562, 1
      %v1065 = vsel %vm745, %v1062, %v1064
      %v1066 = vrot.slane %v563, 1
      %v1067 = vsel %vm745, %v1064, %v1066
      %v1068 = vrot.slane %v564, 1
      %v1069 = vsel %vm745, %v1066, %v1068
      %1070 = vrot.lane.b32.xlu0 %v748, 8
      %v1071 = vpop.permute.xlu0 %1070
      %1072 = vrot.lane.b32.xlu0 %v750, 8
      %v1073 = vpop.permute.xlu0 %1072
      %1074 = vrot.lane.b32.xlu0 %v752, 8
      %v1075 = vpop.permute.xlu0 %1074
      %1076 = vrot.lane.b32.xlu0 %v754, 8
      %v1077 = vpop.permute.xlu0 %1076
      %1078 = vrot.lane.b32.xlu0 %v757, 8
      %v1079 = vpop.permute.xlu0 %1078
      %1080 = vrot.lane.b32.xlu0 %v759, 8
      %v1081 = vpop.permute.xlu0 %1080
      %1082 = vrot.lane.b32.xlu0 %v761, 8
      %v1083 = vpop.permute.xlu0 %1082
      %1084 = vrot.lane.b32.xlu0 %v763, 8
      %v1085 = vpop.permute.xlu0 %1084
      %1086 = vrot.lane.b32.xlu0 %v766, 8
      %v1087 = vpop.permute.xlu0 %1086
      %1088 = vrot.lane.b32.xlu0 %v768, 8
      %v1089 = vpop.permute.xlu0 %1088
      %1090 = vrot.lane.b32.xlu0 %v770, 8
      %v1091 = vpop.permute.xlu0 %1090
      %1092 = vrot.lane.b32.xlu0 %v772, 8
      %v1093 = vpop.permute.xlu0 %1092
      %1094 = vrot.lane.b32.xlu0 %v775, 8
      %v1095 = vpop.permute.xlu0 %1094
      %1096 = vrot.lane.b32.xlu0 %v777, 8
      %v1097 = vpop.permute.xlu0 %1096
      %1098 = vrot.lane.b32.xlu0 %v779, 8
      %v1099 = vpop.permute.xlu0 %1098
      %1100 = vrot.lane.b32.xlu0 %v781, 8
      %v1101 = vpop.permute.xlu0 %1100
      %1102 = vrot.lane.b32.xlu0 %v784, 8
      %v1103 = vpop.permute.xlu0 %1102
      %1104 = vrot.lane.b32.xlu0 %v786, 8
      %v1105 = vpop.permute.xlu0 %1104
      %1106 = vrot.lane.b32.xlu0 %v788, 8
      %v1107 = vpop.permute.xlu0 %1106
      %1108 = vrot.lane.b32.xlu0 %v790, 8
      %v1109 = vpop.permute.xlu0 %1108
      %1110 = vrot.lane.b32.xlu0 %v793, 8
      %v1111 = vpop.permute.xlu0 %1110
      %1112 = vrot.lane.b32.xlu0 %v795, 8
      %v1113 = vpop.permute.xlu0 %1112
      %1114 = vrot.lane.b32.xlu0 %v797, 8
      %v1115 = vpop.permute.xlu0 %1114
      %1116 = vrot.lane.b32.xlu0 %v799, 8
      %v1117 = vpop.permute.xlu0 %1116
      %1118 = vrot.lane.b32.xlu0 %v802, 8
      %v1119 = vpop.permute.xlu0 %1118
      %1120 = vrot.lane.b32.xlu0 %v804, 8
      %v1121 = vpop.permute.xlu0 %1120
      %1122 = vrot.lane.b32.xlu0 %v806, 8
      %v1123 = vpop.permute.xlu0 %1122
      %1124 = vrot.lane.b32.xlu0 %v808, 8
      %v1125 = vpop.permute.xlu0 %1124
      %1126 = vrot.lane.b32.xlu0 %v811, 8
      %v1127 = vpop.permute.xlu0 %1126
      %1128 = vrot.lane.b32.xlu0 %v813, 8
      %v1129 = vpop.permute.xlu0 %1128
      %1130 = vrot.lane.b32.xlu0 %v815, 8
      %v1131 = vpop.permute.xlu0 %1130
      %1132 = vrot.lane.b32.xlu0 %v817, 8
      %v1133 = vpop.permute.xlu0 %1132
      %1134 = vrot.lane.b32.xlu0 %v820, 8
      %v1135 = vpop.permute.xlu0 %1134
      %1136 = vrot.lane.b32.xlu0 %v822, 8
      %v1137 = vpop.permute.xlu0 %1136
      %1138 = vrot.lane.b32.xlu0 %v824, 8
      %v1139 = vpop.permute.xlu0 %1138
      %1140 = vrot.lane.b32.xlu0 %v826, 8
      %v1141 = vpop.permute.xlu0 %1140
      %1142 = vrot.lane.b32.xlu0 %v829, 8
      %v1143 = vpop.permute.xlu0 %1142
      %1144 = vrot.lane.b32.xlu0 %v831, 8
      %v1145 = vpop.permute.xlu0 %1144
      %1146 = vrot.lane.b32.xlu0 %v833, 8
      %v1147 = vpop.permute.xlu0 %1146
      %1148 = vrot.lane.b32.xlu0 %v835, 8
      %v1149 = vpop.permute.xlu0 %1148
      %1150 = vrot.lane.b32.xlu0 %v838, 8
      %v1151 = vpop.permute.xlu0 %1150
      %1152 = vrot.lane.b32.xlu0 %v840, 8
      %v1153 = vpop.permute.xlu0 %1152
      %1154 = vrot.lane.b32.xlu0 %v842, 8
      %v1155 = vpop.permute.xlu0 %1154
      %1156 = vrot.lane.b32.xlu0 %v844, 8
      %v1157 = vpop.permute.xlu0 %1156
      %1158 = vrot.lane.b32.xlu0 %v847, 8
      %v1159 = vpop.permute.xlu0 %1158
      %1160 = vrot.lane.b32.xlu0 %v849, 8
      %v1161 = vpop.permute.xlu0 %1160
      %1162 = vrot.lane.b32.xlu0 %v851, 8
      %v1163 = vpop.permute.xlu0 %1162
      %1164 = vrot.lane.b32.xlu0 %v853, 8
      %v1165 = vpop.permute.xlu0 %1164
      %1166 = vrot.lane.b32.xlu0 %v856, 8
      %v1167 = vpop.permute.xlu0 %1166
      %1168 = vrot.lane.b32.xlu0 %v858, 8
      %v1169 = vpop.permute.xlu0 %1168
      %1170 = vrot.lane.b32.xlu0 %v860, 8
      %v1171 = vpop.permute.xlu0 %1170
      %1172 = vrot.lane.b32.xlu0 %v862, 8
      %v1173 = vpop.permute.xlu0 %1172
      %1174 = vrot.lane.b32.xlu0 %v865, 8
      %v1175 = vpop.permute.xlu0 %1174
      %1176 = vrot.lane.b32.xlu0 %v867, 8
      %v1177 = vpop.permute.xlu0 %1176
      %1178 = vrot.lane.b32.xlu0 %v869, 8
      %v1179 = vpop.permute.xlu0 %1178
      %1180 = vrot.lane.b32.xlu0 %v871, 8
      %v1181 = vpop.permute.xlu0 %1180
      %1182 = vrot.lane.b32.xlu0 %v874, 8
      %v1183 = vpop.permute.xlu0 %1182
      %1184 = vrot.lane.b32.xlu0 %v876, 8
      %v1185 = vpop.permute.xlu0 %1184
      %1186 = vrot.lane.b32.xlu0 %v878, 8
      %v1187 = vpop.permute.xlu0 %1186
      %1188 = vrot.lane.b32.xlu0 %v880, 8
      %v1189 = vpop.permute.xlu0 %1188
      %1190 = vrot.lane.b32.xlu0 %v883, 8
      %v1191 = vpop.permute.xlu0 %1190
      %1192 = vrot.lane.b32.xlu0 %v885, 8
      %v1193 = vpop.permute.xlu0 %1192
      %1194 = vrot.lane.b32.xlu0 %v887, 8
      %v1195 = vpop.permute.xlu0 %1194
      %1196 = vrot.lane.b32.xlu0 %v889, 8
      %v1197 = vpop.permute.xlu0 %1196
      %1198 = vrot.lane.b32.xlu0 %v892, 8
      %v1199 = vpop.permute.xlu0 %1198
      %1200 = vrot.lane.b32.xlu0 %v894, 8
      %v1201 = vpop.permute.xlu0 %1200
      %1202 = vrot.lane.b32.xlu0 %v896, 8
      %v1203 = vpop.permute.xlu0 %1202
      %1204 = vrot.lane.b32.xlu0 %v898, 8
      %v1205 = vpop.permute.xlu0 %1204
      %1206 = vrot.lane.b32.xlu0 %v901, 8
      %v1207 = vpop.permute.xlu0 %1206
      %1208 = vrot.lane.b32.xlu0 %v903, 8
      %v1209 = vpop.permute.xlu0 %1208
      %1210 = vrot.lane.b32.xlu0 %v905, 8
      %v1211 = vpop.permute.xlu0 %1210
      %1212 = vrot.lane.b32.xlu0 %v907, 8
      %v1213 = vpop.permute.xlu0 %1212
      %1214 = vrot.lane.b32.xlu0 %v910, 8
      %v1215 = vpop.permute.xlu0 %1214
      %1216 = vrot.lane.b32.xlu0 %v912, 8
      %v1217 = vpop.permute.xlu0 %1216
      %1218 = vrot.lane.b32.xlu0 %v914, 8
      %v1219 = vpop.permute.xlu0 %1218
      %1220 = vrot.lane.b32.xlu0 %v916, 8
      %v1221 = vpop.permute.xlu0 %1220
      %1222 = vrot.lane.b32.xlu0 %v919, 8
      %v1223 = vpop.permute.xlu0 %1222
      %1224 = vrot.lane.b32.xlu0 %v921, 8
      %v1225 = vpop.permute.xlu0 %1224
      %1226 = vrot.lane.b32.xlu0 %v923, 8
      %v1227 = vpop.permute.xlu0 %1226
      %1228 = vrot.lane.b32.xlu0 %v925, 8
      %v1229 = vpop.permute.xlu0 %1228
      %1230 = vrot.lane.b32.xlu0 %v928, 8
      %v1231 = vpop.permute.xlu0 %1230
      %1232 = vrot.lane.b32.xlu0 %v930, 8
      %v1233 = vpop.permute.xlu0 %1232
      %1234 = vrot.lane.b32.xlu0 %v932, 8
      %v1235 = vpop.permute.xlu0 %1234
      %1236 = vrot.lane.b32.xlu0 %v934, 8
      %v1237 = vpop.permute.xlu0 %1236
      %1238 = vrot.lane.b32.xlu0 %v937, 8
      %v1239 = vpop.permute.xlu0 %1238
      %1240 = vrot.lane.b32.xlu0 %v939, 8
      %v1241 = vpop.permute.xlu0 %1240
      %1242 = vrot.lane.b32.xlu0 %v941, 8
      %v1243 = vpop.permute.xlu0 %1242
      %1244 = vrot.lane.b32.xlu0 %v943, 8
      %v1245 = vpop.permute.xlu0 %1244
      %1246 = vrot.lane.b32.xlu0 %v946, 8
      %v1247 = vpop.permute.xlu0 %1246
      %1248 = vrot.lane.b32.xlu0 %v948, 8
      %v1249 = vpop.permute.xlu0 %1248
      %1250 = vrot.lane.b32.xlu0 %v950, 8
      %v1251 = vpop.permute.xlu0 %1250
      %1252 = vrot.lane.b32.xlu0 %v952, 8
      %v1253 = vpop.permute.xlu0 %1252
      %1254 = vrot.lane.b32.xlu0 %v955, 8
      %v1255 = vpop.permute.xlu0 %1254
      %1256 = vrot.lane.b32.xlu0 %v957, 8
      %v1257 = vpop.permute.xlu0 %1256
      %1258 = vrot.lane.b32.xlu0 %v959, 8
      %v1259 = vpop.permute.xlu0 %1258
      %1260 = vrot.lane.b32.xlu0 %v961, 8
      %v1261 = vpop.permute.xlu0 %1260
      %1262 = vrot.lane.b32.xlu0 %v964, 8
      %v1263 = vpop.permute.xlu0 %1262
      %1264 = vrot.lane.b32.xlu0 %v966, 8
      %v1265 = vpop.permute.xlu0 %1264
      %1266 = vrot.lane.b32.xlu0 %v968, 8
      %v1267 = vpop.permute.xlu0 %1266
      %1268 = vrot.lane.b32.xlu0 %v970, 8
      %v1269 = vpop.permute.xlu0 %1268
      %1270 = vrot.lane.b32.xlu0 %v973, 8
      %v1271 = vpop.permute.xlu0 %1270
      %1272 = vrot.lane.b32.xlu0 %v975, 8
      %v1273 = vpop.permute.xlu0 %1272
      %1274 = vrot.lane.b32.xlu0 %v977, 8
      %v1275 = vpop.permute.xlu0 %1274
      %1276 = vrot.lane.b32.xlu0 %v979, 8
      %v1277 = vpop.permute.xlu0 %1276
      %1278 = vrot.lane.b32.xlu0 %v982, 8
      %v1279 = vpop.permute.xlu0 %1278
      %1280 = vrot.lane.b32.xlu0 %v984, 8
      %v1281 = vpop.permute.xlu0 %1280
      %1282 = vrot.lane.b32.xlu0 %v986, 8
      %v1283 = vpop.permute.xlu0 %1282
      %1284 = vrot.lane.b32.xlu0 %v988, 8
      %v1285 = vpop.permute.xlu0 %1284
      %1286 = vrot.lane.b32.xlu0 %v991, 8
      %v1287 = vpop.permute.xlu0 %1286
      %1288 = vrot.lane.b32.xlu0 %v993, 8
      %v1289 = vpop.permute.xlu0 %1288
      %1290 = vrot.lane.b32.xlu0 %v995, 8
      %v1291 = vpop.permute.xlu0 %1290
      %1292 = vrot.lane.b32.xlu0 %v997, 8
      %v1293 = vpop.permute.xlu0 %1292
      %1294 = vrot.lane.b32.xlu0 %v1000, 8
      %v1295 = vpop.permute.xlu0 %1294
      %1296 = vrot.lane.b32.xlu0 %v1002, 8
      %v1297 = vpop.permute.xlu0 %1296
      %1298 = vrot.lane.b32.xlu0 %v1004, 8
      %v1299 = vpop.permute.xlu0 %1298
      %1300 = vrot.lane.b32.xlu0 %v1006, 8
      %v1301 = vpop.permute.xlu0 %1300
      %1302 = vrot.lane.b32.xlu0 %v1009, 8
      %v1303 = vpop.permute.xlu0 %1302
      %1304 = vrot.lane.b32.xlu0 %v1011, 8
      %v1305 = vpop.permute.xlu0 %1304
      %1306 = vrot.lane.b32.xlu0 %v1013, 8
      %v1307 = vpop.permute.xlu0 %1306
      %1308 = vrot.lane.b32.xlu0 %v1015, 8
      %v1309 = vpop.permute.xlu0 %1308
      %1310 = vrot.lane.b32.xlu0 %v1018, 8
      %v1311 = vpop.permute.xlu0 %1310
      %1312 = vrot.lane.b32.xlu0 %v1020, 8
      %v1313 = vpop.permute.xlu0 %1312
      %1314 = vrot.lane.b32.xlu0 %v1022, 8
      %v1315 = vpop.permute.xlu0 %1314
      %1316 = vrot.lane.b32.xlu0 %v1024, 8
      %v1317 = vpop.permute.xlu0 %1316
      %1318 = vrot.lane.b32.xlu0 %v1027, 8
      %v1319 = vpop.permute.xlu0 %1318
      %1320 = vrot.lane.b32.xlu0 %v1029, 8
      %v1321 = vpop.permute.xlu0 %1320
      %1322 = vrot.lane.b32.xlu0 %v1031, 8
      %v1323 = vpop.permute.xlu0 %1322
      %1324 = vrot.lane.b32.xlu0 %v1033, 8
      %v1325 = vpop.permute.xlu0 %1324
      %1326 = vrot.lane.b32.xlu0 %v1036, 8
      %v1327 = vpop.permute.xlu0 %1326
      %1328 = vrot.lane.b32.xlu0 %v1038, 8
      %v1329 = vpop.permute.xlu0 %1328
      %1330 = vrot.lane.b32.xlu0 %v1040, 8
      %v1331 = vpop.permute.xlu0 %1330
      %1332 = vrot.lane.b32.xlu0 %v1042, 8
      %v1333 = vpop.permute.xlu0 %1332
      %1334 = vrot.lane.b32.xlu0 %v1045, 8
      %v1335 = vpop.permute.xlu0 %1334
      %1336 = vrot.lane.b32.xlu0 %v1047, 8
      %v1337 = vpop.permute.xlu0 %1336
      %1338 = vrot.lane.b32.xlu0 %v1049, 8
      %v1339 = vpop.permute.xlu0 %1338
      %1340 = vrot.lane.b32.xlu0 %v1051, 8
      %v1341 = vpop.permute.xlu0 %1340
      %1342 = vrot.lane.b32.xlu0 %v1054, 8
      %v1343 = vpop.permute.xlu0 %1342
      %1344 = vrot.lane.b32.xlu0 %v1056, 8
      %v1345 = vpop.permute.xlu0 %1344
      %1346 = vrot.lane.b32.xlu0 %v1058, 8
      %v1347 = vpop.permute.xlu0 %1346
      %1348 = vrot.lane.b32.xlu0 %v1060, 8
      %v1349 = vpop.permute.xlu0 %1348
      %1350 = vrot.lane.b32.xlu0 %v1063, 8
      %v1351 = vpop.permute.xlu0 %1350
      %1352 = vrot.lane.b32.xlu0 %v1065, 8
      %v1353 = vpop.permute.xlu0 %1352
      %1354 = vrot.lane.b32.xlu0 %v1067, 8
      %v1355 = vpop.permute.xlu0 %1354
      %1356 = vrot.lane.b32.xlu0 %v1069, 8
      %v1357 = vpop.permute.xlu0 %1356
      %vm1502 = vcmask 1045504
      %v1503 = vrot.slane %v385, 2
      %v1504 = vrot.slane %v386, 2
      %v1505 = vsel %vm1502, %v1503, %v1504
      %v1506 = vrot.slane %v387, 2
      %v1507 = vsel %vm1502, %v1504, %v1506
      %v1508 = vrot.slane %v388, 2
      %v1509 = vsel %vm1502, %v1506, %v1508
      %v1510 = vrot.slane %v389, 2
      %v1511 = vsel %vm1502, %v1508, %v1510
      %v1512 = vrot.slane %v390, 2
      %v1513 = vrot.slane %v391, 2
      %v1514 = vsel %vm1502, %v1512, %v1513
      %v1515 = vrot.slane %v392, 2
      %v1516 = vsel %vm1502, %v1513, %v1515
      %v1517 = vrot.slane %v393, 2
      %v1518 = vsel %vm1502, %v1515, %v1517
      %v1519 = vrot.slane %v394, 2
      %v1520 = vsel %vm1502, %v1517, %v1519
      %v1521 = vrot.slane %v395, 2
      %v1522 = vrot.slane %v396, 2
      %v1523 = vsel %vm1502, %v1521, %v1522
      %v1524 = vrot.slane %v397, 2
      %v1525 = vsel %vm1502, %v1522, %v1524
      %v1526 = vrot.slane %v398, 2
      %v1527 = vsel %vm1502, %v1524, %v1526
      %v1528 = vrot.slane %v399, 2
      %v1529 = vsel %vm1502, %v1526, %v1528
      %v1530 = vrot.slane %v400, 2
      %v1531 = vrot.slane %v401, 2
      %v1532 = vsel %vm1502, %v1530, %v1531
      %v1533 = vrot.slane %v402, 2
      %v1534 = vsel %vm1502, %v1531, %v1533
      %v1535 = vrot.slane %v403, 2
      %v1536 = vsel %vm1502, %v1533, %v1535
      %v1537 = vrot.slane %v404, 2
      %v1538 = vsel %vm1502, %v1535, %v1537
      %v1539 = vrot.slane %v405, 2
      %v1540 = vrot.slane %v406, 2
      %v1541 = vsel %vm1502, %v1539, %v1540
      %v1542 = vrot.slane %v407, 2
      %v1543 = vsel %vm1502, %v1540, %v1542
      %v1544 = vrot.slane %v408, 2
      %v1545 = vsel %vm1502, %v1542, %v1544
      %v1546 = vrot.slane %v409, 2
      %v1547 = vsel %vm1502, %v1544, %v1546
      %v1548 = vrot.slane %v410, 2
      %v1549 = vrot.slane %v411, 2
      %v1550 = vsel %vm1502, %v1548, %v1549
      %v1551 = vrot.slane %v412, 2
      %v1552 = vsel %vm1502, %v1549, %v1551
      %v1553 = vrot.slane %v413, 2
      %v1554 = vsel %vm1502, %v1551, %v1553
      %v1555 = vrot.slane %v414, 2
      %v1556 = vsel %vm1502, %v1553, %v1555
      %v1557 = vrot.slane %v415, 2
      %v1558 = vrot.slane %v416, 2
      %v1559 = vsel %vm1502, %v1557, %v1558
      %v1560 = vrot.slane %v417, 2
      %v1561 = vsel %vm1502, %v1558, %v1560
      %v1562 = vrot.slane %v418, 2
      %v1563 = vsel %vm1502, %v1560, %v1562
      %v1564 = vrot.slane %v419, 2
      %v1565 = vsel %vm1502, %v1562, %v1564
      %v1566 = vrot.slane %v420, 2
      %v1567 = vrot.slane %v421, 2
      %v1568 = vsel %vm1502, %v1566, %v1567
      %v1569 = vrot.slane %v422, 2
      %v1570 = vsel %vm1502, %v1567, %v1569
      %v1571 = vrot.slane %v423, 2
      %v1572 = vsel %vm1502, %v1569, %v1571
      %v1573 = vrot.slane %v424, 2
      %v1574 = vsel %vm1502, %v1571, %v1573
      %v1575 = vrot.slane %v425, 2
      %v1576 = vrot.slane %v426, 2
      %v1577 = vsel %vm1502, %v1575, %v1576
      %v1578 = vrot.slane %v427, 2
      %v1579 = vsel %vm1502, %v1576, %v1578
      %v1580 = vrot.slane %v428, 2
      %v1581 = vsel %vm1502, %v1578, %v1580
      %v1582 = vrot.slane %v429, 2
      %v1583 = vsel %vm1502, %v1580, %v1582
      %v1584 = vrot.slane %v430, 2
      %v1585 = vrot.slane %v431, 2
      %v1586 = vsel %vm1502, %v1584, %v1585
      %v1587 = vrot.slane %v432, 2
      %v1588 = vsel %vm1502, %v1585, %v1587
      %v1589 = vrot.slane %v433, 2
      %v1590 = vsel %vm1502, %v1587, %v1589
      %v1591 = vrot.slane %v434, 2
      %v1592 = vsel %vm1502, %v1589, %v1591
      %v1593 = vrot.slane %v435, 2
      %v1594 = vrot.slane %v436, 2
      %v1595 = vsel %vm1502, %v1593, %v1594
      %v1596 = vrot.slane %v437, 2
      %v1597 = vsel %vm1502, %v1594, %v1596
      %v1598 = vrot.slane %v438, 2
      %v1599 = vsel %vm1502, %v1596, %v1598
      %v1600 = vrot.slane %v439, 2
      %v1601 = vsel %vm1502, %v1598, %v1600
      %v1602 = vrot.slane %v440, 2
      %v1603 = vrot.slane %v441, 2
      %v1604 = vsel %vm1502, %v1602, %v1603
      %v1605 = vrot.slane %v442, 2
      %v1606 = vsel %vm1502, %v1603, %v1605
      %v1607 = vrot.slane %v443, 2
      %v1608 = vsel %vm1502, %v1605, %v1607
      %v1609 = vrot.slane %v444, 2
      %v1610 = vsel %vm1502, %v1607, %v1609
      %v1611 = vrot.slane %v445, 2
      %v1612 = vrot.slane %v446, 2
      %v1613 = vsel %vm1502, %v1611, %v1612
      %v1614 = vrot.slane %v447, 2
      %v1615 = vsel %vm1502, %v1612, %v1614
      %v1616 = vrot.slane %v448, 2
      %v1617 = vsel %vm1502, %v1614, %v1616
      %v1618 = vrot.slane %v449, 2
      %v1619 = vsel %vm1502, %v1616, %v1618
      %v1620 = vrot.slane %v450, 2
      %v1621 = vrot.slane %v451, 2
      %v1622 = vsel %vm1502, %v1620, %v1621
      %v1623 = vrot.slane %v452, 2
      %v1624 = vsel %vm1502, %v1621, %v1623
      %v1625 = vrot.slane %v453, 2
      %v1626 = vsel %vm1502, %v1623, %v1625
      %v1627 = vrot.slane %v454, 2
      %v1628 = vsel %vm1502, %v1625, %v1627
      %v1629 = vrot.slane %v455, 2
      %v1630 = vrot.slane %v456, 2
      %v1631 = vsel %vm1502, %v1629, %v1630
      %v1632 = vrot.slane %v457, 2
      %v1633 = vsel %vm1502, %v1630, %v1632
      %v1634 = vrot.slane %v458, 2
      %v1635 = vsel %vm1502, %v1632, %v1634
      %v1636 = vrot.slane %v459, 2
      %v1637 = vsel %vm1502, %v1634, %v1636
      %v1638 = vrot.slane %v460, 2
      %v1639 = vrot.slane %v461, 2
      %v1640 = vsel %vm1502, %v1638, %v1639
      %v1641 = vrot.slane %v462, 2
      %v1642 = vsel %vm1502, %v1639, %v1641
      %v1643 = vrot.slane %v463, 2
      %v1644 = vsel %vm1502, %v1641, %v1643
      %v1645 = vrot.slane %v464, 2
      %v1646 = vsel %vm1502, %v1643, %v1645
      %v1647 = vrot.slane %v465, 2
      %v1648 = vrot.slane %v466, 2
      %v1649 = vsel %vm1502, %v1647, %v1648
      %v1650 = vrot.slane %v467, 2
      %v1651 = vsel %vm1502, %v1648, %v1650
      %v1652 = vrot.slane %v468, 2
      %v1653 = vsel %vm1502, %v1650, %v1652
      %v1654 = vrot.slane %v469, 2
      %v1655 = vsel %vm1502, %v1652, %v1654
      %v1656 = vrot.slane %v470, 2
      %v1657 = vrot.slane %v471, 2
      %v1658 = vsel %vm1502, %v1656, %v1657
      %v1659 = vrot.slane %v472, 2
      %v1660 = vsel %vm1502, %v1657, %v1659
      %v1661 = vrot.slane %v473, 2
      %v1662 = vsel %vm1502, %v1659, %v1661
      %v1663 = vrot.slane %v474, 2
      %v1664 = vsel %vm1502, %v1661, %v1663
      %v1665 = vrot.slane %v475, 2
      %v1666 = vrot.slane %v476, 2
      %v1667 = vsel %vm1502, %v1665, %v1666
      %v1668 = vrot.slane %v477, 2
      %v1669 = vsel %vm1502, %v1666, %v1668
      %v1670 = vrot.slane %v478, 2
      %v1671 = vsel %vm1502, %v1668, %v1670
      %v1672 = vrot.slane %v479, 2
      %v1673 = vsel %vm1502, %v1670, %v1672
      %v1674 = vrot.slane %v480, 2
      %v1675 = vrot.slane %v481, 2
      %v1676 = vsel %vm1502, %v1674, %v1675
      %v1677 = vrot.slane %v482, 2
      %v1678 = vsel %vm1502, %v1675, %v1677
      %v1679 = vrot.slane %v483, 2
      %v1680 = vsel %vm1502, %v1677, %v1679
      %v1681 = vrot.slane %v484, 2
      %v1682 = vsel %vm1502, %v1679, %v1681
      %v1683 = vrot.slane %v485, 2
      %v1684 = vrot.slane %v486, 2
      %v1685 = vsel %vm1502, %v1683, %v1684
      %v1686 = vrot.slane %v487, 2
      %v1687 = vsel %vm1502, %v1684, %v1686
      %v1688 = vrot.slane %v488, 2
      %v1689 = vsel %vm1502, %v1686, %v1688
      %v1690 = vrot.slane %v489, 2
      %v1691 = vsel %vm1502, %v1688, %v1690
      %v1692 = vrot.slane %v490, 2
      %v1693 = vrot.slane %v491, 2
      %v1694 = vsel %vm1502, %v1692, %v1693
      %v1695 = vrot.slane %v492, 2
      %v1696 = vsel %vm1502, %v1693, %v1695
      %v1697 = vrot.slane %v493, 2
      %v1698 = vsel %vm1502, %v1695, %v1697
      %v1699 = vrot.slane %v494, 2
      %v1700 = vsel %vm1502, %v1697, %v1699
      %v1701 = vrot.slane %v495, 2
      %v1702 = vrot.slane %v496, 2
      %v1703 = vsel %vm1502, %v1701, %v1702
      %v1704 = vrot.slane %v497, 2
      %v1705 = vsel %vm1502, %v1702, %v1704
      %v1706 = vrot.slane %v498, 2
      %v1707 = vsel %vm1502, %v1704, %v1706
      %v1708 = vrot.slane %v499, 2
      %v1709 = vsel %vm1502, %v1706, %v1708
      %v1710 = vrot.slane %v500, 2
      %v1711 = vrot.slane %v501, 2
      %v1712 = vsel %vm1502, %v1710, %v1711
      %v1713 = vrot.slane %v502, 2
      %v1714 = vsel %vm1502, %v1711, %v1713
      %v1715 = vrot.slane %v503, 2
      %v1716 = vsel %vm1502, %v1713, %v1715
      %v1717 = vrot.slane %v504, 2
      %v1718 = vsel %vm1502, %v1715, %v1717
      %v1719 = vrot.slane %v505, 2
      %v1720 = vrot.slane %v506, 2
      %v1721 = vsel %vm1502, %v1719, %v1720
      %v1722 = vrot.slane %v507, 2
      %v1723 = vsel %vm1502, %v1720, %v1722
      %v1724 = vrot.slane %v508, 2
      %v1725 = vsel %vm1502, %v1722, %v1724
      %v1726 = vrot.slane %v509, 2
      %v1727 = vsel %vm1502, %v1724, %v1726
      %v1728 = vrot.slane %v510, 2
      %v1729 = vrot.slane %v511, 2
      %v1730 = vsel %vm1502, %v1728, %v1729
      %v1731 = vrot.slane %v512, 2
      %v1732 = vsel %vm1502, %v1729, %v1731
      %v1733 = vrot.slane %v513, 2
      %v1734 = vsel %vm1502, %v1731, %v1733
      %v1735 = vrot.slane %v514, 2
      %v1736 = vsel %vm1502, %v1733, %v1735
      %v1737 = vrot.slane %v515, 2
      %v1738 = vrot.slane %v516, 2
      %v1739 = vsel %vm1502, %v1737, %v1738
      %v1740 = vrot.slane %v517, 2
      %v1741 = vsel %vm1502, %v1738, %v1740
      %v1742 = vrot.slane %v518, 2
      %v1743 = vsel %vm1502, %v1740, %v1742
      %v1744 = vrot.slane %v519, 2
      %v1745 = vsel %vm1502, %v1742, %v1744
      %v1746 = vrot.slane %v520, 2
      %v1747 = vrot.slane %v521, 2
      %v1748 = vsel %vm1502, %v1746, %v1747
      %v1749 = vrot.slane %v522, 2
      %v1750 = vsel %vm1502, %v1747, %v1749
      %v1751 = vrot.slane %v523, 2
      %v1752 = vsel %vm1502, %v1749, %v1751
      %v1753 = vrot.slane %v524, 2
      %v1754 = vsel %vm1502, %v1751, %v1753
      %v1755 = vrot.slane %v525, 2
      %v1756 = vrot.slane %v526, 2
      %v1757 = vsel %vm1502, %v1755, %v1756
      %v1758 = vrot.slane %v527, 2
      %v1759 = vsel %vm1502, %v1756, %v1758
      %v1760 = vrot.slane %v528, 2
      %v1761 = vsel %vm1502, %v1758, %v1760
      %v1762 = vrot.slane %v529, 2
      %v1763 = vsel %vm1502, %v1760, %v1762
      %v1764 = vrot.slane %v530, 2
      %v1765 = vrot.slane %v531, 2
      %v1766 = vsel %vm1502, %v1764, %v1765
      %v1767 = vrot.slane %v532, 2
      %v1768 = vsel %vm1502, %v1765, %v1767
      %v1769 = vrot.slane %v533, 2
      %v1770 = vsel %vm1502, %v1767, %v1769
      %v1771 = vrot.slane %v534, 2
      %v1772 = vsel %vm1502, %v1769, %v1771
      %v1773 = vrot.slane %v535, 2
      %v1774 = vrot.slane %v536, 2
      %v1775 = vsel %vm1502, %v1773, %v1774
      %v1776 = vrot.slane %v537, 2
      %v1777 = vsel %vm1502, %v1774, %v1776
      %v1778 = vrot.slane %v538, 2
      %v1779 = vsel %vm1502, %v1776, %v1778
      %v1780 = vrot.slane %v539, 2
      %v1781 = vsel %vm1502, %v1778, %v1780
      %v1782 = vrot.slane %v540, 2
      %v1783 = vrot.slane %v541, 2
      %v1784 = vsel %vm1502, %v1782, %v1783
      %v1785 = vrot.slane %v542, 2
      %v1786 = vsel %vm1502, %v1783, %v1785
      %v1787 = vrot.slane %v543, 2
      %v1788 = vsel %vm1502, %v1785, %v1787
      %v1789 = vrot.slane %v544, 2
      %v1790 = vsel %vm1502, %v1787, %v1789
      %v1791 = vrot.slane %v545, 2
      %v1792 = vrot.slane %v546, 2
      %v1793 = vsel %vm1502, %v1791, %v1792
      %v1794 = vrot.slane %v547, 2
      %v1795 = vsel %vm1502, %v1792, %v1794
      %v1796 = vrot.slane %v548, 2
      %v1797 = vsel %vm1502, %v1794, %v1796
      %v1798 = vrot.slane %v549, 2
      %v1799 = vsel %vm1502, %v1796, %v1798
      %v1800 = vrot.slane %v550, 2
      %v1801 = vrot.slane %v551, 2
      %v1802 = vsel %vm1502, %v1800, %v1801
      %v1803 = vrot.slane %v552, 2
      %v1804 = vsel %vm1502, %v1801, %v1803
      %v1805 = vrot.slane %v553, 2
      %v1806 = vsel %vm1502, %v1803, %v1805
      %v1807 = vrot.slane %v554, 2
      %v1808 = vsel %vm1502, %v1805, %v1807
      %v1809 = vrot.slane %v555, 2
      %v1810 = vrot.slane %v556, 2
      %v1811 = vsel %vm1502, %v1809, %v1810
      %v1812 = vrot.slane %v557, 2
      %v1813 = vsel %vm1502, %v1810, %v1812
      %v1814 = vrot.slane %v558, 2
      %v1815 = vsel %vm1502, %v1812, %v1814
      %v1816 = vrot.slane %v559, 2
      %v1817 = vsel %vm1502, %v1814, %v1816
      %v1818 = vrot.slane %v560, 2
      %v1819 = vrot.slane %v561, 2
      %v1820 = vsel %vm1502, %v1818, %v1819
      %v1821 = vrot.slane %v562, 2
      %v1822 = vsel %vm1502, %v1819, %v1821
      %v1823 = vrot.slane %v563, 2
      %v1824 = vsel %vm1502, %v1821, %v1823
      %v1825 = vrot.slane %v564, 2
      %v1826 = vsel %vm1502, %v1823, %v1825
      %1827 = vrot.lane.b32.xlu0 %v1505, 16
      %v1828 = vpop.permute.xlu0 %1827
      %1829 = vrot.lane.b32.xlu0 %v1507, 16
      %v1830 = vpop.permute.xlu0 %1829
      %1831 = vrot.lane.b32.xlu0 %v1509, 16
      %v1832 = vpop.permute.xlu0 %1831
      %1833 = vrot.lane.b32.xlu0 %v1511, 16
      %v1834 = vpop.permute.xlu0 %1833
      %1835 = vrot.lane.b32.xlu0 %v1514, 16
      %v1836 = vpop.permute.xlu0 %1835
      %1837 = vrot.lane.b32.xlu0 %v1516, 16
      %v1838 = vpop.permute.xlu0 %1837
      %1839 = vrot.lane.b32.xlu0 %v1518, 16
      %v1840 = vpop.permute.xlu0 %1839
      %1841 = vrot.lane.b32.xlu0 %v1520, 16
      %v1842 = vpop.permute.xlu0 %1841
      %1843 = vrot.lane.b32.xlu0 %v1523, 16
      %v1844 = vpop.permute.xlu0 %1843
      %1845 = vrot.lane.b32.xlu0 %v1525, 16
      %v1846 = vpop.permute.xlu0 %1845
      %1847 = vrot.lane.b32.xlu0 %v1527, 16
      %v1848 = vpop.permute.xlu0 %1847
      %1849 = vrot.lane.b32.xlu0 %v1529, 16
      %v1850 = vpop.permute.xlu0 %1849
      %1851 = vrot.lane.b32.xlu0 %v1532, 16
      %v1852 = vpop.permute.xlu0 %1851
      %1853 = vrot.lane.b32.xlu0 %v1534, 16
      %v1854 = vpop.permute.xlu0 %1853
      %1855 = vrot.lane.b32.xlu0 %v1536, 16
      %v1856 = vpop.permute.xlu0 %1855
      %1857 = vrot.lane.b32.xlu0 %v1538, 16
      %v1858 = vpop.permute.xlu0 %1857
      %1859 = vrot.lane.b32.xlu0 %v1541, 16
      %v1860 = vpop.permute.xlu0 %1859
      %1861 = vrot.lane.b32.xlu0 %v1543, 16
      %v1862 = vpop.permute.xlu0 %1861
      %1863 = vrot.lane.b32.xlu0 %v1545, 16
      %v1864 = vpop.permute.xlu0 %1863
      %1865 = vrot.lane.b32.xlu0 %v1547, 16
      %v1866 = vpop.permute.xlu0 %1865
      %1867 = vrot.lane.b32.xlu0 %v1550, 16
      %v1868 = vpop.permute.xlu0 %1867
      %1869 = vrot.lane.b32.xlu0 %v1552, 16
      %v1870 = vpop.permute.xlu0 %1869
      %1871 = vrot.lane.b32.xlu0 %v1554, 16
      %v1872 = vpop.permute.xlu0 %1871
      %1873 = vrot.lane.b32.xlu0 %v1556, 16
      %v1874 = vpop.permute.xlu0 %1873
      %1875 = vrot.lane.b32.xlu0 %v1559, 16
      %v1876 = vpop.permute.xlu0 %1875
      %1877 = vrot.lane.b32.xlu0 %v1561, 16
      %v1878 = vpop.permute.xlu0 %1877
      %1879 = vrot.lane.b32.xlu0 %v1563, 16
      %v1880 = vpop.permute.xlu0 %1879
      %1881 = vrot.lane.b32.xlu0 %v1565, 16
      %v1882 = vpop.permute.xlu0 %1881
      %1883 = vrot.lane.b32.xlu0 %v1568, 16
      %v1884 = vpop.permute.xlu0 %1883
      %1885 = vrot.lane.b32.xlu0 %v1570, 16
      %v1886 = vpop.permute.xlu0 %1885
      %1887 = vrot.lane.b32.xlu0 %v1572, 16
      %v1888 = vpop.permute.xlu0 %1887
      %1889 = vrot.lane.b32.xlu0 %v1574, 16
      %v1890 = vpop.permute.xlu0 %1889
      %1891 = vrot.lane.b32.xlu0 %v1577, 16
      %v1892 = vpop.permute.xlu0 %1891
      %1893 = vrot.lane.b32.xlu0 %v1579, 16
      %v1894 = vpop.permute.xlu0 %1893
      %1895 = vrot.lane.b32.xlu0 %v1581, 16
      %v1896 = vpop.permute.xlu0 %1895
      %1897 = vrot.lane.b32.xlu0 %v1583, 16
      %v1898 = vpop.permute.xlu0 %1897
      %1899 = vrot.lane.b32.xlu0 %v1586, 16
      %v1900 = vpop.permute.xlu0 %1899
      %1901 = vrot.lane.b32.xlu0 %v1588, 16
      %v1902 = vpop.permute.xlu0 %1901
      %1903 = vrot.lane.b32.xlu0 %v1590, 16
      %v1904 = vpop.permute.xlu0 %1903
      %1905 = vrot.lane.b32.xlu0 %v1592, 16
      %v1906 = vpop.permute.xlu0 %1905
      %1907 = vrot.lane.b32.xlu0 %v1595, 16
      %v1908 = vpop.permute.xlu0 %1907
      %1909 = vrot.lane.b32.xlu0 %v1597, 16
      %v1910 = vpop.permute.xlu0 %1909
      %1911 = vrot.lane.b32.xlu0 %v1599, 16
      %v1912 = vpop.permute.xlu0 %1911
      %1913 = vrot.lane.b32.xlu0 %v1601, 16
      %v1914 = vpop.permute.xlu0 %1913
      %1915 = vrot.lane.b32.xlu0 %v1604, 16
      %v1916 = vpop.permute.xlu0 %1915
      %1917 = vrot.lane.b32.xlu0 %v1606, 16
      %v1918 = vpop.permute.xlu0 %1917
      %1919 = vrot.lane.b32.xlu0 %v1608, 16
      %v1920 = vpop.permute.xlu0 %1919
      %1921 = vrot.lane.b32.xlu0 %v1610, 16
      %v1922 = vpop.permute.xlu0 %1921
      %1923 = vrot.lane.b32.xlu0 %v1613, 16
      %v1924 = vpop.permute.xlu0 %1923
      %1925 = vrot.lane.b32.xlu0 %v1615, 16
      %v1926 = vpop.permute.xlu0 %1925
      %1927 = vrot.lane.b32.xlu0 %v1617, 16
      %v1928 = vpop.permute.xlu0 %1927
      %1929 = vrot.lane.b32.xlu0 %v1619, 16
      %v1930 = vpop.permute.xlu0 %1929
      %1931 = vrot.lane.b32.xlu0 %v1622, 16
      %v1932 = vpop.permute.xlu0 %1931
      %1933 = vrot.lane.b32.xlu0 %v1624, 16
      %v1934 = vpop.permute.xlu0 %1933
      %1935 = vrot.lane.b32.xlu0 %v1626, 16
      %v1936 = vpop.permute.xlu0 %1935
      %1937 = vrot.lane.b32.xlu0 %v1628, 16
      %v1938 = vpop.permute.xlu0 %1937
      %1939 = vrot.lane.b32.xlu0 %v1631, 16
      %v1940 = vpop.permute.xlu0 %1939
      %1941 = vrot.lane.b32.xlu0 %v1633, 16
      %v1942 = vpop.permute.xlu0 %1941
      %1943 = vrot.lane.b32.xlu0 %v1635, 16
      %v1944 = vpop.permute.xlu0 %1943
      %1945 = vrot.lane.b32.xlu0 %v1637, 16
      %v1946 = vpop.permute.xlu0 %1945
      %1947 = vrot.lane.b32.xlu0 %v1640, 16
      %v1948 = vpop.permute.xlu0 %1947
      %1949 = vrot.lane.b32.xlu0 %v1642, 16
      %v1950 = vpop.permute.xlu0 %1949
      %1951 = vrot.lane.b32.xlu0 %v1644, 16
      %v1952 = vpop.permute.xlu0 %1951
      %1953 = vrot.lane.b32.xlu0 %v1646, 16
      %v1954 = vpop.permute.xlu0 %1953
      %1955 = vrot.lane.b32.xlu0 %v1649, 16
      %v1956 = vpop.permute.xlu0 %1955
      %1957 = vrot.lane.b32.xlu0 %v1651, 16
      %v1958 = vpop.permute.xlu0 %1957
      %1959 = vrot.lane.b32.xlu0 %v1653, 16
      %v1960 = vpop.permute.xlu0 %1959
      %1961 = vrot.lane.b32.xlu0 %v1655, 16
      %v1962 = vpop.permute.xlu0 %1961
      %1963 = vrot.lane.b32.xlu0 %v1658, 16
      %v1964 = vpop.permute.xlu0 %1963
      %1965 = vrot.lane.b32.xlu0 %v1660, 16
      %v1966 = vpop.permute.xlu0 %1965
      %1967 = vrot.lane.b32.xlu0 %v1662, 16
      %v1968 = vpop.permute.xlu0 %1967
      %1969 = vrot.lane.b32.xlu0 %v1664, 16
      %v1970 = vpop.permute.xlu0 %1969
      %1971 = vrot.lane.b32.xlu0 %v1667, 16
      %v1972 = vpop.permute.xlu0 %1971
      %1973 = vrot.lane.b32.xlu0 %v1669, 16
      %v1974 = vpop.permute.xlu0 %1973
      %1975 = vrot.lane.b32.xlu0 %v1671, 16
      %v1976 = vpop.permute.xlu0 %1975
      %1977 = vrot.lane.b32.xlu0 %v1673, 16
      %v1978 = vpop.permute.xlu0 %1977
      %1979 = vrot.lane.b32.xlu0 %v1676, 16
      %v1980 = vpop.permute.xlu0 %1979
      %1981 = vrot.lane.b32.xlu0 %v1678, 16
      %v1982 = vpop.permute.xlu0 %1981
      %1983 = vrot.lane.b32.xlu0 %v1680, 16
      %v1984 = vpop.permute.xlu0 %1983
      %1985 = vrot.lane.b32.xlu0 %v1682, 16
      %v1986 = vpop.permute.xlu0 %1985
      %1987 = vrot.lane.b32.xlu0 %v1685, 16
      %v1988 = vpop.permute.xlu0 %1987
      %1989 = vrot.lane.b32.xlu0 %v1687, 16
      %v1990 = vpop.permute.xlu0 %1989
      %1991 = vrot.lane.b32.xlu0 %v1689, 16
      %v1992 = vpop.permute.xlu0 %1991
      %1993 = vrot.lane.b32.xlu0 %v1691, 16
      %v1994 = vpop.permute.xlu0 %1993
      %1995 = vrot.lane.b32.xlu0 %v1694, 16
      %v1996 = vpop.permute.xlu0 %1995
      %1997 = vrot.lane.b32.xlu0 %v1696, 16
      %v1998 = vpop.permute.xlu0 %1997
      %1999 = vrot.lane.b32.xlu0 %v1698, 16
      %v2000 = vpop.permute.xlu0 %1999
      %2001 = vrot.lane.b32.xlu0 %v1700, 16
      %v2002 = vpop.permute.xlu0 %2001
      %2003 = vrot.lane.b32.xlu0 %v1703, 16
      %v2004 = vpop.permute.xlu0 %2003
      %2005 = vrot.lane.b32.xlu0 %v1705, 16
      %v2006 = vpop.permute.xlu0 %2005
      %2007 = vrot.lane.b32.xlu0 %v1707, 16
      %v2008 = vpop.permute.xlu0 %2007
      %2009 = vrot.lane.b32.xlu0 %v1709, 16
      %v2010 = vpop.permute.xlu0 %2009
      %2011 = vrot.lane.b32.xlu0 %v1712, 16
      %v2012 = vpop.permute.xlu0 %2011
      %2013 = vrot.lane.b32.xlu0 %v1714, 16
      %v2014 = vpop.permute.xlu0 %2013
      %2015 = vrot.lane.b32.xlu0 %v1716, 16
      %v2016 = vpop.permute.xlu0 %2015
      %2017 = vrot.lane.b32.xlu0 %v1718, 16
      %v2018 = vpop.permute.xlu0 %2017
      %2019 = vrot.lane.b32.xlu0 %v1721, 16
      %v2020 = vpop.permute.xlu0 %2019
      %2021 = vrot.lane.b32.xlu0 %v1723, 16
      %v2022 = vpop.permute.xlu0 %2021
      %2023 = vrot.lane.b32.xlu0 %v1725, 16
      %v2024 = vpop.permute.xlu0 %2023
      %2025 = vrot.lane.b32.xlu0 %v1727, 16
      %v2026 = vpop.permute.xlu0 %2025
      %2027 = vrot.lane.b32.xlu0 %v1730, 16
      %v2028 = vpop.permute.xlu0 %2027
      %2029 = vrot.lane.b32.xlu0 %v1732, 16
      %v2030 = vpop.permute.xlu0 %2029
      %2031 = vrot.lane.b32.xlu0 %v1734, 16
      %v2032 = vpop.permute.xlu0 %2031
      %2033 = vrot.lane.b32.xlu0 %v1736, 16
      %v2034 = vpop.permute.xlu0 %2033
      %2035 = vrot.lane.b32.xlu0 %v1739, 16
      %v2036 = vpop.permute.xlu0 %2035
      %2037 = vrot.lane.b32.xlu0 %v1741, 16
      %v2038 = vpop.permute.xlu0 %2037
      %2039 = vrot.lane.b32.xlu0 %v1743, 16
      %v2040 = vpop.permute.xlu0 %2039
      %2041 = vrot.lane.b32.xlu0 %v1745, 16
      %v2042 = vpop.permute.xlu0 %2041
      %2043 = vrot.lane.b32.xlu0 %v1748, 16
      %v2044 = vpop.permute.xlu0 %2043
      %2045 = vrot.lane.b32.xlu0 %v1750, 16
      %v2046 = vpop.permute.xlu0 %2045
      %2047 = vrot.lane.b32.xlu0 %v1752, 16
      %v2048 = vpop.permute.xlu0 %2047
      %2049 = vrot.lane.b32.xlu0 %v1754, 16
      %v2050 = vpop.permute.xlu0 %2049
      %2051 = vrot.lane.b32.xlu0 %v1757, 16
      %v2052 = vpop.permute.xlu0 %2051
      %2053 = vrot.lane.b32.xlu0 %v1759, 16
      %v2054 = vpop.permute.xlu0 %2053
      %2055 = vrot.lane.b32.xlu0 %v1761, 16
      %v2056 = vpop.permute.xlu0 %2055
      %2057 = vrot.lane.b32.xlu0 %v1763, 16
      %v2058 = vpop.permute.xlu0 %2057
      %2059 = vrot.lane.b32.xlu0 %v1766, 16
      %v2060 = vpop.permute.xlu0 %2059
      %2061 = vrot.lane.b32.xlu0 %v1768, 16
      %v2062 = vpop.permute.xlu0 %2061
      %2063 = vrot.lane.b32.xlu0 %v1770, 16
      %v2064 = vpop.permute.xlu0 %2063
      %2065 = vrot.lane.b32.xlu0 %v1772, 16
      %v2066 = vpop.permute.xlu0 %2065
      %2067 = vrot.lane.b32.xlu0 %v1775, 16
      %v2068 = vpop.permute.xlu0 %2067
      %2069 = vrot.lane.b32.xlu0 %v1777, 16
      %v2070 = vpop.permute.xlu0 %2069
      %2071 = vrot.lane.b32.xlu0 %v1779, 16
      %v2072 = vpop.permute.xlu0 %2071
      %2073 = vrot.lane.b32.xlu0 %v1781, 16
      %v2074 = vpop.permute.xlu0 %2073
      %2075 = vrot.lane.b32.xlu0 %v1784, 16
      %v2076 = vpop.permute.xlu0 %2075
      %2077 = vrot.lane.b32.xlu0 %v1786, 16
      %v2078 = vpop.permute.xlu0 %2077
      %2079 = vrot.lane.b32.xlu0 %v1788, 16
      %v2080 = vpop.permute.xlu0 %2079
      %2081 = vrot.lane.b32.xlu0 %v1790, 16
      %v2082 = vpop.permute.xlu0 %2081
      %2083 = vrot.lane.b32.xlu0 %v1793, 16
      %v2084 = vpop.permute.xlu0 %2083
      %2085 = vrot.lane.b32.xlu0 %v1795, 16
      %v2086 = vpop.permute.xlu0 %2085
      %2087 = vrot.lane.b32.xlu0 %v1797, 16
      %v2088 = vpop.permute.xlu0 %2087
      %2089 = vrot.lane.b32.xlu0 %v1799, 16
      %v2090 = vpop.permute.xlu0 %2089
      %2091 = vrot.lane.b32.xlu0 %v1802, 16
      %v2092 = vpop.permute.xlu0 %2091
      %2093 = vrot.lane.b32.xlu0 %v1804, 16
      %v2094 = vpop.permute.xlu0 %2093
      %2095 = vrot.lane.b32.xlu0 %v1806, 16
      %v2096 = vpop.permute.xlu0 %2095
      %2097 = vrot.lane.b32.xlu0 %v1808, 16
      %v2098 = vpop.permute.xlu0 %2097
      %2099 = vrot.lane.b32.xlu0 %v1811, 16
      %v2100 = vpop.permute.xlu0 %2099
      %2101 = vrot.lane.b32.xlu0 %v1813, 16
      %v2102 = vpop.permute.xlu0 %2101
      %2103 = vrot.lane.b32.xlu0 %v1815, 16
      %v2104 = vpop.permute.xlu0 %2103
      %2105 = vrot.lane.b32.xlu0 %v1817, 16
      %v2106 = vpop.permute.xlu0 %2105
      %2107 = vrot.lane.b32.xlu0 %v1820, 16
      %v2108 = vpop.permute.xlu0 %2107
      %2109 = vrot.lane.b32.xlu0 %v1822, 16
      %v2110 = vpop.permute.xlu0 %2109
      %2111 = vrot.lane.b32.xlu0 %v1824, 16
      %v2112 = vpop.permute.xlu0 %2111
      %2113 = vrot.lane.b32.xlu0 %v1826, 16
      %v2114 = vpop.permute.xlu0 %2113
      %vm2259 = vcmask 1044480
      %v2260 = vrot.slane %v385, 3
      %v2261 = vrot.slane %v386, 3
      %v2262 = vsel %vm2259, %v2260, %v2261
      %v2263 = vrot.slane %v387, 3
      %v2264 = vsel %vm2259, %v2261, %v2263
      %v2265 = vrot.slane %v388, 3
      %v2266 = vsel %vm2259, %v2263, %v2265
      %v2267 = vrot.slane %v389, 3
      %v2268 = vsel %vm2259, %v2265, %v2267
      %v2269 = vrot.slane %v390, 3
      %v2270 = vrot.slane %v391, 3
      %v2271 = vsel %vm2259, %v2269, %v2270
      %v2272 = vrot.slane %v392, 3
      %v2273 = vsel %vm2259, %v2270, %v2272
      %v2274 = vrot.slane %v393, 3
      %v2275 = vsel %vm2259, %v2272, %v2274
      %v2276 = vrot.slane %v394, 3
      %v2277 = vsel %vm2259, %v2274, %v2276
      %v2278 = vrot.slane %v395, 3
      %v2279 = vrot.slane %v396, 3
      %v2280 = vsel %vm2259, %v2278, %v2279
      %v2281 = vrot.slane %v397, 3
      %v2282 = vsel %vm2259, %v2279, %v2281
      %v2283 = vrot.slane %v398, 3
      %v2284 = vsel %vm2259, %v2281, %v2283
      %v2285 = vrot.slane %v399, 3
      %v2286 = vsel %vm2259, %v2283, %v2285
      %v2287 = vrot.slane %v400, 3
      %v2288 = vrot.slane %v401, 3
      %v2289 = vsel %vm2259, %v2287, %v2288
      %v2290 = vrot.slane %v402, 3
      %v2291 = vsel %vm2259, %v2288, %v2290
      %v2292 = vrot.slane %v403, 3
      %v2293 = vsel %vm2259, %v2290, %v2292
      %v2294 = vrot.slane %v404, 3
      %v2295 = vsel %vm2259, %v2292, %v2294
      %v2296 = vrot.slane %v405, 3
      %v2297 = vrot.slane %v406, 3
      %v2298 = vsel %vm2259, %v2296, %v2297
      %v2299 = vrot.slane %v407, 3
      %v2300 = vsel %vm2259, %v2297, %v2299
      %v2301 = vrot.slane %v408, 3
      %v2302 = vsel %vm2259, %v2299, %v2301
      %v2303 = vrot.slane %v409, 3
      %v2304 = vsel %vm2259, %v2301, %v2303
      %v2305 = vrot.slane %v410, 3
      %v2306 = vrot.slane %v411, 3
      %v2307 = vsel %vm2259, %v2305, %v2306
      %v2308 = vrot.slane %v412, 3
      %v2309 = vsel %vm2259, %v2306, %v2308
      %v2310 = vrot.slane %v413, 3
      %v2311 = vsel %vm2259, %v2308, %v2310
      %v2312 = vrot.slane %v414, 3
      %v2313 = vsel %vm2259, %v2310, %v2312
      %v2314 = vrot.slane %v415, 3
      %v2315 = vrot.slane %v416, 3
      %v2316 = vsel %vm2259, %v2314, %v2315
      %v2317 = vrot.slane %v417, 3
      %v2318 = vsel %vm2259, %v2315, %v2317
      %v2319 = vrot.slane %v418, 3
      %v2320 = vsel %vm2259, %v2317, %v2319
      %v2321 = vrot.slane %v419, 3
      %v2322 = vsel %vm2259, %v2319, %v2321
      %v2323 = vrot.slane %v420, 3
      %v2324 = vrot.slane %v421, 3
      %v2325 = vsel %vm2259, %v2323, %v2324
      %v2326 = vrot.slane %v422, 3
      %v2327 = vsel %vm2259, %v2324, %v2326
      %v2328 = vrot.slane %v423, 3
      %v2329 = vsel %vm2259, %v2326, %v2328
      %v2330 = vrot.slane %v424, 3
      %v2331 = vsel %vm2259, %v2328, %v2330
      %v2332 = vrot.slane %v425, 3
      %v2333 = vrot.slane %v426, 3
      %v2334 = vsel %vm2259, %v2332, %v2333
      %v2335 = vrot.slane %v427, 3
      %v2336 = vsel %vm2259, %v2333, %v2335
      %v2337 = vrot.slane %v428, 3
      %v2338 = vsel %vm2259, %v2335, %v2337
      %v2339 = vrot.slane %v429, 3
      %v2340 = vsel %vm2259, %v2337, %v2339
      %v2341 = vrot.slane %v430, 3
      %v2342 = vrot.slane %v431, 3
      %v2343 = vsel %vm2259, %v2341, %v2342
      %v2344 = vrot.slane %v432, 3
      %v2345 = vsel %vm2259, %v2342, %v2344
      %v2346 = vrot.slane %v433, 3
      %v2347 = vsel %vm2259, %v2344, %v2346
      %v2348 = vrot.slane %v434, 3
      %v2349 = vsel %vm2259, %v2346, %v2348
      %v2350 = vrot.slane %v435, 3
      %v2351 = vrot.slane %v436, 3
      %v2352 = vsel %vm2259, %v2350, %v2351
      %v2353 = vrot.slane %v437, 3
      %v2354 = vsel %vm2259, %v2351, %v2353
      %v2355 = vrot.slane %v438, 3
      %v2356 = vsel %vm2259, %v2353, %v2355
      %v2357 = vrot.slane %v439, 3
      %v2358 = vsel %vm2259, %v2355, %v2357
      %v2359 = vrot.slane %v440, 3
      %v2360 = vrot.slane %v441, 3
      %v2361 = vsel %vm2259, %v2359, %v2360
      %v2362 = vrot.slane %v442, 3
      %v2363 = vsel %vm2259, %v2360, %v2362
      %v2364 = vrot.slane %v443, 3
      %v2365 = vsel %vm2259, %v2362, %v2364
      %v2366 = vrot.slane %v444, 3
      %v2367 = vsel %vm2259, %v2364, %v2366
      %v2368 = vrot.slane %v445, 3
      %v2369 = vrot.slane %v446, 3
      %v2370 = vsel %vm2259, %v2368, %v2369
      %v2371 = vrot.slane %v447, 3
      %v2372 = vsel %vm2259, %v2369, %v2371
      %v2373 = vrot.slane %v448, 3
      %v2374 = vsel %vm2259, %v2371, %v2373
      %v2375 = vrot.slane %v449, 3
      %v2376 = vsel %vm2259, %v2373, %v2375
      %v2377 = vrot.slane %v450, 3
      %v2378 = vrot.slane %v451, 3
      %v2379 = vsel %vm2259, %v2377, %v2378
      %v2380 = vrot.slane %v452, 3
      %v2381 = vsel %vm2259, %v2378, %v2380
      %v2382 = vrot.slane %v453, 3
      %v2383 = vsel %vm2259, %v2380, %v2382
      %v2384 = vrot.slane %v454, 3
      %v2385 = vsel %vm2259, %v2382, %v2384
      %v2386 = vrot.slane %v455, 3
      %v2387 = vrot.slane %v456, 3
      %v2388 = vsel %vm2259, %v2386, %v2387
      %v2389 = vrot.slane %v457, 3
      %v2390 = vsel %vm2259, %v2387, %v2389
      %v2391 = vrot.slane %v458, 3
      %v2392 = vsel %vm2259, %v2389, %v2391
      %v2393 = vrot.slane %v459, 3
      %v2394 = vsel %vm2259, %v2391, %v2393
      %v2395 = vrot.slane %v460, 3
      %v2396 = vrot.slane %v461, 3
      %v2397 = vsel %vm2259, %v2395, %v2396
      %v2398 = vrot.slane %v462, 3
      %v2399 = vsel %vm2259, %v2396, %v2398
      %v2400 = vrot.slane %v463, 3
      %v2401 = vsel %vm2259, %v2398, %v2400
      %v2402 = vrot.slane %v464, 3
      %v2403 = vsel %vm2259, %v2400, %v2402
      %v2404 = vrot.slane %v465, 3
      %v2405 = vrot.slane %v466, 3
      %v2406 = vsel %vm2259, %v2404, %v2405
      %v2407 = vrot.slane %v467, 3
      %v2408 = vsel %vm2259, %v2405, %v2407
      %v2409 = vrot.slane %v468, 3
      %v2410 = vsel %vm2259, %v2407, %v2409
      %v2411 = vrot.slane %v469, 3
      %v2412 = vsel %vm2259, %v2409, %v2411
      %v2413 = vrot.slane %v470, 3
      %v2414 = vrot.slane %v471, 3
      %v2415 = vsel %vm2259, %v2413, %v2414
      %v2416 = vrot.slane %v472, 3
      %v2417 = vsel %vm2259, %v2414, %v2416
      %v2418 = vrot.slane %v473, 3
      %v2419 = vsel %vm2259, %v2416, %v2418
      %v2420 = vrot.slane %v474, 3
      %v2421 = vsel %vm2259, %v2418, %v2420
      %v2422 = vrot.slane %v475, 3
      %v2423 = vrot.slane %v476, 3
      %v2424 = vsel %vm2259, %v2422, %v2423
      %v2425 = vrot.slane %v477, 3
      %v2426 = vsel %vm2259, %v2423, %v2425
      %v2427 = vrot.slane %v478, 3
      %v2428 = vsel %vm2259, %v2425, %v2427
      %v2429 = vrot.slane %v479, 3
      %v2430 = vsel %vm2259, %v2427, %v2429
      %v2431 = vrot.slane %v480, 3
      %v2432 = vrot.slane %v481, 3
      %v2433 = vsel %vm2259, %v2431, %v2432
      %v2434 = vrot.slane %v482, 3
      %v2435 = vsel %vm2259, %v2432, %v2434
      %v2436 = vrot.slane %v483, 3
      %v2437 = vsel %vm2259, %v2434, %v2436
      %v2438 = vrot.slane %v484, 3
      %v2439 = vsel %vm2259, %v2436, %v2438
      %v2440 = vrot.slane %v485, 3
      %v2441 = vrot.slane %v486, 3
      %v2442 = vsel %vm2259, %v2440, %v2441
      %v2443 = vrot.slane %v487, 3
      %v2444 = vsel %vm2259, %v2441, %v2443
      %v2445 = vrot.slane %v488, 3
      %v2446 = vsel %vm2259, %v2443, %v2445
      %v2447 = vrot.slane %v489, 3
      %v2448 = vsel %vm2259, %v2445, %v2447
      %v2449 = vrot.slane %v490, 3
      %v2450 = vrot.slane %v491, 3
      %v2451 = vsel %vm2259, %v2449, %v2450
      %v2452 = vrot.slane %v492, 3
      %v2453 = vsel %vm2259, %v2450, %v2452
      %v2454 = vrot.slane %v493, 3
      %v2455 = vsel %vm2259, %v2452, %v2454
      %v2456 = vrot.slane %v494, 3
      %v2457 = vsel %vm2259, %v2454, %v2456
      %v2458 = vrot.slane %v495, 3
      %v2459 = vrot.slane %v496, 3
      %v2460 = vsel %vm2259, %v2458, %v2459
      %v2461 = vrot.slane %v497, 3
      %v2462 = vsel %vm2259, %v2459, %v2461
      %v2463 = vrot.slane %v498, 3
      %v2464 = vsel %vm2259, %v2461, %v2463
      %v2465 = vrot.slane %v499, 3
      %v2466 = vsel %vm2259, %v2463, %v2465
      %v2467 = vrot.slane %v500, 3
      %v2468 = vrot.slane %v501, 3
      %v2469 = vsel %vm2259, %v2467, %v2468
      %v2470 = vrot.slane %v502, 3
      %v2471 = vsel %vm2259, %v2468, %v2470
      %v2472 = vrot.slane %v503, 3
      %v2473 = vsel %vm2259, %v2470, %v2472
      %v2474 = vrot.slane %v504, 3
      %v2475 = vsel %vm2259, %v2472, %v2474
      %v2476 = vrot.slane %v505, 3
      %v2477 = vrot.slane %v506, 3
      %v2478 = vsel %vm2259, %v2476, %v2477
      %v2479 = vrot.slane %v507, 3
      %v2480 = vsel %vm2259, %v2477, %v2479
      %v2481 = vrot.slane %v508, 3
      %v2482 = vsel %vm2259, %v2479, %v2481
      %v2483 = vrot.slane %v509, 3
      %v2484 = vsel %vm2259, %v2481, %v2483
      %v2485 = vrot.slane %v510, 3
      %v2486 = vrot.slane %v511, 3
      %v2487 = vsel %vm2259, %v2485, %v2486
      %v2488 = vrot.slane %v512, 3
      %v2489 = vsel %vm2259, %v2486, %v2488
      %v2490 = vrot.slane %v513, 3
      %v2491 = vsel %vm2259, %v2488, %v2490
      %v2492 = vrot.slane %v514, 3
      %v2493 = vsel %vm2259, %v2490, %v2492
      %v2494 = vrot.slane %v515, 3
      %v2495 = vrot.slane %v516, 3
      %v2496 = vsel %vm2259, %v2494, %v2495
      %v2497 = vrot.slane %v517, 3
      %v2498 = vsel %vm2259, %v2495, %v2497
      %v2499 = vrot.slane %v518, 3
      %v2500 = vsel %vm2259, %v2497, %v2499
      %v2501 = vrot.slane %v519, 3
      %v2502 = vsel %vm2259, %v2499, %v2501
      %v2503 = vrot.slane %v520, 3
      %v2504 = vrot.slane %v521, 3
      %v2505 = vsel %vm2259, %v2503, %v2504
      %v2506 = vrot.slane %v522, 3
      %v2507 = vsel %vm2259, %v2504, %v2506
      %v2508 = vrot.slane %v523, 3
      %v2509 = vsel %vm2259, %v2506, %v2508
      %v2510 = vrot.slane %v524, 3
      %v2511 = vsel %vm2259, %v2508, %v2510
      %v2512 = vrot.slane %v525, 3
      %v2513 = vrot.slane %v526, 3
      %v2514 = vsel %vm2259, %v2512, %v2513
      %v2515 = vrot.slane %v527, 3
      %v2516 = vsel %vm2259, %v2513, %v2515
      %v2517 = vrot.slane %v528, 3
      %v2518 = vsel %vm2259, %v2515, %v2517
      %v2519 = vrot.slane %v529, 3
      %v2520 = vsel %vm2259, %v2517, %v2519
      %v2521 = vrot.slane %v530, 3
      %v2522 = vrot.slane %v531, 3
      %v2523 = vsel %vm2259, %v2521, %v2522
      %v2524 = vrot.slane %v532, 3
      %v2525 = vsel %vm2259, %v2522, %v2524
      %v2526 = vrot.slane %v533, 3
      %v2527 = vsel %vm2259, %v2524, %v2526
      %v2528 = vrot.slane %v534, 3
      %v2529 = vsel %vm2259, %v2526, %v2528
      %v2530 = vrot.slane %v535, 3
      %v2531 = vrot.slane %v536, 3
      %v2532 = vsel %vm2259, %v2530, %v2531
      %v2533 = vrot.slane %v537, 3
      %v2534 = vsel %vm2259, %v2531, %v2533
      %v2535 = vrot.slane %v538, 3
      %v2536 = vsel %vm2259, %v2533, %v2535
      %v2537 = vrot.slane %v539, 3
      %v2538 = vsel %vm2259, %v2535, %v2537
      %v2539 = vrot.slane %v540, 3
      %v2540 = vrot.slane %v541, 3
      %v2541 = vsel %vm2259, %v2539, %v2540
      %v2542 = vrot.slane %v542, 3
      %v2543 = vsel %vm2259, %v2540, %v2542
      %v2544 = vrot.slane %v543, 3
      %v2545 = vsel %vm2259, %v2542, %v2544
      %v2546 = vrot.slane %v544, 3
      %v2547 = vsel %vm2259, %v2544, %v2546
      %v2548 = vrot.slane %v545, 3
      %v2549 = vrot.slane %v546, 3
      %v2550 = vsel %vm2259, %v2548, %v2549
      %v2551 = vrot.slane %v547, 3
      %v2552 = vsel %vm2259, %v2549, %v2551
      %v2553 = vrot.slane %v548, 3
      %v2554 = vsel %vm2259, %v2551, %v2553
      %v2555 = vrot.slane %v549, 3
      %v2556 = vsel %vm2259, %v2553, %v2555
      %v2557 = vrot.slane %v550, 3
      %v2558 = vrot.slane %v551, 3
      %v2559 = vsel %vm2259, %v2557, %v2558
      %v2560 = vrot.slane %v552, 3
      %v2561 = vsel %vm2259, %v2558, %v2560
      %v2562 = vrot.slane %v553, 3
      %v2563 = vsel %vm2259, %v2560, %v2562
      %v2564 = vrot.slane %v554, 3
      %v2565 = vsel %vm2259, %v2562, %v2564
      %v2566 = vrot.slane %v555, 3
      %v2567 = vrot.slane %v556, 3
      %v2568 = vsel %vm2259, %v2566, %v2567
      %v2569 = vrot.slane %v557, 3
      %v2570 = vsel %vm2259, %v2567, %v2569
      %v2571 = vrot.slane %v558, 3
      %v2572 = vsel %vm2259, %v2569, %v2571
      %v2573 = vrot.slane %v559, 3
      %v2574 = vsel %vm2259, %v2571, %v2573
      %v2575 = vrot.slane %v560, 3
      %v2576 = vrot.slane %v561, 3
      %v2577 = vsel %vm2259, %v2575, %v2576
      %v2578 = vrot.slane %v562, 3
      %v2579 = vsel %vm2259, %v2576, %v2578
      %v2580 = vrot.slane %v563, 3
      %v2581 = vsel %vm2259, %v2578, %v2580
      %v2582 = vrot.slane %v564, 3
      %v2583 = vsel %vm2259, %v2580, %v2582
      %2584 = vrot.lane.b32.xlu0 %v2262, 24
      %v2585 = vpop.permute.xlu0 %2584
      %2586 = vrot.lane.b32.xlu0 %v2264, 24
      %v2587 = vpop.permute.xlu0 %2586
      %2588 = vrot.lane.b32.xlu0 %v2266, 24
      %v2589 = vpop.permute.xlu0 %2588
      %2590 = vrot.lane.b32.xlu0 %v2268, 24
      %v2591 = vpop.permute.xlu0 %2590
      %2592 = vrot.lane.b32.xlu0 %v2271, 24
      %v2593 = vpop.permute.xlu0 %2592
      %2594 = vrot.lane.b32.xlu0 %v2273, 24
      %v2595 = vpop.permute.xlu0 %2594
      %2596 = vrot.lane.b32.xlu0 %v2275, 24
      %v2597 = vpop.permute.xlu0 %2596
      %2598 = vrot.lane.b32.xlu0 %v2277, 24
      %v2599 = vpop.permute.xlu0 %2598
      %2600 = vrot.lane.b32.xlu0 %v2280, 24
      %v2601 = vpop.permute.xlu0 %2600
      %2602 = vrot.lane.b32.xlu0 %v2282, 24
      %v2603 = vpop.permute.xlu0 %2602
      %2604 = vrot.lane.b32.xlu0 %v2284, 24
      %v2605 = vpop.permute.xlu0 %2604
      %2606 = vrot.lane.b32.xlu0 %v2286, 24
      %v2607 = vpop.permute.xlu0 %2606
      %2608 = vrot.lane.b32.xlu0 %v2289, 24
      %v2609 = vpop.permute.xlu0 %2608
      %2610 = vrot.lane.b32.xlu0 %v2291, 24
      %v2611 = vpop.permute.xlu0 %2610
      %2612 = vrot.lane.b32.xlu0 %v2293, 24
      %v2613 = vpop.permute.xlu0 %2612
      %2614 = vrot.lane.b32.xlu0 %v2295, 24
      %v2615 = vpop.permute.xlu0 %2614
      %2616 = vrot.lane.b32.xlu0 %v2298, 24
      %v2617 = vpop.permute.xlu0 %2616
      %2618 = vrot.lane.b32.xlu0 %v2300, 24
      %v2619 = vpop.permute.xlu0 %2618
      %2620 = vrot.lane.b32.xlu0 %v2302, 24
      %v2621 = vpop.permute.xlu0 %2620
      %2622 = vrot.lane.b32.xlu0 %v2304, 24
      %v2623 = vpop.permute.xlu0 %2622
      %2624 = vrot.lane.b32.xlu0 %v2307, 24
      %v2625 = vpop.permute.xlu0 %2624
      %2626 = vrot.lane.b32.xlu0 %v2309, 24
      %v2627 = vpop.permute.xlu0 %2626
      %2628 = vrot.lane.b32.xlu0 %v2311, 24
      %v2629 = vpop.permute.xlu0 %2628
      %2630 = vrot.lane.b32.xlu0 %v2313, 24
      %v2631 = vpop.permute.xlu0 %2630
      %2632 = vrot.lane.b32.xlu0 %v2316, 24
      %v2633 = vpop.permute.xlu0 %2632
      %2634 = vrot.lane.b32.xlu0 %v2318, 24
      %v2635 = vpop.permute.xlu0 %2634
      %2636 = vrot.lane.b32.xlu0 %v2320, 24
      %v2637 = vpop.permute.xlu0 %2636
      %2638 = vrot.lane.b32.xlu0 %v2322, 24
      %v2639 = vpop.permute.xlu0 %2638
      %2640 = vrot.lane.b32.xlu0 %v2325, 24
      %v2641 = vpop.permute.xlu0 %2640
      %2642 = vrot.lane.b32.xlu0 %v2327, 24
      %v2643 = vpop.permute.xlu0 %2642
      %2644 = vrot.lane.b32.xlu0 %v2329, 24
      %v2645 = vpop.permute.xlu0 %2644
      %2646 = vrot.lane.b32.xlu0 %v2331, 24
      %v2647 = vpop.permute.xlu0 %2646
      %2648 = vrot.lane.b32.xlu0 %v2334, 24
      %v2649 = vpop.permute.xlu0 %2648
      %2650 = vrot.lane.b32.xlu0 %v2336, 24
      %v2651 = vpop.permute.xlu0 %2650
      %2652 = vrot.lane.b32.xlu0 %v2338, 24
      %v2653 = vpop.permute.xlu0 %2652
      %2654 = vrot.lane.b32.xlu0 %v2340, 24
      %v2655 = vpop.permute.xlu0 %2654
      %2656 = vrot.lane.b32.xlu0 %v2343, 24
      %v2657 = vpop.permute.xlu0 %2656
      %2658 = vrot.lane.b32.xlu0 %v2345, 24
      %v2659 = vpop.permute.xlu0 %2658
      %2660 = vrot.lane.b32.xlu0 %v2347, 24
      %v2661 = vpop.permute.xlu0 %2660
      %2662 = vrot.lane.b32.xlu0 %v2349, 24
      %v2663 = vpop.permute.xlu0 %2662
      %2664 = vrot.lane.b32.xlu0 %v2352, 24
      %v2665 = vpop.permute.xlu0 %2664
      %2666 = vrot.lane.b32.xlu0 %v2354, 24
      %v2667 = vpop.permute.xlu0 %2666
      %2668 = vrot.lane.b32.xlu0 %v2356, 24
      %v2669 = vpop.permute.xlu0 %2668
      %2670 = vrot.lane.b32.xlu0 %v2358, 24
      %v2671 = vpop.permute.xlu0 %2670
      %2672 = vrot.lane.b32.xlu0 %v2361, 24
      %v2673 = vpop.permute.xlu0 %2672
      %2674 = vrot.lane.b32.xlu0 %v2363, 24
      %v2675 = vpop.permute.xlu0 %2674
      %2676 = vrot.lane.b32.xlu0 %v2365, 24
      %v2677 = vpop.permute.xlu0 %2676
      %2678 = vrot.lane.b32.xlu0 %v2367, 24
      %v2679 = vpop.permute.xlu0 %2678
      %2680 = vrot.lane.b32.xlu0 %v2370, 24
      %v2681 = vpop.permute.xlu0 %2680
      %2682 = vrot.lane.b32.xlu0 %v2372, 24
      %v2683 = vpop.permute.xlu0 %2682
      %2684 = vrot.lane.b32.xlu0 %v2374, 24
      %v2685 = vpop.permute.xlu0 %2684
      %2686 = vrot.lane.b32.xlu0 %v2376, 24
      %v2687 = vpop.permute.xlu0 %2686
      %2688 = vrot.lane.b32.xlu0 %v2379, 24
      %v2689 = vpop.permute.xlu0 %2688
      %2690 = vrot.lane.b32.xlu0 %v2381, 24
      %v2691 = vpop.permute.xlu0 %2690
      %2692 = vrot.lane.b32.xlu0 %v2383, 24
      %v2693 = vpop.permute.xlu0 %2692
      %2694 = vrot.lane.b32.xlu0 %v2385, 24
      %v2695 = vpop.permute.xlu0 %2694
      %2696 = vrot.lane.b32.xlu0 %v2388, 24
      %v2697 = vpop.permute.xlu0 %2696
      %2698 = vrot.lane.b32.xlu0 %v2390, 24
      %v2699 = vpop.permute.xlu0 %2698
      %2700 = vrot.lane.b32.xlu0 %v2392, 24
      %v2701 = vpop.permute.xlu0 %2700
      %2702 = vrot.lane.b32.xlu0 %v2394, 24
      %v2703 = vpop.permute.xlu0 %2702
      %2704 = vrot.lane.b32.xlu0 %v2397, 24
      %v2705 = vpop.permute.xlu0 %2704
      %2706 = vrot.lane.b32.xlu0 %v2399, 24
      %v2707 = vpop.permute.xlu0 %2706
      %2708 = vrot.lane.b32.xlu0 %v2401, 24
      %v2709 = vpop.permute.xlu0 %2708
      %2710 = vrot.lane.b32.xlu0 %v2403, 24
      %v2711 = vpop.permute.xlu0 %2710
      %2712 = vrot.lane.b32.xlu0 %v2406, 24
      %v2713 = vpop.permute.xlu0 %2712
      %2714 = vrot.lane.b32.xlu0 %v2408, 24
      %v2715 = vpop.permute.xlu0 %2714
      %2716 = vrot.lane.b32.xlu0 %v2410, 24
      %v2717 = vpop.permute.xlu0 %2716
      %2718 = vrot.lane.b32.xlu0 %v2412, 24
      %v2719 = vpop.permute.xlu0 %2718
      %2720 = vrot.lane.b32.xlu0 %v2415, 24
      %v2721 = vpop.permute.xlu0 %2720
      %2722 = vrot.lane.b32.xlu0 %v2417, 24
      %v2723 = vpop.permute.xlu0 %2722
      %2724 = vrot.lane.b32.xlu0 %v2419, 24
      %v2725 = vpop.permute.xlu0 %2724
      %2726 = vrot.lane.b32.xlu0 %v2421, 24
      %v2727 = vpop.permute.xlu0 %2726
      %2728 = vrot.lane.b32.xlu0 %v2424, 24
      %v2729 = vpop.permute.xlu0 %2728
      %2730 = vrot.lane.b32.xlu0 %v2426, 24
      %v2731 = vpop.permute.xlu0 %2730
      %2732 = vrot.lane.b32.xlu0 %v2428, 24
      %v2733 = vpop.permute.xlu0 %2732
      %2734 = vrot.lane.b32.xlu0 %v2430, 24
      %v2735 = vpop.permute.xlu0 %2734
      %2736 = vrot.lane.b32.xlu0 %v2433, 24
      %v2737 = vpop.permute.xlu0 %2736
      %2738 = vrot.lane.b32.xlu0 %v2435, 24
      %v2739 = vpop.permute.xlu0 %2738
      %2740 = vrot.lane.b32.xlu0 %v2437, 24
      %v2741 = vpop.permute.xlu0 %2740
      %2742 = vrot.lane.b32.xlu0 %v2439, 24
      %v2743 = vpop.permute.xlu0 %2742
      %2744 = vrot.lane.b32.xlu0 %v2442, 24
      %v2745 = vpop.permute.xlu0 %2744
      %2746 = vrot.lane.b32.xlu0 %v2444, 24
      %v2747 = vpop.permute.xlu0 %2746
      %2748 = vrot.lane.b32.xlu0 %v2446, 24
      %v2749 = vpop.permute.xlu0 %2748
      %2750 = vrot.lane.b32.xlu0 %v2448, 24
      %v2751 = vpop.permute.xlu0 %2750
      %2752 = vrot.lane.b32.xlu0 %v2451, 24
      %v2753 = vpop.permute.xlu0 %2752
      %2754 = vrot.lane.b32.xlu0 %v2453, 24
      %v2755 = vpop.permute.xlu0 %2754
      %2756 = vrot.lane.b32.xlu0 %v2455, 24
      %v2757 = vpop.permute.xlu0 %2756
      %2758 = vrot.lane.b32.xlu0 %v2457, 24
      %v2759 = vpop.permute.xlu0 %2758
      %2760 = vrot.lane.b32.xlu0 %v2460, 24
      %v2761 = vpop.permute.xlu0 %2760
      %2762 = vrot.lane.b32.xlu0 %v2462, 24
      %v2763 = vpop.permute.xlu0 %2762
      %2764 = vrot.lane.b32.xlu0 %v2464, 24
      %v2765 = vpop.permute.xlu0 %2764
      %2766 = vrot.lane.b32.xlu0 %v2466, 24
      %v2767 = vpop.permute.xlu0 %2766
      %2768 = vrot.lane.b32.xlu0 %v2469, 24
      %v2769 = vpop.permute.xlu0 %2768
      %2770 = vrot.lane.b32.xlu0 %v2471, 24
      %v2771 = vpop.permute.xlu0 %2770
      %2772 = vrot.lane.b32.xlu0 %v2473, 24
      %v2773 = vpop.permute.xlu0 %2772
      %2774 = vrot.lane.b32.xlu0 %v2475, 24
      %v2775 = vpop.permute.xlu0 %2774
      %2776 = vrot.lane.b32.xlu0 %v2478, 24
      %v2777 = vpop.permute.xlu0 %2776
      %2778 = vrot.lane.b32.xlu0 %v2480, 24
      %v2779 = vpop.permute.xlu0 %2778
      %2780 = vrot.lane.b32.xlu0 %v2482, 24
      %v2781 = vpop.permute.xlu0 %2780
      %2782 = vrot.lane.b32.xlu0 %v2484, 24
      %v2783 = vpop.permute.xlu0 %2782
      %2784 = vrot.lane.b32.xlu0 %v2487, 24
      %v2785 = vpop.permute.xlu0 %2784
      %2786 = vrot.lane.b32.xlu0 %v2489, 24
      %v2787 = vpop.permute.xlu0 %2786
      %2788 = vrot.lane.b32.xlu0 %v2491, 24
      %v2789 = vpop.permute.xlu0 %2788
      %2790 = vrot.lane.b32.xlu0 %v2493, 24
      %v2791 = vpop.permute.xlu0 %2790
      %2792 = vrot.lane.b32.xlu0 %v2496, 24
      %v2793 = vpop.permute.xlu0 %2792
      %2794 = vrot.lane.b32.xlu0 %v2498, 24
      %v2795 = vpop.permute.xlu0 %2794
      %2796 = vrot.lane.b32.xlu0 %v2500, 24
      %v2797 = vpop.permute.xlu0 %2796
      %2798 = vrot.lane.b32.xlu0 %v2502, 24
      %v2799 = vpop.permute.xlu0 %2798
      %2800 = vrot.lane.b32.xlu0 %v2505, 24
      %v2801 = vpop.permute.xlu0 %2800
      %2802 = vrot.lane.b32.xlu0 %v2507, 24
      %v2803 = vpop.permute.xlu0 %2802
      %2804 = vrot.lane.b32.xlu0 %v2509, 24
      %v2805 = vpop.permute.xlu0 %2804
      %2806 = vrot.lane.b32.xlu0 %v2511, 24
      %v2807 = vpop.permute.xlu0 %2806
      %2808 = vrot.lane.b32.xlu0 %v2514, 24
      %v2809 = vpop.permute.xlu0 %2808
      %2810 = vrot.lane.b32.xlu0 %v2516, 24
      %v2811 = vpop.permute.xlu0 %2810
      %2812 = vrot.lane.b32.xlu0 %v2518, 24
      %v2813 = vpop.permute.xlu0 %2812
      %2814 = vrot.lane.b32.xlu0 %v2520, 24
      %v2815 = vpop.permute.xlu0 %2814
      %2816 = vrot.lane.b32.xlu0 %v2523, 24
      %v2817 = vpop.permute.xlu0 %2816
      %2818 = vrot.lane.b32.xlu0 %v2525, 24
      %v2819 = vpop.permute.xlu0 %2818
      %2820 = vrot.lane.b32.xlu0 %v2527, 24
      %v2821 = vpop.permute.xlu0 %2820
      %2822 = vrot.lane.b32.xlu0 %v2529, 24
      %v2823 = vpop.permute.xlu0 %2822
      %2824 = vrot.lane.b32.xlu0 %v2532, 24
      %v2825 = vpop.permute.xlu0 %2824
      %2826 = vrot.lane.b32.xlu0 %v2534, 24
      %v2827 = vpop.permute.xlu0 %2826
      %2828 = vrot.lane.b32.xlu0 %v2536, 24
      %v2829 = vpop.permute.xlu0 %2828
      %2830 = vrot.lane.b32.xlu0 %v2538, 24
      %v2831 = vpop.permute.xlu0 %2830
      %2832 = vrot.lane.b32.xlu0 %v2541, 24
      %v2833 = vpop.permute.xlu0 %2832
      %2834 = vrot.lane.b32.xlu0 %v2543, 24
      %v2835 = vpop.permute.xlu0 %2834
      %2836 = vrot.lane.b32.xlu0 %v2545, 24
      %v2837 = vpop.permute.xlu0 %2836
      %2838 = vrot.lane.b32.xlu0 %v2547, 24
      %v2839 = vpop.permute.xlu0 %2838
      %2840 = vrot.lane.b32.xlu0 %v2550, 24
      %v2841 = vpop.permute.xlu0 %2840
      %2842 = vrot.lane.b32.xlu0 %v2552, 24
      %v2843 = vpop.permute.xlu0 %2842
      %2844 = vrot.lane.b32.xlu0 %v2554, 24
      %v2845 = vpop.permute.xlu0 %2844
      %2846 = vrot.lane.b32.xlu0 %v2556, 24
      %v2847 = vpop.permute.xlu0 %2846
      %2848 = vrot.lane.b32.xlu0 %v2559, 24
      %v2849 = vpop.permute.xlu0 %2848
      %2850 = vrot.lane.b32.xlu0 %v2561, 24
      %v2851 = vpop.permute.xlu0 %2850
      %2852 = vrot.lane.b32.xlu0 %v2563, 24
      %v2853 = vpop.permute.xlu0 %2852
      %2854 = vrot.lane.b32.xlu0 %v2565, 24
      %v2855 = vpop.permute.xlu0 %2854
      %2856 = vrot.lane.b32.xlu0 %v2568, 24
      %v2857 = vpop.permute.xlu0 %2856
      %2858 = vrot.lane.b32.xlu0 %v2570, 24
      %v2859 = vpop.permute.xlu0 %2858
      %2860 = vrot.lane.b32.xlu0 %v2572, 24
      %v2861 = vpop.permute.xlu0 %2860
      %2862 = vrot.lane.b32.xlu0 %v2574, 24
      %v2863 = vpop.permute.xlu0 %2862
      %2864 = vrot.lane.b32.xlu0 %v2577, 24
      %v2865 = vpop.permute.xlu0 %2864
      %2866 = vrot.lane.b32.xlu0 %v2579, 24
      %v2867 = vpop.permute.xlu0 %2866
      %2868 = vrot.lane.b32.xlu0 %v2581, 24
      %v2869 = vpop.permute.xlu0 %2868
      %2870 = vrot.lane.b32.xlu0 %v2583, 24
      %v2871 = vpop.permute.xlu0 %2870
      %vm3016 = vcmask 1043456
      %v3017 = vrot.slane %v385, 4
      %v3018 = vrot.slane %v386, 4
      %v3019 = vsel %vm3016, %v3017, %v3018
      %v3020 = vrot.slane %v387, 4
      %v3021 = vsel %vm3016, %v3018, %v3020
      %v3022 = vrot.slane %v388, 4
      %v3023 = vsel %vm3016, %v3020, %v3022
      %v3024 = vrot.slane %v389, 4
      %v3025 = vsel %vm3016, %v3022, %v3024
      %v3026 = vrot.slane %v390, 4
      %v3027 = vrot.slane %v391, 4
      %v3028 = vsel %vm3016, %v3026, %v3027
      %v3029 = vrot.slane %v392, 4
      %v3030 = vsel %vm3016, %v3027, %v3029
      %v3031 = vrot.slane %v393, 4
      %v3032 = vsel %vm3016, %v3029, %v3031
      %v3033 = vrot.slane %v394, 4
      %v3034 = vsel %vm3016, %v3031, %v3033
      %v3035 = vrot.slane %v395, 4
      %v3036 = vrot.slane %v396, 4
      %v3037 = vsel %vm3016, %v3035, %v3036
      %v3038 = vrot.slane %v397, 4
      %v3039 = vsel %vm3016, %v3036, %v3038
      %v3040 = vrot.slane %v398, 4
      %v3041 = vsel %vm3016, %v3038, %v3040
      %v3042 = vrot.slane %v399, 4
      %v3043 = vsel %vm3016, %v3040, %v3042
      %v3044 = vrot.slane %v400, 4
      %v3045 = vrot.slane %v401, 4
      %v3046 = vsel %vm3016, %v3044, %v3045
      %v3047 = vrot.slane %v402, 4
      %v3048 = vsel %vm3016, %v3045, %v3047
      %v3049 = vrot.slane %v403, 4
      %v3050 = vsel %vm3016, %v3047, %v3049
      %v3051 = vrot.slane %v404, 4
      %v3052 = vsel %vm3016, %v3049, %v3051
      %v3053 = vrot.slane %v405, 4
      %v3054 = vrot.slane %v406, 4
      %v3055 = vsel %vm3016, %v3053, %v3054
      %v3056 = vrot.slane %v407, 4
      %v3057 = vsel %vm3016, %v3054, %v3056
      %v3058 = vrot.slane %v408, 4
      %v3059 = vsel %vm3016, %v3056, %v3058
      %v3060 = vrot.slane %v409, 4
      %v3061 = vsel %vm3016, %v3058, %v3060
      %v3062 = vrot.slane %v410, 4
      %v3063 = vrot.slane %v411, 4
      %v3064 = vsel %vm3016, %v3062, %v3063
      %v3065 = vrot.slane %v412, 4
      %v3066 = vsel %vm3016, %v3063, %v3065
      %v3067 = vrot.slane %v413, 4
      %v3068 = vsel %vm3016, %v3065, %v3067
      %v3069 = vrot.slane %v414, 4
      %v3070 = vsel %vm3016, %v3067, %v3069
      %v3071 = vrot.slane %v415, 4
      %v3072 = vrot.slane %v416, 4
      %v3073 = vsel %vm3016, %v3071, %v3072
      %v3074 = vrot.slane %v417, 4
      %v3075 = vsel %vm3016, %v3072, %v3074
      %v3076 = vrot.slane %v418, 4
      %v3077 = vsel %vm3016, %v3074, %v3076
      %v3078 = vrot.slane %v419, 4
      %v3079 = vsel %vm3016, %v3076, %v3078
      %v3080 = vrot.slane %v420, 4
      %v3081 = vrot.slane %v421, 4
      %v3082 = vsel %vm3016, %v3080, %v3081
      %v3083 = vrot.slane %v422, 4
      %v3084 = vsel %vm3016, %v3081, %v3083
      %v3085 = vrot.slane %v423, 4
      %v3086 = vsel %vm3016, %v3083, %v3085
      %v3087 = vrot.slane %v424, 4
      %v3088 = vsel %vm3016, %v3085, %v3087
      %v3089 = vrot.slane %v425, 4
      %v3090 = vrot.slane %v426, 4
      %v3091 = vsel %vm3016, %v3089, %v3090
      %v3092 = vrot.slane %v427, 4
      %v3093 = vsel %vm3016, %v3090, %v3092
      %v3094 = vrot.slane %v428, 4
      %v3095 = vsel %vm3016, %v3092, %v3094
      %v3096 = vrot.slane %v429, 4
      %v3097 = vsel %vm3016, %v3094, %v3096
      %v3098 = vrot.slane %v430, 4
      %v3099 = vrot.slane %v431, 4
      %v3100 = vsel %vm3016, %v3098, %v3099
      %v3101 = vrot.slane %v432, 4
      %v3102 = vsel %vm3016, %v3099, %v3101
      %v3103 = vrot.slane %v433, 4
      %v3104 = vsel %vm3016, %v3101, %v3103
      %v3105 = vrot.slane %v434, 4
      %v3106 = vsel %vm3016, %v3103, %v3105
      %v3107 = vrot.slane %v435, 4
      %v3108 = vrot.slane %v436, 4
      %v3109 = vsel %vm3016, %v3107, %v3108
      %v3110 = vrot.slane %v437, 4
      %v3111 = vsel %vm3016, %v3108, %v3110
      %v3112 = vrot.slane %v438, 4
      %v3113 = vsel %vm3016, %v3110, %v3112
      %v3114 = vrot.slane %v439, 4
      %v3115 = vsel %vm3016, %v3112, %v3114
      %v3116 = vrot.slane %v440, 4
      %v3117 = vrot.slane %v441, 4
      %v3118 = vsel %vm3016, %v3116, %v3117
      %v3119 = vrot.slane %v442, 4
      %v3120 = vsel %vm3016, %v3117, %v3119
      %v3121 = vrot.slane %v443, 4
      %v3122 = vsel %vm3016, %v3119, %v3121
      %v3123 = vrot.slane %v444, 4
      %v3124 = vsel %vm3016, %v3121, %v3123
      %v3125 = vrot.slane %v445, 4
      %v3126 = vrot.slane %v446, 4
      %v3127 = vsel %vm3016, %v3125, %v3126
      %v3128 = vrot.slane %v447, 4
      %v3129 = vsel %vm3016, %v3126, %v3128
      %v3130 = vrot.slane %v448, 4
      %v3131 = vsel %vm3016, %v3128, %v3130
      %v3132 = vrot.slane %v449, 4
      %v3133 = vsel %vm3016, %v3130, %v3132
      %v3134 = vrot.slane %v450, 4
      %v3135 = vrot.slane %v451, 4
      %v3136 = vsel %vm3016, %v3134, %v3135
      %v3137 = vrot.slane %v452, 4
      %v3138 = vsel %vm3016, %v3135, %v3137
      %v3139 = vrot.slane %v453, 4
      %v3140 = vsel %vm3016, %v3137, %v3139
      %v3141 = vrot.slane %v454, 4
      %v3142 = vsel %vm3016, %v3139, %v3141
      %v3143 = vrot.slane %v455, 4
      %v3144 = vrot.slane %v456, 4
      %v3145 = vsel %vm3016, %v3143, %v3144
      %v3146 = vrot.slane %v457, 4
      %v3147 = vsel %vm3016, %v3144, %v3146
      %v3148 = vrot.slane %v458, 4
      %v3149 = vsel %vm3016, %v3146, %v3148
      %v3150 = vrot.slane %v459, 4
      %v3151 = vsel %vm3016, %v3148, %v3150
      %v3152 = vrot.slane %v460, 4
      %v3153 = vrot.slane %v461, 4
      %v3154 = vsel %vm3016, %v3152, %v3153
      %v3155 = vrot.slane %v462, 4
      %v3156 = vsel %vm3016, %v3153, %v3155
      %v3157 = vrot.slane %v463, 4
      %v3158 = vsel %vm3016, %v3155, %v3157
      %v3159 = vrot.slane %v464, 4
      %v3160 = vsel %vm3016, %v3157, %v3159
      %v3161 = vrot.slane %v465, 4
      %v3162 = vrot.slane %v466, 4
      %v3163 = vsel %vm3016, %v3161, %v3162
      %v3164 = vrot.slane %v467, 4
      %v3165 = vsel %vm3016, %v3162, %v3164
      %v3166 = vrot.slane %v468, 4
      %v3167 = vsel %vm3016, %v3164, %v3166
      %v3168 = vrot.slane %v469, 4
      %v3169 = vsel %vm3016, %v3166, %v3168
      %v3170 = vrot.slane %v470, 4
      %v3171 = vrot.slane %v471, 4
      %v3172 = vsel %vm3016, %v3170, %v3171
      %v3173 = vrot.slane %v472, 4
      %v3174 = vsel %vm3016, %v3171, %v3173
      %v3175 = vrot.slane %v473, 4
      %v3176 = vsel %vm3016, %v3173, %v3175
      %v3177 = vrot.slane %v474, 4
      %v3178 = vsel %vm3016, %v3175, %v3177
      %v3179 = vrot.slane %v475, 4
      %v3180 = vrot.slane %v476, 4
      %v3181 = vsel %vm3016, %v3179, %v3180
      %v3182 = vrot.slane %v477, 4
      %v3183 = vsel %vm3016, %v3180, %v3182
      %v3184 = vrot.slane %v478, 4
      %v3185 = vsel %vm3016, %v3182, %v3184
      %v3186 = vrot.slane %v479, 4
      %v3187 = vsel %vm3016, %v3184, %v3186
      %v3188 = vrot.slane %v480, 4
      %v3189 = vrot.slane %v481, 4
      %v3190 = vsel %vm3016, %v3188, %v3189
      %v3191 = vrot.slane %v482, 4
      %v3192 = vsel %vm3016, %v3189, %v3191
      %v3193 = vrot.slane %v483, 4
      %v3194 = vsel %vm3016, %v3191, %v3193
      %v3195 = vrot.slane %v484, 4
      %v3196 = vsel %vm3016, %v3193, %v3195
      %v3197 = vrot.slane %v485, 4
      %v3198 = vrot.slane %v486, 4
      %v3199 = vsel %vm3016, %v3197, %v3198
      %v3200 = vrot.slane %v487, 4
      %v3201 = vsel %vm3016, %v3198, %v3200
      %v3202 = vrot.slane %v488, 4
      %v3203 = vsel %vm3016, %v3200, %v3202
      %v3204 = vrot.slane %v489, 4
      %v3205 = vsel %vm3016, %v3202, %v3204
      %v3206 = vrot.slane %v490, 4
      %v3207 = vrot.slane %v491, 4
      %v3208 = vsel %vm3016, %v3206, %v3207
      %v3209 = vrot.slane %v492, 4
      %v3210 = vsel %vm3016, %v3207, %v3209
      %v3211 = vrot.slane %v493, 4
      %v3212 = vsel %vm3016, %v3209, %v3211
      %v3213 = vrot.slane %v494, 4
      %v3214 = vsel %vm3016, %v3211, %v3213
      %v3215 = vrot.slane %v495, 4
      %v3216 = vrot.slane %v496, 4
      %v3217 = vsel %vm3016, %v3215, %v3216
      %v3218 = vrot.slane %v497, 4
      %v3219 = vsel %vm3016, %v3216, %v3218
      %v3220 = vrot.slane %v498, 4
      %v3221 = vsel %vm3016, %v3218, %v3220
      %v3222 = vrot.slane %v499, 4
      %v3223 = vsel %vm3016, %v3220, %v3222
      %v3224 = vrot.slane %v500, 4
      %v3225 = vrot.slane %v501, 4
      %v3226 = vsel %vm3016, %v3224, %v3225
      %v3227 = vrot.slane %v502, 4
      %v3228 = vsel %vm3016, %v3225, %v3227
      %v3229 = vrot.slane %v503, 4
      %v3230 = vsel %vm3016, %v3227, %v3229
      %v3231 = vrot.slane %v504, 4
      %v3232 = vsel %vm3016, %v3229, %v3231
      %v3233 = vrot.slane %v505, 4
      %v3234 = vrot.slane %v506, 4
      %v3235 = vsel %vm3016, %v3233, %v3234
      %v3236 = vrot.slane %v507, 4
      %v3237 = vsel %vm3016, %v3234, %v3236
      %v3238 = vrot.slane %v508, 4
      %v3239 = vsel %vm3016, %v3236, %v3238
      %v3240 = vrot.slane %v509, 4
      %v3241 = vsel %vm3016, %v3238, %v3240
      %v3242 = vrot.slane %v510, 4
      %v3243 = vrot.slane %v511, 4
      %v3244 = vsel %vm3016, %v3242, %v3243
      %v3245 = vrot.slane %v512, 4
      %v3246 = vsel %vm3016, %v3243, %v3245
      %v3247 = vrot.slane %v513, 4
      %v3248 = vsel %vm3016, %v3245, %v3247
      %v3249 = vrot.slane %v514, 4
      %v3250 = vsel %vm3016, %v3247, %v3249
      %v3251 = vrot.slane %v515, 4
      %v3252 = vrot.slane %v516, 4
      %v3253 = vsel %vm3016, %v3251, %v3252
      %v3254 = vrot.slane %v517, 4
      %v3255 = vsel %vm3016, %v3252, %v3254
      %v3256 = vrot.slane %v518, 4
      %v3257 = vsel %vm3016, %v3254, %v3256
      %v3258 = vrot.slane %v519, 4
      %v3259 = vsel %vm3016, %v3256, %v3258
      %v3260 = vrot.slane %v520, 4
      %v3261 = vrot.slane %v521, 4
      %v3262 = vsel %vm3016, %v3260, %v3261
      %v3263 = vrot.slane %v522, 4
      %v3264 = vsel %vm3016, %v3261, %v3263
      %v3265 = vrot.slane %v523, 4
      %v3266 = vsel %vm3016, %v3263, %v3265
      %v3267 = vrot.slane %v524, 4
      %v3268 = vsel %vm3016, %v3265, %v3267
      %v3269 = vrot.slane %v525, 4
      %v3270 = vrot.slane %v526, 4
      %v3271 = vsel %vm3016, %v3269, %v3270
      %v3272 = vrot.slane %v527, 4
      %v3273 = vsel %vm3016, %v3270, %v3272
      %v3274 = vrot.slane %v528, 4
      %v3275 = vsel %vm3016, %v3272, %v3274
      %v3276 = vrot.slane %v529, 4
      %v3277 = vsel %vm3016, %v3274, %v3276
      %v3278 = vrot.slane %v530, 4
      %v3279 = vrot.slane %v531, 4
      %v3280 = vsel %vm3016, %v3278, %v3279
      %v3281 = vrot.slane %v532, 4
      %v3282 = vsel %vm3016, %v3279, %v3281
      %v3283 = vrot.slane %v533, 4
      %v3284 = vsel %vm3016, %v3281, %v3283
      %v3285 = vrot.slane %v534, 4
      %v3286 = vsel %vm3016, %v3283, %v3285
      %v3287 = vrot.slane %v535, 4
      %v3288 = vrot.slane %v536, 4
      %v3289 = vsel %vm3016, %v3287, %v3288
      %v3290 = vrot.slane %v537, 4
      %v3291 = vsel %vm3016, %v3288, %v3290
      %v3292 = vrot.slane %v538, 4
      %v3293 = vsel %vm3016, %v3290, %v3292
      %v3294 = vrot.slane %v539, 4
      %v3295 = vsel %vm3016, %v3292, %v3294
      %v3296 = vrot.slane %v540, 4
      %v3297 = vrot.slane %v541, 4
      %v3298 = vsel %vm3016, %v3296, %v3297
      %v3299 = vrot.slane %v542, 4
      %v3300 = vsel %vm3016, %v3297, %v3299
      %v3301 = vrot.slane %v543, 4
      %v3302 = vsel %vm3016, %v3299, %v3301
      %v3303 = vrot.slane %v544, 4
      %v3304 = vsel %vm3016, %v3301, %v3303
      %v3305 = vrot.slane %v545, 4
      %v3306 = vrot.slane %v546, 4
      %v3307 = vsel %vm3016, %v3305, %v3306
      %v3308 = vrot.slane %v547, 4
      %v3309 = vsel %vm3016, %v3306, %v3308
      %v3310 = vrot.slane %v548, 4
      %v3311 = vsel %vm3016, %v3308, %v3310
      %v3312 = vrot.slane %v549, 4
      %v3313 = vsel %vm3016, %v3310, %v3312
      %v3314 = vrot.slane %v550, 4
      %v3315 = vrot.slane %v551, 4
      %v3316 = vsel %vm3016, %v3314, %v3315
      %v3317 = vrot.slane %v552, 4
      %v3318 = vsel %vm3016, %v3315, %v3317
      %v3319 = vrot.slane %v553, 4
      %v3320 = vsel %vm3016, %v3317, %v3319
      %v3321 = vrot.slane %v554, 4
      %v3322 = vsel %vm3016, %v3319, %v3321
      %v3323 = vrot.slane %v555, 4
      %v3324 = vrot.slane %v556, 4
      %v3325 = vsel %vm3016, %v3323, %v3324
      %v3326 = vrot.slane %v557, 4
      %v3327 = vsel %vm3016, %v3324, %v3326
      %v3328 = vrot.slane %v558, 4
      %v3329 = vsel %vm3016, %v3326, %v3328
      %v3330 = vrot.slane %v559, 4
      %v3331 = vsel %vm3016, %v3328, %v3330
      %v3332 = vrot.slane %v560, 4
      %v3333 = vrot.slane %v561, 4
      %v3334 = vsel %vm3016, %v3332, %v3333
      %v3335 = vrot.slane %v562, 4
      %v3336 = vsel %vm3016, %v3333, %v3335
      %v3337 = vrot.slane %v563, 4
      %v3338 = vsel %vm3016, %v3335, %v3337
      %v3339 = vrot.slane %v564, 4
      %v3340 = vsel %vm3016, %v3337, %v3339
      %3341 = vrot.lane.b32.xlu0 %v3019, 32
      %v3342 = vpop.permute.xlu0 %3341
      %3343 = vrot.lane.b32.xlu0 %v3021, 32
      %v3344 = vpop.permute.xlu0 %3343
      %3345 = vrot.lane.b32.xlu0 %v3023, 32
      %v3346 = vpop.permute.xlu0 %3345
      %3347 = vrot.lane.b32.xlu0 %v3025, 32
      %v3348 = vpop.permute.xlu0 %3347
      %3349 = vrot.lane.b32.xlu0 %v3028, 32
      %v3350 = vpop.permute.xlu0 %3349
      %3351 = vrot.lane.b32.xlu0 %v3030, 32
      %v3352 = vpop.permute.xlu0 %3351
      %3353 = vrot.lane.b32.xlu0 %v3032, 32
      %v3354 = vpop.permute.xlu0 %3353
      %3355 = vrot.lane.b32.xlu0 %v3034, 32
      %v3356 = vpop.permute.xlu0 %3355
      %3357 = vrot.lane.b32.xlu0 %v3037, 32
      %v3358 = vpop.permute.xlu0 %3357
      %3359 = vrot.lane.b32.xlu0 %v3039, 32
      %v3360 = vpop.permute.xlu0 %3359
      %3361 = vrot.lane.b32.xlu0 %v3041, 32
      %v3362 = vpop.permute.xlu0 %3361
      %3363 = vrot.lane.b32.xlu0 %v3043, 32
      %v3364 = vpop.permute.xlu0 %3363
      %3365 = vrot.lane.b32.xlu0 %v3046, 32
      %v3366 = vpop.permute.xlu0 %3365
      %3367 = vrot.lane.b32.xlu0 %v3048, 32
      %v3368 = vpop.permute.xlu0 %3367
      %3369 = vrot.lane.b32.xlu0 %v3050, 32
      %v3370 = vpop.permute.xlu0 %3369
      %3371 = vrot.lane.b32.xlu0 %v3052, 32
      %v3372 = vpop.permute.xlu0 %3371
      %3373 = vrot.lane.b32.xlu0 %v3055, 32
      %v3374 = vpop.permute.xlu0 %3373
      %3375 = vrot.lane.b32.xlu0 %v3057, 32
      %v3376 = vpop.permute.xlu0 %3375
      %3377 = vrot.lane.b32.xlu0 %v3059, 32
      %v3378 = vpop.permute.xlu0 %3377
      %3379 = vrot.lane.b32.xlu0 %v3061, 32
      %v3380 = vpop.permute.xlu0 %3379
      %3381 = vrot.lane.b32.xlu0 %v3064, 32
      %v3382 = vpop.permute.xlu0 %3381
      %3383 = vrot.lane.b32.xlu0 %v3066, 32
      %v3384 = vpop.permute.xlu0 %3383
      %3385 = vrot.lane.b32.xlu0 %v3068, 32
      %v3386 = vpop.permute.xlu0 %3385
      %3387 = vrot.lane.b32.xlu0 %v3070, 32
      %v3388 = vpop.permute.xlu0 %3387
      %3389 = vrot.lane.b32.xlu0 %v3073, 32
      %v3390 = vpop.permute.xlu0 %3389
      %3391 = vrot.lane.b32.xlu0 %v3075, 32
      %v3392 = vpop.permute.xlu0 %3391
      %3393 = vrot.lane.b32.xlu0 %v3077, 32
      %v3394 = vpop.permute.xlu0 %3393
      %3395 = vrot.lane.b32.xlu0 %v3079, 32
      %v3396 = vpop.permute.xlu0 %3395
      %3397 = vrot.lane.b32.xlu0 %v3082, 32
      %v3398 = vpop.permute.xlu0 %3397
      %3399 = vrot.lane.b32.xlu0 %v3084, 32
      %v3400 = vpop.permute.xlu0 %3399
      %3401 = vrot.lane.b32.xlu0 %v3086, 32
      %v3402 = vpop.permute.xlu0 %3401
      %3403 = vrot.lane.b32.xlu0 %v3088, 32
      %v3404 = vpop.permute.xlu0 %3403
      %3405 = vrot.lane.b32.xlu0 %v3091, 32
      %v3406 = vpop.permute.xlu0 %3405
      %3407 = vrot.lane.b32.xlu0 %v3093, 32
      %v3408 = vpop.permute.xlu0 %3407
      %3409 = vrot.lane.b32.xlu0 %v3095, 32
      %v3410 = vpop.permute.xlu0 %3409
      %3411 = vrot.lane.b32.xlu0 %v3097, 32
      %v3412 = vpop.permute.xlu0 %3411
      %3413 = vrot.lane.b32.xlu0 %v3100, 32
      %v3414 = vpop.permute.xlu0 %3413
      %3415 = vrot.lane.b32.xlu0 %v3102, 32
      %v3416 = vpop.permute.xlu0 %3415
      %3417 = vrot.lane.b32.xlu0 %v3104, 32
      %v3418 = vpop.permute.xlu0 %3417
      %3419 = vrot.lane.b32.xlu0 %v3106, 32
      %v3420 = vpop.permute.xlu0 %3419
      %3421 = vrot.lane.b32.xlu0 %v3109, 32
      %v3422 = vpop.permute.xlu0 %3421
      %3423 = vrot.lane.b32.xlu0 %v3111, 32
      %v3424 = vpop.permute.xlu0 %3423
      %3425 = vrot.lane.b32.xlu0 %v3113, 32
      %v3426 = vpop.permute.xlu0 %3425
      %3427 = vrot.lane.b32.xlu0 %v3115, 32
      %v3428 = vpop.permute.xlu0 %3427
      %3429 = vrot.lane.b32.xlu0 %v3118, 32
      %v3430 = vpop.permute.xlu0 %3429
      %3431 = vrot.lane.b32.xlu0 %v3120, 32
      %v3432 = vpop.permute.xlu0 %3431
      %3433 = vrot.lane.b32.xlu0 %v3122, 32
      %v3434 = vpop.permute.xlu0 %3433
      %3435 = vrot.lane.b32.xlu0 %v3124, 32
      %v3436 = vpop.permute.xlu0 %3435
      %3437 = vrot.lane.b32.xlu0 %v3127, 32
      %v3438 = vpop.permute.xlu0 %3437
      %3439 = vrot.lane.b32.xlu0 %v3129, 32
      %v3440 = vpop.permute.xlu0 %3439
      %3441 = vrot.lane.b32.xlu0 %v3131, 32
      %v3442 = vpop.permute.xlu0 %3441
      %3443 = vrot.lane.b32.xlu0 %v3133, 32
      %v3444 = vpop.permute.xlu0 %3443
      %3445 = vrot.lane.b32.xlu0 %v3136, 32
      %v3446 = vpop.permute.xlu0 %3445
      %3447 = vrot.lane.b32.xlu0 %v3138, 32
      %v3448 = vpop.permute.xlu0 %3447
      %3449 = vrot.lane.b32.xlu0 %v3140, 32
      %v3450 = vpop.permute.xlu0 %3449
      %3451 = vrot.lane.b32.xlu0 %v3142, 32
      %v3452 = vpop.permute.xlu0 %3451
      %3453 = vrot.lane.b32.xlu0 %v3145, 32
      %v3454 = vpop.permute.xlu0 %3453
      %3455 = vrot.lane.b32.xlu0 %v3147, 32
      %v3456 = vpop.permute.xlu0 %3455
      %3457 = vrot.lane.b32.xlu0 %v3149, 32
      %v3458 = vpop.permute.xlu0 %3457
      %3459 = vrot.lane.b32.xlu0 %v3151, 32
      %v3460 = vpop.permute.xlu0 %3459
      %3461 = vrot.lane.b32.xlu0 %v3154, 32
      %v3462 = vpop.permute.xlu0 %3461
      %3463 = vrot.lane.b32.xlu0 %v3156, 32
      %v3464 = vpop.permute.xlu0 %3463
      %3465 = vrot.lane.b32.xlu0 %v3158, 32
      %v3466 = vpop.permute.xlu0 %3465
      %3467 = vrot.lane.b32.xlu0 %v3160, 32
      %v3468 = vpop.permute.xlu0 %3467
      %3469 = vrot.lane.b32.xlu0 %v3163, 32
      %v3470 = vpop.permute.xlu0 %3469
      %3471 = vrot.lane.b32.xlu0 %v3165, 32
      %v3472 = vpop.permute.xlu0 %3471
      %3473 = vrot.lane.b32.xlu0 %v3167, 32
      %v3474 = vpop.permute.xlu0 %3473
      %3475 = vrot.lane.b32.xlu0 %v3169, 32
      %v3476 = vpop.permute.xlu0 %3475
      %3477 = vrot.lane.b32.xlu0 %v3172, 32
      %v3478 = vpop.permute.xlu0 %3477
      %3479 = vrot.lane.b32.xlu0 %v3174, 32
      %v3480 = vpop.permute.xlu0 %3479
      %3481 = vrot.lane.b32.xlu0 %v3176, 32
      %v3482 = vpop.permute.xlu0 %3481
      %3483 = vrot.lane.b32.xlu0 %v3178, 32
      %v3484 = vpop.permute.xlu0 %3483
      %3485 = vrot.lane.b32.xlu0 %v3181, 32
      %v3486 = vpop.permute.xlu0 %3485
      %3487 = vrot.lane.b32.xlu0 %v3183, 32
      %v3488 = vpop.permute.xlu0 %3487
      %3489 = vrot.lane.b32.xlu0 %v3185, 32
      %v3490 = vpop.permute.xlu0 %3489
      %3491 = vrot.lane.b32.xlu0 %v3187, 32
      %v3492 = vpop.permute.xlu0 %3491
      %3493 = vrot.lane.b32.xlu0 %v3190, 32
      %v3494 = vpop.permute.xlu0 %3493
      %3495 = vrot.lane.b32.xlu0 %v3192, 32
      %v3496 = vpop.permute.xlu0 %3495
      %3497 = vrot.lane.b32.xlu0 %v3194, 32
      %v3498 = vpop.permute.xlu0 %3497
      %3499 = vrot.lane.b32.xlu0 %v3196, 32
      %v3500 = vpop.permute.xlu0 %3499
      %3501 = vrot.lane.b32.xlu0 %v3199, 32
      %v3502 = vpop.permute.xlu0 %3501
      %3503 = vrot.lane.b32.xlu0 %v3201, 32
      %v3504 = vpop.permute.xlu0 %3503
      %3505 = vrot.lane.b32.xlu0 %v3203, 32
      %v3506 = vpop.permute.xlu0 %3505
      %3507 = vrot.lane.b32.xlu0 %v3205, 32
      %v3508 = vpop.permute.xlu0 %3507
      %3509 = vrot.lane.b32.xlu0 %v3208, 32
      %v3510 = vpop.permute.xlu0 %3509
      %3511 = vrot.lane.b32.xlu0 %v3210, 32
      %v3512 = vpop.permute.xlu0 %3511
      %3513 = vrot.lane.b32.xlu0 %v3212, 32
      %v3514 = vpop.permute.xlu0 %3513
      %3515 = vrot.lane.b32.xlu0 %v3214, 32
      %v3516 = vpop.permute.xlu0 %3515
      %3517 = vrot.lane.b32.xlu0 %v3217, 32
      %v3518 = vpop.permute.xlu0 %3517
      %3519 = vrot.lane.b32.xlu0 %v3219, 32
      %v3520 = vpop.permute.xlu0 %3519
      %3521 = vrot.lane.b32.xlu0 %v3221, 32
      %v3522 = vpop.permute.xlu0 %3521
      %3523 = vrot.lane.b32.xlu0 %v3223, 32
      %v3524 = vpop.permute.xlu0 %3523
      %3525 = vrot.lane.b32.xlu0 %v3226, 32
      %v3526 = vpop.permute.xlu0 %3525
      %3527 = vrot.lane.b32.xlu0 %v3228, 32
      %v3528 = vpop.permute.xlu0 %3527
      %3529 = vrot.lane.b32.xlu0 %v3230, 32
      %v3530 = vpop.permute.xlu0 %3529
      %3531 = vrot.lane.b32.xlu0 %v3232, 32
      %v3532 = vpop.permute.xlu0 %3531
      %3533 = vrot.lane.b32.xlu0 %v3235, 32
      %v3534 = vpop.permute.xlu0 %3533
      %3535 = vrot.lane.b32.xlu0 %v3237, 32
      %v3536 = vpop.permute.xlu0 %3535
      %3537 = vrot.lane.b32.xlu0 %v3239, 32
      %v3538 = vpop.permute.xlu0 %3537
      %3539 = vrot.lane.b32.xlu0 %v3241, 32
      %v3540 = vpop.permute.xlu0 %3539
      %3541 = vrot.lane.b32.xlu0 %v3244, 32
      %v3542 = vpop.permute.xlu0 %3541
      %3543 = vrot.lane.b32.xlu0 %v3246, 32
      %v3544 = vpop.permute.xlu0 %3543
      %3545 = vrot.lane.b32.xlu0 %v3248, 32
      %v3546 = vpop.permute.xlu0 %3545
      %3547 = vrot.lane.b32.xlu0 %v3250, 32
      %v3548 = vpop.permute.xlu0 %3547
      %3549 = vrot.lane.b32.xlu0 %v3253, 32
      %v3550 = vpop.permute.xlu0 %3549
      %3551 = vrot.lane.b32.xlu0 %v3255, 32
      %v3552 = vpop.permute.xlu0 %3551
      %3553 = vrot.lane.b32.xlu0 %v3257, 32
      %v3554 = vpop.permute.xlu0 %3553
      %3555 = vrot.lane.b32.xlu0 %v3259, 32
      %v3556 = vpop.permute.xlu0 %3555
      %3557 = vrot.lane.b32.xlu0 %v3262, 32
      %v3558 = vpop.permute.xlu0 %3557
      %3559 = vrot.lane.b32.xlu0 %v3264, 32
      %v3560 = vpop.permute.xlu0 %3559
      %3561 = vrot.lane.b32.xlu0 %v3266, 32
      %v3562 = vpop.permute.xlu0 %3561
      %3563 = vrot.lane.b32.xlu0 %v3268, 32
      %v3564 = vpop.permute.xlu0 %3563
      %3565 = vrot.lane.b32.xlu0 %v3271, 32
      %v3566 = vpop.permute.xlu0 %3565
      %3567 = vrot.lane.b32.xlu0 %v3273, 32
      %v3568 = vpop.permute.xlu0 %3567
      %3569 = vrot.lane.b32.xlu0 %v3275, 32
      %v3570 = vpop.permute.xlu0 %3569
      %3571 = vrot.lane.b32.xlu0 %v3277, 32
      %v3572 = vpop.permute.xlu0 %3571
      %3573 = vrot.lane.b32.xlu0 %v3280, 32
      %v3574 = vpop.permute.xlu0 %3573
      %3575 = vrot.lane.b32.xlu0 %v3282, 32
      %v3576 = vpop.permute.xlu0 %3575
      %3577 = vrot.lane.b32.xlu0 %v3284, 32
      %v3578 = vpop.permute.xlu0 %3577
      %3579 = vrot.lane.b32.xlu0 %v3286, 32
      %v3580 = vpop.permute.xlu0 %3579
      %3581 = vrot.lane.b32.xlu0 %v3289, 32
      %v3582 = vpop.permute.xlu0 %3581
      %3583 = vrot.lane.b32.xlu0 %v3291, 32
      %v3584 = vpop.permute.xlu0 %3583
      %3585 = vrot.lane.b32.xlu0 %v3293, 32
      %v3586 = vpop.permute.xlu0 %3585
      %3587 = vrot.lane.b32.xlu0 %v3295, 32
      %v3588 = vpop.permute.xlu0 %3587
      %3589 = vrot.lane.b32.xlu0 %v3298, 32
      %v3590 = vpop.permute.xlu0 %3589
      %3591 = vrot.lane.b32.xlu0 %v3300, 32
      %v3592 = vpop.permute.xlu0 %3591
      %3593 = vrot.lane.b32.xlu0 %v3302, 32
      %v3594 = vpop.permute.xlu0 %3593
      %3595 = vrot.lane.b32.xlu0 %v3304, 32
      %v3596 = vpop.permute.xlu0 %3595
      %3597 = vrot.lane.b32.xlu0 %v3307, 32
      %v3598 = vpop.permute.xlu0 %3597
      %3599 = vrot.lane.b32.xlu0 %v3309, 32
      %v3600 = vpop.permute.xlu0 %3599
      %3601 = vrot.lane.b32.xlu0 %v3311, 32
      %v3602 = vpop.permute.xlu0 %3601
      %3603 = vrot.lane.b32.xlu0 %v3313, 32
      %v3604 = vpop.permute.xlu0 %3603
      %3605 = vrot.lane.b32.xlu0 %v3316, 32
      %v3606 = vpop.permute.xlu0 %3605
      %3607 = vrot.lane.b32.xlu0 %v3318, 32
      %v3608 = vpop.permute.xlu0 %3607
      %3609 = vrot.lane.b32.xlu0 %v3320, 32
      %v3610 = vpop.permute.xlu0 %3609
      %3611 = vrot.lane.b32.xlu0 %v3322, 32
      %v3612 = vpop.permute.xlu0 %3611
      %3613 = vrot.lane.b32.xlu0 %v3325, 32
      %v3614 = vpop.permute.xlu0 %3613
      %3615 = vrot.lane.b32.xlu0 %v3327, 32
      %v3616 = vpop.permute.xlu0 %3615
      %3617 = vrot.lane.b32.xlu0 %v3329, 32
      %v3618 = vpop.permute.xlu0 %3617
      %3619 = vrot.lane.b32.xlu0 %v3331, 32
      %v3620 = vpop.permute.xlu0 %3619
      %3621 = vrot.lane.b32.xlu0 %v3334, 32
      %v3622 = vpop.permute.xlu0 %3621
      %3623 = vrot.lane.b32.xlu0 %v3336, 32
      %v3624 = vpop.permute.xlu0 %3623
      %3625 = vrot.lane.b32.xlu0 %v3338, 32
      %v3626 = vpop.permute.xlu0 %3625
      %3627 = vrot.lane.b32.xlu0 %v3340, 32
      %v3628 = vpop.permute.xlu0 %3627
      %vm3773 = vcmask 64512
      %v3774 = vsel %vm3773, %v385, %v1071
      %v3775 = vsel %vm3773, %v386, %v1073
      %v3776 = vsel %vm3773, %v387, %v1075
      %v3777 = vsel %vm3773, %v388, %v1077
      %v3778 = vsel %vm3773, %v390, %v1079
      %v3779 = vsel %vm3773, %v391, %v1081
      %v3780 = vsel %vm3773, %v392, %v1083
      %v3781 = vsel %vm3773, %v393, %v1085
      %v3782 = vsel %vm3773, %v395, %v1087
      %v3783 = vsel %vm3773, %v396, %v1089
      %v3784 = vsel %vm3773, %v397, %v1091
      %v3785 = vsel %vm3773, %v398, %v1093
      %v3786 = vsel %vm3773, %v400, %v1095
      %v3787 = vsel %vm3773, %v401, %v1097
      %v3788 = vsel %vm3773, %v402, %v1099
      %v3789 = vsel %vm3773, %v403, %v1101
      %v3790 = vsel %vm3773, %v405, %v1103
      %v3791 = vsel %vm3773, %v406, %v1105
      %v3792 = vsel %vm3773, %v407, %v1107
      %v3793 = vsel %vm3773, %v408, %v1109
      %v3794 = vsel %vm3773, %v410, %v1111
      %v3795 = vsel %vm3773, %v411, %v1113
      %v3796 = vsel %vm3773, %v412, %v1115
      %v3797 = vsel %vm3773, %v413, %v1117
      %v3798 = vsel %vm3773, %v415, %v1119
      %v3799 = vsel %vm3773, %v416, %v1121
      %v3800 = vsel %vm3773, %v417, %v1123
      %v3801 = vsel %vm3773, %v418, %v1125
      %v3802 = vsel %vm3773, %v420, %v1127
      %v3803 = vsel %vm3773, %v421, %v1129
      %v3804 = vsel %vm3773, %v422, %v1131
      %v3805 = vsel %vm3773, %v423, %v1133
      %v3806 = vsel %vm3773, %v425, %v1135
      %v3807 = vsel %vm3773, %v426, %v1137
      %v3808 = vsel %vm3773, %v427, %v1139
      %v3809 = vsel %vm3773, %v428, %v1141
      %v3810 = vsel %vm3773, %v430, %v1143
      %v3811 = vsel %vm3773, %v431, %v1145
      %v3812 = vsel %vm3773, %v432, %v1147
      %v3813 = vsel %vm3773, %v433, %v1149
      %v3814 = vsel %vm3773, %v435, %v1151
      %v3815 = vsel %vm3773, %v436, %v1153
      %v3816 = vsel %vm3773, %v437, %v1155
      %v3817 = vsel %vm3773, %v438, %v1157
      %v3818 = vsel %vm3773, %v440, %v1159
      %v3819 = vsel %vm3773, %v441, %v1161
      %v3820 = vsel %vm3773, %v442, %v1163
      %v3821 = vsel %vm3773, %v443, %v1165
      %v3822 = vsel %vm3773, %v445, %v1167
      %v3823 = vsel %vm3773, %v446, %v1169
      %v3824 = vsel %vm3773, %v447, %v1171
      %v3825 = vsel %vm3773, %v448, %v1173
      %v3826 = vsel %vm3773, %v450, %v1175
      %v3827 = vsel %vm3773, %v451, %v1177
      %v3828 = vsel %vm3773, %v452, %v1179
      %v3829 = vsel %vm3773, %v453, %v1181
      %v3830 = vsel %vm3773, %v455, %v1183
      %v3831 = vsel %vm3773, %v456, %v1185
      %v3832 = vsel %vm3773, %v457, %v1187
      %v3833 = vsel %vm3773, %v458, %v1189
      %v3834 = vsel %vm3773, %v460, %v1191
      %v3835 = vsel %vm3773, %v461, %v1193
      %v3836 = vsel %vm3773, %v462, %v1195
      %v3837 = vsel %vm3773, %v463, %v1197
      %v3838 = vsel %vm3773, %v465, %v1199
      %v3839 = vsel %vm3773, %v466, %v1201
      %v3840 = vsel %vm3773, %v467, %v1203
      %v3841 = vsel %vm3773, %v468, %v1205
      %v3842 = vsel %vm3773, %v470, %v1207
      %v3843 = vsel %vm3773, %v471, %v1209
      %v3844 = vsel %vm3773, %v472, %v1211
      %v3845 = vsel %vm3773, %v473, %v1213
      %v3846 = vsel %vm3773, %v475, %v1215
      %v3847 = vsel %vm3773, %v476, %v1217
      %v3848 = vsel %vm3773, %v477, %v1219
      %v3849 = vsel %vm3773, %v478, %v1221
      %v3850 = vsel %vm3773, %v480, %v1223
      %v3851 = vsel %vm3773, %v481, %v1225
      %v3852 = vsel %vm3773, %v482, %v1227
      %v3853 = vsel %vm3773, %v483, %v1229
      %v3854 = vsel %vm3773, %v485, %v1231
      %v3855 = vsel %vm3773, %v486, %v1233
      %v3856 = vsel %vm3773, %v487, %v1235
      %v3857 = vsel %vm3773, %v488, %v1237
      %v3858 = vsel %vm3773, %v490, %v1239
      %v3859 = vsel %vm3773, %v491, %v1241
      %v3860 = vsel %vm3773, %v492, %v1243
      %v3861 = vsel %vm3773, %v493, %v1245
      %v3862 = vsel %vm3773, %v495, %v1247
      %v3863 = vsel %vm3773, %v496, %v1249
      %v3864 = vsel %vm3773, %v497, %v1251
      %v3865 = vsel %vm3773, %v498, %v1253
      %v3866 = vsel %vm3773, %v500, %v1255
      %v3867 = vsel %vm3773, %v501, %v1257
      %v3868 = vsel %vm3773, %v502, %v1259
      %v3869 = vsel %vm3773, %v503, %v1261
      %v3870 = vsel %vm3773, %v505, %v1263
      %v3871 = vsel %vm3773, %v506, %v1265
      %v3872 = vsel %vm3773, %v507, %v1267
      %v3873 = vsel %vm3773, %v508, %v1269
      %v3874 = vsel %vm3773, %v510, %v1271
      %v3875 = vsel %vm3773, %v511, %v1273
      %v3876 = vsel %vm3773, %v512, %v1275
      %v3877 = vsel %vm3773, %v513, %v1277
      %v3878 = vsel %vm3773, %v515, %v1279
      %v3879 = vsel %vm3773, %v516, %v1281
      %v3880 = vsel %vm3773, %v517, %v1283
      %v3881 = vsel %vm3773, %v518, %v1285
      %v3882 = vsel %vm3773, %v520, %v1287
      %v3883 = vsel %vm3773, %v521, %v1289
      %v3884 = vsel %vm3773, %v522, %v1291
      %v3885 = vsel %vm3773, %v523, %v1293
      %v3886 = vsel %vm3773, %v525, %v1295
      %v3887 = vsel %vm3773, %v526, %v1297
      %v3888 = vsel %vm3773, %v527, %v1299
      %v3889 = vsel %vm3773, %v528, %v1301
      %v3890 = vsel %vm3773, %v530, %v1303
      %v3891 = vsel %vm3773, %v531, %v1305
      %v3892 = vsel %vm3773, %v532, %v1307
      %v3893 = vsel %vm3773, %v533, %v1309
      %v3894 = vsel %vm3773, %v535, %v1311
      %v3895 = vsel %vm3773, %v536, %v1313
      %v3896 = vsel %vm3773, %v537, %v1315
      %v3897 = vsel %vm3773, %v538, %v1317
      %v3898 = vsel %vm3773, %v540, %v1319
      %v3899 = vsel %vm3773, %v541, %v1321
      %v3900 = vsel %vm3773, %v542, %v1323
      %v3901 = vsel %vm3773, %v543, %v1325
      %v3902 = vsel %vm3773, %v545, %v1327
      %v3903 = vsel %vm3773, %v546, %v1329
      %v3904 = vsel %vm3773, %v547, %v1331
      %v3905 = vsel %vm3773, %v548, %v1333
      %v3906 = vsel %vm3773, %v550, %v1335
      %v3907 = vsel %vm3773, %v551, %v1337
      %v3908 = vsel %vm3773, %v552, %v1339
      %v3909 = vsel %vm3773, %v553, %v1341
      %v3910 = vsel %vm3773, %v555, %v1343
      %v3911 = vsel %vm3773, %v556, %v1345
      %v3912 = vsel %vm3773, %v557, %v1347
      %v3913 = vsel %vm3773, %v558, %v1349
      %v3914 = vsel %vm3773, %v560, %v1351
      %v3915 = vsel %vm3773, %v561, %v1353
      %v3916 = vsel %vm3773, %v562, %v1355
      %v3917 = vsel %vm3773, %v563, %v1357
      %vm3918 = vcmask 130048
      %v3919 = vsel %vm3918, %v3774, %v1828
      %v3920 = vsel %vm3918, %v3775, %v1830
      %v3921 = vsel %vm3918, %v3776, %v1832
      %v3922 = vsel %vm3918, %v3777, %v1834
      %v3923 = vsel %vm3918, %v3778, %v1836
      %v3924 = vsel %vm3918, %v3779, %v1838
      %v3925 = vsel %vm3918, %v3780, %v1840
      %v3926 = vsel %vm3918, %v3781, %v1842
      %v3927 = vsel %vm3918, %v3782, %v1844
      %v3928 = vsel %vm3918, %v3783, %v1846
      %v3929 = vsel %vm3918, %v3784, %v1848
      %v3930 = vsel %vm3918, %v3785, %v1850
      %v3931 = vsel %vm3918, %v3786, %v1852
      %v3932 = vsel %vm3918, %v3787, %v1854
      %v3933 = vsel %vm3918, %v3788, %v1856
      %v3934 = vsel %vm3918, %v3789, %v1858
      %v3935 = vsel %vm3918, %v3790, %v1860
      %v3936 = vsel %vm3918, %v3791, %v1862
      %v3937 = vsel %vm3918, %v3792, %v1864
      %v3938 = vsel %vm3918, %v3793, %v1866
      %v3939 = vsel %vm3918, %v3794, %v1868
      %v3940 = vsel %vm3918, %v3795, %v1870
      %v3941 = vsel %vm3918, %v3796, %v1872
      %v3942 = vsel %vm3918, %v3797, %v1874
      %v3943 = vsel %vm3918, %v3798, %v1876
      %v3944 = vsel %vm3918, %v3799, %v1878
      %v3945 = vsel %vm3918, %v3800, %v1880
      %v3946 = vsel %vm3918, %v3801, %v1882
      %v3947 = vsel %vm3918, %v3802, %v1884
      %v3948 = vsel %vm3918, %v3803, %v1886
      %v3949 = vsel %vm3918, %v3804, %v1888
      %v3950 = vsel %vm3918, %v3805, %v1890
      %v3951 = vsel %vm3918, %v3806, %v1892
      %v3952 = vsel %vm3918, %v3807, %v1894
      %v3953 = vsel %vm3918, %v3808, %v1896
      %v3954 = vsel %vm3918, %v3809, %v1898
      %v3955 = vsel %vm3918, %v3810, %v1900
      %v3956 = vsel %vm3918, %v3811, %v1902
      %v3957 = vsel %vm3918, %v3812, %v1904
      %v3958 = vsel %vm3918, %v3813, %v1906
      %v3959 = vsel %vm3918, %v3814, %v1908
      %v3960 = vsel %vm3918, %v3815, %v1910
      %v3961 = vsel %vm3918, %v3816, %v1912
      %v3962 = vsel %vm3918, %v3817, %v1914
      %v3963 = vsel %vm3918, %v3818, %v1916
      %v3964 = vsel %vm3918, %v3819, %v1918
      %v3965 = vsel %vm3918, %v3820, %v1920
      %v3966 = vsel %vm3918, %v3821, %v1922
      %v3967 = vsel %vm3918, %v3822, %v1924
      %v3968 = vsel %vm3918, %v3823, %v1926
      %v3969 = vsel %vm3918, %v3824, %v1928
      %v3970 = vsel %vm3918, %v3825, %v1930
      %v3971 = vsel %vm3918, %v3826, %v1932
      %v3972 = vsel %vm3918, %v3827, %v1934
      %v3973 = vsel %vm3918, %v3828, %v1936
      %v3974 = vsel %vm3918, %v3829, %v1938
      %v3975 = vsel %vm3918, %v3830, %v1940
      %v3976 = vsel %vm3918, %v3831, %v1942
      %v3977 = vsel %vm3918, %v3832, %v1944
      %v3978 = vsel %vm3918, %v3833, %v1946
      %v3979 = vsel %vm3918, %v3834, %v1948
      %v3980 = vsel %vm3918, %v3835, %v1950
      %v3981 = vsel %vm3918, %v3836, %v1952
      %v3982 = vsel %vm3918, %v3837, %v1954
      %v3983 = vsel %vm3918, %v3838, %v1956
      %v3984 = vsel %vm3918, %v3839, %v1958
      %v3985 = vsel %vm3918, %v3840, %v1960
      %v3986 = vsel %vm3918, %v3841, %v1962
      %v3987 = vsel %vm3918, %v3842, %v1964
      %v3988 = vsel %vm3918, %v3843, %v1966
      %v3989 = vsel %vm3918, %v3844, %v1968
      %v3990 = vsel %vm3918, %v3845, %v1970
      %v3991 = vsel %vm3918, %v3846, %v1972
      %v3992 = vsel %vm3918, %v3847, %v1974
      %v3993 = vsel %vm3918, %v3848, %v1976
      %v3994 = vsel %vm3918, %v3849, %v1978
      %v3995 = vsel %vm3918, %v3850, %v1980
      %v3996 = vsel %vm3918, %v3851, %v1982
      %v3997 = vsel %vm3918, %v3852, %v1984
      %v3998 = vsel %vm3918, %v3853, %v1986
      %v3999 = vsel %vm3918, %v3854, %v1988
      %v4000 = vsel %vm3918, %v3855, %v1990
      %v4001 = vsel %vm3918, %v3856, %v1992
      %v4002 = vsel %vm3918, %v3857, %v1994
      %v4003 = vsel %vm3918, %v3858, %v1996
      %v4004 = vsel %vm3918, %v3859, %v1998
      %v4005 = vsel %vm3918, %v3860, %v2000
      %v4006 = vsel %vm3918, %v3861, %v2002
      %v4007 = vsel %vm3918, %v3862, %v2004
      %v4008 = vsel %vm3918, %v3863, %v2006
      %v4009 = vsel %vm3918, %v3864, %v2008
      %v4010 = vsel %vm3918, %v3865, %v2010
      %v4011 = vsel %vm3918, %v3866, %v2012
      %v4012 = vsel %vm3918, %v3867, %v2014
      %v4013 = vsel %vm3918, %v3868, %v2016
      %v4014 = vsel %vm3918, %v3869, %v2018
      %v4015 = vsel %vm3918, %v3870, %v2020
      %v4016 = vsel %vm3918, %v3871, %v2022
      %v4017 = vsel %vm3918, %v3872, %v2024
      %v4018 = vsel %vm3918, %v3873, %v2026
      %v4019 = vsel %vm3918, %v3874, %v2028
      %v4020 = vsel %vm3918, %v3875, %v2030
      %v4021 = vsel %vm3918, %v3876, %v2032
      %v4022 = vsel %vm3918, %v3877, %v2034
      %v4023 = vsel %vm3918, %v3878, %v2036
      %v4024 = vsel %vm3918, %v3879, %v2038
      %v4025 = vsel %vm3918, %v3880, %v2040
      %v4026 = vsel %vm3918, %v3881, %v2042
      %v4027 = vsel %vm3918, %v3882, %v2044
      %v4028 = vsel %vm3918, %v3883, %v2046
      %v4029 = vsel %vm3918, %v3884, %v2048
      %v4030 = vsel %vm3918, %v3885, %v2050
      %v4031 = vsel %vm3918, %v3886, %v2052
      %v4032 = vsel %vm3918, %v3887, %v2054
      %v4033 = vsel %vm3918, %v3888, %v2056
      %v4034 = vsel %vm3918, %v3889, %v2058
      %v4035 = vsel %vm3918, %v3890, %v2060
      %v4036 = vsel %vm3918, %v3891, %v2062
      %v4037 = vsel %vm3918, %v3892, %v2064
      %v4038 = vsel %vm3918, %v3893, %v2066
      %v4039 = vsel %vm3918, %v3894, %v2068
      %v4040 = vsel %vm3918, %v3895, %v2070
      %v4041 = vsel %vm3918, %v3896, %v2072
      %v4042 = vsel %vm3918, %v3897, %v2074
      %v4043 = vsel %vm3918, %v3898, %v2076
      %v4044 = vsel %vm3918, %v3899, %v2078
      %v4045 = vsel %vm3918, %v3900, %v2080
      %v4046 = vsel %vm3918, %v3901, %v2082
      %v4047 = vsel %vm3918, %v3902, %v2084
      %v4048 = vsel %vm3918, %v3903, %v2086
      %v4049 = vsel %vm3918, %v3904, %v2088
      %v4050 = vsel %vm3918, %v3905, %v2090
      %v4051 = vsel %vm3918, %v3906, %v2092
      %v4052 = vsel %vm3918, %v3907, %v2094
      %v4053 = vsel %vm3918, %v3908, %v2096
      %v4054 = vsel %vm3918, %v3909, %v2098
      %v4055 = vsel %vm3918, %v3910, %v2100
      %v4056 = vsel %vm3918, %v3911, %v2102
      %v4057 = vsel %vm3918, %v3912, %v2104
      %v4058 = vsel %vm3918, %v3913, %v2106
      %v4059 = vsel %vm3918, %v3914, %v2108
      %v4060 = vsel %vm3918, %v3915, %v2110
      %v4061 = vsel %vm3918, %v3916, %v2112
      %v4062 = vsel %vm3918, %v3917, %v2114
      %vm4063 = vcmask 195584
      %v4064 = vsel %vm4063, %v3919, %v2585
      %v4065 = vsel %vm4063, %v3920, %v2587
      %v4066 = vsel %vm4063, %v3921, %v2589
      %v4067 = vsel %vm4063, %v3922, %v2591
      %v4068 = vsel %vm4063, %v3923, %v2593
      %v4069 = vsel %vm4063, %v3924, %v2595
      %v4070 = vsel %vm4063, %v3925, %v2597
      %v4071 = vsel %vm4063, %v3926, %v2599
      %v4072 = vsel %vm4063, %v3927, %v2601
      %v4073 = vsel %vm4063, %v3928, %v2603
      %v4074 = vsel %vm4063, %v3929, %v2605
      %v4075 = vsel %vm4063, %v3930, %v2607
      %v4076 = vsel %vm4063, %v3931, %v2609
      %v4077 = vsel %vm4063, %v3932, %v2611
      %v4078 = vsel %vm4063, %v3933, %v2613
      %v4079 = vsel %vm4063, %v3934, %v2615
      %v4080 = vsel %vm4063, %v3935, %v2617
      %v4081 = vsel %vm4063, %v3936, %v2619
      %v4082 = vsel %vm4063, %v3937, %v2621
      %v4083 = vsel %vm4063, %v3938, %v2623
      %v4084 = vsel %vm4063, %v3939, %v2625
      %v4085 = vsel %vm4063, %v3940, %v2627
      %v4086 = vsel %vm4063, %v3941, %v2629
      %v4087 = vsel %vm4063, %v3942, %v2631
      %v4088 = vsel %vm4063, %v3943, %v2633
      %v4089 = vsel %vm4063, %v3944, %v2635
      %v4090 = vsel %vm4063, %v3945, %v2637
      %v4091 = vsel %vm4063, %v3946, %v2639
      %v4092 = vsel %vm4063, %v3947, %v2641
      %v4093 = vsel %vm4063, %v3948, %v2643
      %v4094 = vsel %vm4063, %v3949, %v2645
      %v4095 = vsel %vm4063, %v3950, %v2647
      %v4096 = vsel %vm4063, %v3951, %v2649
      %v4097 = vsel %vm4063, %v3952, %v2651
      %v4098 = vsel %vm4063, %v3953, %v2653
      %v4099 = vsel %vm4063, %v3954, %v2655
      %v4100 = vsel %vm4063, %v3955, %v2657
      %v4101 = vsel %vm4063, %v3956, %v2659
      %v4102 = vsel %vm4063, %v3957, %v2661
      %v4103 = vsel %vm4063, %v3958, %v2663
      %v4104 = vsel %vm4063, %v3959, %v2665
      %v4105 = vsel %vm4063, %v3960, %v2667
      %v4106 = vsel %vm4063, %v3961, %v2669
      %v4107 = vsel %vm4063, %v3962, %v2671
      %v4108 = vsel %vm4063, %v3963, %v2673
      %v4109 = vsel %vm4063, %v3964, %v2675
      %v4110 = vsel %vm4063, %v3965, %v2677
      %v4111 = vsel %vm4063, %v3966, %v2679
      %v4112 = vsel %vm4063, %v3967, %v2681
      %v4113 = vsel %vm4063, %v3968, %v2683
      %v4114 = vsel %vm4063, %v3969, %v2685
      %v4115 = vsel %vm4063, %v3970, %v2687
      %v4116 = vsel %vm4063, %v3971, %v2689
      %v4117 = vsel %vm4063, %v3972, %v2691
      %v4118 = vsel %vm4063, %v3973, %v2693
      %v4119 = vsel %vm4063, %v3974, %v2695
      %v4120 = vsel %vm4063, %v3975, %v2697
      %v4121 = vsel %vm4063, %v3976, %v2699
      %v4122 = vsel %vm4063, %v3977, %v2701
      %v4123 = vsel %vm4063, %v3978, %v2703
      %v4124 = vsel %vm4063, %v3979, %v2705
      %v4125 = vsel %vm4063, %v3980, %v2707
      %v4126 = vsel %vm4063, %v3981, %v2709
      %v4127 = vsel %vm4063, %v3982, %v2711
      %v4128 = vsel %vm4063, %v3983, %v2713
      %v4129 = vsel %vm4063, %v3984, %v2715
      %v4130 = vsel %vm4063, %v3985, %v2717
      %v4131 = vsel %vm4063, %v3986, %v2719
      %v4132 = vsel %vm4063, %v3987, %v2721
      %v4133 = vsel %vm4063, %v3988, %v2723
      %v4134 = vsel %vm4063, %v3989, %v2725
      %v4135 = vsel %vm4063, %v3990, %v2727
      %v4136 = vsel %vm4063, %v3991, %v2729
      %v4137 = vsel %vm4063, %v3992, %v2731
      %v4138 = vsel %vm4063, %v3993, %v2733
      %v4139 = vsel %vm4063, %v3994, %v2735
      %v4140 = vsel %vm4063, %v3995, %v2737
      %v4141 = vsel %vm4063, %v3996, %v2739
      %v4142 = vsel %vm4063, %v3997, %v2741
      %v4143 = vsel %vm4063, %v3998, %v2743
      %v4144 = vsel %vm4063, %v3999, %v2745
      %v4145 = vsel %vm4063, %v4000, %v2747
      %v4146 = vsel %vm4063, %v4001, %v2749
      %v4147 = vsel %vm4063, %v4002, %v2751
      %v4148 = vsel %vm4063, %v4003, %v2753
      %v4149 = vsel %vm4063, %v4004, %v2755
      %v4150 = vsel %vm4063, %v4005, %v2757
      %v4151 = vsel %vm4063, %v4006, %v2759
      %v4152 = vsel %vm4063, %v4007, %v2761
      %v4153 = vsel %vm4063, %v4008, %v2763
      %v4154 = vsel %vm4063, %v4009, %v2765
      %v4155 = vsel %vm4063, %v4010, %v2767
      %v4156 = vsel %vm4063, %v4011, %v2769
      %v4157 = vsel %vm4063, %v4012, %v2771
      %v4158 = vsel %vm4063, %v4013, %v2773
      %v4159 = vsel %vm4063, %v4014, %v2775
      %v4160 = vsel %vm4063, %v4015, %v2777
      %v4161 = vsel %vm4063, %v4016, %v2779
      %v4162 = vsel %vm4063, %v4017, %v2781
      %v4163 = vsel %vm4063, %v4018, %v2783
      %v4164 = vsel %vm4063, %v4019, %v2785
      %v4165 = vsel %vm4063, %v4020, %v2787
      %v4166 = vsel %vm4063, %v4021, %v2789
      %v4167 = vsel %vm4063, %v4022, %v2791
      %v4168 = vsel %vm4063, %v4023, %v2793
      %v4169 = vsel %vm4063, %v4024, %v2795
      %v4170 = vsel %vm4063, %v4025, %v2797
      %v4171 = vsel %vm4063, %v4026, %v2799
      %v4172 = vsel %vm4063, %v4027, %v2801
      %v4173 = vsel %vm4063, %v4028, %v2803
      %v4174 = vsel %vm4063, %v4029, %v2805
      %v4175 = vsel %vm4063, %v4030, %v2807
      %v4176 = vsel %vm4063, %v4031, %v2809
      %v4177 = vsel %vm4063, %v4032, %v2811
      %v4178 = vsel %vm4063, %v4033, %v2813
      %v4179 = vsel %vm4063, %v4034, %v2815
      %v4180 = vsel %vm4063, %v4035, %v2817
      %v4181 = vsel %vm4063, %v4036, %v2819
      %v4182 = vsel %vm4063, %v4037, %v2821
      %v4183 = vsel %vm4063, %v4038, %v2823
      %v4184 = vsel %vm4063, %v4039, %v2825
      %v4185 = vsel %vm4063, %v4040, %v2827
      %v4186 = vsel %vm4063, %v4041, %v2829
      %v4187 = vsel %vm4063, %v4042, %v2831
      %v4188 = vsel %vm4063, %v4043, %v2833
      %v4189 = vsel %vm4063, %v4044, %v2835
      %v4190 = vsel %vm4063, %v4045, %v2837
      %v4191 = vsel %vm4063, %v4046, %v2839
      %v4192 = vsel %vm4063, %v4047, %v2841
      %v4193 = vsel %vm4063, %v4048, %v2843
      %v4194 = vsel %vm4063, %v4049, %v2845
      %v4195 = vsel %vm4063, %v4050, %v2847
      %v4196 = vsel %vm4063, %v4051, %v2849
      %v4197 = vsel %vm4063, %v4052, %v2851
      %v4198 = vsel %vm4063, %v4053, %v2853
      %v4199 = vsel %vm4063, %v4054, %v2855
      %v4200 = vsel %vm4063, %v4055, %v2857
      %v4201 = vsel %vm4063, %v4056, %v2859
      %v4202 = vsel %vm4063, %v4057, %v2861
      %v4203 = vsel %vm4063, %v4058, %v2863
      %v4204 = vsel %vm4063, %v4059, %v2865
      %v4205 = vsel %vm4063, %v4060, %v2867
      %v4206 = vsel %vm4063, %v4061, %v2869
      %v4207 = vsel %vm4063, %v4062, %v2871
      %vm4208 = vcmask 261120
      %v4209 = vsel %vm4208, %v4064, %v3342
      %v4210 = vsel %vm4208, %v4065, %v3344
      %v4211 = vsel %vm4208, %v4066, %v3346
      %v4212 = vsel %vm4208, %v4067, %v3348
      %v4213 = vsel %vm4208, %v4068, %v3350
      %v4214 = vsel %vm4208, %v4069, %v3352
      %v4215 = vsel %vm4208, %v4070, %v3354
      %v4216 = vsel %vm4208, %v4071, %v3356
      %v4217 = vsel %vm4208, %v4072, %v3358
      %v4218 = vsel %vm4208, %v4073, %v3360
      %v4219 = vsel %vm4208, %v4074, %v3362
      %v4220 = vsel %vm4208, %v4075, %v3364
      %v4221 = vsel %vm4208, %v4076, %v3366
      %v4222 = vsel %vm4208, %v4077, %v3368
      %v4223 = vsel %vm4208, %v4078, %v3370
      %v4224 = vsel %vm4208, %v4079, %v3372
      %v4225 = vsel %vm4208, %v4080, %v3374
      %v4226 = vsel %vm4208, %v4081, %v3376
      %v4227 = vsel %vm4208, %v4082, %v3378
      %v4228 = vsel %vm4208, %v4083, %v3380
      %v4229 = vsel %vm4208, %v4084, %v3382
      %v4230 = vsel %vm4208, %v4085, %v3384
      %v4231 = vsel %vm4208, %v4086, %v3386
      %v4232 = vsel %vm4208, %v4087, %v3388
      %v4233 = vsel %vm4208, %v4088, %v3390
      %v4234 = vsel %vm4208, %v4089, %v3392
      %v4235 = vsel %vm4208, %v4090, %v3394
      %v4236 = vsel %vm4208, %v4091, %v3396
      %v4237 = vsel %vm4208, %v4092, %v3398
      %v4238 = vsel %vm4208, %v4093, %v3400
      %v4239 = vsel %vm4208, %v4094, %v3402
      %v4240 = vsel %vm4208, %v4095, %v3404
      %v4241 = vsel %vm4208, %v4096, %v3406
      %v4242 = vsel %vm4208, %v4097, %v3408
      %v4243 = vsel %vm4208, %v4098, %v3410
      %v4244 = vsel %vm4208, %v4099, %v3412
      %v4245 = vsel %vm4208, %v4100, %v3414
      %v4246 = vsel %vm4208, %v4101, %v3416
      %v4247 = vsel %vm4208, %v4102, %v3418
      %v4248 = vsel %vm4208, %v4103, %v3420
      %v4249 = vsel %vm4208, %v4104, %v3422
      %v4250 = vsel %vm4208, %v4105, %v3424
      %v4251 = vsel %vm4208, %v4106, %v3426
      %v4252 = vsel %vm4208, %v4107, %v3428
      %v4253 = vsel %vm4208, %v4108, %v3430
      %v4254 = vsel %vm4208, %v4109, %v3432
      %v4255 = vsel %vm4208, %v4110, %v3434
      %v4256 = vsel %vm4208, %v4111, %v3436
      %v4257 = vsel %vm4208, %v4112, %v3438
      %v4258 = vsel %vm4208, %v4113, %v3440
      %v4259 = vsel %vm4208, %v4114, %v3442
      %v4260 = vsel %vm4208, %v4115, %v3444
      %v4261 = vsel %vm4208, %v4116, %v3446
      %v4262 = vsel %vm4208, %v4117, %v3448
      %v4263 = vsel %vm4208, %v4118, %v3450
      %v4264 = vsel %vm4208, %v4119, %v3452
      %v4265 = vsel %vm4208, %v4120, %v3454
      %v4266 = vsel %vm4208, %v4121, %v3456
      %v4267 = vsel %vm4208, %v4122, %v3458
      %v4268 = vsel %vm4208, %v4123, %v3460
      %v4269 = vsel %vm4208, %v4124, %v3462
      %v4270 = vsel %vm4208, %v4125, %v3464
      %v4271 = vsel %vm4208, %v4126, %v3466
      %v4272 = vsel %vm4208, %v4127, %v3468
      %v4273 = vsel %vm4208, %v4128, %v3470
      %v4274 = vsel %vm4208, %v4129, %v3472
      %v4275 = vsel %vm4208, %v4130, %v3474
      %v4276 = vsel %vm4208, %v4131, %v3476
      %v4277 = vsel %vm4208, %v4132, %v3478
      %v4278 = vsel %vm4208, %v4133, %v3480
      %v4279 = vsel %vm4208, %v4134, %v3482
      %v4280 = vsel %vm4208, %v4135, %v3484
      %v4281 = vsel %vm4208, %v4136, %v3486
      %v4282 = vsel %vm4208, %v4137, %v3488
      %v4283 = vsel %vm4208, %v4138, %v3490
      %v4284 = vsel %vm4208, %v4139, %v3492
      %v4285 = vsel %vm4208, %v4140, %v3494
      %v4286 = vsel %vm4208, %v4141, %v3496
      %v4287 = vsel %vm4208, %v4142, %v3498
      %v4288 = vsel %vm4208, %v4143, %v3500
      %v4289 = vsel %vm4208, %v4144, %v3502
      %v4290 = vsel %vm4208, %v4145, %v3504
      %v4291 = vsel %vm4208, %v4146, %v3506
      %v4292 = vsel %vm4208, %v4147, %v3508
      %v4293 = vsel %vm4208, %v4148, %v3510
      %v4294 = vsel %vm4208, %v4149, %v3512
      %v4295 = vsel %vm4208, %v4150, %v3514
      %v4296 = vsel %vm4208, %v4151, %v3516
      %v4297 = vsel %vm4208, %v4152, %v3518
      %v4298 = vsel %vm4208, %v4153, %v3520
      %v4299 = vsel %vm4208, %v4154, %v3522
      %v4300 = vsel %vm4208, %v4155, %v3524
      %v4301 = vsel %vm4208, %v4156, %v3526
      %v4302 = vsel %vm4208, %v4157, %v3528
      %v4303 = vsel %vm4208, %v4158, %v3530
      %v4304 = vsel %vm4208, %v4159, %v3532
      %v4305 = vsel %vm4208, %v4160, %v3534
      %v4306 = vsel %vm4208, %v4161, %v3536
      %v4307 = vsel %vm4208, %v4162, %v3538
      %v4308 = vsel %vm4208, %v4163, %v3540
      %v4309 = vsel %vm4208, %v4164, %v3542
      %v4310 = vsel %vm4208, %v4165, %v3544
      %v4311 = vsel %vm4208, %v4166, %v3546
      %v4312 = vsel %vm4208, %v4167, %v3548
      %v4313 = vsel %vm4208, %v4168, %v3550
      %v4314 = vsel %vm4208, %v4169, %v3552
      %v4315 = vsel %vm4208, %v4170, %v3554
      %v4316 = vsel %vm4208, %v4171, %v3556
      %v4317 = vsel %vm4208, %v4172, %v3558
      %v4318 = vsel %vm4208, %v4173, %v3560
      %v4319 = vsel %vm4208, %v4174, %v3562
      %v4320 = vsel %vm4208, %v4175, %v3564
      %v4321 = vsel %vm4208, %v4176, %v3566
      %v4322 = vsel %vm4208, %v4177, %v3568
      %v4323 = vsel %vm4208, %v4178, %v3570
      %v4324 = vsel %vm4208, %v4179, %v3572
      %v4325 = vsel %vm4208, %v4180, %v3574
      %v4326 = vsel %vm4208, %v4181, %v3576
      %v4327 = vsel %vm4208, %v4182, %v3578
      %v4328 = vsel %vm4208, %v4183, %v3580
      %v4329 = vsel %vm4208, %v4184, %v3582
      %v4330 = vsel %vm4208, %v4185, %v3584
      %v4331 = vsel %vm4208, %v4186, %v3586
      %v4332 = vsel %vm4208, %v4187, %v3588
      %v4333 = vsel %vm4208, %v4188, %v3590
      %v4334 = vsel %vm4208, %v4189, %v3592
      %v4335 = vsel %vm4208, %v4190, %v3594
      %v4336 = vsel %vm4208, %v4191, %v3596
      %v4337 = vsel %vm4208, %v4192, %v3598
      %v4338 = vsel %vm4208, %v4193, %v3600
      %v4339 = vsel %vm4208, %v4194, %v3602
      %v4340 = vsel %vm4208, %v4195, %v3604
      %v4341 = vsel %vm4208, %v4196, %v3606
      %v4342 = vsel %vm4208, %v4197, %v3608
      %v4343 = vsel %vm4208, %v4198, %v3610
      %v4344 = vsel %vm4208, %v4199, %v3612
      %v4345 = vsel %vm4208, %v4200, %v3614
      %v4346 = vsel %vm4208, %v4201, %v3616
      %v4347 = vsel %vm4208, %v4202, %v3618
      %v4348 = vsel %vm4208, %v4203, %v3620
      %v4349 = vsel %vm4208, %v4204, %v3622
      %v4350 = vsel %vm4208, %v4205, %v3624
      %v4351 = vsel %vm4208, %v4206, %v3626
      %v4352 = vsel %vm4208, %v4207, %v3628
      %4481 = vrot.lane.b32.xlu0 %v4213, 40
      %v4482 = vpop.permute.xlu0 %4481
      %4483 = vrot.lane.b32.xlu0 %v4214, 40
      %v4484 = vpop.permute.xlu0 %4483
      %4485 = vrot.lane.b32.xlu0 %v4215, 40
      %v4486 = vpop.permute.xlu0 %4485
      %4487 = vrot.lane.b32.xlu0 %v4216, 40
      %v4488 = vpop.permute.xlu0 %4487
      %4489 = vrot.lane.b32.xlu0 %v4217, 40
      %v4490 = vpop.permute.xlu0 %4489
      %4491 = vrot.lane.b32.xlu0 %v4218, 40
      %v4492 = vpop.permute.xlu0 %4491
      %4493 = vrot.lane.b32.xlu0 %v4219, 40
      %v4494 = vpop.permute.xlu0 %4493
      %4495 = vrot.lane.b32.xlu0 %v4220, 40
      %v4496 = vpop.permute.xlu0 %4495
      %4497 = vrot.lane.b32.xlu0 %v4221, 40
      %v4498 = vpop.permute.xlu0 %4497
      %4499 = vrot.lane.b32.xlu0 %v4222, 40
      %v4500 = vpop.permute.xlu0 %4499
      %4501 = vrot.lane.b32.xlu0 %v4223, 40
      %v4502 = vpop.permute.xlu0 %4501
      %4503 = vrot.lane.b32.xlu0 %v4224, 40
      %v4504 = vpop.permute.xlu0 %4503
      %4505 = vrot.lane.b32.xlu0 %v4225, 40
      %v4506 = vpop.permute.xlu0 %4505
      %4507 = vrot.lane.b32.xlu0 %v4226, 40
      %v4508 = vpop.permute.xlu0 %4507
      %4509 = vrot.lane.b32.xlu0 %v4227, 40
      %v4510 = vpop.permute.xlu0 %4509
      %4511 = vrot.lane.b32.xlu0 %v4228, 40
      %v4512 = vpop.permute.xlu0 %4511
      %4513 = vrot.lane.b32.xlu0 %v4229, 40
      %v4514 = vpop.permute.xlu0 %4513
      %4515 = vrot.lane.b32.xlu0 %v4230, 40
      %v4516 = vpop.permute.xlu0 %4515
      %4517 = vrot.lane.b32.xlu0 %v4231, 40
      %v4518 = vpop.permute.xlu0 %4517
      %4519 = vrot.lane.b32.xlu0 %v4232, 40
      %v4520 = vpop.permute.xlu0 %4519
      %4521 = vrot.lane.b32.xlu0 %v4233, 40
      %v4522 = vpop.permute.xlu0 %4521
      %4523 = vrot.lane.b32.xlu0 %v4234, 40
      %v4524 = vpop.permute.xlu0 %4523
      %4525 = vrot.lane.b32.xlu0 %v4235, 40
      %v4526 = vpop.permute.xlu0 %4525
      %4527 = vrot.lane.b32.xlu0 %v4236, 40
      %v4528 = vpop.permute.xlu0 %4527
      %4529 = vrot.lane.b32.xlu0 %v4237, 40
      %v4530 = vpop.permute.xlu0 %4529
      %4531 = vrot.lane.b32.xlu0 %v4238, 40
      %v4532 = vpop.permute.xlu0 %4531
      %4533 = vrot.lane.b32.xlu0 %v4239, 40
      %v4534 = vpop.permute.xlu0 %4533
      %4535 = vrot.lane.b32.xlu0 %v4240, 40
      %v4536 = vpop.permute.xlu0 %4535
      %4537 = vrot.lane.b32.xlu0 %v4241, 40
      %v4538 = vpop.permute.xlu0 %4537
      %4539 = vrot.lane.b32.xlu0 %v4242, 40
      %v4540 = vpop.permute.xlu0 %4539
      %4541 = vrot.lane.b32.xlu0 %v4243, 40
      %v4542 = vpop.permute.xlu0 %4541
      %4543 = vrot.lane.b32.xlu0 %v4244, 40
      %v4544 = vpop.permute.xlu0 %4543
      %4545 = vrot.lane.b32.xlu0 %v4245, 40
      %v4546 = vpop.permute.xlu0 %4545
      %4547 = vrot.lane.b32.xlu0 %v4246, 40
      %v4548 = vpop.permute.xlu0 %4547
      %4549 = vrot.lane.b32.xlu0 %v4247, 40
      %v4550 = vpop.permute.xlu0 %4549
      %4551 = vrot.lane.b32.xlu0 %v4248, 40
      %v4552 = vpop.permute.xlu0 %4551
      %4553 = vrot.lane.b32.xlu0 %v4249, 40
      %v4554 = vpop.permute.xlu0 %4553
      %4555 = vrot.lane.b32.xlu0 %v4250, 40
      %v4556 = vpop.permute.xlu0 %4555
      %4557 = vrot.lane.b32.xlu0 %v4251, 40
      %v4558 = vpop.permute.xlu0 %4557
      %4559 = vrot.lane.b32.xlu0 %v4252, 40
      %v4560 = vpop.permute.xlu0 %4559
      %4561 = vrot.lane.b32.xlu0 %v4253, 40
      %v4562 = vpop.permute.xlu0 %4561
      %4563 = vrot.lane.b32.xlu0 %v4254, 40
      %v4564 = vpop.permute.xlu0 %4563
      %4565 = vrot.lane.b32.xlu0 %v4255, 40
      %v4566 = vpop.permute.xlu0 %4565
      %4567 = vrot.lane.b32.xlu0 %v4256, 40
      %v4568 = vpop.permute.xlu0 %4567
      %4569 = vrot.lane.b32.xlu0 %v4257, 40
      %v4570 = vpop.permute.xlu0 %4569
      %4571 = vrot.lane.b32.xlu0 %v4258, 40
      %v4572 = vpop.permute.xlu0 %4571
      %4573 = vrot.lane.b32.xlu0 %v4259, 40
      %v4574 = vpop.permute.xlu0 %4573
      %4575 = vrot.lane.b32.xlu0 %v4260, 40
      %v4576 = vpop.permute.xlu0 %4575
      %4577 = vrot.lane.b32.xlu0 %v4261, 40
      %v4578 = vpop.permute.xlu0 %4577
      %4579 = vrot.lane.b32.xlu0 %v4262, 40
      %v4580 = vpop.permute.xlu0 %4579
      %4581 = vrot.lane.b32.xlu0 %v4263, 40
      %v4582 = vpop.permute.xlu0 %4581
      %4583 = vrot.lane.b32.xlu0 %v4264, 40
      %v4584 = vpop.permute.xlu0 %4583
      %4585 = vrot.lane.b32.xlu0 %v4265, 40
      %v4586 = vpop.permute.xlu0 %4585
      %4587 = vrot.lane.b32.xlu0 %v4266, 40
      %v4588 = vpop.permute.xlu0 %4587
      %4589 = vrot.lane.b32.xlu0 %v4267, 40
      %v4590 = vpop.permute.xlu0 %4589
      %4591 = vrot.lane.b32.xlu0 %v4268, 40
      %v4592 = vpop.permute.xlu0 %4591
      %4593 = vrot.lane.b32.xlu0 %v4269, 40
      %v4594 = vpop.permute.xlu0 %4593
      %4595 = vrot.lane.b32.xlu0 %v4270, 40
      %v4596 = vpop.permute.xlu0 %4595
      %4597 = vrot.lane.b32.xlu0 %v4271, 40
      %v4598 = vpop.permute.xlu0 %4597
      %4599 = vrot.lane.b32.xlu0 %v4272, 40
      %v4600 = vpop.permute.xlu0 %4599
      %4601 = vrot.lane.b32.xlu0 %v4273, 40
      %v4602 = vpop.permute.xlu0 %4601
      %4603 = vrot.lane.b32.xlu0 %v4274, 40
      %v4604 = vpop.permute.xlu0 %4603
      %4605 = vrot.lane.b32.xlu0 %v4275, 40
      %v4606 = vpop.permute.xlu0 %4605
      %4607 = vrot.lane.b32.xlu0 %v4276, 40
      %v4608 = vpop.permute.xlu0 %4607
      %4609 = vrot.lane.b32.xlu0 %v4277, 40
      %v4610 = vpop.permute.xlu0 %4609
      %4611 = vrot.lane.b32.xlu0 %v4278, 40
      %v4612 = vpop.permute.xlu0 %4611
      %4613 = vrot.lane.b32.xlu0 %v4279, 40
      %v4614 = vpop.permute.xlu0 %4613
      %4615 = vrot.lane.b32.xlu0 %v4280, 40
      %v4616 = vpop.permute.xlu0 %4615
      %4617 = vrot.lane.b32.xlu0 %v4281, 40
      %v4618 = vpop.permute.xlu0 %4617
      %4619 = vrot.lane.b32.xlu0 %v4282, 40
      %v4620 = vpop.permute.xlu0 %4619
      %4621 = vrot.lane.b32.xlu0 %v4283, 40
      %v4622 = vpop.permute.xlu0 %4621
      %4623 = vrot.lane.b32.xlu0 %v4284, 40
      %v4624 = vpop.permute.xlu0 %4623
      %4625 = vrot.lane.b32.xlu0 %v4285, 40
      %v4626 = vpop.permute.xlu0 %4625
      %4627 = vrot.lane.b32.xlu0 %v4286, 40
      %v4628 = vpop.permute.xlu0 %4627
      %4629 = vrot.lane.b32.xlu0 %v4287, 40
      %v4630 = vpop.permute.xlu0 %4629
      %4631 = vrot.lane.b32.xlu0 %v4288, 40
      %v4632 = vpop.permute.xlu0 %4631
      %4633 = vrot.lane.b32.xlu0 %v4289, 40
      %v4634 = vpop.permute.xlu0 %4633
      %4635 = vrot.lane.b32.xlu0 %v4290, 40
      %v4636 = vpop.permute.xlu0 %4635
      %4637 = vrot.lane.b32.xlu0 %v4291, 40
      %v4638 = vpop.permute.xlu0 %4637
      %4639 = vrot.lane.b32.xlu0 %v4292, 40
      %v4640 = vpop.permute.xlu0 %4639
      %4641 = vrot.lane.b32.xlu0 %v4293, 40
      %v4642 = vpop.permute.xlu0 %4641
      %4643 = vrot.lane.b32.xlu0 %v4294, 40
      %v4644 = vpop.permute.xlu0 %4643
      %4645 = vrot.lane.b32.xlu0 %v4295, 40
      %v4646 = vpop.permute.xlu0 %4645
      %4647 = vrot.lane.b32.xlu0 %v4296, 40
      %v4648 = vpop.permute.xlu0 %4647
      %4649 = vrot.lane.b32.xlu0 %v4297, 40
      %v4650 = vpop.permute.xlu0 %4649
      %4651 = vrot.lane.b32.xlu0 %v4298, 40
      %v4652 = vpop.permute.xlu0 %4651
      %4653 = vrot.lane.b32.xlu0 %v4299, 40
      %v4654 = vpop.permute.xlu0 %4653
      %4655 = vrot.lane.b32.xlu0 %v4300, 40
      %v4656 = vpop.permute.xlu0 %4655
      %4657 = vrot.lane.b32.xlu0 %v4301, 40
      %v4658 = vpop.permute.xlu0 %4657
      %4659 = vrot.lane.b32.xlu0 %v4302, 40
      %v4660 = vpop.permute.xlu0 %4659
      %4661 = vrot.lane.b32.xlu0 %v4303, 40
      %v4662 = vpop.permute.xlu0 %4661
      %4663 = vrot.lane.b32.xlu0 %v4304, 40
      %v4664 = vpop.permute.xlu0 %4663
      %4665 = vrot.lane.b32.xlu0 %v4305, 40
      %v4666 = vpop.permute.xlu0 %4665
      %4667 = vrot.lane.b32.xlu0 %v4306, 40
      %v4668 = vpop.permute.xlu0 %4667
      %4669 = vrot.lane.b32.xlu0 %v4307, 40
      %v4670 = vpop.permute.xlu0 %4669
      %4671 = vrot.lane.b32.xlu0 %v4308, 40
      %v4672 = vpop.permute.xlu0 %4671
      %4673 = vrot.lane.b32.xlu0 %v4309, 40
      %v4674 = vpop.permute.xlu0 %4673
      %4675 = vrot.lane.b32.xlu0 %v4310, 40
      %v4676 = vpop.permute.xlu0 %4675
      %4677 = vrot.lane.b32.xlu0 %v4311, 40
      %v4678 = vpop.permute.xlu0 %4677
      %4679 = vrot.lane.b32.xlu0 %v4312, 40
      %v4680 = vpop.permute.xlu0 %4679
      %4681 = vrot.lane.b32.xlu0 %v4313, 40
      %v4682 = vpop.permute.xlu0 %4681
      %4683 = vrot.lane.b32.xlu0 %v4314, 40
      %v4684 = vpop.permute.xlu0 %4683
      %4685 = vrot.lane.b32.xlu0 %v4315, 40
      %v4686 = vpop.permute.xlu0 %4685
      %4687 = vrot.lane.b32.xlu0 %v4316, 40
      %v4688 = vpop.permute.xlu0 %4687
      %4689 = vrot.lane.b32.xlu0 %v4317, 40
      %v4690 = vpop.permute.xlu0 %4689
      %4691 = vrot.lane.b32.xlu0 %v4318, 40
      %v4692 = vpop.permute.xlu0 %4691
      %4693 = vrot.lane.b32.xlu0 %v4319, 40
      %v4694 = vpop.permute.xlu0 %4693
      %4695 = vrot.lane.b32.xlu0 %v4320, 40
      %v4696 = vpop.permute.xlu0 %4695
      %4697 = vrot.lane.b32.xlu0 %v4321, 40
      %v4698 = vpop.permute.xlu0 %4697
      %4699 = vrot.lane.b32.xlu0 %v4322, 40
      %v4700 = vpop.permute.xlu0 %4699
      %4701 = vrot.lane.b32.xlu0 %v4323, 40
      %v4702 = vpop.permute.xlu0 %4701
      %4703 = vrot.lane.b32.xlu0 %v4324, 40
      %v4704 = vpop.permute.xlu0 %4703
      %4705 = vrot.lane.b32.xlu0 %v4325, 40
      %v4706 = vpop.permute.xlu0 %4705
      %4707 = vrot.lane.b32.xlu0 %v4326, 40
      %v4708 = vpop.permute.xlu0 %4707
      %4709 = vrot.lane.b32.xlu0 %v4327, 40
      %v4710 = vpop.permute.xlu0 %4709
      %4711 = vrot.lane.b32.xlu0 %v4328, 40
      %v4712 = vpop.permute.xlu0 %4711
      %4713 = vrot.lane.b32.xlu0 %v4329, 40
      %v4714 = vpop.permute.xlu0 %4713
      %4715 = vrot.lane.b32.xlu0 %v4330, 40
      %v4716 = vpop.permute.xlu0 %4715
      %4717 = vrot.lane.b32.xlu0 %v4331, 40
      %v4718 = vpop.permute.xlu0 %4717
      %4719 = vrot.lane.b32.xlu0 %v4332, 40
      %v4720 = vpop.permute.xlu0 %4719
      %4721 = vrot.lane.b32.xlu0 %v4333, 40
      %v4722 = vpop.permute.xlu0 %4721
      %4723 = vrot.lane.b32.xlu0 %v4334, 40
      %v4724 = vpop.permute.xlu0 %4723
      %4725 = vrot.lane.b32.xlu0 %v4335, 40
      %v4726 = vpop.permute.xlu0 %4725
      %4727 = vrot.lane.b32.xlu0 %v4336, 40
      %v4728 = vpop.permute.xlu0 %4727
      %4729 = vrot.lane.b32.xlu0 %v4337, 40
      %v4730 = vpop.permute.xlu0 %4729
      %4731 = vrot.lane.b32.xlu0 %v4338, 40
      %v4732 = vpop.permute.xlu0 %4731
      %4733 = vrot.lane.b32.xlu0 %v4339, 40
      %v4734 = vpop.permute.xlu0 %4733
      %4735 = vrot.lane.b32.xlu0 %v4340, 40
      %v4736 = vpop.permute.xlu0 %4735
      %4869 = vrot.lane.b32.xlu0 %v4217, 80
      %v4870 = vpop.permute.xlu0 %4869
      %4871 = vrot.lane.b32.xlu0 %v4218, 80
      %v4872 = vpop.permute.xlu0 %4871
      %4873 = vrot.lane.b32.xlu0 %v4219, 80
      %v4874 = vpop.permute.xlu0 %4873
      %4875 = vrot.lane.b32.xlu0 %v4220, 80
      %v4876 = vpop.permute.xlu0 %4875
      %4877 = vrot.lane.b32.xlu0 %v4221, 80
      %v4878 = vpop.permute.xlu0 %4877
      %4879 = vrot.lane.b32.xlu0 %v4222, 80
      %v4880 = vpop.permute.xlu0 %4879
      %4881 = vrot.lane.b32.xlu0 %v4223, 80
      %v4882 = vpop.permute.xlu0 %4881
      %4883 = vrot.lane.b32.xlu0 %v4224, 80
      %v4884 = vpop.permute.xlu0 %4883
      %4885 = vrot.lane.b32.xlu0 %v4225, 80
      %v4886 = vpop.permute.xlu0 %4885
      %4887 = vrot.lane.b32.xlu0 %v4226, 80
      %v4888 = vpop.permute.xlu0 %4887
      %4889 = vrot.lane.b32.xlu0 %v4227, 80
      %v4890 = vpop.permute.xlu0 %4889
      %4891 = vrot.lane.b32.xlu0 %v4228, 80
      %v4892 = vpop.permute.xlu0 %4891
      %4893 = vrot.lane.b32.xlu0 %v4229, 80
      %v4894 = vpop.permute.xlu0 %4893
      %4895 = vrot.lane.b32.xlu0 %v4230, 80
      %v4896 = vpop.permute.xlu0 %4895
      %4897 = vrot.lane.b32.xlu0 %v4231, 80
      %v4898 = vpop.permute.xlu0 %4897
      %4899 = vrot.lane.b32.xlu0 %v4232, 80
      %v4900 = vpop.permute.xlu0 %4899
      %4901 = vrot.lane.b32.xlu0 %v4233, 80
      %v4902 = vpop.permute.xlu0 %4901
      %4903 = vrot.lane.b32.xlu0 %v4234, 80
      %v4904 = vpop.permute.xlu0 %4903
      %4905 = vrot.lane.b32.xlu0 %v4235, 80
      %v4906 = vpop.permute.xlu0 %4905
      %4907 = vrot.lane.b32.xlu0 %v4236, 80
      %v4908 = vpop.permute.xlu0 %4907
      %4909 = vrot.lane.b32.xlu0 %v4237, 80
      %v4910 = vpop.permute.xlu0 %4909
      %4911 = vrot.lane.b32.xlu0 %v4238, 80
      %v4912 = vpop.permute.xlu0 %4911
      %4913 = vrot.lane.b32.xlu0 %v4239, 80
      %v4914 = vpop.permute.xlu0 %4913
      %4915 = vrot.lane.b32.xlu0 %v4240, 80
      %v4916 = vpop.permute.xlu0 %4915
      %4917 = vrot.lane.b32.xlu0 %v4241, 80
      %v4918 = vpop.permute.xlu0 %4917
      %4919 = vrot.lane.b32.xlu0 %v4242, 80
      %v4920 = vpop.permute.xlu0 %4919
      %4921 = vrot.lane.b32.xlu0 %v4243, 80
      %v4922 = vpop.permute.xlu0 %4921
      %4923 = vrot.lane.b32.xlu0 %v4244, 80
      %v4924 = vpop.permute.xlu0 %4923
      %4925 = vrot.lane.b32.xlu0 %v4245, 80
      %v4926 = vpop.permute.xlu0 %4925
      %4927 = vrot.lane.b32.xlu0 %v4246, 80
      %v4928 = vpop.permute.xlu0 %4927
      %4929 = vrot.lane.b32.xlu0 %v4247, 80
      %v4930 = vpop.permute.xlu0 %4929
      %4931 = vrot.lane.b32.xlu0 %v4248, 80
      %v4932 = vpop.permute.xlu0 %4931
      %4933 = vrot.lane.b32.xlu0 %v4249, 80
      %v4934 = vpop.permute.xlu0 %4933
      %4935 = vrot.lane.b32.xlu0 %v4250, 80
      %v4936 = vpop.permute.xlu0 %4935
      %4937 = vrot.lane.b32.xlu0 %v4251, 80
      %v4938 = vpop.permute.xlu0 %4937
      %4939 = vrot.lane.b32.xlu0 %v4252, 80
      %v4940 = vpop.permute.xlu0 %4939
      %4941 = vrot.lane.b32.xlu0 %v4253, 80
      %v4942 = vpop.permute.xlu0 %4941
      %4943 = vrot.lane.b32.xlu0 %v4254, 80
      %v4944 = vpop.permute.xlu0 %4943
      %4945 = vrot.lane.b32.xlu0 %v4255, 80
      %v4946 = vpop.permute.xlu0 %4945
      %4947 = vrot.lane.b32.xlu0 %v4256, 80
      %v4948 = vpop.permute.xlu0 %4947
      %4949 = vrot.lane.b32.xlu0 %v4257, 80
      %v4950 = vpop.permute.xlu0 %4949
      %4951 = vrot.lane.b32.xlu0 %v4258, 80
      %v4952 = vpop.permute.xlu0 %4951
      %4953 = vrot.lane.b32.xlu0 %v4259, 80
      %v4954 = vpop.permute.xlu0 %4953
      %4955 = vrot.lane.b32.xlu0 %v4260, 80
      %v4956 = vpop.permute.xlu0 %4955
      %4957 = vrot.lane.b32.xlu0 %v4261, 80
      %v4958 = vpop.permute.xlu0 %4957
      %4959 = vrot.lane.b32.xlu0 %v4262, 80
      %v4960 = vpop.permute.xlu0 %4959
      %4961 = vrot.lane.b32.xlu0 %v4263, 80
      %v4962 = vpop.permute.xlu0 %4961
      %4963 = vrot.lane.b32.xlu0 %v4264, 80
      %v4964 = vpop.permute.xlu0 %4963
      %4965 = vrot.lane.b32.xlu0 %v4265, 80
      %v4966 = vpop.permute.xlu0 %4965
      %4967 = vrot.lane.b32.xlu0 %v4266, 80
      %v4968 = vpop.permute.xlu0 %4967
      %4969 = vrot.lane.b32.xlu0 %v4267, 80
      %v4970 = vpop.permute.xlu0 %4969
      %4971 = vrot.lane.b32.xlu0 %v4268, 80
      %v4972 = vpop.permute.xlu0 %4971
      %4973 = vrot.lane.b32.xlu0 %v4269, 80
      %v4974 = vpop.permute.xlu0 %4973
      %4975 = vrot.lane.b32.xlu0 %v4270, 80
      %v4976 = vpop.permute.xlu0 %4975
      %4977 = vrot.lane.b32.xlu0 %v4271, 80
      %v4978 = vpop.permute.xlu0 %4977
      %4979 = vrot.lane.b32.xlu0 %v4272, 80
      %v4980 = vpop.permute.xlu0 %4979
      %4981 = vrot.lane.b32.xlu0 %v4273, 80
      %v4982 = vpop.permute.xlu0 %4981
      %4983 = vrot.lane.b32.xlu0 %v4274, 80
      %v4984 = vpop.permute.xlu0 %4983
      %4985 = vrot.lane.b32.xlu0 %v4275, 80
      %v4986 = vpop.permute.xlu0 %4985
      %4987 = vrot.lane.b32.xlu0 %v4276, 80
      %v4988 = vpop.permute.xlu0 %4987
      %4989 = vrot.lane.b32.xlu0 %v4277, 80
      %v4990 = vpop.permute.xlu0 %4989
      %4991 = vrot.lane.b32.xlu0 %v4278, 80
      %v4992 = vpop.permute.xlu0 %4991
      %4993 = vrot.lane.b32.xlu0 %v4279, 80
      %v4994 = vpop.permute.xlu0 %4993
      %4995 = vrot.lane.b32.xlu0 %v4280, 80
      %v4996 = vpop.permute.xlu0 %4995
      %4997 = vrot.lane.b32.xlu0 %v4281, 80
      %v4998 = vpop.permute.xlu0 %4997
      %4999 = vrot.lane.b32.xlu0 %v4282, 80
      %v5000 = vpop.permute.xlu0 %4999
      %5001 = vrot.lane.b32.xlu0 %v4283, 80
      %v5002 = vpop.permute.xlu0 %5001
      %5003 = vrot.lane.b32.xlu0 %v4284, 80
      %v5004 = vpop.permute.xlu0 %5003
      %5005 = vrot.lane.b32.xlu0 %v4285, 80
      %v5006 = vpop.permute.xlu0 %5005
      %5007 = vrot.lane.b32.xlu0 %v4286, 80
      %v5008 = vpop.permute.xlu0 %5007
      %5009 = vrot.lane.b32.xlu0 %v4287, 80
      %v5010 = vpop.permute.xlu0 %5009
      %5011 = vrot.lane.b32.xlu0 %v4288, 80
      %v5012 = vpop.permute.xlu0 %5011
      %5013 = vrot.lane.b32.xlu0 %v4289, 80
      %v5014 = vpop.permute.xlu0 %5013
      %5015 = vrot.lane.b32.xlu0 %v4290, 80
      %v5016 = vpop.permute.xlu0 %5015
      %5017 = vrot.lane.b32.xlu0 %v4291, 80
      %v5018 = vpop.permute.xlu0 %5017
      %5019 = vrot.lane.b32.xlu0 %v4292, 80
      %v5020 = vpop.permute.xlu0 %5019
      %5021 = vrot.lane.b32.xlu0 %v4293, 80
      %v5022 = vpop.permute.xlu0 %5021
      %5023 = vrot.lane.b32.xlu0 %v4294, 80
      %v5024 = vpop.permute.xlu0 %5023
      %5025 = vrot.lane.b32.xlu0 %v4295, 80
      %v5026 = vpop.permute.xlu0 %5025
      %5027 = vrot.lane.b32.xlu0 %v4296, 80
      %v5028 = vpop.permute.xlu0 %5027
      %5029 = vrot.lane.b32.xlu0 %v4297, 80
      %v5030 = vpop.permute.xlu0 %5029
      %5031 = vrot.lane.b32.xlu0 %v4298, 80
      %v5032 = vpop.permute.xlu0 %5031
      %5033 = vrot.lane.b32.xlu0 %v4299, 80
      %v5034 = vpop.permute.xlu0 %5033
      %5035 = vrot.lane.b32.xlu0 %v4300, 80
      %v5036 = vpop.permute.xlu0 %5035
      %5037 = vrot.lane.b32.xlu0 %v4301, 80
      %v5038 = vpop.permute.xlu0 %5037
      %5039 = vrot.lane.b32.xlu0 %v4302, 80
      %v5040 = vpop.permute.xlu0 %5039
      %5041 = vrot.lane.b32.xlu0 %v4303, 80
      %v5042 = vpop.permute.xlu0 %5041
      %5043 = vrot.lane.b32.xlu0 %v4304, 80
      %v5044 = vpop.permute.xlu0 %5043
      %5045 = vrot.lane.b32.xlu0 %v4305, 80
      %v5046 = vpop.permute.xlu0 %5045
      %5047 = vrot.lane.b32.xlu0 %v4306, 80
      %v5048 = vpop.permute.xlu0 %5047
      %5049 = vrot.lane.b32.xlu0 %v4307, 80
      %v5050 = vpop.permute.xlu0 %5049
      %5051 = vrot.lane.b32.xlu0 %v4308, 80
      %v5052 = vpop.permute.xlu0 %5051
      %5053 = vrot.lane.b32.xlu0 %v4309, 80
      %v5054 = vpop.permute.xlu0 %5053
      %5055 = vrot.lane.b32.xlu0 %v4310, 80
      %v5056 = vpop.permute.xlu0 %5055
      %5057 = vrot.lane.b32.xlu0 %v4311, 80
      %v5058 = vpop.permute.xlu0 %5057
      %5059 = vrot.lane.b32.xlu0 %v4312, 80
      %v5060 = vpop.permute.xlu0 %5059
      %5061 = vrot.lane.b32.xlu0 %v4313, 80
      %v5062 = vpop.permute.xlu0 %5061
      %5063 = vrot.lane.b32.xlu0 %v4314, 80
      %v5064 = vpop.permute.xlu0 %5063
      %5065 = vrot.lane.b32.xlu0 %v4315, 80
      %v5066 = vpop.permute.xlu0 %5065
      %5067 = vrot.lane.b32.xlu0 %v4316, 80
      %v5068 = vpop.permute.xlu0 %5067
      %5069 = vrot.lane.b32.xlu0 %v4317, 80
      %v5070 = vpop.permute.xlu0 %5069
      %5071 = vrot.lane.b32.xlu0 %v4318, 80
      %v5072 = vpop.permute.xlu0 %5071
      %5073 = vrot.lane.b32.xlu0 %v4319, 80
      %v5074 = vpop.permute.xlu0 %5073
      %5075 = vrot.lane.b32.xlu0 %v4320, 80
      %v5076 = vpop.permute.xlu0 %5075
      %5077 = vrot.lane.b32.xlu0 %v4321, 80
      %v5078 = vpop.permute.xlu0 %5077
      %5079 = vrot.lane.b32.xlu0 %v4322, 80
      %v5080 = vpop.permute.xlu0 %5079
      %5081 = vrot.lane.b32.xlu0 %v4323, 80
      %v5082 = vpop.permute.xlu0 %5081
      %5083 = vrot.lane.b32.xlu0 %v4324, 80
      %v5084 = vpop.permute.xlu0 %5083
      %5085 = vrot.lane.b32.xlu0 %v4325, 80
      %v5086 = vpop.permute.xlu0 %5085
      %5087 = vrot.lane.b32.xlu0 %v4326, 80
      %v5088 = vpop.permute.xlu0 %5087
      %5089 = vrot.lane.b32.xlu0 %v4327, 80
      %v5090 = vpop.permute.xlu0 %5089
      %5091 = vrot.lane.b32.xlu0 %v4328, 80
      %v5092 = vpop.permute.xlu0 %5091
      %5093 = vrot.lane.b32.xlu0 %v4329, 80
      %v5094 = vpop.permute.xlu0 %5093
      %5095 = vrot.lane.b32.xlu0 %v4330, 80
      %v5096 = vpop.permute.xlu0 %5095
      %5097 = vrot.lane.b32.xlu0 %v4331, 80
      %v5098 = vpop.permute.xlu0 %5097
      %5099 = vrot.lane.b32.xlu0 %v4332, 80
      %v5100 = vpop.permute.xlu0 %5099
      %5101 = vrot.lane.b32.xlu0 %v4333, 80
      %v5102 = vpop.permute.xlu0 %5101
      %5103 = vrot.lane.b32.xlu0 %v4334, 80
      %v5104 = vpop.permute.xlu0 %5103
      %5105 = vrot.lane.b32.xlu0 %v4335, 80
      %v5106 = vpop.permute.xlu0 %5105
      %5107 = vrot.lane.b32.xlu0 %v4336, 80
      %v5108 = vpop.permute.xlu0 %5107
      %5109 = vrot.lane.b32.xlu0 %v4337, 80
      %v5110 = vpop.permute.xlu0 %5109
      %5111 = vrot.lane.b32.xlu0 %v4338, 80
      %v5112 = vpop.permute.xlu0 %5111
      %5113 = vrot.lane.b32.xlu0 %v4339, 80
      %v5114 = vpop.permute.xlu0 %5113
      %5115 = vrot.lane.b32.xlu0 %v4340, 80
      %v5116 = vpop.permute.xlu0 %5115
      %5117 = vrot.lane.b32.xlu0 %v4341, 80
      %v5118 = vpop.permute.xlu0 %5117
      %5119 = vrot.lane.b32.xlu0 %v4342, 80
      %v5120 = vpop.permute.xlu0 %5119
      %5121 = vrot.lane.b32.xlu0 %v4343, 80
      %v5122 = vpop.permute.xlu0 %5121
      %5123 = vrot.lane.b32.xlu0 %v4344, 80
      %v5124 = vpop.permute.xlu0 %5123
      %5257 = vrot.lane.b32.xlu0 %v4221, 120
      %v5258 = vpop.permute.xlu0 %5257
      %5259 = vrot.lane.b32.xlu0 %v4222, 120
      %v5260 = vpop.permute.xlu0 %5259
      %5261 = vrot.lane.b32.xlu0 %v4223, 120
      %v5262 = vpop.permute.xlu0 %5261
      %5263 = vrot.lane.b32.xlu0 %v4224, 120
      %v5264 = vpop.permute.xlu0 %5263
      %5265 = vrot.lane.b32.xlu0 %v4225, 120
      %v5266 = vpop.permute.xlu0 %5265
      %5267 = vrot.lane.b32.xlu0 %v4226, 120
      %v5268 = vpop.permute.xlu0 %5267
      %5269 = vrot.lane.b32.xlu0 %v4227, 120
      %v5270 = vpop.permute.xlu0 %5269
      %5271 = vrot.lane.b32.xlu0 %v4228, 120
      %v5272 = vpop.permute.xlu0 %5271
      %5273 = vrot.lane.b32.xlu0 %v4229, 120
      %v5274 = vpop.permute.xlu0 %5273
      %5275 = vrot.lane.b32.xlu0 %v4230, 120
      %v5276 = vpop.permute.xlu0 %5275
      %5277 = vrot.lane.b32.xlu0 %v4231, 120
      %v5278 = vpop.permute.xlu0 %5277
      %5279 = vrot.lane.b32.xlu0 %v4232, 120
      %v5280 = vpop.permute.xlu0 %5279
      %5281 = vrot.lane.b32.xlu0 %v4233, 120
      %v5282 = vpop.permute.xlu0 %5281
      %5283 = vrot.lane.b32.xlu0 %v4234, 120
      %v5284 = vpop.permute.xlu0 %5283
      %5285 = vrot.lane.b32.xlu0 %v4235, 120
      %v5286 = vpop.permute.xlu0 %5285
      %5287 = vrot.lane.b32.xlu0 %v4236, 120
      %v5288 = vpop.permute.xlu0 %5287
      %5289 = vrot.lane.b32.xlu0 %v4237, 120
      %v5290 = vpop.permute.xlu0 %5289
      %5291 = vrot.lane.b32.xlu0 %v4238, 120
      %v5292 = vpop.permute.xlu0 %5291
      %5293 = vrot.lane.b32.xlu0 %v4239, 120
      %v5294 = vpop.permute.xlu0 %5293
      %5295 = vrot.lane.b32.xlu0 %v4240, 120
      %v5296 = vpop.permute.xlu0 %5295
      %5297 = vrot.lane.b32.xlu0 %v4241, 120
      %v5298 = vpop.permute.xlu0 %5297
      %5299 = vrot.lane.b32.xlu0 %v4242, 120
      %v5300 = vpop.permute.xlu0 %5299
      %5301 = vrot.lane.b32.xlu0 %v4243, 120
      %v5302 = vpop.permute.xlu0 %5301
      %5303 = vrot.lane.b32.xlu0 %v4244, 120
      %v5304 = vpop.permute.xlu0 %5303
      %5305 = vrot.lane.b32.xlu0 %v4245, 120
      %v5306 = vpop.permute.xlu0 %5305
      %5307 = vrot.lane.b32.xlu0 %v4246, 120
      %v5308 = vpop.permute.xlu0 %5307
      %5309 = vrot.lane.b32.xlu0 %v4247, 120
      %v5310 = vpop.permute.xlu0 %5309
      %5311 = vrot.lane.b32.xlu0 %v4248, 120
      %v5312 = vpop.permute.xlu0 %5311
      %5313 = vrot.lane.b32.xlu0 %v4249, 120
      %v5314 = vpop.permute.xlu0 %5313
      %5315 = vrot.lane.b32.xlu0 %v4250, 120
      %v5316 = vpop.permute.xlu0 %5315
      %5317 = vrot.lane.b32.xlu0 %v4251, 120
      %v5318 = vpop.permute.xlu0 %5317
      %5319 = vrot.lane.b32.xlu0 %v4252, 120
      %v5320 = vpop.permute.xlu0 %5319
      %5321 = vrot.lane.b32.xlu0 %v4253, 120
      %v5322 = vpop.permute.xlu0 %5321
      %5323 = vrot.lane.b32.xlu0 %v4254, 120
      %v5324 = vpop.permute.xlu0 %5323
      %5325 = vrot.lane.b32.xlu0 %v4255, 120
      %v5326 = vpop.permute.xlu0 %5325
      %5327 = vrot.lane.b32.xlu0 %v4256, 120
      %v5328 = vpop.permute.xlu0 %5327
      %5329 = vrot.lane.b32.xlu0 %v4257, 120
      %v5330 = vpop.permute.xlu0 %5329
      %5331 = vrot.lane.b32.xlu0 %v4258, 120
      %v5332 = vpop.permute.xlu0 %5331
      %5333 = vrot.lane.b32.xlu0 %v4259, 120
      %v5334 = vpop.permute.xlu0 %5333
      %5335 = vrot.lane.b32.xlu0 %v4260, 120
      %v5336 = vpop.permute.xlu0 %5335
      %5337 = vrot.lane.b32.xlu0 %v4261, 120
      %v5338 = vpop.permute.xlu0 %5337
      %5339 = vrot.lane.b32.xlu0 %v4262, 120
      %v5340 = vpop.permute.xlu0 %5339
      %5341 = vrot.lane.b32.xlu0 %v4263, 120
      %v5342 = vpop.permute.xlu0 %5341
      %5343 = vrot.lane.b32.xlu0 %v4264, 120
      %v5344 = vpop.permute.xlu0 %5343
      %5345 = vrot.lane.b32.xlu0 %v4265, 120
      %v5346 = vpop.permute.xlu0 %5345
      %5347 = vrot.lane.b32.xlu0 %v4266, 120
      %v5348 = vpop.permute.xlu0 %5347
      %5349 = vrot.lane.b32.xlu0 %v4267, 120
      %v5350 = vpop.permute.xlu0 %5349
      %5351 = vrot.lane.b32.xlu0 %v4268, 120
      %v5352 = vpop.permute.xlu0 %5351
      %5353 = vrot.lane.b32.xlu0 %v4269, 120
      %v5354 = vpop.permute.xlu0 %5353
      %5355 = vrot.lane.b32.xlu0 %v4270, 120
      %v5356 = vpop.permute.xlu0 %5355
      %5357 = vrot.lane.b32.xlu0 %v4271, 120
      %v5358 = vpop.permute.xlu0 %5357
      %5359 = vrot.lane.b32.xlu0 %v4272, 120
      %v5360 = vpop.permute.xlu0 %5359
      %5361 = vrot.lane.b32.xlu0 %v4273, 120
      %v5362 = vpop.permute.xlu0 %5361
      %5363 = vrot.lane.b32.xlu0 %v4274, 120
      %v5364 = vpop.permute.xlu0 %5363
      %5365 = vrot.lane.b32.xlu0 %v4275, 120
      %v5366 = vpop.permute.xlu0 %5365
      %5367 = vrot.lane.b32.xlu0 %v4276, 120
      %v5368 = vpop.permute.xlu0 %5367
      %5369 = vrot.lane.b32.xlu0 %v4277, 120
      %v5370 = vpop.permute.xlu0 %5369
      %5371 = vrot.lane.b32.xlu0 %v4278, 120
      %v5372 = vpop.permute.xlu0 %5371
      %5373 = vrot.lane.b32.xlu0 %v4279, 120
      %v5374 = vpop.permute.xlu0 %5373
      %5375 = vrot.lane.b32.xlu0 %v4280, 120
      %v5376 = vpop.permute.xlu0 %5375
      %5377 = vrot.lane.b32.xlu0 %v4281, 120
      %v5378 = vpop.permute.xlu0 %5377
      %5379 = vrot.lane.b32.xlu0 %v4282, 120
      %v5380 = vpop.permute.xlu0 %5379
      %5381 = vrot.lane.b32.xlu0 %v4283, 120
      %v5382 = vpop.permute.xlu0 %5381
      %5383 = vrot.lane.b32.xlu0 %v4284, 120
      %v5384 = vpop.permute.xlu0 %5383
      %5385 = vrot.lane.b32.xlu0 %v4285, 120
      %v5386 = vpop.permute.xlu0 %5385
      %5387 = vrot.lane.b32.xlu0 %v4286, 120
      %v5388 = vpop.permute.xlu0 %5387
      %5389 = vrot.lane.b32.xlu0 %v4287, 120
      %v5390 = vpop.permute.xlu0 %5389
      %5391 = vrot.lane.b32.xlu0 %v4288, 120
      %v5392 = vpop.permute.xlu0 %5391
      %5393 = vrot.lane.b32.xlu0 %v4289, 120
      %v5394 = vpop.permute.xlu0 %5393
      %5395 = vrot.lane.b32.xlu0 %v4290, 120
      %v5396 = vpop.permute.xlu0 %5395
      %5397 = vrot.lane.b32.xlu0 %v4291, 120
      %v5398 = vpop.permute.xlu0 %5397
      %5399 = vrot.lane.b32.xlu0 %v4292, 120
      %v5400 = vpop.permute.xlu0 %5399
      %5401 = vrot.lane.b32.xlu0 %v4293, 120
      %v5402 = vpop.permute.xlu0 %5401
      %5403 = vrot.lane.b32.xlu0 %v4294, 120
      %v5404 = vpop.permute.xlu0 %5403
      %5405 = vrot.lane.b32.xlu0 %v4295, 120
      %v5406 = vpop.permute.xlu0 %5405
      %5407 = vrot.lane.b32.xlu0 %v4296, 120
      %v5408 = vpop.permute.xlu0 %5407
      %5409 = vrot.lane.b32.xlu0 %v4297, 120
      %v5410 = vpop.permute.xlu0 %5409
      %5411 = vrot.lane.b32.xlu0 %v4298, 120
      %v5412 = vpop.permute.xlu0 %5411
      %5413 = vrot.lane.b32.xlu0 %v4299, 120
      %v5414 = vpop.permute.xlu0 %5413
      %5415 = vrot.lane.b32.xlu0 %v4300, 120
      %v5416 = vpop.permute.xlu0 %5415
      %5417 = vrot.lane.b32.xlu0 %v4301, 120
      %v5418 = vpop.permute.xlu0 %5417
      %5419 = vrot.lane.b32.xlu0 %v4302, 120
      %v5420 = vpop.permute.xlu0 %5419
      %5421 = vrot.lane.b32.xlu0 %v4303, 120
      %v5422 = vpop.permute.xlu0 %5421
      %5423 = vrot.lane.b32.xlu0 %v4304, 120
      %v5424 = vpop.permute.xlu0 %5423
      %5425 = vrot.lane.b32.xlu0 %v4305, 120
      %v5426 = vpop.permute.xlu0 %5425
      %5427 = vrot.lane.b32.xlu0 %v4306, 120
      %v5428 = vpop.permute.xlu0 %5427
      %5429 = vrot.lane.b32.xlu0 %v4307, 120
      %v5430 = vpop.permute.xlu0 %5429
      %5431 = vrot.lane.b32.xlu0 %v4308, 120
      %v5432 = vpop.permute.xlu0 %5431
      %5433 = vrot.lane.b32.xlu0 %v4309, 120
      %v5434 = vpop.permute.xlu0 %5433
      %5435 = vrot.lane.b32.xlu0 %v4310, 120
      %v5436 = vpop.permute.xlu0 %5435
      %5437 = vrot.lane.b32.xlu0 %v4311, 120
      %v5438 = vpop.permute.xlu0 %5437
      %5439 = vrot.lane.b32.xlu0 %v4312, 120
      %v5440 = vpop.permute.xlu0 %5439
      %5441 = vrot.lane.b32.xlu0 %v4313, 120
      %v5442 = vpop.permute.xlu0 %5441
      %5443 = vrot.lane.b32.xlu0 %v4314, 120
      %v5444 = vpop.permute.xlu0 %5443
      %5445 = vrot.lane.b32.xlu0 %v4315, 120
      %v5446 = vpop.permute.xlu0 %5445
      %5447 = vrot.lane.b32.xlu0 %v4316, 120
      %v5448 = vpop.permute.xlu0 %5447
      %5449 = vrot.lane.b32.xlu0 %v4317, 120
      %v5450 = vpop.permute.xlu0 %5449
      %5451 = vrot.lane.b32.xlu0 %v4318, 120
      %v5452 = vpop.permute.xlu0 %5451
      %5453 = vrot.lane.b32.xlu0 %v4319, 120
      %v5454 = vpop.permute.xlu0 %5453
      %5455 = vrot.lane.b32.xlu0 %v4320, 120
      %v5456 = vpop.permute.xlu0 %5455
      %5457 = vrot.lane.b32.xlu0 %v4321, 120
      %v5458 = vpop.permute.xlu0 %5457
      %5459 = vrot.lane.b32.xlu0 %v4322, 120
      %v5460 = vpop.permute.xlu0 %5459
      %5461 = vrot.lane.b32.xlu0 %v4323, 120
      %v5462 = vpop.permute.xlu0 %5461
      %5463 = vrot.lane.b32.xlu0 %v4324, 120
      %v5464 = vpop.permute.xlu0 %5463
      %5465 = vrot.lane.b32.xlu0 %v4325, 120
      %v5466 = vpop.permute.xlu0 %5465
      %5467 = vrot.lane.b32.xlu0 %v4326, 120
      %v5468 = vpop.permute.xlu0 %5467
      %5469 = vrot.lane.b32.xlu0 %v4327, 120
      %v5470 = vpop.permute.xlu0 %5469
      %5471 = vrot.lane.b32.xlu0 %v4328, 120
      %v5472 = vpop.permute.xlu0 %5471
      %5473 = vrot.lane.b32.xlu0 %v4329, 120
      %v5474 = vpop.permute.xlu0 %5473
      %5475 = vrot.lane.b32.xlu0 %v4330, 120
      %v5476 = vpop.permute.xlu0 %5475
      %5477 = vrot.lane.b32.xlu0 %v4331, 120
      %v5478 = vpop.permute.xlu0 %5477
      %5479 = vrot.lane.b32.xlu0 %v4332, 120
      %v5480 = vpop.permute.xlu0 %5479
      %5481 = vrot.lane.b32.xlu0 %v4333, 120
      %v5482 = vpop.permute.xlu0 %5481
      %5483 = vrot.lane.b32.xlu0 %v4334, 120
      %v5484 = vpop.permute.xlu0 %5483
      %5485 = vrot.lane.b32.xlu0 %v4335, 120
      %v5486 = vpop.permute.xlu0 %5485
      %5487 = vrot.lane.b32.xlu0 %v4336, 120
      %v5488 = vpop.permute.xlu0 %5487
      %5489 = vrot.lane.b32.xlu0 %v4337, 120
      %v5490 = vpop.permute.xlu0 %5489
      %5491 = vrot.lane.b32.xlu0 %v4338, 120
      %v5492 = vpop.permute.xlu0 %5491
      %5493 = vrot.lane.b32.xlu0 %v4339, 120
      %v5494 = vpop.permute.xlu0 %5493
      %5495 = vrot.lane.b32.xlu0 %v4340, 120
      %v5496 = vpop.permute.xlu0 %5495
      %5497 = vrot.lane.b32.xlu0 %v4341, 120
      %v5498 = vpop.permute.xlu0 %5497
      %5499 = vrot.lane.b32.xlu0 %v4342, 120
      %v5500 = vpop.permute.xlu0 %5499
      %5501 = vrot.lane.b32.xlu0 %v4343, 120
      %v5502 = vpop.permute.xlu0 %5501
      %5503 = vrot.lane.b32.xlu0 %v4344, 120
      %v5504 = vpop.permute.xlu0 %5503
      %5505 = vrot.lane.b32.xlu0 %v4345, 120
      %v5506 = vpop.permute.xlu0 %5505
      %5507 = vrot.lane.b32.xlu0 %v4346, 120
      %v5508 = vpop.permute.xlu0 %5507
      %5509 = vrot.lane.b32.xlu0 %v4347, 120
      %v5510 = vpop.permute.xlu0 %5509
      %5511 = vrot.lane.b32.xlu0 %v4348, 120
      %v5512 = vpop.permute.xlu0 %5511
      %5645 = vrot.lane.b32.xlu0 %v4225, 32
      %v5646 = vpop.permute.xlu0 %5645
      %5647 = vrot.lane.b32.xlu0 %v4226, 32
      %v5648 = vpop.permute.xlu0 %5647
      %5649 = vrot.lane.b32.xlu0 %v4227, 32
      %v5650 = vpop.permute.xlu0 %5649
      %5651 = vrot.lane.b32.xlu0 %v4228, 32
      %v5652 = vpop.permute.xlu0 %5651
      %5653 = vrot.lane.b32.xlu0 %v4229, 32
      %v5654 = vpop.permute.xlu0 %5653
      %5655 = vrot.lane.b32.xlu0 %v4230, 32
      %v5656 = vpop.permute.xlu0 %5655
      %5657 = vrot.lane.b32.xlu0 %v4231, 32
      %v5658 = vpop.permute.xlu0 %5657
      %5659 = vrot.lane.b32.xlu0 %v4232, 32
      %v5660 = vpop.permute.xlu0 %5659
      %5661 = vrot.lane.b32.xlu0 %v4233, 32
      %v5662 = vpop.permute.xlu0 %5661
      %5663 = vrot.lane.b32.xlu0 %v4234, 32
      %v5664 = vpop.permute.xlu0 %5663
      %5665 = vrot.lane.b32.xlu0 %v4235, 32
      %v5666 = vpop.permute.xlu0 %5665
      %5667 = vrot.lane.b32.xlu0 %v4236, 32
      %v5668 = vpop.permute.xlu0 %5667
      %5669 = vrot.lane.b32.xlu0 %v4237, 32
      %v5670 = vpop.permute.xlu0 %5669
      %5671 = vrot.lane.b32.xlu0 %v4238, 32
      %v5672 = vpop.permute.xlu0 %5671
      %5673 = vrot.lane.b32.xlu0 %v4239, 32
      %v5674 = vpop.permute.xlu0 %5673
      %5675 = vrot.lane.b32.xlu0 %v4240, 32
      %v5676 = vpop.permute.xlu0 %5675
      %5677 = vrot.lane.b32.xlu0 %v4241, 32
      %v5678 = vpop.permute.xlu0 %5677
      %5679 = vrot.lane.b32.xlu0 %v4242, 32
      %v5680 = vpop.permute.xlu0 %5679
      %5681 = vrot.lane.b32.xlu0 %v4243, 32
      %v5682 = vpop.permute.xlu0 %5681
      %5683 = vrot.lane.b32.xlu0 %v4244, 32
      %v5684 = vpop.permute.xlu0 %5683
      %5685 = vrot.lane.b32.xlu0 %v4245, 32
      %v5686 = vpop.permute.xlu0 %5685
      %5687 = vrot.lane.b32.xlu0 %v4246, 32
      %v5688 = vpop.permute.xlu0 %5687
      %5689 = vrot.lane.b32.xlu0 %v4247, 32
      %v5690 = vpop.permute.xlu0 %5689
      %5691 = vrot.lane.b32.xlu0 %v4248, 32
      %v5692 = vpop.permute.xlu0 %5691
      %5693 = vrot.lane.b32.xlu0 %v4249, 32
      %v5694 = vpop.permute.xlu0 %5693
      %5695 = vrot.lane.b32.xlu0 %v4250, 32
      %v5696 = vpop.permute.xlu0 %5695
      %5697 = vrot.lane.b32.xlu0 %v4251, 32
      %v5698 = vpop.permute.xlu0 %5697
      %5699 = vrot.lane.b32.xlu0 %v4252, 32
      %v5700 = vpop.permute.xlu0 %5699
      %5701 = vrot.lane.b32.xlu0 %v4253, 32
      %v5702 = vpop.permute.xlu0 %5701
      %5703 = vrot.lane.b32.xlu0 %v4254, 32
      %v5704 = vpop.permute.xlu0 %5703
      %5705 = vrot.lane.b32.xlu0 %v4255, 32
      %v5706 = vpop.permute.xlu0 %5705
      %5707 = vrot.lane.b32.xlu0 %v4256, 32
      %v5708 = vpop.permute.xlu0 %5707
      %5709 = vrot.lane.b32.xlu0 %v4257, 32
      %v5710 = vpop.permute.xlu0 %5709
      %5711 = vrot.lane.b32.xlu0 %v4258, 32
      %v5712 = vpop.permute.xlu0 %5711
      %5713 = vrot.lane.b32.xlu0 %v4259, 32
      %v5714 = vpop.permute.xlu0 %5713
      %5715 = vrot.lane.b32.xlu0 %v4260, 32
      %v5716 = vpop.permute.xlu0 %5715
      %5717 = vrot.lane.b32.xlu0 %v4261, 32
      %v5718 = vpop.permute.xlu0 %5717
      %5719 = vrot.lane.b32.xlu0 %v4262, 32
      %v5720 = vpop.permute.xlu0 %5719
      %5721 = vrot.lane.b32.xlu0 %v4263, 32
      %v5722 = vpop.permute.xlu0 %5721
      %5723 = vrot.lane.b32.xlu0 %v4264, 32
      %v5724 = vpop.permute.xlu0 %5723
      %5725 = vrot.lane.b32.xlu0 %v4265, 32
      %v5726 = vpop.permute.xlu0 %5725
      %5727 = vrot.lane.b32.xlu0 %v4266, 32
      %v5728 = vpop.permute.xlu0 %5727
      %5729 = vrot.lane.b32.xlu0 %v4267, 32
      %v5730 = vpop.permute.xlu0 %5729
      %5731 = vrot.lane.b32.xlu0 %v4268, 32
      %v5732 = vpop.permute.xlu0 %5731
      %5733 = vrot.lane.b32.xlu0 %v4269, 32
      %v5734 = vpop.permute.xlu0 %5733
      %5735 = vrot.lane.b32.xlu0 %v4270, 32
      %v5736 = vpop.permute.xlu0 %5735
      %5737 = vrot.lane.b32.xlu0 %v4271, 32
      %v5738 = vpop.permute.xlu0 %5737
      %5739 = vrot.lane.b32.xlu0 %v4272, 32
      %v5740 = vpop.permute.xlu0 %5739
      %5741 = vrot.lane.b32.xlu0 %v4273, 32
      %v5742 = vpop.permute.xlu0 %5741
      %5743 = vrot.lane.b32.xlu0 %v4274, 32
      %v5744 = vpop.permute.xlu0 %5743
      %5745 = vrot.lane.b32.xlu0 %v4275, 32
      %v5746 = vpop.permute.xlu0 %5745
      %5747 = vrot.lane.b32.xlu0 %v4276, 32
      %v5748 = vpop.permute.xlu0 %5747
      %5749 = vrot.lane.b32.xlu0 %v4277, 32
      %v5750 = vpop.permute.xlu0 %5749
      %5751 = vrot.lane.b32.xlu0 %v4278, 32
      %v5752 = vpop.permute.xlu0 %5751
      %5753 = vrot.lane.b32.xlu0 %v4279, 32
      %v5754 = vpop.permute.xlu0 %5753
      %5755 = vrot.lane.b32.xlu0 %v4280, 32
      %v5756 = vpop.permute.xlu0 %5755
      %5757 = vrot.lane.b32.xlu0 %v4281, 32
      %v5758 = vpop.permute.xlu0 %5757
      %5759 = vrot.lane.b32.xlu0 %v4282, 32
      %v5760 = vpop.permute.xlu0 %5759
      %5761 = vrot.lane.b32.xlu0 %v4283, 32
      %v5762 = vpop.permute.xlu0 %5761
      %5763 = vrot.lane.b32.xlu0 %v4284, 32
      %v5764 = vpop.permute.xlu0 %5763
      %5765 = vrot.lane.b32.xlu0 %v4285, 32
      %v5766 = vpop.permute.xlu0 %5765
      %5767 = vrot.lane.b32.xlu0 %v4286, 32
      %v5768 = vpop.permute.xlu0 %5767
      %5769 = vrot.lane.b32.xlu0 %v4287, 32
      %v5770 = vpop.permute.xlu0 %5769
      %5771 = vrot.lane.b32.xlu0 %v4288, 32
      %v5772 = vpop.permute.xlu0 %5771
      %5773 = vrot.lane.b32.xlu0 %v4289, 32
      %v5774 = vpop.permute.xlu0 %5773
      %5775 = vrot.lane.b32.xlu0 %v4290, 32
      %v5776 = vpop.permute.xlu0 %5775
      %5777 = vrot.lane.b32.xlu0 %v4291, 32
      %v5778 = vpop.permute.xlu0 %5777
      %5779 = vrot.lane.b32.xlu0 %v4292, 32
      %v5780 = vpop.permute.xlu0 %5779
      %5781 = vrot.lane.b32.xlu0 %v4293, 32
      %v5782 = vpop.permute.xlu0 %5781
      %5783 = vrot.lane.b32.xlu0 %v4294, 32
      %v5784 = vpop.permute.xlu0 %5783
      %5785 = vrot.lane.b32.xlu0 %v4295, 32
      %v5786 = vpop.permute.xlu0 %5785
      %5787 = vrot.lane.b32.xlu0 %v4296, 32
      %v5788 = vpop.permute.xlu0 %5787
      %5789 = vrot.lane.b32.xlu0 %v4297, 32
      %v5790 = vpop.permute.xlu0 %5789
      %5791 = vrot.lane.b32.xlu0 %v4298, 32
      %v5792 = vpop.permute.xlu0 %5791
      %5793 = vrot.lane.b32.xlu0 %v4299, 32
      %v5794 = vpop.permute.xlu0 %5793
      %5795 = vrot.lane.b32.xlu0 %v4300, 32
      %v5796 = vpop.permute.xlu0 %5795
      %5797 = vrot.lane.b32.xlu0 %v4301, 32
      %v5798 = vpop.permute.xlu0 %5797
      %5799 = vrot.lane.b32.xlu0 %v4302, 32
      %v5800 = vpop.permute.xlu0 %5799
      %5801 = vrot.lane.b32.xlu0 %v4303, 32
      %v5802 = vpop.permute.xlu0 %5801
      %5803 = vrot.lane.b32.xlu0 %v4304, 32
      %v5804 = vpop.permute.xlu0 %5803
      %5805 = vrot.lane.b32.xlu0 %v4305, 32
      %v5806 = vpop.permute.xlu0 %5805
      %5807 = vrot.lane.b32.xlu0 %v4306, 32
      %v5808 = vpop.permute.xlu0 %5807
      %5809 = vrot.lane.b32.xlu0 %v4307, 32
      %v5810 = vpop.permute.xlu0 %5809
      %5811 = vrot.lane.b32.xlu0 %v4308, 32
      %v5812 = vpop.permute.xlu0 %5811
      %5813 = vrot.lane.b32.xlu0 %v4309, 32
      %v5814 = vpop.permute.xlu0 %5813
      %5815 = vrot.lane.b32.xlu0 %v4310, 32
      %v5816 = vpop.permute.xlu0 %5815
      %5817 = vrot.lane.b32.xlu0 %v4311, 32
      %v5818 = vpop.permute.xlu0 %5817
      %5819 = vrot.lane.b32.xlu0 %v4312, 32
      %v5820 = vpop.permute.xlu0 %5819
      %5821 = vrot.lane.b32.xlu0 %v4313, 32
      %v5822 = vpop.permute.xlu0 %5821
      %5823 = vrot.lane.b32.xlu0 %v4314, 32
      %v5824 = vpop.permute.xlu0 %5823
      %5825 = vrot.lane.b32.xlu0 %v4315, 32
      %v5826 = vpop.permute.xlu0 %5825
      %5827 = vrot.lane.b32.xlu0 %v4316, 32
      %v5828 = vpop.permute.xlu0 %5827
      %5829 = vrot.lane.b32.xlu0 %v4317, 32
      %v5830 = vpop.permute.xlu0 %5829
      %5831 = vrot.lane.b32.xlu0 %v4318, 32
      %v5832 = vpop.permute.xlu0 %5831
      %5833 = vrot.lane.b32.xlu0 %v4319, 32
      %v5834 = vpop.permute.xlu0 %5833
      %5835 = vrot.lane.b32.xlu0 %v4320, 32
      %v5836 = vpop.permute.xlu0 %5835
      %5837 = vrot.lane.b32.xlu0 %v4321, 32
      %v5838 = vpop.permute.xlu0 %5837
      %5839 = vrot.lane.b32.xlu0 %v4322, 32
      %v5840 = vpop.permute.xlu0 %5839
      %5841 = vrot.lane.b32.xlu0 %v4323, 32
      %v5842 = vpop.permute.xlu0 %5841
      %5843 = vrot.lane.b32.xlu0 %v4324, 32
      %v5844 = vpop.permute.xlu0 %5843
      %5845 = vrot.lane.b32.xlu0 %v4325, 32
      %v5846 = vpop.permute.xlu0 %5845
      %5847 = vrot.lane.b32.xlu0 %v4326, 32
      %v5848 = vpop.permute.xlu0 %5847
      %5849 = vrot.lane.b32.xlu0 %v4327, 32
      %v5850 = vpop.permute.xlu0 %5849
      %5851 = vrot.lane.b32.xlu0 %v4328, 32
      %v5852 = vpop.permute.xlu0 %5851
      %5853 = vrot.lane.b32.xlu0 %v4329, 32
      %v5854 = vpop.permute.xlu0 %5853
      %5855 = vrot.lane.b32.xlu0 %v4330, 32
      %v5856 = vpop.permute.xlu0 %5855
      %5857 = vrot.lane.b32.xlu0 %v4331, 32
      %v5858 = vpop.permute.xlu0 %5857
      %5859 = vrot.lane.b32.xlu0 %v4332, 32
      %v5860 = vpop.permute.xlu0 %5859
      %5861 = vrot.lane.b32.xlu0 %v4333, 32
      %v5862 = vpop.permute.xlu0 %5861
      %5863 = vrot.lane.b32.xlu0 %v4334, 32
      %v5864 = vpop.permute.xlu0 %5863
      %5865 = vrot.lane.b32.xlu0 %v4335, 32
      %v5866 = vpop.permute.xlu0 %5865
      %5867 = vrot.lane.b32.xlu0 %v4336, 32
      %v5868 = vpop.permute.xlu0 %5867
      %5869 = vrot.lane.b32.xlu0 %v4337, 32
      %v5870 = vpop.permute.xlu0 %5869
      %5871 = vrot.lane.b32.xlu0 %v4338, 32
      %v5872 = vpop.permute.xlu0 %5871
      %5873 = vrot.lane.b32.xlu0 %v4339, 32
      %v5874 = vpop.permute.xlu0 %5873
      %5875 = vrot.lane.b32.xlu0 %v4340, 32
      %v5876 = vpop.permute.xlu0 %5875
      %5877 = vrot.lane.b32.xlu0 %v4341, 32
      %v5878 = vpop.permute.xlu0 %5877
      %5879 = vrot.lane.b32.xlu0 %v4342, 32
      %v5880 = vpop.permute.xlu0 %5879
      %5881 = vrot.lane.b32.xlu0 %v4343, 32
      %v5882 = vpop.permute.xlu0 %5881
      %5883 = vrot.lane.b32.xlu0 %v4344, 32
      %v5884 = vpop.permute.xlu0 %5883
      %5885 = vrot.lane.b32.xlu0 %v4345, 32
      %v5886 = vpop.permute.xlu0 %5885
      %5887 = vrot.lane.b32.xlu0 %v4346, 32
      %v5888 = vpop.permute.xlu0 %5887
      %5889 = vrot.lane.b32.xlu0 %v4347, 32
      %v5890 = vpop.permute.xlu0 %5889
      %5891 = vrot.lane.b32.xlu0 %v4348, 32
      %v5892 = vpop.permute.xlu0 %5891
      %5893 = vrot.lane.b32.xlu0 %v4349, 32
      %v5894 = vpop.permute.xlu0 %5893
      %5895 = vrot.lane.b32.xlu0 %v4350, 32
      %v5896 = vpop.permute.xlu0 %5895
      %5897 = vrot.lane.b32.xlu0 %v4351, 32
      %v5898 = vpop.permute.xlu0 %5897
      %5899 = vrot.lane.b32.xlu0 %v4352, 32
      %v5900 = vpop.permute.xlu0 %5899
      %vm6029 = vcmask 326656
      %v6030 = vsel %vm6029, %v4209, %v4482
      %v6031 = vsel %vm6029, %v4210, %v4484
      %v6032 = vsel %vm6029, %v4211, %v4486
      %v6033 = vsel %vm6029, %v4212, %v4488
      %v6034 = vsel %vm6029, %v4213, %v4490
      %v6035 = vsel %vm6029, %v4214, %v4492
      %v6036 = vsel %vm6029, %v4215, %v4494
      %v6037 = vsel %vm6029, %v4216, %v4496
      %v6038 = vsel %vm6029, %v4217, %v4498
      %v6039 = vsel %vm6029, %v4218, %v4500
      %v6040 = vsel %vm6029, %v4219, %v4502
      %v6041 = vsel %vm6029, %v4220, %v4504
      %v6042 = vsel %vm6029, %v4221, %v4506
      %v6043 = vsel %vm6029, %v4222, %v4508
      %v6044 = vsel %vm6029, %v4223, %v4510
      %v6045 = vsel %vm6029, %v4224, %v4512
      %v6046 = vsel %vm6029, %v4225, %v4514
      %v6047 = vsel %vm6029, %v4226, %v4516
      %v6048 = vsel %vm6029, %v4227, %v4518
      %v6049 = vsel %vm6029, %v4228, %v4520
      %v6050 = vsel %vm6029, %v4229, %v4522
      %v6051 = vsel %vm6029, %v4230, %v4524
      %v6052 = vsel %vm6029, %v4231, %v4526
      %v6053 = vsel %vm6029, %v4232, %v4528
      %v6054 = vsel %vm6029, %v4233, %v4530
      %v6055 = vsel %vm6029, %v4234, %v4532
      %v6056 = vsel %vm6029, %v4235, %v4534
      %v6057 = vsel %vm6029, %v4236, %v4536
      %v6058 = vsel %vm6029, %v4237, %v4538
      %v6059 = vsel %vm6029, %v4238, %v4540
      %v6060 = vsel %vm6029, %v4239, %v4542
      %v6061 = vsel %vm6029, %v4240, %v4544
      %v6062 = vsel %vm6029, %v4241, %v4546
      %v6063 = vsel %vm6029, %v4242, %v4548
      %v6064 = vsel %vm6029, %v4243, %v4550
      %v6065 = vsel %vm6029, %v4244, %v4552
      %v6066 = vsel %vm6029, %v4245, %v4554
      %v6067 = vsel %vm6029, %v4246, %v4556
      %v6068 = vsel %vm6029, %v4247, %v4558
      %v6069 = vsel %vm6029, %v4248, %v4560
      %v6070 = vsel %vm6029, %v4249, %v4562
      %v6071 = vsel %vm6029, %v4250, %v4564
      %v6072 = vsel %vm6029, %v4251, %v4566
      %v6073 = vsel %vm6029, %v4252, %v4568
      %v6074 = vsel %vm6029, %v4253, %v4570
      %v6075 = vsel %vm6029, %v4254, %v4572
      %v6076 = vsel %vm6029, %v4255, %v4574
      %v6077 = vsel %vm6029, %v4256, %v4576
      %v6078 = vsel %vm6029, %v4257, %v4578
      %v6079 = vsel %vm6029, %v4258, %v4580
      %v6080 = vsel %vm6029, %v4259, %v4582
      %v6081 = vsel %vm6029, %v4260, %v4584
      %v6082 = vsel %vm6029, %v4261, %v4586
      %v6083 = vsel %vm6029, %v4262, %v4588
      %v6084 = vsel %vm6029, %v4263, %v4590
      %v6085 = vsel %vm6029, %v4264, %v4592
      %v6086 = vsel %vm6029, %v4265, %v4594
      %v6087 = vsel %vm6029, %v4266, %v4596
      %v6088 = vsel %vm6029, %v4267, %v4598
      %v6089 = vsel %vm6029, %v4268, %v4600
      %v6090 = vsel %vm6029, %v4269, %v4602
      %v6091 = vsel %vm6029, %v4270, %v4604
      %v6092 = vsel %vm6029, %v4271, %v4606
      %v6093 = vsel %vm6029, %v4272, %v4608
      %v6094 = vsel %vm6029, %v4273, %v4610
      %v6095 = vsel %vm6029, %v4274, %v4612
      %v6096 = vsel %vm6029, %v4275, %v4614
      %v6097 = vsel %vm6029, %v4276, %v4616
      %v6098 = vsel %vm6029, %v4277, %v4618
      %v6099 = vsel %vm6029, %v4278, %v4620
      %v6100 = vsel %vm6029, %v4279, %v4622
      %v6101 = vsel %vm6029, %v4280, %v4624
      %v6102 = vsel %vm6029, %v4281, %v4626
      %v6103 = vsel %vm6029, %v4282, %v4628
      %v6104 = vsel %vm6029, %v4283, %v4630
      %v6105 = vsel %vm6029, %v4284, %v4632
      %v6106 = vsel %vm6029, %v4285, %v4634
      %v6107 = vsel %vm6029, %v4286, %v4636
      %v6108 = vsel %vm6029, %v4287, %v4638
      %v6109 = vsel %vm6029, %v4288, %v4640
      %v6110 = vsel %vm6029, %v4289, %v4642
      %v6111 = vsel %vm6029, %v4290, %v4644
      %v6112 = vsel %vm6029, %v4291, %v4646
      %v6113 = vsel %vm6029, %v4292, %v4648
      %v6114 = vsel %vm6029, %v4293, %v4650
      %v6115 = vsel %vm6029, %v4294, %v4652
      %v6116 = vsel %vm6029, %v4295, %v4654
      %v6117 = vsel %vm6029, %v4296, %v4656
      %v6118 = vsel %vm6029, %v4297, %v4658
      %v6119 = vsel %vm6029, %v4298, %v4660
      %v6120 = vsel %vm6029, %v4299, %v4662
      %v6121 = vsel %vm6029, %v4300, %v4664
      %v6122 = vsel %vm6029, %v4301, %v4666
      %v6123 = vsel %vm6029, %v4302, %v4668
      %v6124 = vsel %vm6029, %v4303, %v4670
      %v6125 = vsel %vm6029, %v4304, %v4672
      %v6126 = vsel %vm6029, %v4305, %v4674
      %v6127 = vsel %vm6029, %v4306, %v4676
      %v6128 = vsel %vm6029, %v4307, %v4678
      %v6129 = vsel %vm6029, %v4308, %v4680
      %v6130 = vsel %vm6029, %v4309, %v4682
      %v6131 = vsel %vm6029, %v4310, %v4684
      %v6132 = vsel %vm6029, %v4311, %v4686
      %v6133 = vsel %vm6029, %v4312, %v4688
      %v6134 = vsel %vm6029, %v4313, %v4690
      %v6135 = vsel %vm6029, %v4314, %v4692
      %v6136 = vsel %vm6029, %v4315, %v4694
      %v6137 = vsel %vm6029, %v4316, %v4696
      %v6138 = vsel %vm6029, %v4317, %v4698
      %v6139 = vsel %vm6029, %v4318, %v4700
      %v6140 = vsel %vm6029, %v4319, %v4702
      %v6141 = vsel %vm6029, %v4320, %v4704
      %v6142 = vsel %vm6029, %v4321, %v4706
      %v6143 = vsel %vm6029, %v4322, %v4708
      %v6144 = vsel %vm6029, %v4323, %v4710
      %v6145 = vsel %vm6029, %v4324, %v4712
      %v6146 = vsel %vm6029, %v4325, %v4714
      %v6147 = vsel %vm6029, %v4326, %v4716
      %v6148 = vsel %vm6029, %v4327, %v4718
      %v6149 = vsel %vm6029, %v4328, %v4720
      %v6150 = vsel %vm6029, %v4329, %v4722
      %v6151 = vsel %vm6029, %v4330, %v4724
      %v6152 = vsel %vm6029, %v4331, %v4726
      %v6153 = vsel %vm6029, %v4332, %v4728
      %v6154 = vsel %vm6029, %v4333, %v4730
      %v6155 = vsel %vm6029, %v4334, %v4732
      %v6156 = vsel %vm6029, %v4335, %v4734
      %v6157 = vsel %vm6029, %v4336, %v4736
      %vm6158 = vcmask 654336
      %v6159 = vsel %vm6158, %v6030, %v4870
      %v6160 = vsel %vm6158, %v6031, %v4872
      %v6161 = vsel %vm6158, %v6032, %v4874
      %v6162 = vsel %vm6158, %v6033, %v4876
      %v6163 = vsel %vm6158, %v6034, %v4878
      %v6164 = vsel %vm6158, %v6035, %v4880
      %v6165 = vsel %vm6158, %v6036, %v4882
      %v6166 = vsel %vm6158, %v6037, %v4884
      %v6167 = vsel %vm6158, %v6038, %v4886
      %v6168 = vsel %vm6158, %v6039, %v4888
      %v6169 = vsel %vm6158, %v6040, %v4890
      %v6170 = vsel %vm6158, %v6041, %v4892
      %v6171 = vsel %vm6158, %v6042, %v4894
      %v6172 = vsel %vm6158, %v6043, %v4896
      %v6173 = vsel %vm6158, %v6044, %v4898
      %v6174 = vsel %vm6158, %v6045, %v4900
      %v6175 = vsel %vm6158, %v6046, %v4902
      %v6176 = vsel %vm6158, %v6047, %v4904
      %v6177 = vsel %vm6158, %v6048, %v4906
      %v6178 = vsel %vm6158, %v6049, %v4908
      %v6179 = vsel %vm6158, %v6050, %v4910
      %v6180 = vsel %vm6158, %v6051, %v4912
      %v6181 = vsel %vm6158, %v6052, %v4914
      %v6182 = vsel %vm6158, %v6053, %v4916
      %v6183 = vsel %vm6158, %v6054, %v4918
      %v6184 = vsel %vm6158, %v6055, %v4920
      %v6185 = vsel %vm6158, %v6056, %v4922
      %v6186 = vsel %vm6158, %v6057, %v4924
      %v6187 = vsel %vm6158, %v6058, %v4926
      %v6188 = vsel %vm6158, %v6059, %v4928
      %v6189 = vsel %vm6158, %v6060, %v4930
      %v6190 = vsel %vm6158, %v6061, %v4932
      %v6191 = vsel %vm6158, %v6062, %v4934
      %v6192 = vsel %vm6158, %v6063, %v4936
      %v6193 = vsel %vm6158, %v6064, %v4938
      %v6194 = vsel %vm6158, %v6065, %v4940
      %v6195 = vsel %vm6158, %v6066, %v4942
      %v6196 = vsel %vm6158, %v6067, %v4944
      %v6197 = vsel %vm6158, %v6068, %v4946
      %v6198 = vsel %vm6158, %v6069, %v4948
      %v6199 = vsel %vm6158, %v6070, %v4950
      %v6200 = vsel %vm6158, %v6071, %v4952
      %v6201 = vsel %vm6158, %v6072, %v4954
      %v6202 = vsel %vm6158, %v6073, %v4956
      %v6203 = vsel %vm6158, %v6074, %v4958
      %v6204 = vsel %vm6158, %v6075, %v4960
      %v6205 = vsel %vm6158, %v6076, %v4962
      %v6206 = vsel %vm6158, %v6077, %v4964
      %v6207 = vsel %vm6158, %v6078, %v4966
      %v6208 = vsel %vm6158, %v6079, %v4968
      %v6209 = vsel %vm6158, %v6080, %v4970
      %v6210 = vsel %vm6158, %v6081, %v4972
      %v6211 = vsel %vm6158, %v6082, %v4974
      %v6212 = vsel %vm6158, %v6083, %v4976
      %v6213 = vsel %vm6158, %v6084, %v4978
      %v6214 = vsel %vm6158, %v6085, %v4980
      %v6215 = vsel %vm6158, %v6086, %v4982
      %v6216 = vsel %vm6158, %v6087, %v4984
      %v6217 = vsel %vm6158, %v6088, %v4986
      %v6218 = vsel %vm6158, %v6089, %v4988
      %v6219 = vsel %vm6158, %v6090, %v4990
      %v6220 = vsel %vm6158, %v6091, %v4992
      %v6221 = vsel %vm6158, %v6092, %v4994
      %v6222 = vsel %vm6158, %v6093, %v4996
      %v6223 = vsel %vm6158, %v6094, %v4998
      %v6224 = vsel %vm6158, %v6095, %v5000
      %v6225 = vsel %vm6158, %v6096, %v5002
      %v6226 = vsel %vm6158, %v6097, %v5004
      %v6227 = vsel %vm6158, %v6098, %v5006
      %v6228 = vsel %vm6158, %v6099, %v5008
      %v6229 = vsel %vm6158, %v6100, %v5010
      %v6230 = vsel %vm6158, %v6101, %v5012
      %v6231 = vsel %vm6158, %v6102, %v5014
      %v6232 = vsel %vm6158, %v6103, %v5016
      %v6233 = vsel %vm6158, %v6104, %v5018
      %v6234 = vsel %vm6158, %v6105, %v5020
      %v6235 = vsel %vm6158, %v6106, %v5022
      %v6236 = vsel %vm6158, %v6107, %v5024
      %v6237 = vsel %vm6158, %v6108, %v5026
      %v6238 = vsel %vm6158, %v6109, %v5028
      %v6239 = vsel %vm6158, %v6110, %v5030
      %v6240 = vsel %vm6158, %v6111, %v5032
      %v6241 = vsel %vm6158, %v6112, %v5034
      %v6242 = vsel %vm6158, %v6113, %v5036
      %v6243 = vsel %vm6158, %v6114, %v5038
      %v6244 = vsel %vm6158, %v6115, %v5040
      %v6245 = vsel %vm6158, %v6116, %v5042
      %v6246 = vsel %vm6158, %v6117, %v5044
      %v6247 = vsel %vm6158, %v6118, %v5046
      %v6248 = vsel %vm6158, %v6119, %v5048
      %v6249 = vsel %vm6158, %v6120, %v5050
      %v6250 = vsel %vm6158, %v6121, %v5052
      %v6251 = vsel %vm6158, %v6122, %v5054
      %v6252 = vsel %vm6158, %v6123, %v5056
      %v6253 = vsel %vm6158, %v6124, %v5058
      %v6254 = vsel %vm6158, %v6125, %v5060
      %v6255 = vsel %vm6158, %v6126, %v5062
      %v6256 = vsel %vm6158, %v6127, %v5064
      %v6257 = vsel %vm6158, %v6128, %v5066
      %v6258 = vsel %vm6158, %v6129, %v5068
      %v6259 = vsel %vm6158, %v6130, %v5070
      %v6260 = vsel %vm6158, %v6131, %v5072
      %v6261 = vsel %vm6158, %v6132, %v5074
      %v6262 = vsel %vm6158, %v6133, %v5076
      %v6263 = vsel %vm6158, %v6134, %v5078
      %v6264 = vsel %vm6158, %v6135, %v5080
      %v6265 = vsel %vm6158, %v6136, %v5082
      %v6266 = vsel %vm6158, %v6137, %v5084
      %v6267 = vsel %vm6158, %v6138, %v5086
      %v6268 = vsel %vm6158, %v6139, %v5088
      %v6269 = vsel %vm6158, %v6140, %v5090
      %v6270 = vsel %vm6158, %v6141, %v5092
      %v6271 = vsel %vm6158, %v6142, %v5094
      %v6272 = vsel %vm6158, %v6143, %v5096
      %v6273 = vsel %vm6158, %v6144, %v5098
      %v6274 = vsel %vm6158, %v6145, %v5100
      %v6275 = vsel %vm6158, %v6146, %v5102
      %v6276 = vsel %vm6158, %v6147, %v5104
      %v6277 = vsel %vm6158, %v6148, %v5106
      %v6278 = vsel %vm6158, %v6149, %v5108
      %v6279 = vsel %vm6158, %v6150, %v5110
      %v6280 = vsel %vm6158, %v6151, %v5112
      %v6281 = vsel %vm6158, %v6152, %v5114
      %v6282 = vsel %vm6158, %v6153, %v5116
      %v6283 = vsel %vm6158, %v6154, %v5118
      %v6284 = vsel %vm6158, %v6155, %v5120
      %v6285 = vsel %vm6158, %v6156, %v5122
      %v6286 = vsel %vm6158, %v6157, %v5124
      %vm6287 = vcmask 982016
      %v6288 = vsel %vm6287, %v6159, %v5258
      %v6289 = vsel %vm6287, %v6160, %v5260
      %v6290 = vsel %vm6287, %v6161, %v5262
      %v6291 = vsel %vm6287, %v6162, %v5264
      %v6292 = vsel %vm6287, %v6163, %v5266
      %v6293 = vsel %vm6287, %v6164, %v5268
      %v6294 = vsel %vm6287, %v6165, %v5270
      %v6295 = vsel %vm6287, %v6166, %v5272
      %v6296 = vsel %vm6287, %v6167, %v5274
      %v6297 = vsel %vm6287, %v6168, %v5276
      %v6298 = vsel %vm6287, %v6169, %v5278
      %v6299 = vsel %vm6287, %v6170, %v5280
      %v6300 = vsel %vm6287, %v6171, %v5282
      %v6301 = vsel %vm6287, %v6172, %v5284
      %v6302 = vsel %vm6287, %v6173, %v5286
      %v6303 = vsel %vm6287, %v6174, %v5288
      %v6304 = vsel %vm6287, %v6175, %v5290
      %v6305 = vsel %vm6287, %v6176, %v5292
      %v6306 = vsel %vm6287, %v6177, %v5294
      %v6307 = vsel %vm6287, %v6178, %v5296
      %v6308 = vsel %vm6287, %v6179, %v5298
      %v6309 = vsel %vm6287, %v6180, %v5300
      %v6310 = vsel %vm6287, %v6181, %v5302
      %v6311 = vsel %vm6287, %v6182, %v5304
      %v6312 = vsel %vm6287, %v6183, %v5306
      %v6313 = vsel %vm6287, %v6184, %v5308
      %v6314 = vsel %vm6287, %v6185, %v5310
      %v6315 = vsel %vm6287, %v6186, %v5312
      %v6316 = vsel %vm6287, %v6187, %v5314
      %v6317 = vsel %vm6287, %v6188, %v5316
      %v6318 = vsel %vm6287, %v6189, %v5318
      %v6319 = vsel %vm6287, %v6190, %v5320
      %v6320 = vsel %vm6287, %v6191, %v5322
      %v6321 = vsel %vm6287, %v6192, %v5324
      %v6322 = vsel %vm6287, %v6193, %v5326
      %v6323 = vsel %vm6287, %v6194, %v5328
      %v6324 = vsel %vm6287, %v6195, %v5330
      %v6325 = vsel %vm6287, %v6196, %v5332
      %v6326 = vsel %vm6287, %v6197, %v5334
      %v6327 = vsel %vm6287, %v6198, %v5336
      %v6328 = vsel %vm6287, %v6199, %v5338
      %v6329 = vsel %vm6287, %v6200, %v5340
      %v6330 = vsel %vm6287, %v6201, %v5342
      %v6331 = vsel %vm6287, %v6202, %v5344
      %v6332 = vsel %vm6287, %v6203, %v5346
      %v6333 = vsel %vm6287, %v6204, %v5348
      %v6334 = vsel %vm6287, %v6205, %v5350
      %v6335 = vsel %vm6287, %v6206, %v5352
      %v6336 = vsel %vm6287, %v6207, %v5354
      %v6337 = vsel %vm6287, %v6208, %v5356
      %v6338 = vsel %vm6287, %v6209, %v5358
      %v6339 = vsel %vm6287, %v6210, %v5360
      %v6340 = vsel %vm6287, %v6211, %v5362
      %v6341 = vsel %vm6287, %v6212, %v5364
      %v6342 = vsel %vm6287, %v6213, %v5366
      %v6343 = vsel %vm6287, %v6214, %v5368
      %v6344 = vsel %vm6287, %v6215, %v5370
      %v6345 = vsel %vm6287, %v6216, %v5372
      %v6346 = vsel %vm6287, %v6217, %v5374
      %v6347 = vsel %vm6287, %v6218, %v5376
      %v6348 = vsel %vm6287, %v6219, %v5378
      %v6349 = vsel %vm6287, %v6220, %v5380
      %v6350 = vsel %vm6287, %v6221, %v5382
      %v6351 = vsel %vm6287, %v6222, %v5384
      %v6352 = vsel %vm6287, %v6223, %v5386
      %v6353 = vsel %vm6287, %v6224, %v5388
      %v6354 = vsel %vm6287, %v6225, %v5390
      %v6355 = vsel %vm6287, %v6226, %v5392
      %v6356 = vsel %vm6287, %v6227, %v5394
      %v6357 = vsel %vm6287, %v6228, %v5396
      %v6358 = vsel %vm6287, %v6229, %v5398
      %v6359 = vsel %vm6287, %v6230, %v5400
      %v6360 = vsel %vm6287, %v6231, %v5402
      %v6361 = vsel %vm6287, %v6232, %v5404
      %v6362 = vsel %vm6287, %v6233, %v5406
      %v6363 = vsel %vm6287, %v6234, %v5408
      %v6364 = vsel %vm6287, %v6235, %v5410
      %v6365 = vsel %vm6287, %v6236, %v5412
      %v6366 = vsel %vm6287, %v6237, %v5414
      %v6367 = vsel %vm6287, %v6238, %v5416
      %v6368 = vsel %vm6287, %v6239, %v5418
      %v6369 = vsel %vm6287, %v6240, %v5420
      %v6370 = vsel %vm6287, %v6241, %v5422
      %v6371 = vsel %vm6287, %v6242, %v5424
      %v6372 = vsel %vm6287, %v6243, %v5426
      %v6373 = vsel %vm6287, %v6244, %v5428
      %v6374 = vsel %vm6287, %v6245, %v5430
      %v6375 = vsel %vm6287, %v6246, %v5432
      %v6376 = vsel %vm6287, %v6247, %v5434
      %v6377 = vsel %vm6287, %v6248, %v5436
      %v6378 = vsel %vm6287, %v6249, %v5438
      %v6379 = vsel %vm6287, %v6250, %v5440
      %v6380 = vsel %vm6287, %v6251, %v5442
      %v6381 = vsel %vm6287, %v6252, %v5444
      %v6382 = vsel %vm6287, %v6253, %v5446
      %v6383 = vsel %vm6287, %v6254, %v5448
      %v6384 = vsel %vm6287, %v6255, %v5450
      %v6385 = vsel %vm6287, %v6256, %v5452
      %v6386 = vsel %vm6287, %v6257, %v5454
      %v6387 = vsel %vm6287, %v6258, %v5456
      %v6388 = vsel %vm6287, %v6259, %v5458
      %v6389 = vsel %vm6287, %v6260, %v5460
      %v6390 = vsel %vm6287, %v6261, %v5462
      %v6391 = vsel %vm6287, %v6262, %v5464
      %v6392 = vsel %vm6287, %v6263, %v5466
      %v6393 = vsel %vm6287, %v6264, %v5468
      %v6394 = vsel %vm6287, %v6265, %v5470
      %v6395 = vsel %vm6287, %v6266, %v5472
      %v6396 = vsel %vm6287, %v6267, %v5474
      %v6397 = vsel %vm6287, %v6268, %v5476
      %v6398 = vsel %vm6287, %v6269, %v5478
      %v6399 = vsel %vm6287, %v6270, %v5480
      %v6400 = vsel %vm6287, %v6271, %v5482
      %v6401 = vsel %vm6287, %v6272, %v5484
      %v6402 = vsel %vm6287, %v6273, %v5486
      %v6403 = vsel %vm6287, %v6274, %v5488
      %v6404 = vsel %vm6287, %v6275, %v5490
      %v6405 = vsel %vm6287, %v6276, %v5492
      %v6406 = vsel %vm6287, %v6277, %v5494
      %v6407 = vsel %vm6287, %v6278, %v5496
      %v6408 = vsel %vm6287, %v6279, %v5498
      %v6409 = vsel %vm6287, %v6280, %v5500
      %v6410 = vsel %vm6287, %v6281, %v5502
      %v6411 = vsel %vm6287, %v6282, %v5504
      %v6412 = vsel %vm6287, %v6283, %v5506
      %v6413 = vsel %vm6287, %v6284, %v5508
      %v6414 = vsel %vm6287, %v6285, %v5510
      %v6415 = vsel %vm6287, %v6286, %v5512
      %v6416 = vsel %vm4208, %v5258, %v5646
      %v6417 = vsel %vm4208, %v5260, %v5648
      %v6418 = vsel %vm4208, %v5262, %v5650
      %v6419 = vsel %vm4208, %v5264, %v5652
      %v6420 = vsel %vm4208, %v5266, %v5654
      %v6421 = vsel %vm4208, %v5268, %v5656
      %v6422 = vsel %vm4208, %v5270, %v5658
      %v6423 = vsel %vm4208, %v5272, %v5660
      %v6424 = vsel %vm4208, %v5274, %v5662
      %v6425 = vsel %vm4208, %v5276, %v5664
      %v6426 = vsel %vm4208, %v5278, %v5666
      %v6427 = vsel %vm4208, %v5280, %v5668
      %v6428 = vsel %vm4208, %v5282, %v5670
      %v6429 = vsel %vm4208, %v5284, %v5672
      %v6430 = vsel %vm4208, %v5286, %v5674
      %v6431 = vsel %vm4208, %v5288, %v5676
      %v6432 = vsel %vm4208, %v5290, %v5678
      %v6433 = vsel %vm4208, %v5292, %v5680
      %v6434 = vsel %vm4208, %v5294, %v5682
      %v6435 = vsel %vm4208, %v5296, %v5684
      %v6436 = vsel %vm4208, %v5298, %v5686
      %v6437 = vsel %vm4208, %v5300, %v5688
      %v6438 = vsel %vm4208, %v5302, %v5690
      %v6439 = vsel %vm4208, %v5304, %v5692
      %v6440 = vsel %vm4208, %v5306, %v5694
      %v6441 = vsel %vm4208, %v5308, %v5696
      %v6442 = vsel %vm4208, %v5310, %v5698
      %v6443 = vsel %vm4208, %v5312, %v5700
      %v6444 = vsel %vm4208, %v5314, %v5702
      %v6445 = vsel %vm4208, %v5316, %v5704
      %v6446 = vsel %vm4208, %v5318, %v5706
      %v6447 = vsel %vm4208, %v5320, %v5708
      %v6448 = vsel %vm4208, %v5322, %v5710
      %v6449 = vsel %vm4208, %v5324, %v5712
      %v6450 = vsel %vm4208, %v5326, %v5714
      %v6451 = vsel %vm4208, %v5328, %v5716
      %v6452 = vsel %vm4208, %v5330, %v5718
      %v6453 = vsel %vm4208, %v5332, %v5720
      %v6454 = vsel %vm4208, %v5334, %v5722
      %v6455 = vsel %vm4208, %v5336, %v5724
      %v6456 = vsel %vm4208, %v5338, %v5726
      %v6457 = vsel %vm4208, %v5340, %v5728
      %v6458 = vsel %vm4208, %v5342, %v5730
      %v6459 = vsel %vm4208, %v5344, %v5732
      %v6460 = vsel %vm4208, %v5346, %v5734
      %v6461 = vsel %vm4208, %v5348, %v5736
      %v6462 = vsel %vm4208, %v5350, %v5738
      %v6463 = vsel %vm4208, %v5352, %v5740
      %v6464 = vsel %vm4208, %v5354, %v5742
      %v6465 = vsel %vm4208, %v5356, %v5744
      %v6466 = vsel %vm4208, %v5358, %v5746
      %v6467 = vsel %vm4208, %v5360, %v5748
      %v6468 = vsel %vm4208, %v5362, %v5750
      %v6469 = vsel %vm4208, %v5364, %v5752
      %v6470 = vsel %vm4208, %v5366, %v5754
      %v6471 = vsel %vm4208, %v5368, %v5756
      %v6472 = vsel %vm4208, %v5370, %v5758
      %v6473 = vsel %vm4208, %v5372, %v5760
      %v6474 = vsel %vm4208, %v5374, %v5762
      %v6475 = vsel %vm4208, %v5376, %v5764
      %v6476 = vsel %vm4208, %v5378, %v5766
      %v6477 = vsel %vm4208, %v5380, %v5768
      %v6478 = vsel %vm4208, %v5382, %v5770
      %v6479 = vsel %vm4208, %v5384, %v5772
      %v6480 = vsel %vm4208, %v5386, %v5774
      %v6481 = vsel %vm4208, %v5388, %v5776
      %v6482 = vsel %vm4208, %v5390, %v5778
      %v6483 = vsel %vm4208, %v5392, %v5780
      %v6484 = vsel %vm4208, %v5394, %v5782
      %v6485 = vsel %vm4208, %v5396, %v5784
      %v6486 = vsel %vm4208, %v5398, %v5786
      %v6487 = vsel %vm4208, %v5400, %v5788
      %v6488 = vsel %vm4208, %v5402, %v5790
      %v6489 = vsel %vm4208, %v5404, %v5792
      %v6490 = vsel %vm4208, %v5406, %v5794
      %v6491 = vsel %vm4208, %v5408, %v5796
      %v6492 = vsel %vm4208, %v5410, %v5798
      %v6493 = vsel %vm4208, %v5412, %v5800
      %v6494 = vsel %vm4208, %v5414, %v5802
      %v6495 = vsel %vm4208, %v5416, %v5804
      %v6496 = vsel %vm4208, %v5418, %v5806
      %v6497 = vsel %vm4208, %v5420, %v5808
      %v6498 = vsel %vm4208, %v5422, %v5810
      %v6499 = vsel %vm4208, %v5424, %v5812
      %v6500 = vsel %vm4208, %v5426, %v5814
      %v6501 = vsel %vm4208, %v5428, %v5816
      %v6502 = vsel %vm4208, %v5430, %v5818
      %v6503 = vsel %vm4208, %v5432, %v5820
      %v6504 = vsel %vm4208, %v5434, %v5822
      %v6505 = vsel %vm4208, %v5436, %v5824
      %v6506 = vsel %vm4208, %v5438, %v5826
      %v6507 = vsel %vm4208, %v5440, %v5828
      %v6508 = vsel %vm4208, %v5442, %v5830
      %v6509 = vsel %vm4208, %v5444, %v5832
      %v6510 = vsel %vm4208, %v5446, %v5834
      %v6511 = vsel %vm4208, %v5448, %v5836
      %v6512 = vsel %vm4208, %v5450, %v5838
      %v6513 = vsel %vm4208, %v5452, %v5840
      %v6514 = vsel %vm4208, %v5454, %v5842
      %v6515 = vsel %vm4208, %v5456, %v5844
      %v6516 = vsel %vm4208, %v5458, %v5846
      %v6517 = vsel %vm4208, %v5460, %v5848
      %v6518 = vsel %vm4208, %v5462, %v5850
      %v6519 = vsel %vm4208, %v5464, %v5852
      %v6520 = vsel %vm4208, %v5466, %v5854
      %v6521 = vsel %vm4208, %v5468, %v5856
      %v6522 = vsel %vm4208, %v5470, %v5858
      %v6523 = vsel %vm4208, %v5472, %v5860
      %v6524 = vsel %vm4208, %v5474, %v5862
      %v6525 = vsel %vm4208, %v5476, %v5864
      %v6526 = vsel %vm4208, %v5478, %v5866
      %v6527 = vsel %vm4208, %v5480, %v5868
      %v6528 = vsel %vm4208, %v5482, %v5870
      %v6529 = vsel %vm4208, %v5484, %v5872
      %v6530 = vsel %vm4208, %v5486, %v5874
      %v6531 = vsel %vm4208, %v5488, %v5876
      %v6532 = vsel %vm4208, %v5490, %v5878
      %v6533 = vsel %vm4208, %v5492, %v5880
      %v6534 = vsel %vm4208, %v5494, %v5882
      %v6535 = vsel %vm4208, %v5496, %v5884
      %v6536 = vsel %vm4208, %v5498, %v5886
      %v6537 = vsel %vm4208, %v5500, %v5888
      %v6538 = vsel %vm4208, %v5502, %v5890
      %v6539 = vsel %vm4208, %v5504, %v5892
      %v6540 = vsel %vm4208, %v5506, %v5894
      %v6541 = vsel %vm4208, %v5508, %v5896
      %v6542 = vsel %vm4208, %v5510, %v5898
      %v6543 = vsel %vm4208, %v5512, %v5900
      %v6544 = vld [vmem:[%s1] sm:$0xff]
      %v6545 = vld [vmem:[%s1 + $0x8] sm:$0xff]
      %v6546 = vld [vmem:[%s1 + $0x10] sm:$0xff]
      %v6547 = vld [vmem:[%s1 + $0x18] sm:$0xff]
      %v6548 = vld [vmem:[%s1 + $0x20] sm:$0xff]
      %v6549 = vld [vmem:[%s1 + $0x28] sm:$0xff]
      %v6550 = vld [vmem:[%s1 + $0x30] sm:$0xff]
      %v6551 = vld [vmem:[%s1 + $0x38] sm:$0xff]
      %v6552 = vld [vmem:[%s1 + $0x40] sm:$0xff]
      %v6553 = vld [vmem:[%s1 + $0x48] sm:$0xff]
      %v6554 = vld [vmem:[%s1 + $0x50] sm:$0xff]
      %v6555 = vld [vmem:[%s1 + $0x58] sm:$0xff]
      %v6556 = vld [vmem:[%s1 + $0x60] sm:$0xff]
      %v6557 = vld [vmem:[%s1 + $0x68] sm:$0xff]
      %v6558 = vld [vmem:[%s1 + $0x70] sm:$0xff]
      %v6559 = vld [vmem:[%s1 + $0x78] sm:$0xff]
      %v6560 = vld [vmem:[%s1 + $0x80] sm:$0xff]
      %v6561 = vld [vmem:[%s1 + $0x88] sm:$0xff]
      %v6562 = vld [vmem:[%s1 + $0x90] sm:$0xff]
      %v6563 = vld [vmem:[%s1 + $0x98] sm:$0xff]
      %v6564 = vld [vmem:[%s1 + $0xa0] sm:$0xff]
      %v6565 = vld [vmem:[%s1 + $0xa8] sm:$0xff]
      %v6566 = vld [vmem:[%s1 + $0xb0] sm:$0xff]
      %v6567 = vld [vmem:[%s1 + $0xb8] sm:$0xff]
      %v6568 = vld [vmem:[%s1 + $0xc0] sm:$0xff]
      %v6569 = vld [vmem:[%s2] sm:$0x1]
      %v6571 = vlaneseq
      %v6572 = vshrl.u32 %v6571, 7
      %v6573 = vsub.s32 0, %v6572
      %v6574 = vrot.slane %v6569, %v6573
      %vm6576 = vcmask 588800
      %v6578 = vsel %vm6576, %v6416, 0
      %v6581 = vsel %vm6576, %v6417, 0
      %v6584 = vsel %vm6576, %v6418, 0
      %v6587 = vsel %vm6576, %v6419, 0
      %v6590 = vsel %vm6576, %v6420, 0
      %v6593 = vsel %vm6576, %v6421, 0
      %v6596 = vsel %vm6576, %v6422, 0
      %v6599 = vsel %vm6576, %v6423, 0
      %v6602 = vsel %vm6576, %v6424, 0
      %v6605 = vsel %vm6576, %v6425, 0
      %v6608 = vsel %vm6576, %v6426, 0
      %v6611 = vsel %vm6576, %v6427, 0
      %v6614 = vsel %vm6576, %v6428, 0
      %v6617 = vsel %vm6576, %v6429, 0
      %v6620 = vsel %vm6576, %v6430, 0
      %v6623 = vsel %vm6576, %v6431, 0
      %v6626 = vsel %vm6576, %v6432, 0
      %v6629 = vsel %vm6576, %v6433, 0
      %v6632 = vsel %vm6576, %v6434, 0
      %v6635 = vsel %vm6576, %v6435, 0
      %v6638 = vsel %vm6576, %v6436, 0
      %v6641 = vsel %vm6576, %v6437, 0
      %v6644 = vsel %vm6576, %v6438, 0
      %v6647 = vsel %vm6576, %v6439, 0
      %v6650 = vsel %vm6576, %v6440, 0
      %v6653 = vsel %vm6576, %v6441, 0
      %v6656 = vsel %vm6576, %v6442, 0
      %v6659 = vsel %vm6576, %v6443, 0
      %v6662 = vsel %vm6576, %v6444, 0
      %v6665 = vsel %vm6576, %v6445, 0
      %v6668 = vsel %vm6576, %v6446, 0
      %v6671 = vsel %vm6576, %v6447, 0
      %v6674 = vsel %vm6576, %v6448, 0
      %v6677 = vsel %vm6576, %v6449, 0
      %v6680 = vsel %vm6576, %v6450, 0
      %v6683 = vsel %vm6576, %v6451, 0
      %v6686 = vsel %vm6576, %v6452, 0
      %v6689 = vsel %vm6576, %v6453, 0
      %v6692 = vsel %vm6576, %v6454, 0
      %v6695 = vsel %vm6576, %v6455, 0
      %v6698 = vsel %vm6576, %v6456, 0
      %v6701 = vsel %vm6576, %v6457, 0
      %v6704 = vsel %vm6576, %v6458, 0
      %v6707 = vsel %vm6576, %v6459, 0
      %v6710 = vsel %vm6576, %v6460, 0
      %v6713 = vsel %vm6576, %v6461, 0
      %v6716 = vsel %vm6576, %v6462, 0
      %v6719 = vsel %vm6576, %v6463, 0
      %v6722 = vsel %vm6576, %v6464, 0
      %v6725 = vsel %vm6576, %v6465, 0
      %v6728 = vsel %vm6576, %v6466, 0
      %v6731 = vsel %vm6576, %v6467, 0
      %v6734 = vsel %vm6576, %v6468, 0
      %v6737 = vsel %vm6576, %v6469, 0
      %v6740 = vsel %vm6576, %v6470, 0
      %v6743 = vsel %vm6576, %v6471, 0
      %v6746 = vsel %vm6576, %v6472, 0
      %v6749 = vsel %vm6576, %v6473, 0
      %v6752 = vsel %vm6576, %v6474, 0
      %v6755 = vsel %vm6576, %v6475, 0
      %v6758 = vsel %vm6576, %v6476, 0
      %v6761 = vsel %vm6576, %v6477, 0
      %v6764 = vsel %vm6576, %v6478, 0
      %v6767 = vsel %vm6576, %v6479, 0
      %v6770 = vsel %vm6576, %v6480, 0
      %v6773 = vsel %vm6576, %v6481, 0
      %v6776 = vsel %vm6576, %v6482, 0
      %v6779 = vsel %vm6576, %v6483, 0
      %v6782 = vsel %vm6576, %v6484, 0
      %v6785 = vsel %vm6576, %v6485, 0
      %v6788 = vsel %vm6576, %v6486, 0
      %v6791 = vsel %vm6576, %v6487, 0
      %v6794 = vsel %vm6576, %v6488, 0
      %v6797 = vsel %vm6576, %v6489, 0
      %v6800 = vsel %vm6576, %v6490, 0
      %v6803 = vsel %vm6576, %v6491, 0
      %v6806 = vsel %vm6576, %v6492, 0
      %v6809 = vsel %vm6576, %v6493, 0
      %v6812 = vsel %vm6576, %v6494, 0
      %v6815 = vsel %vm6576, %v6495, 0
      %v6818 = vsel %vm6576, %v6496, 0
      %v6821 = vsel %vm6576, %v6497, 0
      %v6824 = vsel %vm6576, %v6498, 0
      %v6827 = vsel %vm6576, %v6499, 0
      %v6830 = vsel %vm6576, %v6500, 0
      %v6833 = vsel %vm6576, %v6501, 0
      %v6836 = vsel %vm6576, %v6502, 0
      %v6839 = vsel %vm6576, %v6503, 0
      %v6842 = vsel %vm6576, %v6504, 0
      %v6845 = vsel %vm6576, %v6505, 0
      %v6848 = vsel %vm6576, %v6506, 0
      %v6851 = vsel %vm6576, %v6507, 0
      %v6854 = vsel %vm6576, %v6508, 0
      %v6857 = vsel %vm6576, %v6509, 0
      %v6860 = vsel %vm6576, %v6510, 0
      %v6863 = vsel %vm6576, %v6511, 0
      %v6866 = vsel %vm6576, %v6512, 0
      %v6869 = vsel %vm6576, %v6513, 0
      %v6872 = vsel %vm6576, %v6514, 0
      %v6875 = vsel %vm6576, %v6515, 0
      %v6878 = vsel %vm6576, %v6516, 0
      %v6881 = vsel %vm6576, %v6517, 0
      %v6884 = vsel %vm6576, %v6518, 0
      %v6887 = vsel %vm6576, %v6519, 0
      %v6890 = vsel %vm6576, %v6520, 0
      %v6893 = vsel %vm6576, %v6521, 0
      %v6896 = vsel %vm6576, %v6522, 0
      %v6899 = vsel %vm6576, %v6523, 0
      %v6902 = vsel %vm6576, %v6524, 0
      %v6905 = vsel %vm6576, %v6525, 0
      %v6908 = vsel %vm6576, %v6526, 0
      %v6911 = vsel %vm6576, %v6527, 0
      %v6914 = vsel %vm6576, %v6528, 0
      %v6917 = vsel %vm6576, %v6529, 0
      %v6920 = vsel %vm6576, %v6530, 0
      %v6923 = vsel %vm6576, %v6531, 0
      %v6926 = vsel %vm6576, %v6532, 0
      %v6929 = vsel %vm6576, %v6533, 0
      %v6932 = vsel %vm6576, %v6534, 0
      %v6935 = vsel %vm6576, %v6535, 0
      %v6938 = vsel %vm6576, %v6536, 0
      %v6941 = vsel %vm6576, %v6537, 0
      %v6944 = vsel %vm6576, %v6538, 0
      %v6947 = vsel %vm6576, %v6539, 0
      %v6950 = vsel %vm6576, %v6540, 0
      %v6953 = vsel %vm6576, %v6541, 0
      %v6956 = vsel %vm6576, %v6542, 0
      %v6959 = vsel %vm6576, %v6543, 0
      %6961 = vmatprep.subr.mxu0 0.0
      %6962 = vmatpush1.msra.mxu0 %v6544
      %6963 = vmatprep.subr.mxu0 0.0
      %6964 = vmatpush1.msra.mxu0 %v6545
      %6965 = vmatprep.subr.mxu0 0.0
      %6966 = vmatpush1.msra.mxu0 %v6546
      %6967 = vmatprep.subr.mxu0 0.0
      %6968 = vmatpush1.msra.mxu0 %v6547
      %6969 = vmatprep.subr.mxu0 0.0
      %6970 = vmatpush1.msra.mxu0 %v6548
      %6971 = vmatprep.subr.mxu0 0.0
      %6972 = vmatpush1.msra.mxu0 %v6549
      %6973 = vmatprep.subr.mxu0 0.0
      %6974 = vmatpush1.msra.mxu0 %v6550
      %6975 = vmatprep.subr.mxu0 0.0
      %6976 = vmatpush1.msra.mxu0 %v6551
      %6977 = vmatprep.subr.mxu0 0.0
      %6978 = vmatpush1.msra.mxu0 %v6552
      %6979 = vmatprep.subr.mxu0 0.0
      %6980 = vmatpush1.msra.mxu0 %v6553
      %6981 = vmatprep.subr.mxu0 0.0
      %6982 = vmatpush1.msra.mxu0 %v6554
      %6983 = vmatprep.subr.mxu0 0.0
      %6984 = vmatpush1.msra.mxu0 %v6555
      %6985 = vmatprep.subr.mxu0 0.0
      %6986 = vmatpush1.msra.mxu0 %v6556
      %6987 = vmatprep.subr.mxu0 0.0
      %6988 = vmatpush1.msra.mxu0 %v6557
      %6989 = vmatprep.subr.mxu0 0.0
      %6990 = vmatpush1.msra.mxu0 %v6558
      %6991 = vmatprep.subr.mxu0 0.0
      %6992 = vmatpush1.msra.mxu0 %v6559
      %6993 = vmatprep.subr.mxu0 0.0
      %6994 = vmatpush1.msra.mxu0 %v6560
      %6995 = vmatprep.subr.mxu0 0.0
      %6996 = vmatpush1.msra.mxu0 %v6561
      %6997 = vmatprep.subr.mxu0 0.0
      %6998 = vmatpush1.msra.mxu0 %v6562
      %6999 = vmatprep.subr.mxu0 0.0
      %7000 = vmatpush1.msra.mxu0 %v6563
      %7001 = vmatprep.subr.mxu0 0.0
      %7002 = vmatpush1.msra.mxu0 %v6564
      %7003 = vmatprep.subr.mxu0 0.0
      %7004 = vmatpush1.msra.mxu0 %v6565
      %7005 = vmatprep.subr.mxu0 0.0
      %7006 = vmatpush1.msra.mxu0 %v6566
      %7007 = vmatprep.subr.mxu0 0.0
      %7008 = vmatpush1.msra.mxu0 %v6567
      %7009 = vmatprep.subr.mxu0 0.0
      %7010 = vmatpush1.msra.mxu0 %v6568
      %7011 = vmatprep.subr.mxu0 0.0
      %7012 = vmatpush1.msra.mxu0 0.0
      %7013 = vmatprep.subr.mxu0 0.0
      %7014 = vmatpush1.msra.mxu0 0.0
      %7015 = vmatprep.subr.mxu0 0.0
      %7016 = vmatpush1.msra.mxu0 0.0
      %7017 = vmatprep.subr.mxu0 0.0
      %7018 = vmatpush1.msra.mxu0 0.0
      %7019 = vmatprep.subr.mxu0 0.0
      %7020 = vmatpush1.msra.mxu0 0.0
      %7021 = vmatprep.subr.mxu0 0.0
      %7022 = vmatpush1.msra.mxu0 0.0
      %7023 = vmatprep.subr.mxu0 0.0
      %7024 = vmatpush1.msra.mxu0 0.0
      %7025 = vmatprep.mubr.f32.mxu0 %v6578
      %7026 = vmatmul.mubr.f32.gmra.mrb[0].mxu0 %v6288
      %v7027 = vpop.f32.mrb[0].mxu0
      %v7028 = vadd.f32 %v6574, %v7027
      %v7029 = vpop.f32.mrb[0].mxu0
      %7030 = vmatprep.mubr.f32.mxu0 %v6581
      %7031 = vmatmul.mubr.f32.gmra.mrb[0].mxu0 %v6289
      %v7032 = vpop.f32.mrb[0].mxu0
      %v7033 = vadd.f32 %v6574, %v7032
      %v7034 = vpop.f32.mrb[0].mxu0
      %7035 = vmatprep.mubr.f32.mxu0 %v6584
      %7036 = vmatmul.mubr.f32.gmra.mrb[0].mxu0 %v6290
      %v7037 = vpop.f32.mrb[0].mxu0
      %v7038 = vadd.f32 %v6574, %v7037
      %v7039 = vpop.f32.mrb[0].mxu0
      %7040 = vmatprep.mubr.f32.mxu0 %v6587
      %7041 = vmatmul.mubr.f32.gmra.mrb[0].mxu0 %v6291
      %v7042 = vpop.f32.mrb[0].mxu0
      %v7043 = vadd.f32 %v6574, %v7042
      %v7044 = vpop.f32.mrb[0].mxu0
      %7045 = vmatprep.mubr.f32.mxu0 %v6590
      %7046 = vmatmul.mubr.f32.gmra.mrb[0].mxu0 %v6292
      %v7047 = vpop.f32.mrb[0].mxu0
      %v7048 = vadd.f32 %v6574, %v7047
      %v7049 = vpop.f32.mrb[0].mxu0
      %7050 = vmatprep.mubr.f32.mxu0 %v6593
      %7051 = vmatmul.mubr.f32.gmra.mrb[0].mxu0 %v6293
      %v7052 = vpop.f32.mrb[0].mxu0
      %v7053 = vadd.f32 %v6574, %v7052
      %v7054 = vpop.f32.mrb[0].mxu0
      %7055 = vmatprep.mubr.f32.mxu0 %v6596
      %7056 = vmatmul.mubr.f32.gmra.mrb[0].mxu0 %v6294
      %v7057 = vpop.f32.mrb[0].mxu0
      %v7058 = vadd.f32 %v6574, %v7057
      %v7059 = vpop.f32.mrb[0].mxu0
      %7060 = vmatprep.mubr.f32.mxu0 %v6599
      %7061 = vmatmul.mubr.f32.gmra.mrb[0].mxu0 %v6295
      %v7062 = vpop.f32.mrb[0].mxu0
      %v7063 = vadd.f32 %v6574, %v7062
      %v7064 = vpop.f32.mrb[0].mxu0
      %7065 = vmatprep.mubr.f32.mxu0 %v6602
      %7066 = vmatmul.mubr.f32.gmra.mrb[0].mxu0 %v6296
      %v7067 = vpop.f32.mrb[0].mxu0
      %v7068 = vadd.f32 %v6574, %v7067
      %v7069 = vpop.f32.mrb[0].mxu0
      %7070 = vmatprep.mubr.f32.mxu0 %v6605
      %7071 = vmatmul.mubr.f32.gmra.mrb[0].mxu0 %v6297
      %v7072 = vpop.f32.mrb[0].mxu0
      %v7073 = vadd.f32 %v6574, %v7072
      %v7074 = vpop.f32.mrb[0].mxu0
      %7075 = vmatprep.mubr.f32.mxu0 %v6608
      %7076 = vmatmul.mubr.f32.gmra.mrb[0].mxu0 %v6298
      %v7077 = vpop.f32.mrb[0].mxu0
      %v7078 = vadd.f32 %v6574, %v7077
      %v7079 = vpop.f32.mrb[0].mxu0
      %7080 = vmatprep.mubr.f32.mxu0 %v6611
      %7081 = vmatmul.mubr.f32.gmra.mrb[0].mxu0 %v6299
      %v7082 = vpop.f32.mrb[0].mxu0
      %v7083 = vadd.f32 %v6574, %v7082
      %v7084 = vpop.f32.mrb[0].mxu0
      %7085 = vmatprep.mubr.f32.mxu0 %v6614
      %7086 = vmatmul.mubr.f32.gmra.mrb[0].mxu0 %v6300
      %v7087 = vpop.f32.mrb[0].mxu0
      %v7088 = vadd.f32 %v6574, %v7087
      %v7089 = vpop.f32.mrb[0].mxu0
      %7090 = vmatprep.mubr.f32.mxu0 %v6617
      %7091 = vmatmul.mubr.f32.gmra.mrb[0].mxu0 %v6301
      %v7092 = vpop.f32.mrb[0].mxu0
      %v7093 = vadd.f32 %v6574, %v7092
      %v7094 = vpop.f32.mrb[0].mxu0
      %7095 = vmatprep.mubr.f32.mxu0 %v6620
      %7096 = vmatmul.mubr.f32.gmra.mrb[0].mxu0 %v6302
      %v7097 = vpop.f32.mrb[0].mxu0
      %v7098 = vadd.f32 %v6574, %v7097
      %v7099 = vpop.f32.mrb[0].mxu0
      %7100 = vmatprep.mubr.f32.mxu0 %v6623
      %7101 = vmatmul.mubr.f32.gmra.mrb[0].mxu0 %v6303
      %v7102 = vpop.f32.mrb[0].mxu0
      %v7103 = vadd.f32 %v6574, %v7102
      %v7104 = vpop.f32.mrb[0].mxu0
      %7105 = vmatprep.mubr.f32.mxu0 %v6626
      %7106 = vmatmul.mubr.f32.gmra.mrb[0].mxu0 %v6304
      %v7107 = vpop.f32.mrb[0].mxu0
      %v7108 = vadd.f32 %v6574, %v7107
      %v7109 = vpop.f32.mrb[0].mxu0
      %7110 = vmatprep.mubr.f32.mxu0 %v6629
      %7111 = vmatmul.mubr.f32.gmra.mrb[0].mxu0 %v6305
      %v7112 = vpop.f32.mrb[0].mxu0
      %v7113 = vadd.f32 %v6574, %v7112
      %v7114 = vpop.f32.mrb[0].mxu0
      %7115 = vmatprep.mubr.f32.mxu0 %v6632
      %7116 = vmatmul.mubr.f32.gmra.mrb[0].mxu0 %v6306
      %v7117 = vpop.f32.mrb[0].mxu0
      %v7118 = vadd.f32 %v6574, %v7117
      %v7119 = vpop.f32.mrb[0].mxu0
      %7120 = vmatprep.mubr.f32.mxu0 %v6635
      %7121 = vmatmul.mubr.f32.gmra.mrb[0].mxu0 %v6307
      %v7122 = vpop.f32.mrb[0].mxu0
      %v7123 = vadd.f32 %v6574, %v7122
      %v7124 = vpop.f32.mrb[0].mxu0
      %7125 = vmatprep.mubr.f32.mxu0 %v6638
      %7126 = vmatmul.mubr.f32.gmra.mrb[0].mxu0 %v6308
      %v7127 = vpop.f32.mrb[0].mxu0
      %v7128 = vadd.f32 %v6574, %v7127
      %v7129 = vpop.f32.mrb[0].mxu0
      %7130 = vmatprep.mubr.f32.mxu0 %v6641
      %7131 = vmatmul.mubr.f32.gmra.mrb[0].mxu0 %v6309
      %v7132 = vpop.f32.mrb[0].mxu0
      %v7133 = vadd.f32 %v6574, %v7132
      %v7134 = vpop.f32.mrb[0].mxu0
      %7135 = vmatprep.mubr.f32.mxu0 %v6644
      %7136 = vmatmul.mubr.f32.gmra.mrb[0].mxu0 %v6310
      %v7137 = vpop.f32.mrb[0].mxu0
      %v7138 = vadd.f32 %v6574, %v7137
      %v7139 = vpop.f32.mrb[0].mxu0
      %7140 = vmatprep.mubr.f32.mxu0 %v6647
      %7141 = vmatmul.mubr.f32.gmra.mrb[0].mxu0 %v6311
      %v7142 = vpop.f32.mrb[0].mxu0
      %v7143 = vadd.f32 %v6574, %v7142
      %v7144 = vpop.f32.mrb[0].mxu0
      %7145 = vmatprep.mubr.f32.mxu0 %v6650
      %7146 = vmatmul.mubr.f32.gmra.mrb[0].mxu0 %v6312
      %v7147 = vpop.f32.mrb[0].mxu0
      %v7148 = vadd.f32 %v6574, %v7147
      %v7149 = vpop.f32.mrb[0].mxu0
      %7150 = vmatprep.mubr.f32.mxu0 %v6653
      %7151 = vmatmul.mubr.f32.gmra.mrb[0].mxu0 %v6313
      %v7152 = vpop.f32.mrb[0].mxu0
      %v7153 = vadd.f32 %v6574, %v7152
      %v7154 = vpop.f32.mrb[0].mxu0
      %7155 = vmatprep.mubr.f32.mxu0 %v6656
      %7156 = vmatmul.mubr.f32.gmra.mrb[0].mxu0 %v6314
      %v7157 = vpop.f32.mrb[0].mxu0
      %v7158 = vadd.f32 %v6574, %v7157
      %v7159 = vpop.f32.mrb[0].mxu0
      %7160 = vmatprep.mubr.f32.mxu0 %v6659
      %7161 = vmatmul.mubr.f32.gmra.mrb[0].mxu0 %v6315
      %v7162 = vpop.f32.mrb[0].mxu0
      %v7163 = vadd.f32 %v6574, %v7162
      %v7164 = vpop.f32.mrb[0].mxu0
      %7165 = vmatprep.mubr.f32.mxu0 %v6662
      %7166 = vmatmul.mubr.f32.gmra.mrb[0].mxu0 %v6316
      %v7167 = vpop.f32.mrb[0].mxu0
      %v7168 = vadd.f32 %v6574, %v7167
      %v7169 = vpop.f32.mrb[0].mxu0
      %7170 = vmatprep.mubr.f32.mxu0 %v6665
      %7171 = vmatmul.mubr.f32.gmra.mrb[0].mxu0 %v6317
      %v7172 = vpop.f32.mrb[0].mxu0
      %v7173 = vadd.f32 %v6574, %v7172
      %v7174 = vpop.f32.mrb[0].mxu0
      %7175 = vmatprep.mubr.f32.mxu0 %v6668
      %7176 = vmatmul.mubr.f32.gmra.mrb[0].mxu0 %v6318
      %v7177 = vpop.f32.mrb[0].mxu0
      %v7178 = vadd.f32 %v6574, %v7177
      %v7179 = vpop.f32.mrb[0].mxu0
      %7180 = vmatprep.mubr.f32.mxu0 %v6671
      %7181 = vmatmul.mubr.f32.gmra.mrb[0].mxu0 %v6319
      %v7182 = vpop.f32.mrb[0].mxu0
      %v7183 = vadd.f32 %v6574, %v7182
      %v7184 = vpop.f32.mrb[0].mxu0
      %7185 = vmatprep.mubr.f32.mxu0 %v6674
      %7186 = vmatmul.mubr.f32.gmra.mrb[0].mxu0 %v6320
      %v7187 = vpop.f32.mrb[0].mxu0
      %v7188 = vadd.f32 %v6574, %v7187
      %v7189 = vpop.f32.mrb[0].mxu0
      %7190 = vmatprep.mubr.f32.mxu0 %v6677
      %7191 = vmatmul.mubr.f32.gmra.mrb[0].mxu0 %v6321
      %v7192 = vpop.f32.mrb[0].mxu0
      %v7193 = vadd.f32 %v6574, %v7192
      %v7194 = vpop.f32.mrb[0].mxu0
      %7195 = vmatprep.mubr.f32.mxu0 %v6680
      %7196 = vmatmul.mubr.f32.gmra.mrb[0].mxu0 %v6322
      %v7197 = vpop.f32.mrb[0].mxu0
      %v7198 = vadd.f32 %v6574, %v7197
      %v7199 = vpop.f32.mrb[0].mxu0
      %7200 = vmatprep.mubr.f32.mxu0 %v6683
      %7201 = vmatmul.mubr.f32.gmra.mrb[0].mxu0 %v6323
      %v7202 = vpop.f32.mrb[0].mxu0
      %v7203 = vadd.f32 %v6574, %v7202
      %v7204 = vpop.f32.mrb[0].mxu0
      %7205 = vmatprep.mubr.f32.mxu0 %v6686
      %7206 = vmatmul.mubr.f32.gmra.mrb[0].mxu0 %v6324
      %v7207 = vpop.f32.mrb[0].mxu0
      %v7208 = vadd.f32 %v6574, %v7207
      %v7209 = vpop.f32.mrb[0].mxu0
      %7210 = vmatprep.mubr.f32.mxu0 %v6689
      %7211 = vmatmul.mubr.f32.gmra.mrb[0].mxu0 %v6325
      %v7212 = vpop.f32.mrb[0].mxu0
      %v7213 = vadd.f32 %v6574, %v7212
      %v7214 = vpop.f32.mrb[0].mxu0
      %7215 = vmatprep.mubr.f32.mxu0 %v6692
      %7216 = vmatmul.mubr.f32.gmra.mrb[0].mxu0 %v6326
      %v7217 = vpop.f32.mrb[0].mxu0
      %v7218 = vadd.f32 %v6574, %v7217
      %v7219 = vpop.f32.mrb[0].mxu0
      %7220 = vmatprep.mubr.f32.mxu0 %v6695
      %7221 = vmatmul.mubr.f32.gmra.mrb[0].mxu0 %v6327
      %v7222 = vpop.f32.mrb[0].mxu0
      %v7223 = vadd.f32 %v6574, %v7222
      %v7224 = vpop.f32.mrb[0].mxu0
      %7225 = vmatprep.mubr.f32.mxu0 %v6698
      %7226 = vmatmul.mubr.f32.gmra.mrb[0].mxu0 %v6328
      %v7227 = vpop.f32.mrb[0].mxu0
      %v7228 = vadd.f32 %v6574, %v7227
      %v7229 = vpop.f32.mrb[0].mxu0
      %7230 = vmatprep.mubr.f32.mxu0 %v6701
      %7231 = vmatmul.mubr.f32.gmra.mrb[0].mxu0 %v6329
      %v7232 = vpop.f32.mrb[0].mxu0
      %v7233 = vadd.f32 %v6574, %v7232
      %v7234 = vpop.f32.mrb[0].mxu0
      %7235 = vmatprep.mubr.f32.mxu0 %v6704
      %7236 = vmatmul.mubr.f32.gmra.mrb[0].mxu0 %v6330
      %v7237 = vpop.f32.mrb[0].mxu0
      %v7238 = vadd.f32 %v6574, %v7237
      %v7239 = vpop.f32.mrb[0].mxu0
      %7240 = vmatprep.mubr.f32.mxu0 %v6707
      %7241 = vmatmul.mubr.f32.gmra.mrb[0].mxu0 %v6331
      %v7242 = vpop.f32.mrb[0].mxu0
      %v7243 = vadd.f32 %v6574, %v7242
      %v7244 = vpop.f32.mrb[0].mxu0
      %7245 = vmatprep.mubr.f32.mxu0 %v6710
      %7246 = vmatmul.mubr.f32.gmra.mrb[0].mxu0 %v6332
      %v7247 = vpop.f32.mrb[0].mxu0
      %v7248 = vadd.f32 %v6574, %v7247
      %v7249 = vpop.f32.mrb[0].mxu0
      %7250 = vmatprep.mubr.f32.mxu0 %v6713
      %7251 = vmatmul.mubr.f32.gmra.mrb[0].mxu0 %v6333
      %v7252 = vpop.f32.mrb[0].mxu0
      %v7253 = vadd.f32 %v6574, %v7252
      %v7254 = vpop.f32.mrb[0].mxu0
      %7255 = vmatprep.mubr.f32.mxu0 %v6716
      %7256 = vmatmul.mubr.f32.gmra.mrb[0].mxu0 %v6334
      %v7257 = vpop.f32.mrb[0].mxu0
      %v7258 = vadd.f32 %v6574, %v7257
      %v7259 = vpop.f32.mrb[0].mxu0
      %7260 = vmatprep.mubr.f32.mxu0 %v6719
      %7261 = vmatmul.mubr.f32.gmra.mrb[0].mxu0 %v6335
      %v7262 = vpop.f32.mrb[0].mxu0
      %v7263 = vadd.f32 %v6574, %v7262
      %v7264 = vpop.f32.mrb[0].mxu0
      %7265 = vmatprep.mubr.f32.mxu0 %v6722
      %7266 = vmatmul.mubr.f32.gmra.mrb[0].mxu0 %v6336
      %v7267 = vpop.f32.mrb[0].mxu0
      %v7268 = vadd.f32 %v6574, %v7267
      %v7269 = vpop.f32.mrb[0].mxu0
      %7270 = vmatprep.mubr.f32.mxu0 %v6725
      %7271 = vmatmul.mubr.f32.gmra.mrb[0].mxu0 %v6337
      %v7272 = vpop.f32.mrb[0].mxu0
      %v7273 = vadd.f32 %v6574, %v7272
      %v7274 = vpop.f32.mrb[0].mxu0
      %7275 = vmatprep.mubr.f32.mxu0 %v6728
      %7276 = vmatmul.mubr.f32.gmra.mrb[0].mxu0 %v6338
      %v7277 = vpop.f32.mrb[0].mxu0
      %v7278 = vadd.f32 %v6574, %v7277
      %v7279 = vpop.f32.mrb[0].mxu0
      %7280 = vmatprep.mubr.f32.mxu0 %v6731
      %7281 = vmatmul.mubr.f32.gmra.mrb[0].mxu0 %v6339
      %v7282 = vpop.f32.mrb[0].mxu0
      %v7283 = vadd.f32 %v6574, %v7282
      %v7284 = vpop.f32.mrb[0].mxu0
      %7285 = vmatprep.mubr.f32.mxu0 %v6734
      %7286 = vmatmul.mubr.f32.gmra.mrb[0].mxu0 %v6340
      %v7287 = vpop.f32.mrb[0].mxu0
      %v7288 = vadd.f32 %v6574, %v7287
      %v7289 = vpop.f32.mrb[0].mxu0
      %7290 = vmatprep.mubr.f32.mxu0 %v6737
      %7291 = vmatmul.mubr.f32.gmra.mrb[0].mxu0 %v6341
      %v7292 = vpop.f32.mrb[0].mxu0
      %v7293 = vadd.f32 %v6574, %v7292
      %v7294 = vpop.f32.mrb[0].mxu0
      %7295 = vmatprep.mubr.f32.mxu0 %v6740
      %7296 = vmatmul.mubr.f32.gmra.mrb[0].mxu0 %v6342
      %v7297 = vpop.f32.mrb[0].mxu0
      %v7298 = vadd.f32 %v6574, %v7297
      %v7299 = vpop.f32.mrb[0].mxu0
      %7300 = vmatprep.mubr.f32.mxu0 %v6743
      %7301 = vmatmul.mubr.f32.gmra.mrb[0].mxu0 %v6343
      %v7302 = vpop.f32.mrb[0].mxu0
      %v7303 = vadd.f32 %v6574, %v7302
      %v7304 = vpop.f32.mrb[0].mxu0
      %7305 = vmatprep.mubr.f32.mxu0 %v6746
      %7306 = vmatmul.mubr.f32.gmra.mrb[0].mxu0 %v6344
      %v7307 = vpop.f32.mrb[0].mxu0
      %v7308 = vadd.f32 %v6574, %v7307
      %v7309 = vpop.f32.mrb[0].mxu0
      %7310 = vmatprep.mubr.f32.mxu0 %v6749
      %7311 = vmatmul.mubr.f32.gmra.mrb[0].mxu0 %v6345
      %v7312 = vpop.f32.mrb[0].mxu0
      %v7313 = vadd.f32 %v6574, %v7312
      %v7314 = vpop.f32.mrb[0].mxu0
      %7315 = vmatprep.mubr.f32.mxu0 %v6752
      %7316 = vmatmul.mubr.f32.gmra.mrb[0].mxu0 %v6346
      %v7317 = vpop.f32.mrb[0].mxu0
      %v7318 = vadd.f32 %v6574, %v7317
      %v7319 = vpop.f32.mrb[0].mxu0
      %7320 = vmatprep.mubr.f32.mxu0 %v6755
      %7321 = vmatmul.mubr.f32.gmra.mrb[0].mxu0 %v6347
      %v7322 = vpop.f32.mrb[0].mxu0
      %v7323 = vadd.f32 %v6574, %v7322
      %v7324 = vpop.f32.mrb[0].mxu0
      %7325 = vmatprep.mubr.f32.mxu0 %v6758
      %7326 = vmatmul.mubr.f32.gmra.mrb[0].mxu0 %v6348
      %v7327 = vpop.f32.mrb[0].mxu0
      %v7328 = vadd.f32 %v6574, %v7327
      %v7329 = vpop.f32.mrb[0].mxu0
      %7330 = vmatprep.mubr.f32.mxu0 %v6761
      %7331 = vmatmul.mubr.f32.gmra.mrb[0].mxu0 %v6349
      %v7332 = vpop.f32.mrb[0].mxu0
      %v7333 = vadd.f32 %v6574, %v7332
      %v7334 = vpop.f32.mrb[0].mxu0
      %7335 = vmatprep.mubr.f32.mxu0 %v6764
      %7336 = vmatmul.mubr.f32.gmra.mrb[0].mxu0 %v6350
      %v7337 = vpop.f32.mrb[0].mxu0
      %v7338 = vadd.f32 %v6574, %v7337
      %v7339 = vpop.f32.mrb[0].mxu0
      %7340 = vmatprep.mubr.f32.mxu0 %v6767
      %7341 = vmatmul.mubr.f32.gmra.mrb[0].mxu0 %v6351
      %v7342 = vpop.f32.mrb[0].mxu0
      %v7343 = vadd.f32 %v6574, %v7342
      %v7344 = vpop.f32.mrb[0].mxu0
      %7345 = vmatprep.mubr.f32.mxu0 %v6770
      %7346 = vmatmul.mubr.f32.gmra.mrb[0].mxu0 %v6352
      %v7347 = vpop.f32.mrb[0].mxu0
      %v7348 = vadd.f32 %v6574, %v7347
      %v7349 = vpop.f32.mrb[0].mxu0
      %7350 = vmatprep.mubr.f32.mxu0 %v6773
      %7351 = vmatmul.mubr.f32.gmra.mrb[0].mxu0 %v6353
      %v7352 = vpop.f32.mrb[0].mxu0
      %v7353 = vadd.f32 %v6574, %v7352
      %v7354 = vpop.f32.mrb[0].mxu0
      %7355 = vmatprep.mubr.f32.mxu0 %v6776
      %7356 = vmatmul.mubr.f32.gmra.mrb[0].mxu0 %v6354
      %v7357 = vpop.f32.mrb[0].mxu0
      %v7358 = vadd.f32 %v6574, %v7357
      %v7359 = vpop.f32.mrb[0].mxu0
      %7360 = vmatprep.mubr.f32.mxu0 %v6779
      %7361 = vmatmul.mubr.f32.gmra.mrb[0].mxu0 %v6355
      %v7362 = vpop.f32.mrb[0].mxu0
      %v7363 = vadd.f32 %v6574, %v7362
      %v7364 = vpop.f32.mrb[0].mxu0
      %7365 = vmatprep.mubr.f32.mxu0 %v6782
      %7366 = vmatmul.mubr.f32.gmra.mrb[0].mxu0 %v6356
      %v7367 = vpop.f32.mrb[0].mxu0
      %v7368 = vadd.f32 %v6574, %v7367
      %v7369 = vpop.f32.mrb[0].mxu0
      %7370 = vmatprep.mubr.f32.mxu0 %v6785
      %7371 = vmatmul.mubr.f32.gmra.mrb[0].mxu0 %v6357
      %v7372 = vpop.f32.mrb[0].mxu0
      %v7373 = vadd.f32 %v6574, %v7372
      %v7374 = vpop.f32.mrb[0].mxu0
      %7375 = vmatprep.mubr.f32.mxu0 %v6788
      %7376 = vmatmul.mubr.f32.gmra.mrb[0].mxu0 %v6358
      %v7377 = vpop.f32.mrb[0].mxu0
      %v7378 = vadd.f32 %v6574, %v7377
      %v7379 = vpop.f32.mrb[0].mxu0
      %7380 = vmatprep.mubr.f32.mxu0 %v6791
      %7381 = vmatmul.mubr.f32.gmra.mrb[0].mxu0 %v6359
      %v7382 = vpop.f32.mrb[0].mxu0
      %v7383 = vadd.f32 %v6574, %v7382
      %v7384 = vpop.f32.mrb[0].mxu0
      %7385 = vmatprep.mubr.f32.mxu0 %v6794
      %7386 = vmatmul.mubr.f32.gmra.mrb[0].mxu0 %v6360
      %v7387 = vpop.f32.mrb[0].mxu0
      %v7388 = vadd.f32 %v6574, %v7387
      %v7389 = vpop.f32.mrb[0].mxu0
      %7390 = vmatprep.mubr.f32.mxu0 %v6797
      %7391 = vmatmul.mubr.f32.gmra.mrb[0].mxu0 %v6361
      %v7392 = vpop.f32.mrb[0].mxu0
      %v7393 = vadd.f32 %v6574, %v7392
      %v7394 = vpop.f32.mrb[0].mxu0
      %7395 = vmatprep.mubr.f32.mxu0 %v6800
      %7396 = vmatmul.mubr.f32.gmra.mrb[0].mxu0 %v6362
      %v7397 = vpop.f32.mrb[0].mxu0
      %v7398 = vadd.f32 %v6574, %v7397
      %v7399 = vpop.f32.mrb[0].mxu0
      %7400 = vmatprep.mubr.f32.mxu0 %v6803
      %7401 = vmatmul.mubr.f32.gmra.mrb[0].mxu0 %v6363
      %v7402 = vpop.f32.mrb[0].mxu0
      %v7403 = vadd.f32 %v6574, %v7402
      %v7404 = vpop.f32.mrb[0].mxu0
      %7405 = vmatprep.mubr.f32.mxu0 %v6806
      %7406 = vmatmul.mubr.f32.gmra.mrb[0].mxu0 %v6364
      %v7407 = vpop.f32.mrb[0].mxu0
      %v7408 = vadd.f32 %v6574, %v7407
      %v7409 = vpop.f32.mrb[0].mxu0
      %7410 = vmatprep.mubr.f32.mxu0 %v6809
      %7411 = vmatmul.mubr.f32.gmra.mrb[0].mxu0 %v6365
      %v7412 = vpop.f32.mrb[0].mxu0
      %v7413 = vadd.f32 %v6574, %v7412
      %v7414 = vpop.f32.mrb[0].mxu0
      %7415 = vmatprep.mubr.f32.mxu0 %v6812
      %7416 = vmatmul.mubr.f32.gmra.mrb[0].mxu0 %v6366
      %v7417 = vpop.f32.mrb[0].mxu0
      %v7418 = vadd.f32 %v6574, %v7417
      %v7419 = vpop.f32.mrb[0].mxu0
      %7420 = vmatprep.mubr.f32.mxu0 %v6815
      %7421 = vmatmul.mubr.f32.gmra.mrb[0].mxu0 %v6367
      %v7422 = vpop.f32.mrb[0].mxu0
      %v7423 = vadd.f32 %v6574, %v7422
      %v7424 = vpop.f32.mrb[0].mxu0
      %7425 = vmatprep.mubr.f32.mxu0 %v6818
      %7426 = vmatmul.mubr.f32.gmra.mrb[0].mxu0 %v6368
      %v7427 = vpop.f32.mrb[0].mxu0
      %v7428 = vadd.f32 %v6574, %v7427
      %v7429 = vpop.f32.mrb[0].mxu0
      %7430 = vmatprep.mubr.f32.mxu0 %v6821
      %7431 = vmatmul.mubr.f32.gmra.mrb[0].mxu0 %v6369
      %v7432 = vpop.f32.mrb[0].mxu0
      %v7433 = vadd.f32 %v6574, %v7432
      %v7434 = vpop.f32.mrb[0].mxu0
      %7435 = vmatprep.mubr.f32.mxu0 %v6824
      %7436 = vmatmul.mubr.f32.gmra.mrb[0].mxu0 %v6370
      %v7437 = vpop.f32.mrb[0].mxu0
      %v7438 = vadd.f32 %v6574, %v7437
      %v7439 = vpop.f32.mrb[0].mxu0
      %7440 = vmatprep.mubr.f32.mxu0 %v6827
      %7441 = vmatmul.mubr.f32.gmra.mrb[0].mxu0 %v6371
      %v7442 = vpop.f32.mrb[0].mxu0
      %v7443 = vadd.f32 %v6574, %v7442
      %v7444 = vpop.f32.mrb[0].mxu0
      %7445 = vmatprep.mubr.f32.mxu0 %v6830
      %7446 = vmatmul.mubr.f32.gmra.mrb[0].mxu0 %v6372
      %v7447 = vpop.f32.mrb[0].mxu0
      %v7448 = vadd.f32 %v6574, %v7447
      %v7449 = vpop.f32.mrb[0].mxu0
      %7450 = vmatprep.mubr.f32.mxu0 %v6833
      %7451 = vmatmul.mubr.f32.gmra.mrb[0].mxu0 %v6373
      %v7452 = vpop.f32.mrb[0].mxu0
      %v7453 = vadd.f32 %v6574, %v7452
      %v7454 = vpop.f32.mrb[0].mxu0
      %7455 = vmatprep.mubr.f32.mxu0 %v6836
      %7456 = vmatmul.mubr.f32.gmra.mrb[0].mxu0 %v6374
      %v7457 = vpop.f32.mrb[0].mxu0
      %v7458 = vadd.f32 %v6574, %v7457
      %v7459 = vpop.f32.mrb[0].mxu0
      %7460 = vmatprep.mubr.f32.mxu0 %v6839
      %7461 = vmatmul.mubr.f32.gmra.mrb[0].mxu0 %v6375
      %v7462 = vpop.f32.mrb[0].mxu0
      %v7463 = vadd.f32 %v6574, %v7462
      %v7464 = vpop.f32.mrb[0].mxu0
      %7465 = vmatprep.mubr.f32.mxu0 %v6842
      %7466 = vmatmul.mubr.f32.gmra.mrb[0].mxu0 %v6376
      %v7467 = vpop.f32.mrb[0].mxu0
      %v7468 = vadd.f32 %v6574, %v7467
      %v7469 = vpop.f32.mrb[0].mxu0
      %7470 = vmatprep.mubr.f32.mxu0 %v6845
      %7471 = vmatmul.mubr.f32.gmra.mrb[0].mxu0 %v6377
      %v7472 = vpop.f32.mrb[0].mxu0
      %v7473 = vadd.f32 %v6574, %v7472
      %v7474 = vpop.f32.mrb[0].mxu0
      %7475 = vmatprep.mubr.f32.mxu0 %v6848
      %7476 = vmatmul.mubr.f32.gmra.mrb[0].mxu0 %v6378
      %v7477 = vpop.f32.mrb[0].mxu0
      %v7478 = vadd.f32 %v6574, %v7477
      %v7479 = vpop.f32.mrb[0].mxu0
      %7480 = vmatprep.mubr.f32.mxu0 %v6851
      %7481 = vmatmul.mubr.f32.gmra.mrb[0].mxu0 %v6379
      %v7482 = vpop.f32.mrb[0].mxu0
      %v7483 = vadd.f32 %v6574, %v7482
      %v7484 = vpop.f32.mrb[0].mxu0
      %7485 = vmatprep.mubr.f32.mxu0 %v6854
      %7486 = vmatmul.mubr.f32.gmra.mrb[0].mxu0 %v6380
      %v7487 = vpop.f32.mrb[0].mxu0
      %v7488 = vadd.f32 %v6574, %v7487
      %v7489 = vpop.f32.mrb[0].mxu0
      %7490 = vmatprep.mubr.f32.mxu0 %v6857
      %7491 = vmatmul.mubr.f32.gmra.mrb[0].mxu0 %v6381
      %v7492 = vpop.f32.mrb[0].mxu0
      %v7493 = vadd.f32 %v6574, %v7492
      %v7494 = vpop.f32.mrb[0].mxu0
      %7495 = vmatprep.mubr.f32.mxu0 %v6860
      %7496 = vmatmul.mubr.f32.gmra.mrb[0].mxu0 %v6382
      %v7497 = vpop.f32.mrb[0].mxu0
      %v7498 = vadd.f32 %v6574, %v7497
      %v7499 = vpop.f32.mrb[0].mxu0
      %7500 = vmatprep.mubr.f32.mxu0 %v6863
      %7501 = vmatmul.mubr.f32.gmra.mrb[0].mxu0 %v6383
      %v7502 = vpop.f32.mrb[0].mxu0
      %v7503 = vadd.f32 %v6574, %v7502
      %v7504 = vpop.f32.mrb[0].mxu0
      %7505 = vmatprep.mubr.f32.mxu0 %v6866
      %7506 = vmatmul.mubr.f32.gmra.mrb[0].mxu0 %v6384
      %v7507 = vpop.f32.mrb[0].mxu0
      %v7508 = vadd.f32 %v6574, %v7507
      %v7509 = vpop.f32.mrb[0].mxu0
      %7510 = vmatprep.mubr.f32.mxu0 %v6869
      %7511 = vmatmul.mubr.f32.gmra.mrb[0].mxu0 %v6385
      %v7512 = vpop.f32.mrb[0].mxu0
      %v7513 = vadd.f32 %v6574, %v7512
      %v7514 = vpop.f32.mrb[0].mxu0
      %7515 = vmatprep.mubr.f32.mxu0 %v6872
      %7516 = vmatmul.mubr.f32.gmra.mrb[0].mxu0 %v6386
      %v7517 = vpop.f32.mrb[0].mxu0
      %v7518 = vadd.f32 %v6574, %v7517
      %v7519 = vpop.f32.mrb[0].mxu0
      %7520 = vmatprep.mubr.f32.mxu0 %v6875
      %7521 = vmatmul.mubr.f32.gmra.mrb[0].mxu0 %v6387
      %v7522 = vpop.f32.mrb[0].mxu0
      %v7523 = vadd.f32 %v6574, %v7522
      %v7524 = vpop.f32.mrb[0].mxu0
      %7525 = vmatprep.mubr.f32.mxu0 %v6878
      %7526 = vmatmul.mubr.f32.gmra.mrb[0].mxu0 %v6388
      %v7527 = vpop.f32.mrb[0].mxu0
      %v7528 = vadd.f32 %v6574, %v7527
      %v7529 = vpop.f32.mrb[0].mxu0
      %7530 = vmatprep.mubr.f32.mxu0 %v6881
      %7531 = vmatmul.mubr.f32.gmra.mrb[0].mxu0 %v6389
      %v7532 = vpop.f32.mrb[0].mxu0
      %v7533 = vadd.f32 %v6574, %v7532
      %v7534 = vpop.f32.mrb[0].mxu0
      %7535 = vmatprep.mubr.f32.mxu0 %v6884
      %7536 = vmatmul.mubr.f32.gmra.mrb[0].mxu0 %v6390
      %v7537 = vpop.f32.mrb[0].mxu0
      %v7538 = vadd.f32 %v6574, %v7537
      %v7539 = vpop.f32.mrb[0].mxu0
      %7540 = vmatprep.mubr.f32.mxu0 %v6887
      %7541 = vmatmul.mubr.f32.gmra.mrb[0].mxu0 %v6391
      %v7542 = vpop.f32.mrb[0].mxu0
      %v7543 = vadd.f32 %v6574, %v7542
      %v7544 = vpop.f32.mrb[0].mxu0
      %7545 = vmatprep.mubr.f32.mxu0 %v6890
      %7546 = vmatmul.mubr.f32.gmra.mrb[0].mxu0 %v6392
      %v7547 = vpop.f32.mrb[0].mxu0
      %v7548 = vadd.f32 %v6574, %v7547
      %v7549 = vpop.f32.mrb[0].mxu0
      %7550 = vmatprep.mubr.f32.mxu0 %v6893
      %7551 = vmatmul.mubr.f32.gmra.mrb[0].mxu0 %v6393
      %v7552 = vpop.f32.mrb[0].mxu0
      %v7553 = vadd.f32 %v6574, %v7552
      %v7554 = vpop.f32.mrb[0].mxu0
      %7555 = vmatprep.mubr.f32.mxu0 %v6896
      %7556 = vmatmul.mubr.f32.gmra.mrb[0].mxu0 %v6394
      %v7557 = vpop.f32.mrb[0].mxu0
      %v7558 = vadd.f32 %v6574, %v7557
      %v7559 = vpop.f32.mrb[0].mxu0
      %7560 = vmatprep.mubr.f32.mxu0 %v6899
      %7561 = vmatmul.mubr.f32.gmra.mrb[0].mxu0 %v6395
      %v7562 = vpop.f32.mrb[0].mxu0
      %v7563 = vadd.f32 %v6574, %v7562
      %v7564 = vpop.f32.mrb[0].mxu0
      %7565 = vmatprep.mubr.f32.mxu0 %v6902
      %7566 = vmatmul.mubr.f32.gmra.mrb[0].mxu0 %v6396
      %v7567 = vpop.f32.mrb[0].mxu0
      %v7568 = vadd.f32 %v6574, %v7567
      %v7569 = vpop.f32.mrb[0].mxu0
      %7570 = vmatprep.mubr.f32.mxu0 %v6905
      %7571 = vmatmul.mubr.f32.gmra.mrb[0].mxu0 %v6397
      %v7572 = vpop.f32.mrb[0].mxu0
      %v7573 = vadd.f32 %v6574, %v7572
      %v7574 = vpop.f32.mrb[0].mxu0
      %7575 = vmatprep.mubr.f32.mxu0 %v6908
      %7576 = vmatmul.mubr.f32.gmra.mrb[0].mxu0 %v6398
      %v7577 = vpop.f32.mrb[0].mxu0
      %v7578 = vadd.f32 %v6574, %v7577
      %v7579 = vpop.f32.mrb[0].mxu0
      %7580 = vmatprep.mubr.f32.mxu0 %v6911
      %7581 = vmatmul.mubr.f32.gmra.mrb[0].mxu0 %v6399
      %v7582 = vpop.f32.mrb[0].mxu0
      %v7583 = vadd.f32 %v6574, %v7582
      %v7584 = vpop.f32.mrb[0].mxu0
      %7585 = vmatprep.mubr.f32.mxu0 %v6914
      %7586 = vmatmul.mubr.f32.gmra.mrb[0].mxu0 %v6400
      %v7587 = vpop.f32.mrb[0].mxu0
      %v7588 = vadd.f32 %v6574, %v7587
      %v7589 = vpop.f32.mrb[0].mxu0
      %7590 = vmatprep.mubr.f32.mxu0 %v6917
      %7591 = vmatmul.mubr.f32.gmra.mrb[0].mxu0 %v6401
      %v7592 = vpop.f32.mrb[0].mxu0
      %v7593 = vadd.f32 %v6574, %v7592
      %v7594 = vpop.f32.mrb[0].mxu0
      %7595 = vmatprep.mubr.f32.mxu0 %v6920
      %7596 = vmatmul.mubr.f32.gmra.mrb[0].mxu0 %v6402
      %v7597 = vpop.f32.mrb[0].mxu0
      %v7598 = vadd.f32 %v6574, %v7597
      %v7599 = vpop.f32.mrb[0].mxu0
      %7600 = vmatprep.mubr.f32.mxu0 %v6923
      %7601 = vmatmul.mubr.f32.gmra.mrb[0].mxu0 %v6403
      %v7602 = vpop.f32.mrb[0].mxu0
      %v7603 = vadd.f32 %v6574, %v7602
      %v7604 = vpop.f32.mrb[0].mxu0
      %7605 = vmatprep.mubr.f32.mxu0 %v6926
      %7606 = vmatmul.mubr.f32.gmra.mrb[0].mxu0 %v6404
      %v7607 = vpop.f32.mrb[0].mxu0
      %v7608 = vadd.f32 %v6574, %v7607
      %v7609 = vpop.f32.mrb[0].mxu0
      %7610 = vmatprep.mubr.f32.mxu0 %v6929
      %7611 = vmatmul.mubr.f32.gmra.mrb[0].mxu0 %v6405
      %v7612 = vpop.f32.mrb[0].mxu0
      %v7613 = vadd.f32 %v6574, %v7612
      %v7614 = vpop.f32.mrb[0].mxu0
      %7615 = vmatprep.mubr.f32.mxu0 %v6932
      %7616 = vmatmul.mubr.f32.gmra.mrb[0].mxu0 %v6406
      %v7617 = vpop.f32.mrb[0].mxu0
      %v7618 = vadd.f32 %v6574, %v7617
      %v7619 = vpop.f32.mrb[0].mxu0
      %7620 = vmatprep.mubr.f32.mxu0 %v6935
      %7621 = vmatmul.mubr.f32.gmra.mrb[0].mxu0 %v6407
      %v7622 = vpop.f32.mrb[0].mxu0
      %v7623 = vadd.f32 %v6574, %v7622
      %v7624 = vpop.f32.mrb[0].mxu0
      %7625 = vmatprep.mubr.f32.mxu0 %v6938
      %7626 = vmatmul.mubr.f32.gmra.mrb[0].mxu0 %v6408
      %v7627 = vpop.f32.mrb[0].mxu0
      %v7628 = vadd.f32 %v6574, %v7627
      %v7629 = vpop.f32.mrb[0].mxu0
      %7630 = vmatprep.mubr.f32.mxu0 %v6941
      %7631 = vmatmul.mubr.f32.gmra.mrb[0].mxu0 %v6409
      %v7632 = vpop.f32.mrb[0].mxu0
      %v7633 = vadd.f32 %v6574, %v7632
      %v7634 = vpop.f32.mrb[0].mxu0
      %7635 = vmatprep.mubr.f32.mxu0 %v6944
      %7636 = vmatmul.mubr.f32.gmra.mrb[0].mxu0 %v6410
      %v7637 = vpop.f32.mrb[0].mxu0
      %v7638 = vadd.f32 %v6574, %v7637
      %v7639 = vpop.f32.mrb[0].mxu0
      %7640 = vmatprep.mubr.f32.mxu0 %v6947
      %7641 = vmatmul.mubr.f32.gmra.mrb[0].mxu0 %v6411
      %v7642 = vpop.f32.mrb[0].mxu0
      %v7643 = vadd.f32 %v6574, %v7642
      %v7644 = vpop.f32.mrb[0].mxu0
      %7645 = vmatprep.mubr.f32.mxu0 %v6950
      %7646 = vmatmul.mubr.f32.gmra.mrb[0].mxu0 %v6412
      %v7647 = vpop.f32.mrb[0].mxu0
      %v7648 = vadd.f32 %v6574, %v7647
      %v7649 = vpop.f32.mrb[0].mxu0
      %7650 = vmatprep.mubr.f32.mxu0 %v6953
      %7651 = vmatmul.mubr.f32.gmra.mrb[0].mxu0 %v6413
      %v7652 = vpop.f32.mrb[0].mxu0
      %v7653 = vadd.f32 %v6574, %v7652
      %v7654 = vpop.f32.mrb[0].mxu0
      %7655 = vmatprep.mubr.f32.mxu0 %v6956
      %7656 = vmatmul.mubr.f32.gmra.mrb[0].mxu0 %v6414
      %v7657 = vpop.f32.mrb[0].mxu0
      %v7658 = vadd.f32 %v6574, %v7657
      %v7659 = vpop.f32.mrb[0].mxu0
      %7660 = vmatprep.mubr.f32.mxu0 %v6959
      %7661 = vmatmul.mubr.f32.gmra.mrb[0].mxu0 %v6415
      %v7662 = vpop.f32.mrb[0].mxu0
      %v7663 = vadd.f32 %v6574, %v7662
      %v7664 = vpop.f32.mrb[0].mxu0
      %7665 = vdwg.mxu0
      %v7666 = vmax.f32 %v7028, 0.0
      %v7667 = vmax.f32 %v7033, 0.0
      %v7668 = vmax.f32 %v7038, 0.0
      %v7669 = vmax.f32 %v7043, 0.0
      %v7670 = vmax.f32 %v7048, 0.0
      %v7671 = vmax.f32 %v7053, 0.0
      %v7672 = vmax.f32 %v7058, 0.0
      %v7673 = vmax.f32 %v7063, 0.0
      %v7674 = vmax.f32 %v7068, 0.0
      %v7675 = vmax.f32 %v7073, 0.0
      %v7676 = vmax.f32 %v7078, 0.0
      %v7677 = vmax.f32 %v7083, 0.0
      %v7678 = vmax.f32 %v7088, 0.0
      %v7679 = vmax.f32 %v7093, 0.0
      %v7680 = vmax.f32 %v7098, 0.0
      %v7681 = vmax.f32 %v7103, 0.0
      %v7682 = vmax.f32 %v7108, 0.0
      %v7683 = vmax.f32 %v7113, 0.0
      %v7684 = vmax.f32 %v7118, 0.0
      %v7685 = vmax.f32 %v7123, 0.0
      %v7686 = vmax.f32 %v7128, 0.0
      %v7687 = vmax.f32 %v7133, 0.0
      %v7688 = vmax.f32 %v7138, 0.0
      %v7689 = vmax.f32 %v7143, 0.0
      %v7690 = vmax.f32 %v7148, 0.0
      %v7691 = vmax.f32 %v7153, 0.0
      %v7692 = vmax.f32 %v7158, 0.0
      %v7693 = vmax.f32 %v7163, 0.0
      %v7694 = vmax.f32 %v7168, 0.0
      %v7695 = vmax.f32 %v7173, 0.0
      %v7696 = vmax.f32 %v7178, 0.0
      %v7697 = vmax.f32 %v7183, 0.0
      %v7698 = vmax.f32 %v7188, 0.0
      %v7699 = vmax.f32 %v7193, 0.0
      %v7700 = vmax.f32 %v7198, 0.0
      %v7701 = vmax.f32 %v7203, 0.0
      %v7702 = vmax.f32 %v7208, 0.0
      %v7703 = vmax.f32 %v7213, 0.0
      %v7704 = vmax.f32 %v7218, 0.0
      %v7705 = vmax.f32 %v7223, 0.0
      %v7706 = vmax.f32 %v7228, 0.0
      %v7707 = vmax.f32 %v7233, 0.0
      %v7708 = vmax.f32 %v7238, 0.0
      %v7709 = vmax.f32 %v7243, 0.0
      %v7710 = vmax.f32 %v7248, 0.0
      %v7711 = vmax.f32 %v7253, 0.0
      %v7712 = vmax.f32 %v7258, 0.0
      %v7713 = vmax.f32 %v7263, 0.0
      %v7714 = vmax.f32 %v7268, 0.0
      %v7715 = vmax.f32 %v7273, 0.0
      %v7716 = vmax.f32 %v7278, 0.0
      %v7717 = vmax.f32 %v7283, 0.0
      %v7718 = vmax.f32 %v7288, 0.0
      %v7719 = vmax.f32 %v7293, 0.0
      %v7720 = vmax.f32 %v7298, 0.0
      %v7721 = vmax.f32 %v7303, 0.0
      %v7722 = vmax.f32 %v7308, 0.0
      %v7723 = vmax.f32 %v7313, 0.0
      %v7724 = vmax.f32 %v7318, 0.0
      %v7725 = vmax.f32 %v7323, 0.0
      %v7726 = vmax.f32 %v7328, 0.0
      %v7727 = vmax.f32 %v7333, 0.0
      %v7728 = vmax.f32 %v7338, 0.0
      %v7729 = vmax.f32 %v7343, 0.0
      %v7730 = vmax.f32 %v7348, 0.0
      %v7731 = vmax.f32 %v7353, 0.0
      %v7732 = vmax.f32 %v7358, 0.0
      %v7733 = vmax.f32 %v7363, 0.0
      %v7734 = vmax.f32 %v7368, 0.0
      %v7735 = vmax.f32 %v7373, 0.0
      %v7736 = vmax.f32 %v7378, 0.0
      %v7737 = vmax.f32 %v7383, 0.0
      %v7738 = vmax.f32 %v7388, 0.0
      %v7739 = vmax.f32 %v7393, 0.0
      %v7740 = vmax.f32 %v7398, 0.0
      %v7741 = vmax.f32 %v7403, 0.0
      %v7742 = vmax.f32 %v7408, 0.0
      %v7743 = vmax.f32 %v7413, 0.0
      %v7744 = vmax.f32 %v7418, 0.0
      %v7745 = vmax.f32 %v7423, 0.0
      %v7746 = vmax.f32 %v7428, 0.0
      %v7747 = vmax.f32 %v7433, 0.0
      %v7748 = vmax.f32 %v7438, 0.0
      %v7749 = vmax.f32 %v7443, 0.0
      %v7750 = vmax.f32 %v7448, 0.0
      %v7751 = vmax.f32 %v7453, 0.0
      %v7752 = vmax.f32 %v7458, 0.0
      %v7753 = vmax.f32 %v7463, 0.0
      %v7754 = vmax.f32 %v7468, 0.0
      %v7755 = vmax.f32 %v7473, 0.0
      %v7756 = vmax.f32 %v7478, 0.0
      %v7757 = vmax.f32 %v7483, 0.0
      %v7758 = vmax.f32 %v7488, 0.0
      %v7759 = vmax.f32 %v7493, 0.0
      %v7760 = vmax.f32 %v7498, 0.0
      %v7761 = vmax.f32 %v7503, 0.0
      %v7762 = vmax.f32 %v7508, 0.0
      %v7763 = vmax.f32 %v7513, 0.0
      %v7764 = vmax.f32 %v7518, 0.0
      %v7765 = vmax.f32 %v7523, 0.0
      %v7766 = vmax.f32 %v7528, 0.0
      %v7767 = vmax.f32 %v7533, 0.0
      %v7768 = vmax.f32 %v7538, 0.0
      %v7769 = vmax.f32 %v7543, 0.0
      %v7770 = vmax.f32 %v7548, 0.0
      %v7771 = vmax.f32 %v7553, 0.0
      %v7772 = vmax.f32 %v7558, 0.0
      %v7773 = vmax.f32 %v7563, 0.0
      %v7774 = vmax.f32 %v7568, 0.0
      %v7775 = vmax.f32 %v7573, 0.0
      %v7776 = vmax.f32 %v7578, 0.0
      %v7777 = vmax.f32 %v7583, 0.0
      %v7778 = vmax.f32 %v7588, 0.0
      %v7779 = vmax.f32 %v7593, 0.0
      %v7780 = vmax.f32 %v7598, 0.0
      %v7781 = vmax.f32 %v7603, 0.0
      %v7782 = vmax.f32 %v7608, 0.0
      %v7783 = vmax.f32 %v7613, 0.0
      %v7784 = vmax.f32 %v7618, 0.0
      %v7785 = vmax.f32 %v7623, 0.0
      %v7786 = vmax.f32 %v7628, 0.0
      %v7787 = vmax.f32 %v7633, 0.0
      %v7788 = vmax.f32 %v7638, 0.0
      %v7789 = vmax.f32 %v7643, 0.0
      %v7790 = vmax.f32 %v7648, 0.0
      %v7791 = vmax.f32 %v7653, 0.0
      %v7792 = vmax.f32 %v7658, 0.0
      %v7793 = vmax.f32 %v7663, 0.0
      %7794 = vst [vmem:[#allocation2] sm:$0xff] %v7666
      %7795 = vst [vmem:[#allocation2 + $0x8] sm:$0xff] %v7667
      %7796 = vst [vmem:[#allocation2 + $0x10] sm:$0xff] %v7668
      %7797 = vst [vmem:[#allocation2 + $0x18] sm:$0xff] %v7669
      %7798 = vst [vmem:[#allocation2 + $0x20] sm:$0xff] %v7670
      %7799 = vst [vmem:[#allocation2 + $0x28] sm:$0xff] %v7671
      %7800 = vst [vmem:[#allocation2 + $0x30] sm:$0xff] %v7672
      %7801 = vst [vmem:[#allocation2 + $0x38] sm:$0xff] %v7673
      %7802 = vst [vmem:[#allocation2 + $0x40] sm:$0xff] %v7674
      %7803 = vst [vmem:[#allocation2 + $0x48] sm:$0xff] %v7675
      %7804 = vst [vmem:[#allocation2 + $0x50] sm:$0xff] %v7676
      %7805 = vst [vmem:[#allocation2 + $0x58] sm:$0xff] %v7677
      %7806 = vst [vmem:[#allocation2 + $0x60] sm:$0xff] %v7678
      %7807 = vst [vmem:[#allocation2 + $0x68] sm:$0xff] %v7679
      %7808 = vst [vmem:[#allocation2 + $0x70] sm:$0xff] %v7680
      %7809 = vst [vmem:[#allocation2 + $0x78] sm:$0xff] %v7681
      %7810 = vst [vmem:[#allocation2 + $0x80] sm:$0xff] %v7682
      %7811 = vst [vmem:[#allocation2 + $0x88] sm:$0xff] %v7683
      %7812 = vst [vmem:[#allocation2 + $0x90] sm:$0xff] %v7684
      %7813 = vst [vmem:[#allocation2 + $0x98] sm:$0xff] %v7685
      %7814 = vst [vmem:[#allocation2 + $0xa0] sm:$0xff] %v7686
      %7815 = vst [vmem:[#allocation2 + $0xa8] sm:$0xff] %v7687
      %7816 = vst [vmem:[#allocation2 + $0xb0] sm:$0xff] %v7688
      %7817 = vst [vmem:[#allocation2 + $0xb8] sm:$0xff] %v7689
      %7818 = vst [vmem:[#allocation2 + $0xc0] sm:$0xff] %v7690
      %7819 = vst [vmem:[#allocation2 + $0xc8] sm:$0xff] %v7691
      %7820 = vst [vmem:[#allocation2 + $0xd0] sm:$0xff] %v7692
      %7821 = vst [vmem:[#allocation2 + $0xd8] sm:$0xff] %v7693
      %7822 = vst [vmem:[#allocation2 + $0xe0] sm:$0xff] %v7694
      %7823 = vst [vmem:[#allocation2 + $0xe8] sm:$0xff] %v7695
      %7824 = vst [vmem:[#allocation2 + $0xf0] sm:$0xff] %v7696
      %7825 = vst [vmem:[#allocation2 + $0xf8] sm:$0xff] %v7697
      %7826 = vst [vmem:[#allocation2 + $0x100] sm:$0xff] %v7698
      %7827 = vst [vmem:[#allocation2 + $0x108] sm:$0xff] %v7699
      %7828 = vst [vmem:[#allocation2 + $0x110] sm:$0xff] %v7700
      %7829 = vst [vmem:[#allocation2 + $0x118] sm:$0xff] %v7701
      %7830 = vst [vmem:[#allocation2 + $0x120] sm:$0xff] %v7702
      %7831 = vst [vmem:[#allocation2 + $0x128] sm:$0xff] %v7703
      %7832 = vst [vmem:[#allocation2 + $0x130] sm:$0xff] %v7704
      %7833 = vst [vmem:[#allocation2 + $0x138] sm:$0xff] %v7705
      %7834 = vst [vmem:[#allocation2 + $0x140] sm:$0xff] %v7706
      %7835 = vst [vmem:[#allocation2 + $0x148] sm:$0xff] %v7707
      %7836 = vst [vmem:[#allocation2 + $0x150] sm:$0xff] %v7708
      %7837 = vst [vmem:[#allocation2 + $0x158] sm:$0xff] %v7709
      %7838 = vst [vmem:[#allocation2 + $0x160] sm:$0xff] %v7710
      %7839 = vst [vmem:[#allocation2 + $0x168] sm:$0xff] %v7711
      %7840 = vst [vmem:[#allocation2 + $0x170] sm:$0xff] %v7712
      %7841 = vst [vmem:[#allocation2 + $0x178] sm:$0xff] %v7713
      %7842 = vst [vmem:[#allocation2 + $0x180] sm:$0xff] %v7714
      %7843 = vst [vmem:[#allocation2 + $0x188] sm:$0xff] %v7715
      %7844 = vst [vmem:[#allocation2 + $0x190] sm:$0xff] %v7716
      %7845 = vst [vmem:[#allocation2 + $0x198] sm:$0xff] %v7717
      %7846 = vst [vmem:[#allocation2 + $0x1a0] sm:$0xff] %v7718
      %7847 = vst [vmem:[#allocation2 + $0x1a8] sm:$0xff] %v7719
      %7848 = vst [vmem:[#allocation2 + $0x1b0] sm:$0xff] %v7720
      %7849 = vst [vmem:[#allocation2 + $0x1b8] sm:$0xff] %v7721
      %7850 = vst [vmem:[#allocation2 + $0x1c0] sm:$0xff] %v7722
      %7851 = vst [vmem:[#allocation2 + $0x1c8] sm:$0xff] %v7723
      %7852 = vst [vmem:[#allocation2 + $0x1d0] sm:$0xff] %v7724
      %7853 = vst [vmem:[#allocation2 + $0x1d8] sm:$0xff] %v7725
      %7854 = vst [vmem:[#allocation2 + $0x1e0] sm:$0xff] %v7726
      %7855 = vst [vmem:[#allocation2 + $0x1e8] sm:$0xff] %v7727
      %7856 = vst [vmem:[#allocation2 + $0x1f0] sm:$0xff] %v7728
      %7857 = vst [vmem:[#allocation2 + $0x1f8] sm:$0xff] %v7729
      %7858 = vst [vmem:[#allocation2 + $0x200] sm:$0xff] %v7730
      %7859 = vst [vmem:[#allocation2 + $0x208] sm:$0xff] %v7731
      %7860 = vst [vmem:[#allocation2 + $0x210] sm:$0xff] %v7732
      %7861 = vst [vmem:[#allocation2 + $0x218] sm:$0xff] %v7733
      %7862 = vst [vmem:[#allocation2 + $0x220] sm:$0xff] %v7734
      %7863 = vst [vmem:[#allocation2 + $0x228] sm:$0xff] %v7735
      %7864 = vst [vmem:[#allocation2 + $0x230] sm:$0xff] %v7736
      %7865 = vst [vmem:[#allocation2 + $0x238] sm:$0xff] %v7737
      %7866 = vst [vmem:[#allocation2 + $0x240] sm:$0xff] %v7738
      %7867 = vst [vmem:[#allocation2 + $0x248] sm:$0xff] %v7739
      %7868 = vst [vmem:[#allocation2 + $0x250] sm:$0xff] %v7740
      %7869 = vst [vmem:[#allocation2 + $0x258] sm:$0xff] %v7741
      %7870 = vst [vmem:[#allocation2 + $0x260] sm:$0xff] %v7742
      %7871 = vst [vmem:[#allocation2 + $0x268] sm:$0xff] %v7743
      %7872 = vst [vmem:[#allocation2 + $0x270] sm:$0xff] %v7744
      %7873 = vst [vmem:[#allocation2 + $0x278] sm:$0xff] %v7745
      %7874 = vst [vmem:[#allocation2 + $0x280] sm:$0xff] %v7746
      %7875 = vst [vmem:[#allocation2 + $0x288] sm:$0xff] %v7747
      %7876 = vst [vmem:[#allocation2 + $0x290] sm:$0xff] %v7748
      %7877 = vst [vmem:[#allocation2 + $0x298] sm:$0xff] %v7749
      %7878 = vst [vmem:[#allocation2 + $0x2a0] sm:$0xff] %v7750
      %7879 = vst [vmem:[#allocation2 + $0x2a8] sm:$0xff] %v7751
      %7880 = vst [vmem:[#allocation2 + $0x2b0] sm:$0xff] %v7752
      %7881 = vst [vmem:[#allocation2 + $0x2b8] sm:$0xff] %v7753
      %7882 = vst [vmem:[#allocation2 + $0x2c0] sm:$0xff] %v7754
      %7883 = vst [vmem:[#allocation2 + $0x2c8] sm:$0xff] %v7755
      %7884 = vst [vmem:[#allocation2 + $0x2d0] sm:$0xff] %v7756
      %7885 = vst [vmem:[#allocation2 + $0x2d8] sm:$0xff] %v7757
      %7886 = vst [vmem:[#allocation2 + $0x2e0] sm:$0xff] %v7758
      %7887 = vst [vmem:[#allocation2 + $0x2e8] sm:$0xff] %v7759
      %7888 = vst [vmem:[#allocation2 + $0x2f0] sm:$0xff] %v7760
      %7889 = vst [vmem:[#allocation2 + $0x2f8] sm:$0xff] %v7761
      %7890 = vst [vmem:[#allocation2 + $0x300] sm:$0xff] %v7762
      %7891 = vst [vmem:[#allocation2 + $0x308] sm:$0xff] %v7763
      %7892 = vst [vmem:[#allocation2 + $0x310] sm:$0xff] %v7764
      %7893 = vst [vmem:[#allocation2 + $0x318] sm:$0xff] %v7765
      %7894 = vst [vmem:[#allocation2 + $0x320] sm:$0xff] %v7766
      %7895 = vst [vmem:[#allocation2 + $0x328] sm:$0xff] %v7767
      %7896 = vst [vmem:[#allocation2 + $0x330] sm:$0xff] %v7768
      %7897 = vst [vmem:[#allocation2 + $0x338] sm:$0xff] %v7769
      %7898 = vst [vmem:[#allocation2 + $0x340] sm:$0xff] %v7770
      %7899 = vst [vmem:[#allocation2 + $0x348] sm:$0xff] %v7771
      %7900 = vst [vmem:[#allocation2 + $0x350] sm:$0xff] %v7772
      %7901 = vst [vmem:[#allocation2 + $0x358] sm:$0xff] %v7773
      %7902 = vst [vmem:[#allocation2 + $0x360] sm:$0xff] %v7774
      %7903 = vst [vmem:[#allocation2 + $0x368] sm:$0xff] %v7775
      %7904 = vst [vmem:[#allocation2 + $0x370] sm:$0xff] %v7776
      %7905 = vst [vmem:[#allocation2 + $0x378] sm:$0xff] %v7777
      %7906 = vst [vmem:[#allocation2 + $0x380] sm:$0xff] %v7778
      %7907 = vst [vmem:[#allocation2 + $0x388] sm:$0xff] %v7779
      %7908 = vst [vmem:[#allocation2 + $0x390] sm:$0xff] %v7780
      %7909 = vst [vmem:[#allocation2 + $0x398] sm:$0xff] %v7781
      %7910 = vst [vmem:[#allocation2 + $0x3a0] sm:$0xff] %v7782
      %7911 = vst [vmem:[#allocation2 + $0x3a8] sm:$0xff] %v7783
      %7912 = vst [vmem:[#allocation2 + $0x3b0] sm:$0xff] %v7784
      %7913 = vst [vmem:[#allocation2 + $0x3b8] sm:$0xff] %v7785
      %7914 = vst [vmem:[#allocation2 + $0x3c0] sm:$0xff] %v7786
      %7915 = vst [vmem:[#allocation2 + $0x3c8] sm:$0xff] %v7787
      %7916 = vst [vmem:[#allocation2 + $0x3d0] sm:$0xff] %v7788
      %7917 = vst [vmem:[#allocation2 + $0x3d8] sm:$0xff] %v7789
      %7918 = vst [vmem:[#allocation2 + $0x3e0] sm:$0xff] %v7790
      %7919 = vst [vmem:[#allocation2 + $0x3e8] sm:$0xff] %v7791
      %7920 = vst [vmem:[#allocation2 + $0x3f0] sm:$0xff] %v7792
      %7921 = vst [vmem:[#allocation2 + $0x3f8] sm:$0xff] %v7793
      %v7922 = vld [vmem:[#allocation2] ss:$2 sm:$0xff]
      %s7923 = scalar_lea.vmem [#allocation2], 16
      %v7924 = vld [vmem:[%s7923] ss:$2 sm:$0x3f]
      %s7925 = scalar_lea.vmem [#allocation2], 64
      %v7926 = vld [vmem:[%s7925] ss:$2 sm:$0xff]
      %s7927 = scalar_lea.vmem [#allocation2], 80
      %v7928 = vld [vmem:[%s7927] ss:$2 sm:$0x3f]
      %s7929 = scalar_lea.vmem [#allocation2], 128
      %v7930 = vld [vmem:[%s7929] ss:$2 sm:$0xff]
      %s7931 = scalar_lea.vmem [#allocation2], 144
      %v7932 = vld [vmem:[%s7931] ss:$2 sm:$0x3f]
      %s7933 = scalar_lea.vmem [#allocation2], 192
      %v7934 = vld [vmem:[%s7933] ss:$2 sm:$0xff]
      %s7935 = scalar_lea.vmem [#allocation2], 208
      %v7936 = vld [vmem:[%s7935] ss:$2 sm:$0x3f]
      %s7937 = scalar_lea.vmem [#allocation2], 256
      %v7938 = vld [vmem:[%s7937] ss:$2 sm:$0xff]
      %s7939 = scalar_lea.vmem [#allocation2], 272
      %v7940 = vld [vmem:[%s7939] ss:$2 sm:$0x3f]
      %s7941 = scalar_lea.vmem [#allocation2], 320
      %v7942 = vld [vmem:[%s7941] ss:$2 sm:$0xff]
      %s7943 = scalar_lea.vmem [#allocation2], 336
      %v7944 = vld [vmem:[%s7943] ss:$2 sm:$0x3f]
      %s7945 = scalar_lea.vmem [#allocation2], 384
      %v7946 = vld [vmem:[%s7945] ss:$2 sm:$0xff]
      %s7947 = scalar_lea.vmem [#allocation2], 400
      %v7948 = vld [vmem:[%s7947] ss:$2 sm:$0x3f]
      %s7949 = scalar_lea.vmem [#allocation2], 448
      %v7950 = vld [vmem:[%s7949] ss:$2 sm:$0xff]
      %s7951 = scalar_lea.vmem [#allocation2], 464
      %v7952 = vld [vmem:[%s7951] ss:$2 sm:$0x3f]
      %s7953 = scalar_lea.vmem [#allocation2], 512
      %v7954 = vld [vmem:[%s7953] ss:$2 sm:$0xff]
      %s7955 = scalar_lea.vmem [#allocation2], 528
      %v7956 = vld [vmem:[%s7955] ss:$2 sm:$0x3f]
      %s7957 = scalar_lea.vmem [#allocation2], 576
      %v7958 = vld [vmem:[%s7957] ss:$2 sm:$0xff]
      %s7959 = scalar_lea.vmem [#allocation2], 592
      %v7960 = vld [vmem:[%s7959] ss:$2 sm:$0x3f]
      %s7961 = scalar_lea.vmem [#allocation2], 640
      %v7962 = vld [vmem:[%s7961] ss:$2 sm:$0xff]
      %s7963 = scalar_lea.vmem [#allocation2], 656
      %v7964 = vld [vmem:[%s7963] ss:$2 sm:$0x3f]
      %s7965 = scalar_lea.vmem [#allocation2], 704
      %v7966 = vld [vmem:[%s7965] ss:$2 sm:$0xff]
      %s7967 = scalar_lea.vmem [#allocation2], 720
      %v7968 = vld [vmem:[%s7967] ss:$2 sm:$0x3f]
      %s7969 = scalar_lea.vmem [#allocation2], 768
      %v7970 = vld [vmem:[%s7969] ss:$2 sm:$0xff]
      %s7971 = scalar_lea.vmem [#allocation2], 784
      %v7972 = vld [vmem:[%s7971] ss:$2 sm:$0x3f]
      %s7973 = scalar_lea.vmem [#allocation2], 832
      %v7974 = vld [vmem:[%s7973] ss:$2 sm:$0xff]
      %s7975 = scalar_lea.vmem [#allocation2], 848
      %v7976 = vld [vmem:[%s7975] ss:$2 sm:$0x3f]
      %s7977 = scalar_lea.vmem [#allocation2], 1
      %v7978 = vld [vmem:[%s7977] ss:$2 sm:$0xff]
      %s7979 = scalar_lea.vmem [#allocation2], 17
      %v7980 = vld [vmem:[%s7979] ss:$2 sm:$0x3f]
      %s7981 = scalar_lea.vmem [#allocation2], 65
      %v7982 = vld [vmem:[%s7981] ss:$2 sm:$0xff]
      %s7983 = scalar_lea.vmem [#allocation2], 81
      %v7984 = vld [vmem:[%s7983] ss:$2 sm:$0x3f]
      %s7985 = scalar_lea.vmem [#allocation2], 129
      %v7986 = vld [vmem:[%s7985] ss:$2 sm:$0xff]
      %s7987 = scalar_lea.vmem [#allocation2], 145
      %v7988 = vld [vmem:[%s7987] ss:$2 sm:$0x3f]
      %s7989 = scalar_lea.vmem [#allocation2], 193
      %v7990 = vld [vmem:[%s7989] ss:$2 sm:$0xff]
      %s7991 = scalar_lea.vmem [#allocation2], 209
      %v7992 = vld [vmem:[%s7991] ss:$2 sm:$0x3f]
      %s7993 = scalar_lea.vmem [#allocation2], 257
      %v7994 = vld [vmem:[%s7993] ss:$2 sm:$0xff]
      %s7995 = scalar_lea.vmem [#allocation2], 273
      %v7996 = vld [vmem:[%s7995] ss:$2 sm:$0x3f]
      %s7997 = scalar_lea.vmem [#allocation2], 321
      %v7998 = vld [vmem:[%s7997] ss:$2 sm:$0xff]
      %s7999 = scalar_lea.vmem [#allocation2], 337
      %v8000 = vld [vmem:[%s7999] ss:$2 sm:$0x3f]
      %s8001 = scalar_lea.vmem [#allocation2], 385
      %v8002 = vld [vmem:[%s8001] ss:$2 sm:$0xff]
      %s8003 = scalar_lea.vmem [#allocation2], 401
      %v8004 = vld [vmem:[%s8003] ss:$2 sm:$0x3f]
      %s8005 = scalar_lea.vmem [#allocation2], 449
      %v8006 = vld [vmem:[%s8005] ss:$2 sm:$0xff]
      %s8007 = scalar_lea.vmem [#allocation2], 465
      %v8008 = vld [vmem:[%s8007] ss:$2 sm:$0x3f]
      %s8009 = scalar_lea.vmem [#allocation2], 513
      %v8010 = vld [vmem:[%s8009] ss:$2 sm:$0xff]
      %s8011 = scalar_lea.vmem [#allocation2], 529
      %v8012 = vld [vmem:[%s8011] ss:$2 sm:$0x3f]
      %s8013 = scalar_lea.vmem [#allocation2], 577
      %v8014 = vld [vmem:[%s8013] ss:$2 sm:$0xff]
      %s8015 = scalar_lea.vmem [#allocation2], 593
      %v8016 = vld [vmem:[%s8015] ss:$2 sm:$0x3f]
      %s8017 = scalar_lea.vmem [#allocation2], 641
      %v8018 = vld [vmem:[%s8017] ss:$2 sm:$0xff]
      %s8019 = scalar_lea.vmem [#allocation2], 657
      %v8020 = vld [vmem:[%s8019] ss:$2 sm:$0x3f]
      %s8021 = scalar_lea.vmem [#allocation2], 705
      %v8022 = vld [vmem:[%s8021] ss:$2 sm:$0xff]
      %s8023 = scalar_lea.vmem [#allocation2], 721
      %v8024 = vld [vmem:[%s8023] ss:$2 sm:$0x3f]
      %s8025 = scalar_lea.vmem [#allocation2], 769
      %v8026 = vld [vmem:[%s8025] ss:$2 sm:$0xff]
      %s8027 = scalar_lea.vmem [#allocation2], 785
      %v8028 = vld [vmem:[%s8027] ss:$2 sm:$0x3f]
      %s8029 = scalar_lea.vmem [#allocation2], 833
      %v8030 = vld [vmem:[%s8029] ss:$2 sm:$0xff]
      %s8031 = scalar_lea.vmem [#allocation2], 849
      %v8032 = vld [vmem:[%s8031] ss:$2 sm:$0x3f]
      %v8033 = vmax.f32 %v7922, %v7978
      %v8034 = vmax.f32 %v7924, %v7980
      %v8035 = vmax.f32 %v7926, %v7982
      %v8036 = vmax.f32 %v7928, %v7984
      %v8037 = vmax.f32 %v7930, %v7986
      %v8038 = vmax.f32 %v7932, %v7988
      %v8039 = vmax.f32 %v7934, %v7990
      %v8040 = vmax.f32 %v7936, %v7992
      %v8041 = vmax.f32 %v7938, %v7994
      %v8042 = vmax.f32 %v7940, %v7996
      %v8043 = vmax.f32 %v7942, %v7998
      %v8044 = vmax.f32 %v7944, %v8000
      %v8045 = vmax.f32 %v7946, %v8002
      %v8046 = vmax.f32 %v7948, %v8004
      %v8047 = vmax.f32 %v7950, %v8006
      %v8048 = vmax.f32 %v7952, %v8008
      %v8049 = vmax.f32 %v7954, %v8010
      %v8050 = vmax.f32 %v7956, %v8012
      %v8051 = vmax.f32 %v7958, %v8014
      %v8052 = vmax.f32 %v7960, %v8016
      %v8053 = vmax.f32 %v7962, %v8018
      %v8054 = vmax.f32 %v7964, %v8020
      %v8055 = vmax.f32 %v7966, %v8022
      %v8056 = vmax.f32 %v7968, %v8024
      %v8057 = vmax.f32 %v7970, %v8026
      %v8058 = vmax.f32 %v7972, %v8028
      %v8059 = vmax.f32 %v7974, %v8030
      %v8060 = vmax.f32 %v7976, %v8032
      %s8061 = scalar_lea.vmem [#allocation2], 32
      %v8062 = vld [vmem:[%s8061] ss:$2 sm:$0xff]
      %s8063 = scalar_lea.vmem %s8061, 16 [#allocation2]
      %v8064 = vld [vmem:[%s8063] ss:$2 sm:$0x3f]
      %s8065 = scalar_lea.vmem %s8061, 64 [#allocation2]
      %v8066 = vld [vmem:[%s8065] ss:$2 sm:$0xff]
      %s8067 = scalar_lea.vmem %s8061, 80 [#allocation2]
      %v8068 = vld [vmem:[%s8067] ss:$2 sm:$0x3f]
      %s8069 = scalar_lea.vmem %s8061, 128 [#allocation2]
      %v8070 = vld [vmem:[%s8069] ss:$2 sm:$0xff]
      %s8071 = scalar_lea.vmem %s8061, 144 [#allocation2]
      %v8072 = vld [vmem:[%s8071] ss:$2 sm:$0x3f]
      %s8073 = scalar_lea.vmem %s8061, 192 [#allocation2]
      %v8074 = vld [vmem:[%s8073] ss:$2 sm:$0xff]
      %s8075 = scalar_lea.vmem %s8061, 208 [#allocation2]
      %v8076 = vld [vmem:[%s8075] ss:$2 sm:$0x3f]
      %s8077 = scalar_lea.vmem %s8061, 256 [#allocation2]
      %v8078 = vld [vmem:[%s8077] ss:$2 sm:$0xff]
      %s8079 = scalar_lea.vmem %s8061, 272 [#allocation2]
      %v8080 = vld [vmem:[%s8079] ss:$2 sm:$0x3f]
      %s8081 = scalar_lea.vmem %s8061, 320 [#allocation2]
      %v8082 = vld [vmem:[%s8081] ss:$2 sm:$0xff]
      %s8083 = scalar_lea.vmem %s8061, 336 [#allocation2]
      %v8084 = vld [vmem:[%s8083] ss:$2 sm:$0x3f]
      %s8085 = scalar_lea.vmem %s8061, 384 [#allocation2]
      %v8086 = vld [vmem:[%s8085] ss:$2 sm:$0xff]
      %s8087 = scalar_lea.vmem %s8061, 400 [#allocation2]
      %v8088 = vld [vmem:[%s8087] ss:$2 sm:$0x3f]
      %s8089 = scalar_lea.vmem %s8061, 448 [#allocation2]
      %v8090 = vld [vmem:[%s8089] ss:$2 sm:$0xff]
      %s8091 = scalar_lea.vmem %s8061, 464 [#allocation2]
      %v8092 = vld [vmem:[%s8091] ss:$2 sm:$0x3f]
      %s8093 = scalar_lea.vmem %s8061, 512 [#allocation2]
      %v8094 = vld [vmem:[%s8093] ss:$2 sm:$0xff]
      %s8095 = scalar_lea.vmem %s8061, 528 [#allocation2]
      %v8096 = vld [vmem:[%s8095] ss:$2 sm:$0x3f]
      %s8097 = scalar_lea.vmem %s8061, 576 [#allocation2]
      %v8098 = vld [vmem:[%s8097] ss:$2 sm:$0xff]
      %s8099 = scalar_lea.vmem %s8061, 592 [#allocation2]
      %v8100 = vld [vmem:[%s8099] ss:$2 sm:$0x3f]
      %s8101 = scalar_lea.vmem %s8061, 640 [#allocation2]
      %v8102 = vld [vmem:[%s8101] ss:$2 sm:$0xff]
      %s8103 = scalar_lea.vmem %s8061, 656 [#allocation2]
      %v8104 = vld [vmem:[%s8103] ss:$2 sm:$0x3f]
      %s8105 = scalar_lea.vmem %s8061, 704 [#allocation2]
      %v8106 = vld [vmem:[%s8105] ss:$2 sm:$0xff]
      %s8107 = scalar_lea.vmem %s8061, 720 [#allocation2]
      %v8108 = vld [vmem:[%s8107] ss:$2 sm:$0x3f]
      %s8109 = scalar_lea.vmem %s8061, 768 [#allocation2]
      %v8110 = vld [vmem:[%s8109] ss:$2 sm:$0xff]
      %s8111 = scalar_lea.vmem %s8061, 784 [#allocation2]
      %v8112 = vld [vmem:[%s8111] ss:$2 sm:$0x3f]
      %s8113 = scalar_lea.vmem %s8061, 832 [#allocation2]
      %v8114 = vld [vmem:[%s8113] ss:$2 sm:$0xff]
      %s8115 = scalar_lea.vmem %s8061, 848 [#allocation2]
      %v8116 = vld [vmem:[%s8115] ss:$2 sm:$0x3f]
      %s8117 = scalar_lea.vmem %s8061, 1 [#allocation2]
      %v8118 = vld [vmem:[%s8117] ss:$2 sm:$0xff]
      %s8119 = scalar_lea.vmem %s8061, 17 [#allocation2]
      %v8120 = vld [vmem:[%s8119] ss:$2 sm:$0x3f]
      %s8121 = scalar_lea.vmem %s8061, 65 [#allocation2]
      %v8122 = vld [vmem:[%s8121] ss:$2 sm:$0xff]
      %s8123 = scalar_lea.vmem %s8061, 81 [#allocation2]
      %v8124 = vld [vmem:[%s8123] ss:$2 sm:$0x3f]
      %s8125 = scalar_lea.vmem %s8061, 129 [#allocation2]
      %v8126 = vld [vmem:[%s8125] ss:$2 sm:$0xff]
      %s8127 = scalar_lea.vmem %s8061, 145 [#allocation2]
      %v8128 = vld [vmem:[%s8127] ss:$2 sm:$0x3f]
      %s8129 = scalar_lea.vmem %s8061, 193 [#allocation2]
      %v8130 = vld [vmem:[%s8129] ss:$2 sm:$0xff]
      %s8131 = scalar_lea.vmem %s8061, 209 [#allocation2]
      %v8132 = vld [vmem:[%s8131] ss:$2 sm:$0x3f]
      %s8133 = scalar_lea.vmem %s8061, 257 [#allocation2]
      %v8134 = vld [vmem:[%s8133] ss:$2 sm:$0xff]
      %s8135 = scalar_lea.vmem %s8061, 273 [#allocation2]
      %v8136 = vld [vmem:[%s8135] ss:$2 sm:$0x3f]
      %s8137 = scalar_lea.vmem %s8061, 321 [#allocation2]
      %v8138 = vld [vmem:[%s8137] ss:$2 sm:$0xff]
      %s8139 = scalar_lea.vmem %s8061, 337 [#allocation2]
      %v8140 = vld [vmem:[%s8139] ss:$2 sm:$0x3f]
      %s8141 = scalar_lea.vmem %s8061, 385 [#allocation2]
      %v8142 = vld [vmem:[%s8141] ss:$2 sm:$0xff]
      %s8143 = scalar_lea.vmem %s8061, 401 [#allocation2]
      %v8144 = vld [vmem:[%s8143] ss:$2 sm:$0x3f]
      %s8145 = scalar_lea.vmem %s8061, 449 [#allocation2]
      %v8146 = vld [vmem:[%s8145] ss:$2 sm:$0xff]
      %s8147 = scalar_lea.vmem %s8061, 465 [#allocation2]
      %v8148 = vld [vmem:[%s8147] ss:$2 sm:$0x3f]
      %s8149 = scalar_lea.vmem %s8061, 513 [#allocation2]
      %v8150 = vld [vmem:[%s8149] ss:$2 sm:$0xff]
      %s8151 = scalar_lea.vmem %s8061, 529 [#allocation2]
      %v8152 = vld [vmem:[%s8151] ss:$2 sm:$0x3f]
      %s8153 = scalar_lea.vmem %s8061, 577 [#allocation2]
      %v8154 = vld [vmem:[%s8153] ss:$2 sm:$0xff]
      %s8155 = scalar_lea.vmem %s8061, 593 [#allocation2]
      %v8156 = vld [vmem:[%s8155] ss:$2 sm:$0x3f]
      %s8157 = scalar_lea.vmem %s8061, 641 [#allocation2]
      %v8158 = vld [vmem:[%s8157] ss:$2 sm:$0xff]
      %s8159 = scalar_lea.vmem %s8061, 657 [#allocation2]
      %v8160 = vld [vmem:[%s8159] ss:$2 sm:$0x3f]
      %s8161 = scalar_lea.vmem %s8061, 705 [#allocation2]
      %v8162 = vld [vmem:[%s8161] ss:$2 sm:$0xff]
      %s8163 = scalar_lea.vmem %s8061, 721 [#allocation2]
      %v8164 = vld [vmem:[%s8163] ss:$2 sm:$0x3f]
      %s8165 = scalar_lea.vmem %s8061, 769 [#allocation2]
      %v8166 = vld [vmem:[%s8165] ss:$2 sm:$0xff]
      %s8167 = scalar_lea.vmem %s8061, 785 [#allocation2]
      %v8168 = vld [vmem:[%s8167] ss:$2 sm:$0x3f]
      %s8169 = scalar_lea.vmem %s8061, 833 [#allocation2]
      %v8170 = vld [vmem:[%s8169] ss:$2 sm:$0xff]
      %s8171 = scalar_lea.vmem %s8061, 849 [#allocation2]
      %v8172 = vld [vmem:[%s8171] ss:$2 sm:$0x3f]
      %v8173 = vmax.f32 %v8062, %v8118
      %v8174 = vmax.f32 %v8064, %v8120
      %v8175 = vmax.f32 %v8066, %v8122
      %v8176 = vmax.f32 %v8068, %v8124
      %v8177 = vmax.f32 %v8070, %v8126
      %v8178 = vmax.f32 %v8072, %v8128
      %v8179 = vmax.f32 %v8074, %v8130
      %v8180 = vmax.f32 %v8076, %v8132
      %v8181 = vmax.f32 %v8078, %v8134
      %v8182 = vmax.f32 %v8080, %v8136
      %v8183 = vmax.f32 %v8082, %v8138
      %v8184 = vmax.f32 %v8084, %v8140
      %v8185 = vmax.f32 %v8086, %v8142
      %v8186 = vmax.f32 %v8088, %v8144
      %v8187 = vmax.f32 %v8090, %v8146
      %v8188 = vmax.f32 %v8092, %v8148
      %v8189 = vmax.f32 %v8094, %v8150
      %v8190 = vmax.f32 %v8096, %v8152
      %v8191 = vmax.f32 %v8098, %v8154
      %v8192 = vmax.f32 %v8100, %v8156
      %v8193 = vmax.f32 %v8102, %v8158
      %v8194 = vmax.f32 %v8104, %v8160
      %v8195 = vmax.f32 %v8106, %v8162
      %v8196 = vmax.f32 %v8108, %v8164
      %v8197 = vmax.f32 %v8110, %v8166
      %v8198 = vmax.f32 %v8112, %v8168
      %v8199 = vmax.f32 %v8114, %v8170
      %v8200 = vmax.f32 %v8116, %v8172
      %v8201 = vmax.f32 %v8033, %v8173
      %v8202 = vmax.f32 %v8034, %v8174
      %v8203 = vmax.f32 %v8035, %v8175
      %v8204 = vmax.f32 %v8036, %v8176
      %v8205 = vmax.f32 %v8037, %v8177
      %v8206 = vmax.f32 %v8038, %v8178
      %v8207 = vmax.f32 %v8039, %v8179
      %v8208 = vmax.f32 %v8040, %v8180
      %v8209 = vmax.f32 %v8041, %v8181
      %v8210 = vmax.f32 %v8042, %v8182
      %v8211 = vmax.f32 %v8043, %v8183
      %v8212 = vmax.f32 %v8044, %v8184
      %v8213 = vmax.f32 %v8045, %v8185
      %v8214 = vmax.f32 %v8046, %v8186
      %v8215 = vmax.f32 %v8047, %v8187
      %v8216 = vmax.f32 %v8048, %v8188
      %v8217 = vmax.f32 %v8049, %v8189
      %v8218 = vmax.f32 %v8050, %v8190
      %v8219 = vmax.f32 %v8051, %v8191
      %v8220 = vmax.f32 %v8052, %v8192
      %v8221 = vmax.f32 %v8053, %v8193
      %v8222 = vmax.f32 %v8054, %v8194
      %v8223 = vmax.f32 %v8055, %v8195
      %v8224 = vmax.f32 %v8056, %v8196
      %v8225 = vmax.f32 %v8057, %v8197
      %v8226 = vmax.f32 %v8058, %v8198
      %v8227 = vmax.f32 %v8059, %v8199
      %v8228 = vmax.f32 %v8060, %v8200
      %8229 = vst.msk [vmem:[#allocation4] sm:$0xff] %vm3773, 0.0
      %8230 = vst.msk [vmem:[#allocation4 + $0x8] sm:$0xff] %vm3773, 0.0
      %vm8231 = vcmask 60416
      %8232 = vst.msk [vmem:[#allocation4 + $0x10] sm:$0xf] %vm8231, 0.0
      %8233 = vst.msk [vmem:[#allocation4 + $0x18] sm:$0xff] %vm3773, 0.0
      %8234 = vst.msk [vmem:[#allocation4 + $0x20] sm:$0xff] %vm3773, 0.0
      %8235 = vst.msk [vmem:[#allocation4 + $0x28] sm:$0xf] %vm8231, 0.0
      %8236 = vst.msk [vmem:[#allocation4 + $0x30] sm:$0xff] %vm3773, 0.0
      %8237 = vst.msk [vmem:[#allocation4 + $0x38] sm:$0xff] %vm3773, 0.0
      %8238 = vst.msk [vmem:[#allocation4 + $0x40] sm:$0xf] %vm8231, 0.0
      %8239 = vst.msk [vmem:[#allocation4 + $0x48] sm:$0xff] %vm3773, 0.0
      %8240 = vst.msk [vmem:[#allocation4 + $0x50] sm:$0xff] %vm3773, 0.0
      %8241 = vst.msk [vmem:[#allocation4 + $0x58] sm:$0xf] %vm8231, 0.0
      %8242 = vst.msk [vmem:[#allocation4 + $0x60] sm:$0xff] %vm3773, 0.0
      %8243 = vst.msk [vmem:[#allocation4 + $0x68] sm:$0xff] %vm3773, 0.0
      %8244 = vst.msk [vmem:[#allocation4 + $0x70] sm:$0xf] %vm8231, 0.0
      %8245 = vst.msk [vmem:[#allocation4 + $0x78] sm:$0xff] %vm3773, 0.0
      %8246 = vst.msk [vmem:[#allocation4 + $0x80] sm:$0xff] %vm3773, 0.0
      %8247 = vst.msk [vmem:[#allocation4 + $0x88] sm:$0xf] %vm8231, 0.0
      %8248 = vst.msk [vmem:[#allocation4 + $0x90] sm:$0xff] %vm3773, 0.0
      %8249 = vst.msk [vmem:[#allocation4 + $0x98] sm:$0xff] %vm3773, 0.0
      %8250 = vst.msk [vmem:[#allocation4 + $0xa0] sm:$0xf] %vm8231, 0.0
      %8251 = vst.msk [vmem:[#allocation4 + $0xa8] sm:$0xff] %vm3773, 0.0
      %8252 = vst.msk [vmem:[#allocation4 + $0xb0] sm:$0xff] %vm3773, 0.0
      %8253 = vst.msk [vmem:[#allocation4 + $0xb8] sm:$0xf] %vm8231, 0.0
      %8254 = vst.msk [vmem:[#allocation4 + $0xc0] sm:$0xff] %vm3773, 0.0
      %8255 = vst.msk [vmem:[#allocation4 + $0xc8] sm:$0xff] %vm3773, 0.0
      %8256 = vst.msk [vmem:[#allocation4 + $0xd0] sm:$0xf] %vm8231, 0.0
      %8257 = vst.msk [vmem:[#allocation4 + $0xd8] sm:$0xff] %vm3773, 0.0
      %8258 = vst.msk [vmem:[#allocation4 + $0xe0] sm:$0xff] %vm3773, 0.0
      %8259 = vst.msk [vmem:[#allocation4 + $0xe8] sm:$0xf] %vm8231, 0.0
      %8260 = vst.msk [vmem:[#allocation4 + $0xf0] sm:$0xff] %vm3773, 0.0
      %8261 = vst.msk [vmem:[#allocation4 + $0xf8] sm:$0xff] %vm3773, 0.0
      %8262 = vst.msk [vmem:[#allocation4 + $0x100] sm:$0xf] %vm8231, 0.0
      %8263 = vst.msk [vmem:[#allocation4 + $0x108] sm:$0xff] %vm3773, 0.0
      %8264 = vst.msk [vmem:[#allocation4 + $0x110] sm:$0xff] %vm3773, 0.0
      %8265 = vst.msk [vmem:[#allocation4 + $0x118] sm:$0xf] %vm8231, 0.0
      %8266 = vst.msk [vmem:[#allocation4 + $0x120] sm:$0xff] %vm3773, 0.0
      %8267 = vst.msk [vmem:[#allocation4 + $0x128] sm:$0xff] %vm3773, 0.0
      %8268 = vst.msk [vmem:[#allocation4 + $0x130] sm:$0xf] %vm8231, 0.0
      %8269 = vst.msk [vmem:[#allocation4 + $0x138] sm:$0xff] %vm3773, 0.0
      %8270 = vst.msk [vmem:[#allocation4 + $0x140] sm:$0xff] %vm3773, 0.0
      %8271 = vst.msk [vmem:[#allocation4 + $0x148] sm:$0xf] %vm8231, 0.0
      %8272 = vst.msk [vmem:[#allocation4 + $0x150] sm:$0xff] %vm3773, 0.0
      %8273 = vst.msk [vmem:[#allocation4 + $0x158] sm:$0xff] %vm3773, 0.0
      %8274 = vst.msk [vmem:[#allocation4 + $0x160] sm:$0xf] %vm8231, 0.0
      %8275 = vst.msk [vmem:[#allocation4 + $0x168] sm:$0xff] %vm3773, 0.0
      %8276 = vst.msk [vmem:[#allocation4 + $0x170] sm:$0xff] %vm3773, 0.0
      %8277 = vst.msk [vmem:[#allocation4 + $0x178] sm:$0xf] %vm8231, 0.0
      %8278 = vst.msk [vmem:[#allocation4 + $0x180] sm:$0xff] %vm3773, 0.0
      %8279 = vst.msk [vmem:[#allocation4 + $0x188] sm:$0xff] %vm3773, 0.0
      %8280 = vst.msk [vmem:[#allocation4 + $0x190] sm:$0xf] %vm8231, 0.0
      %8281 = vst.msk [vmem:[#allocation4 + $0x198] sm:$0xff] %vm3773, 0.0
      %8282 = vst.msk [vmem:[#allocation4 + $0x1a0] sm:$0xff] %vm3773, 0.0
      %8283 = vst.msk [vmem:[#allocation4 + $0x1a8] sm:$0xf] %vm8231, 0.0
      %8284 = vst.msk [vmem:[#allocation4] sm:$0xff] %vm3773, %v8201
      %vm8285 = vcmask 62464
      %8286 = vst.msk [vmem:[#allocation4 + $0x8] sm:$0x3f] %vm8285, %v8202
      %8287 = vst.msk [vmem:[#allocation4 + $0x18] sm:$0xff] %vm3773, %v8203
      %8288 = vst.msk [vmem:[#allocation4 + $0x20] sm:$0x3f] %vm8285, %v8204
      %8289 = vst.msk [vmem:[#allocation4 + $0x30] sm:$0xff] %vm3773, %v8205
      %8290 = vst.msk [vmem:[#allocation4 + $0x38] sm:$0x3f] %vm8285, %v8206
      %8291 = vst.msk [vmem:[#allocation4 + $0x48] sm:$0xff] %vm3773, %v8207
      %8292 = vst.msk [vmem:[#allocation4 + $0x50] sm:$0x3f] %vm8285, %v8208
      %8293 = vst.msk [vmem:[#allocation4 + $0x60] sm:$0xff] %vm3773, %v8209
      %8294 = vst.msk [vmem:[#allocation4 + $0x68] sm:$0x3f] %vm8285, %v8210
      %8295 = vst.msk [vmem:[#allocation4 + $0x78] sm:$0xff] %vm3773, %v8211
      %8296 = vst.msk [vmem:[#allocation4 + $0x80] sm:$0x3f] %vm8285, %v8212
      %8297 = vst.msk [vmem:[#allocation4 + $0x90] sm:$0xff] %vm3773, %v8213
      %8298 = vst.msk [vmem:[#allocation4 + $0x98] sm:$0x3f] %vm8285, %v8214
      %8299 = vst.msk [vmem:[#allocation4 + $0xa8] sm:$0xff] %vm3773, %v8215
      %8300 = vst.msk [vmem:[#allocation4 + $0xb0] sm:$0x3f] %vm8285, %v8216
      %8301 = vst.msk [vmem:[#allocation4 + $0xc0] sm:$0xff] %vm3773, %v8217
      %8302 = vst.msk [vmem:[#allocation4 + $0xc8] sm:$0x3f] %vm8285, %v8218
      %8303 = vst.msk [vmem:[#allocation4 + $0xd8] sm:$0xff] %vm3773, %v8219
      %8304 = vst.msk [vmem:[#allocation4 + $0xe0] sm:$0x3f] %vm8285, %v8220
      %8305 = vst.msk [vmem:[#allocation4 + $0xf0] sm:$0xff] %vm3773, %v8221
      %8306 = vst.msk [vmem:[#allocation4 + $0xf8] sm:$0x3f] %vm8285, %v8222
      %8307 = vst.msk [vmem:[#allocation4 + $0x108] sm:$0xff] %vm3773, %v8223
      %8308 = vst.msk [vmem:[#allocation4 + $0x110] sm:$0x3f] %vm8285, %v8224
      %8309 = vst.msk [vmem:[#allocation4 + $0x120] sm:$0xff] %vm3773, %v8225
      %8310 = vst.msk [vmem:[#allocation4 + $0x128] sm:$0x3f] %vm8285, %v8226
      %8311 = vst.msk [vmem:[#allocation4 + $0x138] sm:$0xff] %vm3773, %v8227
      %8312 = vst.msk [vmem:[#allocation4 + $0x140] sm:$0x3f] %vm8285, %v8228
      %v8313 = vld [vmem:[#allocation4] sm:$0xff]
      %v8314 = vld [vmem:[#allocation4 + $0x8] sm:$0xff]
      %v8315 = vld [vmem:[#allocation4 + $0x10] sm:$0xf]
      %v8316 = vld [vmem:[#allocation4 + $0x18] sm:$0xff]
      %v8317 = vld [vmem:[#allocation4 + $0x20] sm:$0xff]
      %v8318 = vld [vmem:[#allocation4 + $0x28] sm:$0xf]
      %v8319 = vld [vmem:[#allocation4 + $0x30] sm:$0xff]
      %v8320 = vld [vmem:[#allocation4 + $0x38] sm:$0xff]
      %v8321 = vld [vmem:[#allocation4 + $0x40] sm:$0xf]
      %v8322 = vld [vmem:[#allocation4 + $0x48] sm:$0xff]
      %v8323 = vld [vmem:[#allocation4 + $0x50] sm:$0xff]
      %v8324 = vld [vmem:[#allocation4 + $0x58] sm:$0xf]
      %v8325 = vld [vmem:[#allocation4 + $0x60] sm:$0xff]
      %v8326 = vld [vmem:[#allocation4 + $0x68] sm:$0xff]
      %v8327 = vld [vmem:[#allocation4 + $0x70] sm:$0xf]
      %v8328 = vld [vmem:[#allocation4 + $0x78] sm:$0xff]
      %v8329 = vld [vmem:[#allocation4 + $0x80] sm:$0xff]
      %v8330 = vld [vmem:[#allocation4 + $0x88] sm:$0xf]
      %v8331 = vld [vmem:[#allocation4 + $0x90] sm:$0xff]
      %v8332 = vld [vmem:[#allocation4 + $0x98] sm:$0xff]
      %v8333 = vld [vmem:[#allocation4 + $0xa0] sm:$0xf]
      %v8334 = vld [vmem:[#allocation4 + $0xa8] sm:$0xff]
      %v8335 = vld [vmem:[#allocation4 + $0xb0] sm:$0xff]
      %v8336 = vld [vmem:[#allocation4 + $0xb8] sm:$0xf]
      %v8337 = vld [vmem:[#allocation4 + $0xc0] sm:$0xff]
      %v8338 = vld [vmem:[#allocation4 + $0xc8] sm:$0xff]
      %v8339 = vld [vmem:[#allocation4 + $0xd0] sm:$0xf]
      %v8340 = vld [vmem:[#allocation4 + $0xd8] sm:$0xff]
      %v8341 = vld [vmem:[#allocation4 + $0xe0] sm:$0xff]
      %v8342 = vld [vmem:[#allocation4 + $0xe8] sm:$0xf]
      %v8343 = vld [vmem:[#allocation4 + $0xf0] sm:$0xff]
      %v8344 = vld [vmem:[#allocation4 + $0xf8] sm:$0xff]
      %v8345 = vld [vmem:[#allocation4 + $0x100] sm:$0xf]
      %v8346 = vld [vmem:[#allocation4 + $0x108] sm:$0xff]
      %v8347 = vld [vmem:[#allocation4 + $0x110] sm:$0xff]
      %v8348 = vld [vmem:[#allocation4 + $0x118] sm:$0xf]
      %v8349 = vld [vmem:[#allocation4 + $0x120] sm:$0xff]
      %v8350 = vld [vmem:[#allocation4 + $0x128] sm:$0xff]
      %v8351 = vld [vmem:[#allocation4 + $0x130] sm:$0xf]
      %v8352 = vld [vmem:[#allocation4 + $0x138] sm:$0xff]
      %v8353 = vld [vmem:[#allocation4 + $0x140] sm:$0xff]
      %v8354 = vld [vmem:[#allocation4 + $0x148] sm:$0xf]
      %v8355 = vld [vmem:[#allocation4 + $0x150] sm:$0xff]
      %v8356 = vld [vmem:[#allocation4 + $0x158] sm:$0xff]
      %v8357 = vld [vmem:[#allocation4 + $0x160] sm:$0xf]
      %v8358 = vld [vmem:[#allocation4 + $0x168] sm:$0xff]
      %v8359 = vld [vmem:[#allocation4 + $0x170] sm:$0xff]
      %v8360 = vld [vmem:[#allocation4 + $0x178] sm:$0xf]
      %v8361 = vld [vmem:[#allocation4 + $0x180] sm:$0xff]
      %v8362 = vld [vmem:[#allocation4 + $0x188] sm:$0xff]
      %v8363 = vld [vmem:[#allocation4 + $0x190] sm:$0xf]
      %v8364 = vld [vmem:[#allocation4 + $0x198] sm:$0xff]
      %v8365 = vld [vmem:[#allocation4 + $0x1a0] sm:$0xff]
      %v8366 = vld [vmem:[#allocation4 + $0x1a8] sm:$0xf]
      %v8421 = vrot.slane %v8313, 1
      %v8422 = vrot.slane %v8314, 1
      %v8423 = vsel %vm745, %v8421, %v8422
      %v8424 = vrot.slane %v8315, 1
      %v8425 = vsel %vm745, %v8422, %v8424
      %v8426 = vrot.slane %v8316, 1
      %v8427 = vrot.slane %v8317, 1
      %v8428 = vsel %vm745, %v8426, %v8427
      %v8429 = vrot.slane %v8318, 1
      %v8430 = vsel %vm745, %v8427, %v8429
      %v8431 = vrot.slane %v8319, 1
      %v8432 = vrot.slane %v8320, 1
      %v8433 = vsel %vm745, %v8431, %v8432
      %v8434 = vrot.slane %v8321, 1
      %v8435 = vsel %vm745, %v8432, %v8434
      %v8436 = vrot.slane %v8322, 1
      %v8437 = vrot.slane %v8323, 1
      %v8438 = vsel %vm745, %v8436, %v8437
      %v8439 = vrot.slane %v8324, 1
      %v8440 = vsel %vm745, %v8437, %v8439
      %v8441 = vrot.slane %v8325, 1
      %v8442 = vrot.slane %v8326, 1
      %v8443 = vsel %vm745, %v8441, %v8442
      %v8444 = vrot.slane %v8327, 1
      %v8445 = vsel %vm745, %v8442, %v8444
      %v8446 = vrot.slane %v8328, 1
      %v8447 = vrot.slane %v8329, 1
      %v8448 = vsel %vm745, %v8446, %v8447
      %v8449 = vrot.slane %v8330, 1
      %v8450 = vsel %vm745, %v8447, %v8449
      %v8451 = vrot.slane %v8331, 1
      %v8452 = vrot.slane %v8332, 1
      %v8453 = vsel %vm745, %v8451, %v8452
      %v8454 = vrot.slane %v8333, 1
      %v8455 = vsel %vm745, %v8452, %v8454
      %v8456 = vrot.slane %v8334, 1
      %v8457 = vrot.slane %v8335, 1
      %v8458 = vsel %vm745, %v8456, %v8457
      %v8459 = vrot.slane %v8336, 1
      %v8460 = vsel %vm745, %v8457, %v8459
      %v8461 = vrot.slane %v8337, 1
      %v8462 = vrot.slane %v8338, 1
      %v8463 = vsel %vm745, %v8461, %v8462
      %v8464 = vrot.slane %v8339, 1
      %v8465 = vsel %vm745, %v8462, %v8464
      %v8466 = vrot.slane %v8340, 1
      %v8467 = vrot.slane %v8341, 1
      %v8468 = vsel %vm745, %v8466, %v8467
      %v8469 = vrot.slane %v8342, 1
      %v8470 = vsel %vm745, %v8467, %v8469
      %v8471 = vrot.slane %v8343, 1
      %v8472 = vrot.slane %v8344, 1
      %v8473 = vsel %vm745, %v8471, %v8472
      %v8474 = vrot.slane %v8345, 1
      %v8475 = vsel %vm745, %v8472, %v8474
      %v8476 = vrot.slane %v8346, 1
      %v8477 = vrot.slane %v8347, 1
      %v8478 = vsel %vm745, %v8476, %v8477
      %v8479 = vrot.slane %v8348, 1
      %v8480 = vsel %vm745, %v8477, %v8479
      %v8481 = vrot.slane %v8349, 1
      %v8482 = vrot.slane %v8350, 1
      %v8483 = vsel %vm745, %v8481, %v8482
      %v8484 = vrot.slane %v8351, 1
      %v8485 = vsel %vm745, %v8482, %v8484
      %v8486 = vrot.slane %v8352, 1
      %v8487 = vrot.slane %v8353, 1
      %v8488 = vsel %vm745, %v8486, %v8487
      %v8489 = vrot.slane %v8354, 1
      %v8490 = vsel %vm745, %v8487, %v8489
      %v8491 = vrot.slane %v8355, 1
      %v8492 = vrot.slane %v8356, 1
      %v8493 = vsel %vm745, %v8491, %v8492
      %v8494 = vrot.slane %v8357, 1
      %v8495 = vsel %vm745, %v8492, %v8494
      %v8496 = vrot.slane %v8358, 1
      %v8497 = vrot.slane %v8359, 1
      %v8498 = vsel %vm745, %v8496, %v8497
      %v8499 = vrot.slane %v8360, 1
      %v8500 = vsel %vm745, %v8497, %v8499
      %v8501 = vrot.slane %v8361, 1
      %v8502 = vrot.slane %v8362, 1
      %v8503 = vsel %vm745, %v8501, %v8502
      %v8504 = vrot.slane %v8363, 1
      %v8505 = vsel %vm745, %v8502, %v8504
      %v8506 = vrot.slane %v8364, 1
      %v8507 = vrot.slane %v8365, 1
      %v8508 = vsel %vm745, %v8506, %v8507
      %v8509 = vrot.slane %v8366, 1
      %v8510 = vsel %vm745, %v8507, %v8509
      %8511 = vrot.lane.b32.xlu0 %v8423, 8
      %v8512 = vpop.permute.xlu0 %8511
      %8513 = vrot.lane.b32.xlu0 %v8425, 8
      %v8514 = vpop.permute.xlu0 %8513
      %8515 = vrot.lane.b32.xlu0 %v8428, 8
      %v8516 = vpop.permute.xlu0 %8515
      %8517 = vrot.lane.b32.xlu0 %v8430, 8
      %v8518 = vpop.permute.xlu0 %8517
      %8519 = vrot.lane.b32.xlu0 %v8433, 8
      %v8520 = vpop.permute.xlu0 %8519
      %8521 = vrot.lane.b32.xlu0 %v8435, 8
      %v8522 = vpop.permute.xlu0 %8521
      %8523 = vrot.lane.b32.xlu0 %v8438, 8
      %v8524 = vpop.permute.xlu0 %8523
      %8525 = vrot.lane.b32.xlu0 %v8440, 8
      %v8526 = vpop.permute.xlu0 %8525
      %8527 = vrot.lane.b32.xlu0 %v8443, 8
      %v8528 = vpop.permute.xlu0 %8527
      %8529 = vrot.lane.b32.xlu0 %v8445, 8
      %v8530 = vpop.permute.xlu0 %8529
      %8531 = vrot.lane.b32.xlu0 %v8448, 8
      %v8532 = vpop.permute.xlu0 %8531
      %8533 = vrot.lane.b32.xlu0 %v8450, 8
      %v8534 = vpop.permute.xlu0 %8533
      %8535 = vrot.lane.b32.xlu0 %v8453, 8
      %v8536 = vpop.permute.xlu0 %8535
      %8537 = vrot.lane.b32.xlu0 %v8455, 8
      %v8538 = vpop.permute.xlu0 %8537
      %8539 = vrot.lane.b32.xlu0 %v8458, 8
      %v8540 = vpop.permute.xlu0 %8539
      %8541 = vrot.lane.b32.xlu0 %v8460, 8
      %v8542 = vpop.permute.xlu0 %8541
      %8543 = vrot.lane.b32.xlu0 %v8463, 8
      %v8544 = vpop.permute.xlu0 %8543
      %8545 = vrot.lane.b32.xlu0 %v8465, 8
      %v8546 = vpop.permute.xlu0 %8545
      %8547 = vrot.lane.b32.xlu0 %v8468, 8
      %v8548 = vpop.permute.xlu0 %8547
      %8549 = vrot.lane.b32.xlu0 %v8470, 8
      %v8550 = vpop.permute.xlu0 %8549
      %8551 = vrot.lane.b32.xlu0 %v8473, 8
      %v8552 = vpop.permute.xlu0 %8551
      %8553 = vrot.lane.b32.xlu0 %v8475, 8
      %v8554 = vpop.permute.xlu0 %8553
      %8555 = vrot.lane.b32.xlu0 %v8478, 8
      %v8556 = vpop.permute.xlu0 %8555
      %8557 = vrot.lane.b32.xlu0 %v8480, 8
      %v8558 = vpop.permute.xlu0 %8557
      %8559 = vrot.lane.b32.xlu0 %v8483, 8
      %v8560 = vpop.permute.xlu0 %8559
      %8561 = vrot.lane.b32.xlu0 %v8485, 8
      %v8562 = vpop.permute.xlu0 %8561
      %8563 = vrot.lane.b32.xlu0 %v8488, 8
      %v8564 = vpop.permute.xlu0 %8563
      %8565 = vrot.lane.b32.xlu0 %v8490, 8
      %v8566 = vpop.permute.xlu0 %8565
      %8567 = vrot.lane.b32.xlu0 %v8493, 8
      %v8568 = vpop.permute.xlu0 %8567
      %8569 = vrot.lane.b32.xlu0 %v8495, 8
      %v8570 = vpop.permute.xlu0 %8569
      %8571 = vrot.lane.b32.xlu0 %v8498, 8
      %v8572 = vpop.permute.xlu0 %8571
      %8573 = vrot.lane.b32.xlu0 %v8500, 8
      %v8574 = vpop.permute.xlu0 %8573
      %8575 = vrot.lane.b32.xlu0 %v8503, 8
      %v8576 = vpop.permute.xlu0 %8575
      %8577 = vrot.lane.b32.xlu0 %v8505, 8
      %v8578 = vpop.permute.xlu0 %8577
      %8579 = vrot.lane.b32.xlu0 %v8508, 8
      %v8580 = vpop.permute.xlu0 %8579
      %8581 = vrot.lane.b32.xlu0 %v8510, 8
      %v8582 = vpop.permute.xlu0 %8581
      %v8619 = vrot.slane %v8313, 2
      %v8620 = vrot.slane %v8314, 2
      %v8621 = vsel %vm1502, %v8619, %v8620
      %v8622 = vrot.slane %v8315, 2
      %v8623 = vsel %vm1502, %v8620, %v8622
      %v8624 = vrot.slane %v8316, 2
      %v8625 = vrot.slane %v8317, 2
      %v8626 = vsel %vm1502, %v8624, %v8625
      %v8627 = vrot.slane %v8318, 2
      %v8628 = vsel %vm1502, %v8625, %v8627
      %v8629 = vrot.slane %v8319, 2
      %v8630 = vrot.slane %v8320, 2
      %v8631 = vsel %vm1502, %v8629, %v8630
      %v8632 = vrot.slane %v8321, 2
      %v8633 = vsel %vm1502, %v8630, %v8632
      %v8634 = vrot.slane %v8322, 2
      %v8635 = vrot.slane %v8323, 2
      %v8636 = vsel %vm1502, %v8634, %v8635
      %v8637 = vrot.slane %v8324, 2
      %v8638 = vsel %vm1502, %v8635, %v8637
      %v8639 = vrot.slane %v8325, 2
      %v8640 = vrot.slane %v8326, 2
      %v8641 = vsel %vm1502, %v8639, %v8640
      %v8642 = vrot.slane %v8327, 2
      %v8643 = vsel %vm1502, %v8640, %v8642
      %v8644 = vrot.slane %v8328, 2
      %v8645 = vrot.slane %v8329, 2
      %v8646 = vsel %vm1502, %v8644, %v8645
      %v8647 = vrot.slane %v8330, 2
      %v8648 = vsel %vm1502, %v8645, %v8647
      %v8649 = vrot.slane %v8331, 2
      %v8650 = vrot.slane %v8332, 2
      %v8651 = vsel %vm1502, %v8649, %v8650
      %v8652 = vrot.slane %v8333, 2
      %v8653 = vsel %vm1502, %v8650, %v8652
      %v8654 = vrot.slane %v8334, 2
      %v8655 = vrot.slane %v8335, 2
      %v8656 = vsel %vm1502, %v8654, %v8655
      %v8657 = vrot.slane %v8336, 2
      %v8658 = vsel %vm1502, %v8655, %v8657
      %v8659 = vrot.slane %v8337, 2
      %v8660 = vrot.slane %v8338, 2
      %v8661 = vsel %vm1502, %v8659, %v8660
      %v8662 = vrot.slane %v8339, 2
      %v8663 = vsel %vm1502, %v8660, %v8662
      %v8664 = vrot.slane %v8340, 2
      %v8665 = vrot.slane %v8341, 2
      %v8666 = vsel %vm1502, %v8664, %v8665
      %v8667 = vrot.slane %v8342, 2
      %v8668 = vsel %vm1502, %v8665, %v8667
      %v8669 = vrot.slane %v8343, 2
      %v8670 = vrot.slane %v8344, 2
      %v8671 = vsel %vm1502, %v8669, %v8670
      %v8672 = vrot.slane %v8345, 2
      %v8673 = vsel %vm1502, %v8670, %v8672
      %v8674 = vrot.slane %v8346, 2
      %v8675 = vrot.slane %v8347, 2
      %v8676 = vsel %vm1502, %v8674, %v8675
      %v8677 = vrot.slane %v8348, 2
      %v8678 = vsel %vm1502, %v8675, %v8677
      %v8679 = vrot.slane %v8349, 2
      %v8680 = vrot.slane %v8350, 2
      %v8681 = vsel %vm1502, %v8679, %v8680
      %v8682 = vrot.slane %v8351, 2
      %v8683 = vsel %vm1502, %v8680, %v8682
      %v8684 = vrot.slane %v8352, 2
      %v8685 = vrot.slane %v8353, 2
      %v8686 = vsel %vm1502, %v8684, %v8685
      %v8687 = vrot.slane %v8354, 2
      %v8688 = vsel %vm1502, %v8685, %v8687
      %v8689 = vrot.slane %v8355, 2
      %v8690 = vrot.slane %v8356, 2
      %v8691 = vsel %vm1502, %v8689, %v8690
      %v8692 = vrot.slane %v8357, 2
      %v8693 = vsel %vm1502, %v8690, %v8692
      %v8694 = vrot.slane %v8358, 2
      %v8695 = vrot.slane %v8359, 2
      %v8696 = vsel %vm1502, %v8694, %v8695
      %v8697 = vrot.slane %v8360, 2
      %v8698 = vsel %vm1502, %v8695, %v8697
      %v8699 = vrot.slane %v8361, 2
      %v8700 = vrot.slane %v8362, 2
      %v8701 = vsel %vm1502, %v8699, %v8700
      %v8702 = vrot.slane %v8363, 2
      %v8703 = vsel %vm1502, %v8700, %v8702
      %v8704 = vrot.slane %v8364, 2
      %v8705 = vrot.slane %v8365, 2
      %v8706 = vsel %vm1502, %v8704, %v8705
      %v8707 = vrot.slane %v8366, 2
      %v8708 = vsel %vm1502, %v8705, %v8707
      %8709 = vrot.lane.b32.xlu0 %v8621, 16
      %v8710 = vpop.permute.xlu0 %8709
      %8711 = vrot.lane.b32.xlu0 %v8623, 16
      %v8712 = vpop.permute.xlu0 %8711
      %8713 = vrot.lane.b32.xlu0 %v8626, 16
      %v8714 = vpop.permute.xlu0 %8713
      %8715 = vrot.lane.b32.xlu0 %v8628, 16
      %v8716 = vpop.permute.xlu0 %8715
      %8717 = vrot.lane.b32.xlu0 %v8631, 16
      %v8718 = vpop.permute.xlu0 %8717
      %8719 = vrot.lane.b32.xlu0 %v8633, 16
      %v8720 = vpop.permute.xlu0 %8719
      %8721 = vrot.lane.b32.xlu0 %v8636, 16
      %v8722 = vpop.permute.xlu0 %8721
      %8723 = vrot.lane.b32.xlu0 %v8638, 16
      %v8724 = vpop.permute.xlu0 %8723
      %8725 = vrot.lane.b32.xlu0 %v8641, 16
      %v8726 = vpop.permute.xlu0 %8725
      %8727 = vrot.lane.b32.xlu0 %v8643, 16
      %v8728 = vpop.permute.xlu0 %8727
      %8729 = vrot.lane.b32.xlu0 %v8646, 16
      %v8730 = vpop.permute.xlu0 %8729
      %8731 = vrot.lane.b32.xlu0 %v8648, 16
      %v8732 = vpop.permute.xlu0 %8731
      %8733 = vrot.lane.b32.xlu0 %v8651, 16
      %v8734 = vpop.permute.xlu0 %8733
      %8735 = vrot.lane.b32.xlu0 %v8653, 16
      %v8736 = vpop.permute.xlu0 %8735
      %8737 = vrot.lane.b32.xlu0 %v8656, 16
      %v8738 = vpop.permute.xlu0 %8737
      %8739 = vrot.lane.b32.xlu0 %v8658, 16
      %v8740 = vpop.permute.xlu0 %8739
      %8741 = vrot.lane.b32.xlu0 %v8661, 16
      %v8742 = vpop.permute.xlu0 %8741
      %8743 = vrot.lane.b32.xlu0 %v8663, 16
      %v8744 = vpop.permute.xlu0 %8743
      %8745 = vrot.lane.b32.xlu0 %v8666, 16
      %v8746 = vpop.permute.xlu0 %8745
      %8747 = vrot.lane.b32.xlu0 %v8668, 16
      %v8748 = vpop.permute.xlu0 %8747
      %8749 = vrot.lane.b32.xlu0 %v8671, 16
      %v8750 = vpop.permute.xlu0 %8749
      %8751 = vrot.lane.b32.xlu0 %v8673, 16
      %v8752 = vpop.permute.xlu0 %8751
      %8753 = vrot.lane.b32.xlu0 %v8676, 16
      %v8754 = vpop.permute.xlu0 %8753
      %8755 = vrot.lane.b32.xlu0 %v8678, 16
      %v8756 = vpop.permute.xlu0 %8755
      %8757 = vrot.lane.b32.xlu0 %v8681, 16
      %v8758 = vpop.permute.xlu0 %8757
      %8759 = vrot.lane.b32.xlu0 %v8683, 16
      %v8760 = vpop.permute.xlu0 %8759
      %8761 = vrot.lane.b32.xlu0 %v8686, 16
      %v8762 = vpop.permute.xlu0 %8761
      %8763 = vrot.lane.b32.xlu0 %v8688, 16
      %v8764 = vpop.permute.xlu0 %8763
      %8765 = vrot.lane.b32.xlu0 %v8691, 16
      %v8766 = vpop.permute.xlu0 %8765
      %8767 = vrot.lane.b32.xlu0 %v8693, 16
      %v8768 = vpop.permute.xlu0 %8767
      %8769 = vrot.lane.b32.xlu0 %v8696, 16
      %v8770 = vpop.permute.xlu0 %8769
      %8771 = vrot.lane.b32.xlu0 %v8698, 16
      %v8772 = vpop.permute.xlu0 %8771
      %8773 = vrot.lane.b32.xlu0 %v8701, 16
      %v8774 = vpop.permute.xlu0 %8773
      %8775 = vrot.lane.b32.xlu0 %v8703, 16
      %v8776 = vpop.permute.xlu0 %8775
      %8777 = vrot.lane.b32.xlu0 %v8706, 16
      %v8778 = vpop.permute.xlu0 %8777
      %8779 = vrot.lane.b32.xlu0 %v8708, 16
      %v8780 = vpop.permute.xlu0 %8779
      %v8817 = vrot.slane %v8313, 3
      %v8818 = vrot.slane %v8314, 3
      %v8819 = vsel %vm2259, %v8817, %v8818
      %v8820 = vrot.slane %v8315, 3
      %v8821 = vsel %vm2259, %v8818, %v8820
      %v8822 = vrot.slane %v8316, 3
      %v8823 = vrot.slane %v8317, 3
      %v8824 = vsel %vm2259, %v8822, %v8823
      %v8825 = vrot.slane %v8318, 3
      %v8826 = vsel %vm2259, %v8823, %v8825
      %v8827 = vrot.slane %v8319, 3
      %v8828 = vrot.slane %v8320, 3
      %v8829 = vsel %vm2259, %v8827, %v8828
      %v8830 = vrot.slane %v8321, 3
      %v8831 = vsel %vm2259, %v8828, %v8830
      %v8832 = vrot.slane %v8322, 3
      %v8833 = vrot.slane %v8323, 3
      %v8834 = vsel %vm2259, %v8832, %v8833
      %v8835 = vrot.slane %v8324, 3
      %v8836 = vsel %vm2259, %v8833, %v8835
      %v8837 = vrot.slane %v8325, 3
      %v8838 = vrot.slane %v8326, 3
      %v8839 = vsel %vm2259, %v8837, %v8838
      %v8840 = vrot.slane %v8327, 3
      %v8841 = vsel %vm2259, %v8838, %v8840
      %v8842 = vrot.slane %v8328, 3
      %v8843 = vrot.slane %v8329, 3
      %v8844 = vsel %vm2259, %v8842, %v8843
      %v8845 = vrot.slane %v8330, 3
      %v8846 = vsel %vm2259, %v8843, %v8845
      %v8847 = vrot.slane %v8331, 3
      %v8848 = vrot.slane %v8332, 3
      %v8849 = vsel %vm2259, %v8847, %v8848
      %v8850 = vrot.slane %v8333, 3
      %v8851 = vsel %vm2259, %v8848, %v8850
      %v8852 = vrot.slane %v8334, 3
      %v8853 = vrot.slane %v8335, 3
      %v8854 = vsel %vm2259, %v8852, %v8853
      %v8855 = vrot.slane %v8336, 3
      %v8856 = vsel %vm2259, %v8853, %v8855
      %v8857 = vrot.slane %v8337, 3
      %v8858 = vrot.slane %v8338, 3
      %v8859 = vsel %vm2259, %v8857, %v8858
      %v8860 = vrot.slane %v8339, 3
      %v8861 = vsel %vm2259, %v8858, %v8860
      %v8862 = vrot.slane %v8340, 3
      %v8863 = vrot.slane %v8341, 3
      %v8864 = vsel %vm2259, %v8862, %v8863
      %v8865 = vrot.slane %v8342, 3
      %v8866 = vsel %vm2259, %v8863, %v8865
      %v8867 = vrot.slane %v8343, 3
      %v8868 = vrot.slane %v8344, 3
      %v8869 = vsel %vm2259, %v8867, %v8868
      %v8870 = vrot.slane %v8345, 3
      %v8871 = vsel %vm2259, %v8868, %v8870
      %v8872 = vrot.slane %v8346, 3
      %v8873 = vrot.slane %v8347, 3
      %v8874 = vsel %vm2259, %v8872, %v8873
      %v8875 = vrot.slane %v8348, 3
      %v8876 = vsel %vm2259, %v8873, %v8875
      %v8877 = vrot.slane %v8349, 3
      %v8878 = vrot.slane %v8350, 3
      %v8879 = vsel %vm2259, %v8877, %v8878
      %v8880 = vrot.slane %v8351, 3
      %v8881 = vsel %vm2259, %v8878, %v8880
      %v8882 = vrot.slane %v8352, 3
      %v8883 = vrot.slane %v8353, 3
      %v8884 = vsel %vm2259, %v8882, %v8883
      %v8885 = vrot.slane %v8354, 3
      %v8886 = vsel %vm2259, %v8883, %v8885
      %v8887 = vrot.slane %v8355, 3
      %v8888 = vrot.slane %v8356, 3
      %v8889 = vsel %vm2259, %v8887, %v8888
      %v8890 = vrot.slane %v8357, 3
      %v8891 = vsel %vm2259, %v8888, %v8890
      %v8892 = vrot.slane %v8358, 3
      %v8893 = vrot.slane %v8359, 3
      %v8894 = vsel %vm2259, %v8892, %v8893
      %v8895 = vrot.slane %v8360, 3
      %v8896 = vsel %vm2259, %v8893, %v8895
      %v8897 = vrot.slane %v8361, 3
      %v8898 = vrot.slane %v8362, 3
      %v8899 = vsel %vm2259, %v8897, %v8898
      %v8900 = vrot.slane %v8363, 3
      %v8901 = vsel %vm2259, %v8898, %v8900
      %v8902 = vrot.slane %v8364, 3
      %v8903 = vrot.slane %v8365, 3
      %v8904 = vsel %vm2259, %v8902, %v8903
      %v8905 = vrot.slane %v8366, 3
      %v8906 = vsel %vm2259, %v8903, %v8905
      %8907 = vrot.lane.b32.xlu0 %v8819, 24
      %v8908 = vpop.permute.xlu0 %8907
      %8909 = vrot.lane.b32.xlu0 %v8821, 24
      %v8910 = vpop.permute.xlu0 %8909
      %8911 = vrot.lane.b32.xlu0 %v8824, 24
      %v8912 = vpop.permute.xlu0 %8911
      %8913 = vrot.lane.b32.xlu0 %v8826, 24
      %v8914 = vpop.permute.xlu0 %8913
      %8915 = vrot.lane.b32.xlu0 %v8829, 24
      %v8916 = vpop.permute.xlu0 %8915
      %8917 = vrot.lane.b32.xlu0 %v8831, 24
      %v8918 = vpop.permute.xlu0 %8917
      %8919 = vrot.lane.b32.xlu0 %v8834, 24
      %v8920 = vpop.permute.xlu0 %8919
      %8921 = vrot.lane.b32.xlu0 %v8836, 24
      %v8922 = vpop.permute.xlu0 %8921
      %8923 = vrot.lane.b32.xlu0 %v8839, 24
      %v8924 = vpop.permute.xlu0 %8923
      %8925 = vrot.lane.b32.xlu0 %v8841, 24
      %v8926 = vpop.permute.xlu0 %8925
      %8927 = vrot.lane.b32.xlu0 %v8844, 24
      %v8928 = vpop.permute.xlu0 %8927
      %8929 = vrot.lane.b32.xlu0 %v8846, 24
      %v8930 = vpop.permute.xlu0 %8929
      %8931 = vrot.lane.b32.xlu0 %v8849, 24
      %v8932 = vpop.permute.xlu0 %8931
      %8933 = vrot.lane.b32.xlu0 %v8851, 24
      %v8934 = vpop.permute.xlu0 %8933
      %8935 = vrot.lane.b32.xlu0 %v8854, 24
      %v8936 = vpop.permute.xlu0 %8935
      %8937 = vrot.lane.b32.xlu0 %v8856, 24
      %v8938 = vpop.permute.xlu0 %8937
      %8939 = vrot.lane.b32.xlu0 %v8859, 24
      %v8940 = vpop.permute.xlu0 %8939
      %8941 = vrot.lane.b32.xlu0 %v8861, 24
      %v8942 = vpop.permute.xlu0 %8941
      %8943 = vrot.lane.b32.xlu0 %v8864, 24
      %v8944 = vpop.permute.xlu0 %8943
      %8945 = vrot.lane.b32.xlu0 %v8866, 24
      %v8946 = vpop.permute.xlu0 %8945
      %8947 = vrot.lane.b32.xlu0 %v8869, 24
      %v8948 = vpop.permute.xlu0 %8947
      %8949 = vrot.lane.b32.xlu0 %v8871, 24
      %v8950 = vpop.permute.xlu0 %8949
      %8951 = vrot.lane.b32.xlu0 %v8874, 24
      %v8952 = vpop.permute.xlu0 %8951
      %8953 = vrot.lane.b32.xlu0 %v8876, 24
      %v8954 = vpop.permute.xlu0 %8953
      %8955 = vrot.lane.b32.xlu0 %v8879, 24
      %v8956 = vpop.permute.xlu0 %8955
      %8957 = vrot.lane.b32.xlu0 %v8881, 24
      %v8958 = vpop.permute.xlu0 %8957
      %8959 = vrot.lane.b32.xlu0 %v8884, 24
      %v8960 = vpop.permute.xlu0 %8959
      %8961 = vrot.lane.b32.xlu0 %v8886, 24
      %v8962 = vpop.permute.xlu0 %8961
      %8963 = vrot.lane.b32.xlu0 %v8889, 24
      %v8964 = vpop.permute.xlu0 %8963
      %8965 = vrot.lane.b32.xlu0 %v8891, 24
      %v8966 = vpop.permute.xlu0 %8965
      %8967 = vrot.lane.b32.xlu0 %v8894, 24
      %v8968 = vpop.permute.xlu0 %8967
      %8969 = vrot.lane.b32.xlu0 %v8896, 24
      %v8970 = vpop.permute.xlu0 %8969
      %8971 = vrot.lane.b32.xlu0 %v8899, 24
      %v8972 = vpop.permute.xlu0 %8971
      %8973 = vrot.lane.b32.xlu0 %v8901, 24
      %v8974 = vpop.permute.xlu0 %8973
      %8975 = vrot.lane.b32.xlu0 %v8904, 24
      %v8976 = vpop.permute.xlu0 %8975
      %8977 = vrot.lane.b32.xlu0 %v8906, 24
      %v8978 = vpop.permute.xlu0 %8977
      %v9015 = vrot.slane %v8313, 4
      %v9016 = vrot.slane %v8314, 4
      %v9017 = vsel %vm3016, %v9015, %v9016
      %v9018 = vrot.slane %v8315, 4
      %v9019 = vsel %vm3016, %v9016, %v9018
      %v9020 = vrot.slane %v8316, 4
      %v9021 = vrot.slane %v8317, 4
      %v9022 = vsel %vm3016, %v9020, %v9021
      %v9023 = vrot.slane %v8318, 4
      %v9024 = vsel %vm3016, %v9021, %v9023
      %v9025 = vrot.slane %v8319, 4
      %v9026 = vrot.slane %v8320, 4
      %v9027 = vsel %vm3016, %v9025, %v9026
      %v9028 = vrot.slane %v8321, 4
      %v9029 = vsel %vm3016, %v9026, %v9028
      %v9030 = vrot.slane %v8322, 4
      %v9031 = vrot.slane %v8323, 4
      %v9032 = vsel %vm3016, %v9030, %v9031
      %v9033 = vrot.slane %v8324, 4
      %v9034 = vsel %vm3016, %v9031, %v9033
      %v9035 = vrot.slane %v8325, 4
      %v9036 = vrot.slane %v8326, 4
      %v9037 = vsel %vm3016, %v9035, %v9036
      %v9038 = vrot.slane %v8327, 4
      %v9039 = vsel %vm3016, %v9036, %v9038
      %v9040 = vrot.slane %v8328, 4
      %v9041 = vrot.slane %v8329, 4
      %v9042 = vsel %vm3016, %v9040, %v9041
      %v9043 = vrot.slane %v8330, 4
      %v9044 = vsel %vm3016, %v9041, %v9043
      %v9045 = vrot.slane %v8331, 4
      %v9046 = vrot.slane %v8332, 4
      %v9047 = vsel %vm3016, %v9045, %v9046
      %v9048 = vrot.slane %v8333, 4
      %v9049 = vsel %vm3016, %v9046, %v9048
      %v9050 = vrot.slane %v8334, 4
      %v9051 = vrot.slane %v8335, 4
      %v9052 = vsel %vm3016, %v9050, %v9051
      %v9053 = vrot.slane %v8336, 4
      %v9054 = vsel %vm3016, %v9051, %v9053
      %v9055 = vrot.slane %v8337, 4
      %v9056 = vrot.slane %v8338, 4
      %v9057 = vsel %vm3016, %v9055, %v9056
      %v9058 = vrot.slane %v8339, 4
      %v9059 = vsel %vm3016, %v9056, %v9058
      %v9060 = vrot.slane %v8340, 4
      %v9061 = vrot.slane %v8341, 4
      %v9062 = vsel %vm3016, %v9060, %v9061
      %v9063 = vrot.slane %v8342, 4
      %v9064 = vsel %vm3016, %v9061, %v9063
      %v9065 = vrot.slane %v8343, 4
      %v9066 = vrot.slane %v8344, 4
      %v9067 = vsel %vm3016, %v9065, %v9066
      %v9068 = vrot.slane %v8345, 4
      %v9069 = vsel %vm3016, %v9066, %v9068
      %v9070 = vrot.slane %v8346, 4
      %v9071 = vrot.slane %v8347, 4
      %v9072 = vsel %vm3016, %v9070, %v9071
      %v9073 = vrot.slane %v8348, 4
      %v9074 = vsel %vm3016, %v9071, %v9073
      %v9075 = vrot.slane %v8349, 4
      %v9076 = vrot.slane %v8350, 4
      %v9077 = vsel %vm3016, %v9075, %v9076
      %v9078 = vrot.slane %v8351, 4
      %v9079 = vsel %vm3016, %v9076, %v9078
      %v9080 = vrot.slane %v8352, 4
      %v9081 = vrot.slane %v8353, 4
      %v9082 = vsel %vm3016, %v9080, %v9081
      %v9083 = vrot.slane %v8354, 4
      %v9084 = vsel %vm3016, %v9081, %v9083
      %v9085 = vrot.slane %v8355, 4
      %v9086 = vrot.slane %v8356, 4
      %v9087 = vsel %vm3016, %v9085, %v9086
      %v9088 = vrot.slane %v8357, 4
      %v9089 = vsel %vm3016, %v9086, %v9088
      %v9090 = vrot.slane %v8358, 4
      %v9091 = vrot.slane %v8359, 4
      %v9092 = vsel %vm3016, %v9090, %v9091
      %v9093 = vrot.slane %v8360, 4
      %v9094 = vsel %vm3016, %v9091, %v9093
      %v9095 = vrot.slane %v8361, 4
      %v9096 = vrot.slane %v8362, 4
      %v9097 = vsel %vm3016, %v9095, %v9096
      %v9098 = vrot.slane %v8363, 4
      %v9099 = vsel %vm3016, %v9096, %v9098
      %v9100 = vrot.slane %v8364, 4
      %v9101 = vrot.slane %v8365, 4
      %v9102 = vsel %vm3016, %v9100, %v9101
      %v9103 = vrot.slane %v8366, 4
      %v9104 = vsel %vm3016, %v9101, %v9103
      %9105 = vrot.lane.b32.xlu0 %v9017, 32
      %v9106 = vpop.permute.xlu0 %9105
      %9107 = vrot.lane.b32.xlu0 %v9019, 32
      %v9108 = vpop.permute.xlu0 %9107
      %9109 = vrot.lane.b32.xlu0 %v9022, 32
      %v9110 = vpop.permute.xlu0 %9109
      %9111 = vrot.lane.b32.xlu0 %v9024, 32
      %v9112 = vpop.permute.xlu0 %9111
      %9113 = vrot.lane.b32.xlu0 %v9027, 32
      %v9114 = vpop.permute.xlu0 %9113
      %9115 = vrot.lane.b32.xlu0 %v9029, 32
      %v9116 = vpop.permute.xlu0 %9115
      %9117 = vrot.lane.b32.xlu0 %v9032, 32
      %v9118 = vpop.permute.xlu0 %9117
      %9119 = vrot.lane.b32.xlu0 %v9034, 32
      %v9120 = vpop.permute.xlu0 %9119
      %9121 = vrot.lane.b32.xlu0 %v9037, 32
      %v9122 = vpop.permute.xlu0 %9121
      %9123 = vrot.lane.b32.xlu0 %v9039, 32
      %v9124 = vpop.permute.xlu0 %9123
      %9125 = vrot.lane.b32.xlu0 %v9042, 32
      %v9126 = vpop.permute.xlu0 %9125
      %9127 = vrot.lane.b32.xlu0 %v9044, 32
      %v9128 = vpop.permute.xlu0 %9127
      %9129 = vrot.lane.b32.xlu0 %v9047, 32
      %v9130 = vpop.permute.xlu0 %9129
      %9131 = vrot.lane.b32.xlu0 %v9049, 32
      %v9132 = vpop.permute.xlu0 %9131
      %9133 = vrot.lane.b32.xlu0 %v9052, 32
      %v9134 = vpop.permute.xlu0 %9133
      %9135 = vrot.lane.b32.xlu0 %v9054, 32
      %v9136 = vpop.permute.xlu0 %9135
      %9137 = vrot.lane.b32.xlu0 %v9057, 32
      %v9138 = vpop.permute.xlu0 %9137
      %9139 = vrot.lane.b32.xlu0 %v9059, 32
      %v9140 = vpop.permute.xlu0 %9139
      %9141 = vrot.lane.b32.xlu0 %v9062, 32
      %v9142 = vpop.permute.xlu0 %9141
      %9143 = vrot.lane.b32.xlu0 %v9064, 32
      %v9144 = vpop.permute.xlu0 %9143
      %9145 = vrot.lane.b32.xlu0 %v9067, 32
      %v9146 = vpop.permute.xlu0 %9145
      %9147 = vrot.lane.b32.xlu0 %v9069, 32
      %v9148 = vpop.permute.xlu0 %9147
      %9149 = vrot.lane.b32.xlu0 %v9072, 32
      %v9150 = vpop.permute.xlu0 %9149
      %9151 = vrot.lane.b32.xlu0 %v9074, 32
      %v9152 = vpop.permute.xlu0 %9151
      %9153 = vrot.lane.b32.xlu0 %v9077, 32
      %v9154 = vpop.permute.xlu0 %9153
      %9155 = vrot.lane.b32.xlu0 %v9079, 32
      %v9156 = vpop.permute.xlu0 %9155
      %9157 = vrot.lane.b32.xlu0 %v9082, 32
      %v9158 = vpop.permute.xlu0 %9157
      %9159 = vrot.lane.b32.xlu0 %v9084, 32
      %v9160 = vpop.permute.xlu0 %9159
      %9161 = vrot.lane.b32.xlu0 %v9087, 32
      %v9162 = vpop.permute.xlu0 %9161
      %9163 = vrot.lane.b32.xlu0 %v9089, 32
      %v9164 = vpop.permute.xlu0 %9163
      %9165 = vrot.lane.b32.xlu0 %v9092, 32
      %v9166 = vpop.permute.xlu0 %9165
      %9167 = vrot.lane.b32.xlu0 %v9094, 32
      %v9168 = vpop.permute.xlu0 %9167
      %9169 = vrot.lane.b32.xlu0 %v9097, 32
      %v9170 = vpop.permute.xlu0 %9169
      %9171 = vrot.lane.b32.xlu0 %v9099, 32
      %v9172 = vpop.permute.xlu0 %9171
      %9173 = vrot.lane.b32.xlu0 %v9102, 32
      %v9174 = vpop.permute.xlu0 %9173
      %9175 = vrot.lane.b32.xlu0 %v9104, 32
      %v9176 = vpop.permute.xlu0 %9175
      %v9213 = vsel %vm3773, %v8313, %v8512
      %v9214 = vsel %vm3773, %v8314, %v8514
      %v9215 = vsel %vm3773, %v8316, %v8516
      %v9216 = vsel %vm3773, %v8317, %v8518
      %v9217 = vsel %vm3773, %v8319, %v8520
      %v9218 = vsel %vm3773, %v8320, %v8522
      %v9219 = vsel %vm3773, %v8322, %v8524
      %v9220 = vsel %vm3773, %v8323, %v8526
      %v9221 = vsel %vm3773, %v8325, %v8528
      %v9222 = vsel %vm3773, %v8326, %v8530
      %v9223 = vsel %vm3773, %v8328, %v8532
      %v9224 = vsel %vm3773, %v8329, %v8534
      %v9225 = vsel %vm3773, %v8331, %v8536
      %v9226 = vsel %vm3773, %v8332, %v8538
      %v9227 = vsel %vm3773, %v8334, %v8540
      %v9228 = vsel %vm3773, %v8335, %v8542
      %v9229 = vsel %vm3773, %v8337, %v8544
      %v9230 = vsel %vm3773, %v8338, %v8546
      %v9231 = vsel %vm3773, %v8340, %v8548
      %v9232 = vsel %vm3773, %v8341, %v8550
      %v9233 = vsel %vm3773, %v8343, %v8552
      %v9234 = vsel %vm3773, %v8344, %v8554
      %v9235 = vsel %vm3773, %v8346, %v8556
      %v9236 = vsel %vm3773, %v8347, %v8558
      %v9237 = vsel %vm3773, %v8349, %v8560
      %v9238 = vsel %vm3773, %v8350, %v8562
      %v9239 = vsel %vm3773, %v8352, %v8564
      %v9240 = vsel %vm3773, %v8353, %v8566
      %v9241 = vsel %vm3773, %v8355, %v8568
      %v9242 = vsel %vm3773, %v8356, %v8570
      %v9243 = vsel %vm3773, %v8358, %v8572
      %v9244 = vsel %vm3773, %v8359, %v8574
      %v9245 = vsel %vm3773, %v8361, %v8576
      %v9246 = vsel %vm3773, %v8362, %v8578
      %v9247 = vsel %vm3773, %v8364, %v8580
      %v9248 = vsel %vm3773, %v8365, %v8582
      %v9249 = vsel %vm3918, %v9213, %v8710
      %v9250 = vsel %vm3918, %v9214, %v8712
      %v9251 = vsel %vm3918, %v9215, %v8714
      %v9252 = vsel %vm3918, %v9216, %v8716
      %v9253 = vsel %vm3918, %v9217, %v8718
      %v9254 = vsel %vm3918, %v9218, %v8720
      %v9255 = vsel %vm3918, %v9219, %v8722
      %v9256 = vsel %vm3918, %v9220, %v8724
      %v9257 = vsel %vm3918, %v9221, %v8726
      %v9258 = vsel %vm3918, %v9222, %v8728
      %v9259 = vsel %vm3918, %v9223, %v8730
      %v9260 = vsel %vm3918, %v9224, %v8732
      %v9261 = vsel %vm3918, %v9225, %v8734
      %v9262 = vsel %vm3918, %v9226, %v8736
      %v9263 = vsel %vm3918, %v9227, %v8738
      %v9264 = vsel %vm3918, %v9228, %v8740
      %v9265 = vsel %vm3918, %v9229, %v8742
      %v9266 = vsel %vm3918, %v9230, %v8744
      %v9267 = vsel %vm3918, %v9231, %v8746
      %v9268 = vsel %vm3918, %v9232, %v8748
      %v9269 = vsel %vm3918, %v9233, %v8750
      %v9270 = vsel %vm3918, %v9234, %v8752
      %v9271 = vsel %vm3918, %v9235, %v8754
      %v9272 = vsel %vm3918, %v9236, %v8756
      %v9273 = vsel %vm3918, %v9237, %v8758
      %v9274 = vsel %vm3918, %v9238, %v8760
      %v9275 = vsel %vm3918, %v9239, %v8762
      %v9276 = vsel %vm3918, %v9240, %v8764
      %v9277 = vsel %vm3918, %v9241, %v8766
      %v9278 = vsel %vm3918, %v9242, %v8768
      %v9279 = vsel %vm3918, %v9243, %v8770
      %v9280 = vsel %vm3918, %v9244, %v8772
      %v9281 = vsel %vm3918, %v9245, %v8774
      %v9282 = vsel %vm3918, %v9246, %v8776
      %v9283 = vsel %vm3918, %v9247, %v8778
      %v9284 = vsel %vm3918, %v9248, %v8780
      %v9285 = vsel %vm4063, %v9249, %v8908
      %v9286 = vsel %vm4063, %v9250, %v8910
      %v9287 = vsel %vm4063, %v9251, %v8912
      %v9288 = vsel %vm4063, %v9252, %v8914
      %v9289 = vsel %vm4063, %v9253, %v8916
      %v9290 = vsel %vm4063, %v9254, %v8918
      %v9291 = vsel %vm4063, %v9255, %v8920
      %v9292 = vsel %vm4063, %v9256, %v8922
      %v9293 = vsel %vm4063, %v9257, %v8924
      %v9294 = vsel %vm4063, %v9258, %v8926
      %v9295 = vsel %vm4063, %v9259, %v8928
      %v9296 = vsel %vm4063, %v9260, %v8930
      %v9297 = vsel %vm4063, %v9261, %v8932
      %v9298 = vsel %vm4063, %v9262, %v8934
      %v9299 = vsel %vm4063, %v9263, %v8936
      %v9300 = vsel %vm4063, %v9264, %v8938
      %v9301 = vsel %vm4063, %v9265, %v8940
      %v9302 = vsel %vm4063, %v9266, %v8942
      %v9303 = vsel %vm4063, %v9267, %v8944
      %v9304 = vsel %vm4063, %v9268, %v8946
      %v9305 = vsel %vm4063, %v9269, %v8948
      %v9306 = vsel %vm4063, %v9270, %v8950
      %v9307 = vsel %vm4063, %v9271, %v8952
      %v9308 = vsel %vm4063, %v9272, %v8954
      %v9309 = vsel %vm4063, %v9273, %v8956
      %v9310 = vsel %vm4063, %v9274, %v8958
      %v9311 = vsel %vm4063, %v9275, %v8960
      %v9312 = vsel %vm4063, %v9276, %v8962
      %v9313 = vsel %vm4063, %v9277, %v8964
      %v9314 = vsel %vm4063, %v9278, %v8966
      %v9315 = vsel %vm4063, %v9279, %v8968
      %v9316 = vsel %vm4063, %v9280, %v8970
      %v9317 = vsel %vm4063, %v9281, %v8972
      %v9318 = vsel %vm4063, %v9282, %v8974
      %v9319 = vsel %vm4063, %v9283, %v8976
      %v9320 = vsel %vm4063, %v9284, %v8978
      %v9321 = vsel %vm4208, %v9285, %v9106
      %v9322 = vsel %vm4208, %v9286, %v9108
      %v9323 = vsel %vm4208, %v9287, %v9110
      %v9324 = vsel %vm4208, %v9288, %v9112
      %v9325 = vsel %vm4208, %v9289, %v9114
      %v9326 = vsel %vm4208, %v9290, %v9116
      %v9327 = vsel %vm4208, %v9291, %v9118
      %v9328 = vsel %vm4208, %v9292, %v9120
      %v9329 = vsel %vm4208, %v9293, %v9122
      %v9330 = vsel %vm4208, %v9294, %v9124
      %v9331 = vsel %vm4208, %v9295, %v9126
      %v9332 = vsel %vm4208, %v9296, %v9128
      %v9333 = vsel %vm4208, %v9297, %v9130
      %v9334 = vsel %vm4208, %v9298, %v9132
      %v9335 = vsel %vm4208, %v9299, %v9134
      %v9336 = vsel %vm4208, %v9300, %v9136
      %v9337 = vsel %vm4208, %v9301, %v9138
      %v9338 = vsel %vm4208, %v9302, %v9140
      %v9339 = vsel %vm4208, %v9303, %v9142
      %v9340 = vsel %vm4208, %v9304, %v9144
      %v9341 = vsel %vm4208, %v9305, %v9146
      %v9342 = vsel %vm4208, %v9306, %v9148
      %v9343 = vsel %vm4208, %v9307, %v9150
      %v9344 = vsel %vm4208, %v9308, %v9152
      %v9345 = vsel %vm4208, %v9309, %v9154
      %v9346 = vsel %vm4208, %v9310, %v9156
      %v9347 = vsel %vm4208, %v9311, %v9158
      %v9348 = vsel %vm4208, %v9312, %v9160
      %v9349 = vsel %vm4208, %v9313, %v9162
      %v9350 = vsel %vm4208, %v9314, %v9164
      %v9351 = vsel %vm4208, %v9315, %v9166
      %v9352 = vsel %vm4208, %v9316, %v9168
      %v9353 = vsel %vm4208, %v9317, %v9170
      %v9354 = vsel %vm4208, %v9318, %v9172
      %v9355 = vsel %vm4208, %v9319, %v9174
      %v9356 = vsel %vm4208, %v9320, %v9176
      %9385 = vrot.lane.b32.xlu0 %v9323, 40
      %v9386 = vpop.permute.xlu0 %9385
      %9387 = vrot.lane.b32.xlu0 %v9324, 40
      %v9388 = vpop.permute.xlu0 %9387
      %9389 = vrot.lane.b32.xlu0 %v9325, 40
      %v9390 = vpop.permute.xlu0 %9389
      %9391 = vrot.lane.b32.xlu0 %v9326, 40
      %v9392 = vpop.permute.xlu0 %9391
      %9393 = vrot.lane.b32.xlu0 %v9327, 40
      %v9394 = vpop.permute.xlu0 %9393
      %9395 = vrot.lane.b32.xlu0 %v9328, 40
      %v9396 = vpop.permute.xlu0 %9395
      %9397 = vrot.lane.b32.xlu0 %v9329, 40
      %v9398 = vpop.permute.xlu0 %9397
      %9399 = vrot.lane.b32.xlu0 %v9330, 40
      %v9400 = vpop.permute.xlu0 %9399
      %9401 = vrot.lane.b32.xlu0 %v9331, 40
      %v9402 = vpop.permute.xlu0 %9401
      %9403 = vrot.lane.b32.xlu0 %v9332, 40
      %v9404 = vpop.permute.xlu0 %9403
      %9405 = vrot.lane.b32.xlu0 %v9333, 40
      %v9406 = vpop.permute.xlu0 %9405
      %9407 = vrot.lane.b32.xlu0 %v9334, 40
      %v9408 = vpop.permute.xlu0 %9407
      %9409 = vrot.lane.b32.xlu0 %v9335, 40
      %v9410 = vpop.permute.xlu0 %9409
      %9411 = vrot.lane.b32.xlu0 %v9336, 40
      %v9412 = vpop.permute.xlu0 %9411
      %9413 = vrot.lane.b32.xlu0 %v9337, 40
      %v9414 = vpop.permute.xlu0 %9413
      %9415 = vrot.lane.b32.xlu0 %v9338, 40
      %v9416 = vpop.permute.xlu0 %9415
      %9417 = vrot.lane.b32.xlu0 %v9339, 40
      %v9418 = vpop.permute.xlu0 %9417
      %9419 = vrot.lane.b32.xlu0 %v9340, 40
      %v9420 = vpop.permute.xlu0 %9419
      %9421 = vrot.lane.b32.xlu0 %v9341, 40
      %v9422 = vpop.permute.xlu0 %9421
      %9423 = vrot.lane.b32.xlu0 %v9342, 40
      %v9424 = vpop.permute.xlu0 %9423
      %9425 = vrot.lane.b32.xlu0 %v9343, 40
      %v9426 = vpop.permute.xlu0 %9425
      %9427 = vrot.lane.b32.xlu0 %v9344, 40
      %v9428 = vpop.permute.xlu0 %9427
      %9429 = vrot.lane.b32.xlu0 %v9345, 40
      %v9430 = vpop.permute.xlu0 %9429
      %9431 = vrot.lane.b32.xlu0 %v9346, 40
      %v9432 = vpop.permute.xlu0 %9431
      %9433 = vrot.lane.b32.xlu0 %v9347, 40
      %v9434 = vpop.permute.xlu0 %9433
      %9435 = vrot.lane.b32.xlu0 %v9348, 40
      %v9436 = vpop.permute.xlu0 %9435
      %9437 = vrot.lane.b32.xlu0 %v9349, 40
      %v9438 = vpop.permute.xlu0 %9437
      %9439 = vrot.lane.b32.xlu0 %v9350, 40
      %v9440 = vpop.permute.xlu0 %9439
      %9471 = vrot.lane.b32.xlu0 %v9325, 80
      %v9472 = vpop.permute.xlu0 %9471
      %9473 = vrot.lane.b32.xlu0 %v9326, 80
      %v9474 = vpop.permute.xlu0 %9473
      %9475 = vrot.lane.b32.xlu0 %v9327, 80
      %v9476 = vpop.permute.xlu0 %9475
      %9477 = vrot.lane.b32.xlu0 %v9328, 80
      %v9478 = vpop.permute.xlu0 %9477
      %9479 = vrot.lane.b32.xlu0 %v9329, 80
      %v9480 = vpop.permute.xlu0 %9479
      %9481 = vrot.lane.b32.xlu0 %v9330, 80
      %v9482 = vpop.permute.xlu0 %9481
      %9483 = vrot.lane.b32.xlu0 %v9331, 80
      %v9484 = vpop.permute.xlu0 %9483
      %9485 = vrot.lane.b32.xlu0 %v9332, 80
      %v9486 = vpop.permute.xlu0 %9485
      %9487 = vrot.lane.b32.xlu0 %v9333, 80
      %v9488 = vpop.permute.xlu0 %9487
      %9489 = vrot.lane.b32.xlu0 %v9334, 80
      %v9490 = vpop.permute.xlu0 %9489
      %9491 = vrot.lane.b32.xlu0 %v9335, 80
      %v9492 = vpop.permute.xlu0 %9491
      %9493 = vrot.lane.b32.xlu0 %v9336, 80
      %v9494 = vpop.permute.xlu0 %9493
      %9495 = vrot.lane.b32.xlu0 %v9337, 80
      %v9496 = vpop.permute.xlu0 %9495
      %9497 = vrot.lane.b32.xlu0 %v9338, 80
      %v9498 = vpop.permute.xlu0 %9497
      %9499 = vrot.lane.b32.xlu0 %v9339, 80
      %v9500 = vpop.permute.xlu0 %9499
      %9501 = vrot.lane.b32.xlu0 %v9340, 80
      %v9502 = vpop.permute.xlu0 %9501
      %9503 = vrot.lane.b32.xlu0 %v9341, 80
      %v9504 = vpop.permute.xlu0 %9503
      %9505 = vrot.lane.b32.xlu0 %v9342, 80
      %v9506 = vpop.permute.xlu0 %9505
      %9507 = vrot.lane.b32.xlu0 %v9343, 80
      %v9508 = vpop.permute.xlu0 %9507
      %9509 = vrot.lane.b32.xlu0 %v9344, 80
      %v9510 = vpop.permute.xlu0 %9509
      %9511 = vrot.lane.b32.xlu0 %v9345, 80
      %v9512 = vpop.permute.xlu0 %9511
      %9513 = vrot.lane.b32.xlu0 %v9346, 80
      %v9514 = vpop.permute.xlu0 %9513
      %9515 = vrot.lane.b32.xlu0 %v9347, 80
      %v9516 = vpop.permute.xlu0 %9515
      %9517 = vrot.lane.b32.xlu0 %v9348, 80
      %v9518 = vpop.permute.xlu0 %9517
      %9519 = vrot.lane.b32.xlu0 %v9349, 80
      %v9520 = vpop.permute.xlu0 %9519
      %9521 = vrot.lane.b32.xlu0 %v9350, 80
      %v9522 = vpop.permute.xlu0 %9521
      %9523 = vrot.lane.b32.xlu0 %v9351, 80
      %v9524 = vpop.permute.xlu0 %9523
      %9525 = vrot.lane.b32.xlu0 %v9352, 80
      %v9526 = vpop.permute.xlu0 %9525
      %9557 = vrot.lane.b32.xlu0 %v9327, 120
      %v9558 = vpop.permute.xlu0 %9557
      %9559 = vrot.lane.b32.xlu0 %v9328, 120
      %v9560 = vpop.permute.xlu0 %9559
      %9561 = vrot.lane.b32.xlu0 %v9329, 120
      %v9562 = vpop.permute.xlu0 %9561
      %9563 = vrot.lane.b32.xlu0 %v9330, 120
      %v9564 = vpop.permute.xlu0 %9563
      %9565 = vrot.lane.b32.xlu0 %v9331, 120
      %v9566 = vpop.permute.xlu0 %9565
      %9567 = vrot.lane.b32.xlu0 %v9332, 120
      %v9568 = vpop.permute.xlu0 %9567
      %9569 = vrot.lane.b32.xlu0 %v9333, 120
      %v9570 = vpop.permute.xlu0 %9569
      %9571 = vrot.lane.b32.xlu0 %v9334, 120
      %v9572 = vpop.permute.xlu0 %9571
      %9573 = vrot.lane.b32.xlu0 %v9335, 120
      %v9574 = vpop.permute.xlu0 %9573
      %9575 = vrot.lane.b32.xlu0 %v9336, 120
      %v9576 = vpop.permute.xlu0 %9575
      %9577 = vrot.lane.b32.xlu0 %v9337, 120
      %v9578 = vpop.permute.xlu0 %9577
      %9579 = vrot.lane.b32.xlu0 %v9338, 120
      %v9580 = vpop.permute.xlu0 %9579
      %9581 = vrot.lane.b32.xlu0 %v9339, 120
      %v9582 = vpop.permute.xlu0 %9581
      %9583 = vrot.lane.b32.xlu0 %v9340, 120
      %v9584 = vpop.permute.xlu0 %9583
      %9585 = vrot.lane.b32.xlu0 %v9341, 120
      %v9586 = vpop.permute.xlu0 %9585
      %9587 = vrot.lane.b32.xlu0 %v9342, 120
      %v9588 = vpop.permute.xlu0 %9587
      %9589 = vrot.lane.b32.xlu0 %v9343, 120
      %v9590 = vpop.permute.xlu0 %9589
      %9591 = vrot.lane.b32.xlu0 %v9344, 120
      %v9592 = vpop.permute.xlu0 %9591
      %9593 = vrot.lane.b32.xlu0 %v9345, 120
      %v9594 = vpop.permute.xlu0 %9593
      %9595 = vrot.lane.b32.xlu0 %v9346, 120
      %v9596 = vpop.permute.xlu0 %9595
      %9597 = vrot.lane.b32.xlu0 %v9347, 120
      %v9598 = vpop.permute.xlu0 %9597
      %9599 = vrot.lane.b32.xlu0 %v9348, 120
      %v9600 = vpop.permute.xlu0 %9599
      %9601 = vrot.lane.b32.xlu0 %v9349, 120
      %v9602 = vpop.permute.xlu0 %9601
      %9603 = vrot.lane.b32.xlu0 %v9350, 120
      %v9604 = vpop.permute.xlu0 %9603
      %9605 = vrot.lane.b32.xlu0 %v9351, 120
      %v9606 = vpop.permute.xlu0 %9605
      %9607 = vrot.lane.b32.xlu0 %v9352, 120
      %v9608 = vpop.permute.xlu0 %9607
      %9609 = vrot.lane.b32.xlu0 %v9353, 120
      %v9610 = vpop.permute.xlu0 %9609
      %9611 = vrot.lane.b32.xlu0 %v9354, 120
      %v9612 = vpop.permute.xlu0 %9611
      %9643 = vrot.lane.b32.xlu0 %v9329, 32
      %v9644 = vpop.permute.xlu0 %9643
      %9645 = vrot.lane.b32.xlu0 %v9330, 32
      %v9646 = vpop.permute.xlu0 %9645
      %9647 = vrot.lane.b32.xlu0 %v9331, 32
      %v9648 = vpop.permute.xlu0 %9647
      %9649 = vrot.lane.b32.xlu0 %v9332, 32
      %v9650 = vpop.permute.xlu0 %9649
      %9651 = vrot.lane.b32.xlu0 %v9333, 32
      %v9652 = vpop.permute.xlu0 %9651
      %9653 = vrot.lane.b32.xlu0 %v9334, 32
      %v9654 = vpop.permute.xlu0 %9653
      %9655 = vrot.lane.b32.xlu0 %v9335, 32
      %v9656 = vpop.permute.xlu0 %9655
      %9657 = vrot.lane.b32.xlu0 %v9336, 32
      %v9658 = vpop.permute.xlu0 %9657
      %9659 = vrot.lane.b32.xlu0 %v9337, 32
      %v9660 = vpop.permute.xlu0 %9659
      %9661 = vrot.lane.b32.xlu0 %v9338, 32
      %v9662 = vpop.permute.xlu0 %9661
      %9663 = vrot.lane.b32.xlu0 %v9339, 32
      %v9664 = vpop.permute.xlu0 %9663
      %9665 = vrot.lane.b32.xlu0 %v9340, 32
      %v9666 = vpop.permute.xlu0 %9665
      %9667 = vrot.lane.b32.xlu0 %v9341, 32
      %v9668 = vpop.permute.xlu0 %9667
      %9669 = vrot.lane.b32.xlu0 %v9342, 32
      %v9670 = vpop.permute.xlu0 %9669
      %9671 = vrot.lane.b32.xlu0 %v9343, 32
      %v9672 = vpop.permute.xlu0 %9671
      %9673 = vrot.lane.b32.xlu0 %v9344, 32
      %v9674 = vpop.permute.xlu0 %9673
      %9675 = vrot.lane.b32.xlu0 %v9345, 32
      %v9676 = vpop.permute.xlu0 %9675
      %9677 = vrot.lane.b32.xlu0 %v9346, 32
      %v9678 = vpop.permute.xlu0 %9677
      %9679 = vrot.lane.b32.xlu0 %v9347, 32
      %v9680 = vpop.permute.xlu0 %9679
      %9681 = vrot.lane.b32.xlu0 %v9348, 32
      %v9682 = vpop.permute.xlu0 %9681
      %9683 = vrot.lane.b32.xlu0 %v9349, 32
      %v9684 = vpop.permute.xlu0 %9683
      %9685 = vrot.lane.b32.xlu0 %v9350, 32
      %v9686 = vpop.permute.xlu0 %9685
      %9687 = vrot.lane.b32.xlu0 %v9351, 32
      %v9688 = vpop.permute.xlu0 %9687
      %9689 = vrot.lane.b32.xlu0 %v9352, 32
      %v9690 = vpop.permute.xlu0 %9689
      %9691 = vrot.lane.b32.xlu0 %v9353, 32
      %v9692 = vpop.permute.xlu0 %9691
      %9693 = vrot.lane.b32.xlu0 %v9354, 32
      %v9694 = vpop.permute.xlu0 %9693
      %9695 = vrot.lane.b32.xlu0 %v9355, 32
      %v9696 = vpop.permute.xlu0 %9695
      %9697 = vrot.lane.b32.xlu0 %v9356, 32
      %v9698 = vpop.permute.xlu0 %9697
      %v9727 = vsel %vm6029, %v9321, %v9386
      %v9728 = vsel %vm6029, %v9322, %v9388
      %v9729 = vsel %vm6029, %v9323, %v9390
      %v9730 = vsel %vm6029, %v9324, %v9392
      %v9731 = vsel %vm6029, %v9325, %v9394
      %v9732 = vsel %vm6029, %v9326, %v9396
      %v9733 = vsel %vm6029, %v9327, %v9398
      %v9734 = vsel %vm6029, %v9328, %v9400
      %v9735 = vsel %vm6029, %v9329, %v9402
      %v9736 = vsel %vm6029, %v9330, %v9404
      %v9737 = vsel %vm6029, %v9331, %v9406
      %v9738 = vsel %vm6029, %v9332, %v9408
      %v9739 = vsel %vm6029, %v9333, %v9410
      %v9740 = vsel %vm6029, %v9334, %v9412
      %v9741 = vsel %vm6029, %v9335, %v9414
      %v9742 = vsel %vm6029, %v9336, %v9416
      %v9743 = vsel %vm6029, %v9337, %v9418
      %v9744 = vsel %vm6029, %v9338, %v9420
      %v9745 = vsel %vm6029, %v9339, %v9422
      %v9746 = vsel %vm6029, %v9340, %v9424
      %v9747 = vsel %vm6029, %v9341, %v9426
      %v9748 = vsel %vm6029, %v9342, %v9428
      %v9749 = vsel %vm6029, %v9343, %v9430
      %v9750 = vsel %vm6029, %v9344, %v9432
      %v9751 = vsel %vm6029, %v9345, %v9434
      %v9752 = vsel %vm6029, %v9346, %v9436
      %v9753 = vsel %vm6029, %v9347, %v9438
      %v9754 = vsel %vm6029, %v9348, %v9440
      %v9755 = vsel %vm6158, %v9727, %v9472
      %v9756 = vsel %vm6158, %v9728, %v9474
      %v9757 = vsel %vm6158, %v9729, %v9476
      %v9758 = vsel %vm6158, %v9730, %v9478
      %v9759 = vsel %vm6158, %v9731, %v9480
      %v9760 = vsel %vm6158, %v9732, %v9482
      %v9761 = vsel %vm6158, %v9733, %v9484
      %v9762 = vsel %vm6158, %v9734, %v9486
      %v9763 = vsel %vm6158, %v9735, %v9488
      %v9764 = vsel %vm6158, %v9736, %v9490
      %v9765 = vsel %vm6158, %v9737, %v9492
      %v9766 = vsel %vm6158, %v9738, %v9494
      %v9767 = vsel %vm6158, %v9739, %v9496
      %v9768 = vsel %vm6158, %v9740, %v9498
      %v9769 = vsel %vm6158, %v9741, %v9500
      %v9770 = vsel %vm6158, %v9742, %v9502
      %v9771 = vsel %vm6158, %v9743, %v9504
      %v9772 = vsel %vm6158, %v9744, %v9506
      %v9773 = vsel %vm6158, %v9745, %v9508
      %v9774 = vsel %vm6158, %v9746, %v9510
      %v9775 = vsel %vm6158, %v9747, %v9512
      %v9776 = vsel %vm6158, %v9748, %v9514
      %v9777 = vsel %vm6158, %v9749, %v9516
      %v9778 = vsel %vm6158, %v9750, %v9518
      %v9779 = vsel %vm6158, %v9751, %v9520
      %v9780 = vsel %vm6158, %v9752, %v9522
      %v9781 = vsel %vm6158, %v9753, %v9524
      %v9782 = vsel %vm6158, %v9754, %v9526
      %v9783 = vsel %vm6287, %v9755, %v9558
      %v9784 = vsel %vm6287, %v9756, %v9560
      %v9785 = vsel %vm6287, %v9757, %v9562
      %v9786 = vsel %vm6287, %v9758, %v9564
      %v9787 = vsel %vm6287, %v9759, %v9566
      %v9788 = vsel %vm6287, %v9760, %v9568
      %v9789 = vsel %vm6287, %v9761, %v9570
      %v9790 = vsel %vm6287, %v9762, %v9572
      %v9791 = vsel %vm6287, %v9763, %v9574
      %v9792 = vsel %vm6287, %v9764, %v9576
      %v9793 = vsel %vm6287, %v9765, %v9578
      %v9794 = vsel %vm6287, %v9766, %v9580
      %v9795 = vsel %vm6287, %v9767, %v9582
      %v9796 = vsel %vm6287, %v9768, %v9584
      %v9797 = vsel %vm6287, %v9769, %v9586
      %v9798 = vsel %vm6287, %v9770, %v9588
      %v9799 = vsel %vm6287, %v9771, %v9590
      %v9800 = vsel %vm6287, %v9772, %v9592
      %v9801 = vsel %vm6287, %v9773, %v9594
      %v9802 = vsel %vm6287, %v9774, %v9596
      %v9803 = vsel %vm6287, %v9775, %v9598
      %v9804 = vsel %vm6287, %v9776, %v9600
      %v9805 = vsel %vm6287, %v9777, %v9602
      %v9806 = vsel %vm6287, %v9778, %v9604
      %v9807 = vsel %vm6287, %v9779, %v9606
      %v9808 = vsel %vm6287, %v9780, %v9608
      %v9809 = vsel %vm6287, %v9781, %v9610
      %v9810 = vsel %vm6287, %v9782, %v9612
      %v9811 = vsel %vm4208, %v9558, %v9644
      %v9812 = vsel %vm4208, %v9560, %v9646
      %v9813 = vsel %vm4208, %v9562, %v9648
      %v9814 = vsel %vm4208, %v9564, %v9650
      %v9815 = vsel %vm4208, %v9566, %v9652
      %v9816 = vsel %vm4208, %v9568, %v9654
      %v9817 = vsel %vm4208, %v9570, %v9656
      %v9818 = vsel %vm4208, %v9572, %v9658
      %v9819 = vsel %vm4208, %v9574, %v9660
      %v9820 = vsel %vm4208, %v9576, %v9662
      %v9821 = vsel %vm4208, %v9578, %v9664
      %v9822 = vsel %vm4208, %v9580, %v9666
      %v9823 = vsel %vm4208, %v9582, %v9668
      %v9824 = vsel %vm4208, %v9584, %v9670
      %v9825 = vsel %vm4208, %v9586, %v9672
      %v9826 = vsel %vm4208, %v9588, %v9674
      %v9827 = vsel %vm4208, %v9590, %v9676
      %v9828 = vsel %vm4208, %v9592, %v9678
      %v9829 = vsel %vm4208, %v9594, %v9680
      %v9830 = vsel %vm4208, %v9596, %v9682
      %v9831 = vsel %vm4208, %v9598, %v9684
      %v9832 = vsel %vm4208, %v9600, %v9686
      %v9833 = vsel %vm4208, %v9602, %v9688
      %v9834 = vsel %vm4208, %v9604, %v9690
      %v9835 = vsel %vm4208, %v9606, %v9692
      %v9836 = vsel %vm4208, %v9608, %v9694
      %v9837 = vsel %vm4208, %v9610, %v9696
      %v9838 = vsel %vm4208, %v9612, %v9698
      %v9839 = vld [vmem:[%s3] sm:$0xff]
      %v9840 = vld [vmem:[%s3 + $0x8] sm:$0xff]
      %v9841 = vld [vmem:[%s3 + $0x10] sm:$0xff]
      %v9842 = vld [vmem:[%s3 + $0x18] sm:$0xff]
      %v9843 = vld [vmem:[%s3 + $0x20] sm:$0xff]
      %v9844 = vld [vmem:[%s3 + $0x28] sm:$0xff]
      %v9845 = vld [vmem:[%s3 + $0x30] sm:$0xff]
      %v9846 = vld [vmem:[%s3 + $0x38] sm:$0xff]
      %v9847 = vld [vmem:[%s3 + $0x40] sm:$0xff]
      %v9848 = vld [vmem:[%s3 + $0x48] sm:$0xff]
      %v9849 = vld [vmem:[%s3 + $0x50] sm:$0xff]
      %v9850 = vld [vmem:[%s3 + $0x58] sm:$0xff]
      %v9851 = vld [vmem:[%s3 + $0x60] sm:$0xff]
      %v9852 = vld [vmem:[%s3 + $0x68] sm:$0xff]
      %v9853 = vld [vmem:[%s3 + $0x70] sm:$0xff]
      %v9854 = vld [vmem:[%s3 + $0x78] sm:$0xff]
      %v9855 = vld [vmem:[%s3 + $0x80] sm:$0xff]
      %v9856 = vld [vmem:[%s3 + $0x88] sm:$0xff]
      %v9857 = vld [vmem:[%s3 + $0x90] sm:$0xff]
      %v9858 = vld [vmem:[%s3 + $0x98] sm:$0xff]
      %v9859 = vld [vmem:[%s3 + $0xa0] sm:$0xff]
      %v9860 = vld [vmem:[%s3 + $0xa8] sm:$0xff]
      %v9861 = vld [vmem:[%s3 + $0xb0] sm:$0xff]
      %v9862 = vld [vmem:[%s3 + $0xb8] sm:$0xff]
      %v9863 = vld [vmem:[%s3 + $0xc0] sm:$0xff]
      %v9864 = vld [vmem:[%s4] sm:$0x1]
      %v9866 = vlaneseq
      %v9867 = vshrl.u32 %v9866, 7
      %v9868 = vsub.s32 0, %v9867
      %v9869 = vrot.slane %v9864, %v9868
      %v9872 = vsel %vm6576, %v9811, 0
      %v9875 = vsel %vm6576, %v9812, 0
      %v9878 = vsel %vm6576, %v9813, 0
      %v9881 = vsel %vm6576, %v9814, 0
      %v9884 = vsel %vm6576, %v9815, 0
      %v9887 = vsel %vm6576, %v9816, 0
      %v9890 = vsel %vm6576, %v9817, 0
      %v9893 = vsel %vm6576, %v9818, 0
      %v9896 = vsel %vm6576, %v9819, 0
      %v9899 = vsel %vm6576, %v9820, 0
      %v9902 = vsel %vm6576, %v9821, 0
      %v9905 = vsel %vm6576, %v9822, 0
      %v9908 = vsel %vm6576, %v9823, 0
      %v9911 = vsel %vm6576, %v9824, 0
      %v9914 = vsel %vm6576, %v9825, 0
      %v9917 = vsel %vm6576, %v9826, 0
      %v9920 = vsel %vm6576, %v9827, 0
      %v9923 = vsel %vm6576, %v9828, 0
      %v9926 = vsel %vm6576, %v9829, 0
      %v9929 = vsel %vm6576, %v9830, 0
      %v9932 = vsel %vm6576, %v9831, 0
      %v9935 = vsel %vm6576, %v9832, 0
      %v9938 = vsel %vm6576, %v9833, 0
      %v9941 = vsel %vm6576, %v9834, 0
      %v9944 = vsel %vm6576, %v9835, 0
      %v9947 = vsel %vm6576, %v9836, 0
      %v9950 = vsel %vm6576, %v9837, 0
      %v9953 = vsel %vm6576, %v9838, 0
      %9955 = vmatprep.subr.mxu0 0.0
      %9956 = vmatpush1.msra.mxu0 %v9839
      %9957 = vmatprep.subr.mxu0 0.0
      %9958 = vmatpush1.msra.mxu0 %v9840
      %9959 = vmatprep.subr.mxu0 0.0
      %9960 = vmatpush1.msra.mxu0 %v9841
      %9961 = vmatprep.subr.mxu0 0.0
      %9962 = vmatpush1.msra.mxu0 %v9842
      %9963 = vmatprep.subr.mxu0 0.0
      %9964 = vmatpush1.msra.mxu0 %v9843
      %9965 = vmatprep.subr.mxu0 0.0
      %9966 = vmatpush1.msra.mxu0 %v9844
      %9967 = vmatprep.subr.mxu0 0.0
      %9968 = vmatpush1.msra.mxu0 %v9845
      %9969 = vmatprep.subr.mxu0 0.0
      %9970 = vmatpush1.msra.mxu0 %v9846
      %9971 = vmatprep.subr.mxu0 0.0
      %9972 = vmatpush1.msra.mxu0 %v9847
      %9973 = vmatprep.subr.mxu0 0.0
      %9974 = vmatpush1.msra.mxu0 %v9848
      %9975 = vmatprep.subr.mxu0 0.0
      %9976 = vmatpush1.msra.mxu0 %v9849
      %9977 = vmatprep.subr.mxu0 0.0
      %9978 = vmatpush1.msra.mxu0 %v9850
      %9979 = vmatprep.subr.mxu0 0.0
      %9980 = vmatpush1.msra.mxu0 %v9851
      %9981 = vmatprep.subr.mxu0 0.0
      %9982 = vmatpush1.msra.mxu0 %v9852
      %9983 = vmatprep.subr.mxu0 0.0
      %9984 = vmatpush1.msra.mxu0 %v9853
      %9985 = vmatprep.subr.mxu0 0.0
      %9986 = vmatpush1.msra.mxu0 %v9854
      %9987 = vmatprep.subr.mxu0 0.0
      %9988 = vmatpush1.msra.mxu0 %v9855
      %9989 = vmatprep.subr.mxu0 0.0
      %9990 = vmatpush1.msra.mxu0 %v9856
      %9991 = vmatprep.subr.mxu0 0.0
      %9992 = vmatpush1.msra.mxu0 %v9857
      %9993 = vmatprep.subr.mxu0 0.0
      %9994 = vmatpush1.msra.mxu0 %v9858
      %9995 = vmatprep.subr.mxu0 0.0
      %9996 = vmatpush1.msra.mxu0 %v9859
      %9997 = vmatprep.subr.mxu0 0.0
      %9998 = vmatpush1.msra.mxu0 %v9860
      %9999 = vmatprep.subr.mxu0 0.0
      %10000 = vmatpush1.msra.mxu0 %v9861
      %10001 = vmatprep.subr.mxu0 0.0
      %10002 = vmatpush1.msra.mxu0 %v9862
      %10003 = vmatprep.subr.mxu0 0.0
      %10004 = vmatpush1.msra.mxu0 %v9863
      %10005 = vmatprep.subr.mxu0 0.0
      %10006 = vmatpush1.msra.mxu0 0.0
      %10007 = vmatprep.subr.mxu0 0.0
      %10008 = vmatpush1.msra.mxu0 0.0
      %10009 = vmatprep.subr.mxu0 0.0
      %10010 = vmatpush1.msra.mxu0 0.0
      %10011 = vmatprep.subr.mxu0 0.0
      %10012 = vmatpush1.msra.mxu0 0.0
      %10013 = vmatprep.subr.mxu0 0.0
      %10014 = vmatpush1.msra.mxu0 0.0
      %10015 = vmatprep.subr.mxu0 0.0
      %10016 = vmatpush1.msra.mxu0 0.0
      %10017 = vmatprep.subr.mxu0 0.0
      %10018 = vmatpush1.msra.mxu0 0.0
      %10019 = vmatprep.mubr.f32.mxu0 %v9872
      %10020 = vmatmul.mubr.f32.gmra.mrb[0].mxu0 %v9783
      %v10021 = vpop.f32.mrb[0].mxu0
      %v10022 = vadd.f32 %v9869, %v10021
      %v10023 = vpop.f32.mrb[0].mxu0
      %10024 = vmatprep.mubr.f32.mxu0 %v9875
      %10025 = vmatmul.mubr.f32.gmra.mrb[0].mxu0 %v9784
      %v10026 = vpop.f32.mrb[0].mxu0
      %v10027 = vadd.f32 %v9869, %v10026
      %v10028 = vpop.f32.mrb[0].mxu0
      %10029 = vmatprep.mubr.f32.mxu0 %v9878
      %10030 = vmatmul.mubr.f32.gmra.mrb[0].mxu0 %v9785
      %v10031 = vpop.f32.mrb[0].mxu0
      %v10032 = vadd.f32 %v9869, %v10031
      %v10033 = vpop.f32.mrb[0].mxu0
      %10034 = vmatprep.mubr.f32.mxu0 %v9881
      %10035 = vmatmul.mubr.f32.gmra.mrb[0].mxu0 %v9786
      %v10036 = vpop.f32.mrb[0].mxu0
      %v10037 = vadd.f32 %v9869, %v10036
      %v10038 = vpop.f32.mrb[0].mxu0
      %10039 = vmatprep.mubr.f32.mxu0 %v9884
      %10040 = vmatmul.mubr.f32.gmra.mrb[0].mxu0 %v9787
      %v10041 = vpop.f32.mrb[0].mxu0
      %v10042 = vadd.f32 %v9869, %v10041
      %v10043 = vpop.f32.mrb[0].mxu0
      %10044 = vmatprep.mubr.f32.mxu0 %v9887
      %10045 = vmatmul.mubr.f32.gmra.mrb[0].mxu0 %v9788
      %v10046 = vpop.f32.mrb[0].mxu0
      %v10047 = vadd.f32 %v9869, %v10046
      %v10048 = vpop.f32.mrb[0].mxu0
      %10049 = vmatprep.mubr.f32.mxu0 %v9890
      %10050 = vmatmul.mubr.f32.gmra.mrb[0].mxu0 %v9789
      %v10051 = vpop.f32.mrb[0].mxu0
      %v10052 = vadd.f32 %v9869, %v10051
      %v10053 = vpop.f32.mrb[0].mxu0
      %10054 = vmatprep.mubr.f32.mxu0 %v9893
      %10055 = vmatmul.mubr.f32.gmra.mrb[0].mxu0 %v9790
      %v10056 = vpop.f32.mrb[0].mxu0
      %v10057 = vadd.f32 %v9869, %v10056
      %v10058 = vpop.f32.mrb[0].mxu0
      %10059 = vmatprep.mubr.f32.mxu0 %v9896
      %10060 = vmatmul.mubr.f32.gmra.mrb[0].mxu0 %v9791
      %v10061 = vpop.f32.mrb[0].mxu0
      %v10062 = vadd.f32 %v9869, %v10061
      %v10063 = vpop.f32.mrb[0].mxu0
      %10064 = vmatprep.mubr.f32.mxu0 %v9899
      %10065 = vmatmul.mubr.f32.gmra.mrb[0].mxu0 %v9792
      %v10066 = vpop.f32.mrb[0].mxu0
      %v10067 = vadd.f32 %v9869, %v10066
      %v10068 = vpop.f32.mrb[0].mxu0
      %10069 = vmatprep.mubr.f32.mxu0 %v9902
      %10070 = vmatmul.mubr.f32.gmra.mrb[0].mxu0 %v9793
      %v10071 = vpop.f32.mrb[0].mxu0
      %v10072 = vadd.f32 %v9869, %v10071
      %v10073 = vpop.f32.mrb[0].mxu0
      %10074 = vmatprep.mubr.f32.mxu0 %v9905
      %10075 = vmatmul.mubr.f32.gmra.mrb[0].mxu0 %v9794
      %v10076 = vpop.f32.mrb[0].mxu0
      %v10077 = vadd.f32 %v9869, %v10076
      %v10078 = vpop.f32.mrb[0].mxu0
      %10079 = vmatprep.mubr.f32.mxu0 %v9908
      %10080 = vmatmul.mubr.f32.gmra.mrb[0].mxu0 %v9795
      %v10081 = vpop.f32.mrb[0].mxu0
      %v10082 = vadd.f32 %v9869, %v10081
      %v10083 = vpop.f32.mrb[0].mxu0
      %10084 = vmatprep.mubr.f32.mxu0 %v9911
      %10085 = vmatmul.mubr.f32.gmra.mrb[0].mxu0 %v9796
      %v10086 = vpop.f32.mrb[0].mxu0
      %v10087 = vadd.f32 %v9869, %v10086
      %v10088 = vpop.f32.mrb[0].mxu0
      %10089 = vmatprep.mubr.f32.mxu0 %v9914
      %10090 = vmatmul.mubr.f32.gmra.mrb[0].mxu0 %v9797
      %v10091 = vpop.f32.mrb[0].mxu0
      %v10092 = vadd.f32 %v9869, %v10091
      %v10093 = vpop.f32.mrb[0].mxu0
      %10094 = vmatprep.mubr.f32.mxu0 %v9917
      %10095 = vmatmul.mubr.f32.gmra.mrb[0].mxu0 %v9798
      %v10096 = vpop.f32.mrb[0].mxu0
      %v10097 = vadd.f32 %v9869, %v10096
      %v10098 = vpop.f32.mrb[0].mxu0
      %10099 = vmatprep.mubr.f32.mxu0 %v9920
      %10100 = vmatmul.mubr.f32.gmra.mrb[0].mxu0 %v9799
      %v10101 = vpop.f32.mrb[0].mxu0
      %v10102 = vadd.f32 %v9869, %v10101
      %v10103 = vpop.f32.mrb[0].mxu0
      %10104 = vmatprep.mubr.f32.mxu0 %v9923
      %10105 = vmatmul.mubr.f32.gmra.mrb[0].mxu0 %v9800
      %v10106 = vpop.f32.mrb[0].mxu0
      %v10107 = vadd.f32 %v9869, %v10106
      %v10108 = vpop.f32.mrb[0].mxu0
      %10109 = vmatprep.mubr.f32.mxu0 %v9926
      %10110 = vmatmul.mubr.f32.gmra.mrb[0].mxu0 %v9801
      %v10111 = vpop.f32.mrb[0].mxu0
      %v10112 = vadd.f32 %v9869, %v10111
      %v10113 = vpop.f32.mrb[0].mxu0
      %10114 = vmatprep.mubr.f32.mxu0 %v9929
      %10115 = vmatmul.mubr.f32.gmra.mrb[0].mxu0 %v9802
      %v10116 = vpop.f32.mrb[0].mxu0
      %v10117 = vadd.f32 %v9869, %v10116
      %v10118 = vpop.f32.mrb[0].mxu0
      %10119 = vmatprep.mubr.f32.mxu0 %v9932
      %10120 = vmatmul.mubr.f32.gmra.mrb[0].mxu0 %v9803
      %v10121 = vpop.f32.mrb[0].mxu0
      %v10122 = vadd.f32 %v9869, %v10121
      %v10123 = vpop.f32.mrb[0].mxu0
      %10124 = vmatprep.mubr.f32.mxu0 %v9935
      %10125 = vmatmul.mubr.f32.gmra.mrb[0].mxu0 %v9804
      %v10126 = vpop.f32.mrb[0].mxu0
      %v10127 = vadd.f32 %v9869, %v10126
      %v10128 = vpop.f32.mrb[0].mxu0
      %10129 = vmatprep.mubr.f32.mxu0 %v9938
      %10130 = vmatmul.mubr.f32.gmra.mrb[0].mxu0 %v9805
      %v10131 = vpop.f32.mrb[0].mxu0
      %v10132 = vadd.f32 %v9869, %v10131
      %v10133 = vpop.f32.mrb[0].mxu0
      %10134 = vmatprep.mubr.f32.mxu0 %v9941
      %10135 = vmatmul.mubr.f32.gmra.mrb[0].mxu0 %v9806
      %v10136 = vpop.f32.mrb[0].mxu0
      %v10137 = vadd.f32 %v9869, %v10136
      %v10138 = vpop.f32.mrb[0].mxu0
      %10139 = vmatprep.mubr.f32.mxu0 %v9944
      %10140 = vmatmul.mubr.f32.gmra.mrb[0].mxu0 %v9807
      %v10141 = vpop.f32.mrb[0].mxu0
      %v10142 = vadd.f32 %v9869, %v10141
      %v10143 = vpop.f32.mrb[0].mxu0
      %10144 = vmatprep.mubr.f32.mxu0 %v9947
      %10145 = vmatmul.mubr.f32.gmra.mrb[0].mxu0 %v9808
      %v10146 = vpop.f32.mrb[0].mxu0
      %v10147 = vadd.f32 %v9869, %v10146
      %v10148 = vpop.f32.mrb[0].mxu0
      %10149 = vmatprep.mubr.f32.mxu0 %v9950
      %10150 = vmatmul.mubr.f32.gmra.mrb[0].mxu0 %v9809
      %v10151 = vpop.f32.mrb[0].mxu0
      %v10152 = vadd.f32 %v9869, %v10151
      %v10153 = vpop.f32.mrb[0].mxu0
      %10154 = vmatprep.mubr.f32.mxu0 %v9953
      %10155 = vmatmul.mubr.f32.gmra.mrb[0].mxu0 %v9810
      %v10156 = vpop.f32.mrb[0].mxu0
      %v10157 = vadd.f32 %v9869, %v10156
      %v10158 = vpop.f32.mrb[0].mxu0
      %10159 = vdwg.mxu0
      %v10160 = vmax.f32 %v10022, 0.0
      %v10161 = vmax.f32 %v10027, 0.0
      %v10162 = vmax.f32 %v10032, 0.0
      %v10163 = vmax.f32 %v10037, 0.0
      %v10164 = vmax.f32 %v10042, 0.0
      %v10165 = vmax.f32 %v10047, 0.0
      %v10166 = vmax.f32 %v10052, 0.0
      %v10167 = vmax.f32 %v10057, 0.0
      %v10168 = vmax.f32 %v10062, 0.0
      %v10169 = vmax.f32 %v10067, 0.0
      %v10170 = vmax.f32 %v10072, 0.0
      %v10171 = vmax.f32 %v10077, 0.0
      %v10172 = vmax.f32 %v10082, 0.0
      %v10173 = vmax.f32 %v10087, 0.0
      %v10174 = vmax.f32 %v10092, 0.0
      %v10175 = vmax.f32 %v10097, 0.0
      %v10176 = vmax.f32 %v10102, 0.0
      %v10177 = vmax.f32 %v10107, 0.0
      %v10178 = vmax.f32 %v10112, 0.0
      %v10179 = vmax.f32 %v10117, 0.0
      %v10180 = vmax.f32 %v10122, 0.0
      %v10181 = vmax.f32 %v10127, 0.0
      %v10182 = vmax.f32 %v10132, 0.0
      %v10183 = vmax.f32 %v10137, 0.0
      %v10184 = vmax.f32 %v10142, 0.0
      %v10185 = vmax.f32 %v10147, 0.0
      %v10186 = vmax.f32 %v10152, 0.0
      %v10187 = vmax.f32 %v10157, 0.0
      %10188 = vst [vmem:[#allocation3] sm:$0xff] %v10160
      %10189 = vst [vmem:[#allocation3 + $0x8] sm:$0xff] %v10161
      %10190 = vst [vmem:[#allocation3 + $0x10] sm:$0xff] %v10162
      %10191 = vst [vmem:[#allocation3 + $0x18] sm:$0xff] %v10163
      %10192 = vst [vmem:[#allocation3 + $0x20] sm:$0xff] %v10164
      %10193 = vst [vmem:[#allocation3 + $0x28] sm:$0xff] %v10165
      %10194 = vst [vmem:[#allocation3 + $0x30] sm:$0xff] %v10166
      %10195 = vst [vmem:[#allocation3 + $0x38] sm:$0xff] %v10167
      %10196 = vst [vmem:[#allocation3 + $0x40] sm:$0xff] %v10168
      %10197 = vst [vmem:[#allocation3 + $0x48] sm:$0xff] %v10169
      %10198 = vst [vmem:[#allocation3 + $0x50] sm:$0xff] %v10170
      %10199 = vst [vmem:[#allocation3 + $0x58] sm:$0xff] %v10171
      %10200 = vst [vmem:[#allocation3 + $0x60] sm:$0xff] %v10172
      %10201 = vst [vmem:[#allocation3 + $0x68] sm:$0xff] %v10173
      %10202 = vst [vmem:[#allocation3 + $0x70] sm:$0xff] %v10174
      %10203 = vst [vmem:[#allocation3 + $0x78] sm:$0xff] %v10175
      %10204 = vst [vmem:[#allocation3 + $0x80] sm:$0xff] %v10176
      %10205 = vst [vmem:[#allocation3 + $0x88] sm:$0xff] %v10177
      %10206 = vst [vmem:[#allocation3 + $0x90] sm:$0xff] %v10178
      %10207 = vst [vmem:[#allocation3 + $0x98] sm:$0xff] %v10179
      %10208 = vst [vmem:[#allocation3 + $0xa0] sm:$0xff] %v10180
      %10209 = vst [vmem:[#allocation3 + $0xa8] sm:$0xff] %v10181
      %10210 = vst [vmem:[#allocation3 + $0xb0] sm:$0xff] %v10182
      %10211 = vst [vmem:[#allocation3 + $0xb8] sm:$0xff] %v10183
      %10212 = vst [vmem:[#allocation3 + $0xc0] sm:$0xff] %v10184
      %10213 = vst [vmem:[#allocation3 + $0xc8] sm:$0xff] %v10185
      %10214 = vst [vmem:[#allocation3 + $0xd0] sm:$0xff] %v10186
      %10215 = vst [vmem:[#allocation3 + $0xd8] sm:$0xff] %v10187
      %v10216 = vld [vmem:[#allocation3] ss:$2 sm:$0x1f]
      %s10217 = scalar_lea.vmem [#allocation3], 32
      %v10218 = vld [vmem:[%s10217] ss:$2 sm:$0x1f]
      %s10219 = scalar_lea.vmem [#allocation3], 64
      %v10220 = vld [vmem:[%s10219] ss:$2 sm:$0x1f]
      %s10221 = scalar_lea.vmem [#allocation3], 96
      %v10222 = vld [vmem:[%s10221] ss:$2 sm:$0x1f]
      %s10223 = scalar_lea.vmem [#allocation3], 128
      %v10224 = vld [vmem:[%s10223] ss:$2 sm:$0x1f]
      %s10225 = scalar_lea.vmem [#allocation3], 1
      %v10226 = vld [vmem:[%s10225] ss:$2 sm:$0x1f]
      %s10227 = scalar_lea.vmem [#allocation3], 33
      %v10228 = vld [vmem:[%s10227] ss:$2 sm:$0x1f]
      %s10229 = scalar_lea.vmem [#allocation3], 65
      %v10230 = vld [vmem:[%s10229] ss:$2 sm:$0x1f]
      %s10231 = scalar_lea.vmem [#allocation3], 97
      %v10232 = vld [vmem:[%s10231] ss:$2 sm:$0x1f]
      %s10233 = scalar_lea.vmem [#allocation3], 129
      %v10234 = vld [vmem:[%s10233] ss:$2 sm:$0x1f]
      %v10235 = vmax.f32 %v10216, %v10226
      %v10236 = vmax.f32 %v10218, %v10228
      %v10237 = vmax.f32 %v10220, %v10230
      %v10238 = vmax.f32 %v10222, %v10232
      %v10239 = vmax.f32 %v10224, %v10234
      %s10240 = scalar_lea.vmem [#allocation3], 16
      %v10241 = vld [vmem:[%s10240] ss:$2 sm:$0x1f]
      %s10242 = scalar_lea.vmem %s10240, 32 [#allocation3]
      %v10243 = vld [vmem:[%s10242] ss:$2 sm:$0x1f]
      %s10244 = scalar_lea.vmem %s10240, 64 [#allocation3]
      %v10245 = vld [vmem:[%s10244] ss:$2 sm:$0x1f]
      %s10246 = scalar_lea.vmem %s10240, 96 [#allocation3]
      %v10247 = vld [vmem:[%s10246] ss:$2 sm:$0x1f]
      %s10248 = scalar_lea.vmem %s10240, 128 [#allocation3]
      %v10249 = vld [vmem:[%s10248] ss:$2 sm:$0x1f]
      %s10250 = scalar_lea.vmem %s10240, 1 [#allocation3]
      %v10251 = vld [vmem:[%s10250] ss:$2 sm:$0x1f]
      %s10252 = scalar_lea.vmem %s10240, 33 [#allocation3]
      %v10253 = vld [vmem:[%s10252] ss:$2 sm:$0x1f]
      %s10254 = scalar_lea.vmem %s10240, 65 [#allocation3]
      %v10255 = vld [vmem:[%s10254] ss:$2 sm:$0x1f]
      %s10256 = scalar_lea.vmem %s10240, 97 [#allocation3]
      %v10257 = vld [vmem:[%s10256] ss:$2 sm:$0x1f]
      %s10258 = scalar_lea.vmem %s10240, 129 [#allocation3]
      %v10259 = vld [vmem:[%s10258] ss:$2 sm:$0x1f]
      %v10260 = vmax.f32 %v10241, %v10251
      %v10261 = vmax.f32 %v10243, %v10253
      %v10262 = vmax.f32 %v10245, %v10255
      %v10263 = vmax.f32 %v10247, %v10257
      %v10264 = vmax.f32 %v10249, %v10259
      %v10265 = vmax.f32 %v10235, %v10260
      %v10266 = vmax.f32 %v10236, %v10261
      %v10267 = vmax.f32 %v10237, %v10262
      %v10268 = vmax.f32 %v10238, %v10263
      %v10269 = vmax.f32 %v10239, %v10264
      %v10270 = vld [vmem:[%s6] sm:$0x1]
      %v10271 = vld [vmem:[%s5] sm:$0xff]
      %v10272 = vld [vmem:[%s5 + $0x8] sm:$0xff]
      %v10274 = vsel %vm3918, %v10265, 0
      %10276 = vmatprep.subr.mxu0 0.0
      %10277 = vmatpush1.msra.mxu0 %v10271
      %10278 = vmatprep.subr.mxu0 0.0
      %10279 = vmatpush1.msra.mxu0 %v10272
      %10280 = vmatprep.subr.mxu0 0.0
      %10281 = vmatpush1.msra.mxu0 0.0
      %10282 = vmatprep.subr.mxu0 0.0
      %10283 = vmatpush1.msra.mxu0 0.0
      %10284 = vmatprep.subr.mxu0 0.0
      %10285 = vmatpush1.msra.mxu0 0.0
      %10286 = vmatprep.subr.mxu0 0.0
      %10287 = vmatpush1.msra.mxu0 0.0
      %10288 = vmatprep.subr.mxu0 0.0
      %10289 = vmatpush1.msra.mxu0 0.0
      %10290 = vmatprep.subr.mxu0 0.0
      %10291 = vmatpush1.msra.mxu0 0.0
      %10292 = vmatprep.subr.mxu0 0.0
      %10293 = vmatpush1.msra.mxu0 0.0
      %10294 = vmatprep.subr.mxu0 0.0
      %10295 = vmatpush1.msra.mxu0 0.0
      %10296 = vmatprep.subr.mxu0 0.0
      %10297 = vmatpush1.msra.mxu0 0.0
      %10298 = vmatprep.subr.mxu0 0.0
      %10299 = vmatpush1.msra.mxu0 0.0
      %10300 = vmatprep.subr.mxu0 0.0
      %10301 = vmatpush1.msra.mxu0 0.0
      %10302 = vmatprep.subr.mxu0 0.0
      %10303 = vmatpush1.msra.mxu0 0.0
      %10304 = vmatprep.subr.mxu0 0.0
      %10305 = vmatpush1.msra.mxu0 0.0
      %10306 = vmatprep.subr.mxu0 0.0
      %10307 = vmatpush1.msra.mxu0 0.0
      %10308 = vmatprep.subr.mxu0 0.0
      %10309 = vmatpush1.msra.mxu0 0.0
      %10310 = vmatprep.subr.mxu0 0.0
      %10311 = vmatpush1.msra.mxu0 0.0
      %10312 = vmatprep.subr.mxu0 0.0
      %10313 = vmatpush1.msra.mxu0 0.0
      %10314 = vmatprep.subr.mxu0 0.0
      %10315 = vmatpush1.msra.mxu0 0.0
      %10316 = vmatprep.subr.mxu0 0.0
      %10317 = vmatpush1.msra.mxu0 0.0
      %10318 = vmatprep.subr.mxu0 0.0
      %10319 = vmatpush1.msra.mxu0 0.0
      %10320 = vmatprep.subr.mxu0 0.0
      %10321 = vmatpush1.msra.mxu0 0.0
      %10322 = vmatprep.subr.mxu0 0.0
      %10323 = vmatpush1.msra.mxu0 0.0
      %10324 = vmatprep.subr.mxu0 0.0
      %10325 = vmatpush1.msra.mxu0 0.0
      %10326 = vmatprep.subr.mxu0 0.0
      %10327 = vmatpush1.msra.mxu0 0.0
      %10328 = vmatprep.subr.mxu0 0.0
      %10329 = vmatpush1.msra.mxu0 0.0
      %10330 = vmatprep.subr.mxu0 0.0
      %10331 = vmatpush1.msra.mxu0 0.0
      %10332 = vmatprep.subr.mxu0 0.0
      %10333 = vmatpush1.msra.mxu0 0.0
      %10334 = vmatprep.subr.mxu0 0.0
      %10335 = vmatpush1.msra.mxu0 0.0
      %10336 = vmatprep.subr.mxu0 0.0
      %10337 = vmatpush1.msra.mxu0 0.0
      %10338 = vmatprep.subr.mxu0 0.0
      %10339 = vmatpush1.msra.mxu0 0.0
      %10340 = vmatprep.mubr.f32.mxu0 0.0
      %10341 = vmatmul.mubr.f32.gmra.mrb[0].mxu0 %v10274
      %v10342 = vpop.f32.mrb[0].mxu0
      %v10343 = vadd.f32 0.0, %v10342
      %v10344 = vpop.f32.mrb[0].mxu0
      %10345 = vdwg.mxu0
      %v10346 = vadd.f32 %v10270, %v10343
      %s10347 = scalar_lea.vmem %s5, 16
      %v10348 = vld [vmem:[%s10347] sm:$0xff]
      %v10349 = vld [vmem:[%s10347 + $0x8] sm:$0xff]
      %v10350 = vrot.slane %v10265, 1
      %v10351 = vsel %vm3918, %v10350, 0
      %10353 = vmatprep.subr.mxu0 0.0
      %10354 = vmatpush1.msra.mxu0 %v10348
      %10355 = vmatprep.subr.mxu0 0.0
      %10356 = vmatpush1.msra.mxu0 %v10349
      %10357 = vmatprep.subr.mxu0 0.0
      %10358 = vmatpush1.msra.mxu0 0.0
      %10359 = vmatprep.subr.mxu0 0.0
      %10360 = vmatpush1.msra.mxu0 0.0
      %10361 = vmatprep.subr.mxu0 0.0
      %10362 = vmatpush1.msra.mxu0 0.0
      %10363 = vmatprep.subr.mxu0 0.0
      %10364 = vmatpush1.msra.mxu0 0.0
      %10365 = vmatprep.subr.mxu0 0.0
      %10366 = vmatpush1.msra.mxu0 0.0
      %10367 = vmatprep.subr.mxu0 0.0
      %10368 = vmatpush1.msra.mxu0 0.0
      %10369 = vmatprep.subr.mxu0 0.0
      %10370 = vmatpush1.msra.mxu0 0.0
      %10371 = vmatprep.subr.mxu0 0.0
      %10372 = vmatpush1.msra.mxu0 0.0
      %10373 = vmatprep.subr.mxu0 0.0
      %10374 = vmatpush1.msra.mxu0 0.0
      %10375 = vmatprep.subr.mxu0 0.0
      %10376 = vmatpush1.msra.mxu0 0.0
      %10377 = vmatprep.subr.mxu0 0.0
      %10378 = vmatpush1.msra.mxu0 0.0
      %10379 = vmatprep.subr.mxu0 0.0
      %10380 = vmatpush1.msra.mxu0 0.0
      %10381 = vmatprep.subr.mxu0 0.0
      %10382 = vmatpush1.msra.mxu0 0.0
      %10383 = vmatprep.subr.mxu0 0.0
      %10384 = vmatpush1.msra.mxu0 0.0
      %10385 = vmatprep.subr.mxu0 0.0
      %10386 = vmatpush1.msra.mxu0 0.0
      %10387 = vmatprep.subr.mxu0 0.0
      %10388 = vmatpush1.msra.mxu0 0.0
      %10389 = vmatprep.subr.mxu0 0.0
      %10390 = vmatpush1.msra.mxu0 0.0
      %10391 = vmatprep.subr.mxu0 0.0
      %10392 = vmatpush1.msra.mxu0 0.0
      %10393 = vmatprep.subr.mxu0 0.0
      %10394 = vmatpush1.msra.mxu0 0.0
      %10395 = vmatprep.subr.mxu0 0.0
      %10396 = vmatpush1.msra.mxu0 0.0
      %10397 = vmatprep.subr.mxu0 0.0
      %10398 = vmatpush1.msra.mxu0 0.0
      %10399 = vmatprep.subr.mxu0 0.0
      %10400 = vmatpush1.msra.mxu0 0.0
      %10401 = vmatprep.subr.mxu0 0.0
      %10402 = vmatpush1.msra.mxu0 0.0
      %10403 = vmatprep.subr.mxu0 0.0
      %10404 = vmatpush1.msra.mxu0 0.0
      %10405 = vmatprep.subr.mxu0 0.0
      %10406 = vmatpush1.msra.mxu0 0.0
      %10407 = vmatprep.subr.mxu0 0.0
      %10408 = vmatpush1.msra.mxu0 0.0
      %10409 = vmatprep.subr.mxu0 0.0
      %10410 = vmatpush1.msra.mxu0 0.0
      %10411 = vmatprep.subr.mxu0 0.0
      %10412 = vmatpush1.msra.mxu0 0.0
      %10413 = vmatprep.subr.mxu0 0.0
      %10414 = vmatpush1.msra.mxu0 0.0
      %10415 = vmatprep.subr.mxu0 0.0
      %10416 = vmatpush1.msra.mxu0 0.0
      %10417 = vmatprep.mubr.f32.mxu0 0.0
      %10418 = vmatmul.mubr.f32.gmra.mrb[0].mxu0 %v10351
      %v10419 = vpop.f32.mrb[0].mxu0
      %v10420 = vadd.f32 0.0, %v10419
      %v10421 = vpop.f32.mrb[0].mxu0
      %10422 = vdwg.mxu0
      %v10423 = vadd.f32 %v10346, %v10420
      %s10424 = scalar_lea.vmem %s5, 32
      %v10425 = vld [vmem:[%s10424] sm:$0xff]
      %v10426 = vld [vmem:[%s10424 + $0x8] sm:$0xff]
      %v10427 = vrot.slane %v10265, 2
      %v10428 = vsel %vm3918, %v10427, 0
      %10430 = vmatprep.subr.mxu0 0.0
      %10431 = vmatpush1.msra.mxu0 %v10425
      %10432 = vmatprep.subr.mxu0 0.0
      %10433 = vmatpush1.msra.mxu0 %v10426
      %10434 = vmatprep.subr.mxu0 0.0
      %10435 = vmatpush1.msra.mxu0 0.0
      %10436 = vmatprep.subr.mxu0 0.0
      %10437 = vmatpush1.msra.mxu0 0.0
      %10438 = vmatprep.subr.mxu0 0.0
      %10439 = vmatpush1.msra.mxu0 0.0
      %10440 = vmatprep.subr.mxu0 0.0
      %10441 = vmatpush1.msra.mxu0 0.0
      %10442 = vmatprep.subr.mxu0 0.0
      %10443 = vmatpush1.msra.mxu0 0.0
      %10444 = vmatprep.subr.mxu0 0.0
      %10445 = vmatpush1.msra.mxu0 0.0
      %10446 = vmatprep.subr.mxu0 0.0
      %10447 = vmatpush1.msra.mxu0 0.0
      %10448 = vmatprep.subr.mxu0 0.0
      %10449 = vmatpush1.msra.mxu0 0.0
      %10450 = vmatprep.subr.mxu0 0.0
      %10451 = vmatpush1.msra.mxu0 0.0
      %10452 = vmatprep.subr.mxu0 0.0
      %10453 = vmatpush1.msra.mxu0 0.0
      %10454 = vmatprep.subr.mxu0 0.0
      %10455 = vmatpush1.msra.mxu0 0.0
      %10456 = vmatprep.subr.mxu0 0.0
      %10457 = vmatpush1.msra.mxu0 0.0
      %10458 = vmatprep.subr.mxu0 0.0
      %10459 = vmatpush1.msra.mxu0 0.0
      %10460 = vmatprep.subr.mxu0 0.0
      %10461 = vmatpush1.msra.mxu0 0.0
      %10462 = vmatprep.subr.mxu0 0.0
      %10463 = vmatpush1.msra.mxu0 0.0
      %10464 = vmatprep.subr.mxu0 0.0
      %10465 = vmatpush1.msra.mxu0 0.0
      %10466 = vmatprep.subr.mxu0 0.0
      %10467 = vmatpush1.msra.mxu0 0.0
      %10468 = vmatprep.subr.mxu0 0.0
      %10469 = vmatpush1.msra.mxu0 0.0
      %10470 = vmatprep.subr.mxu0 0.0
      %10471 = vmatpush1.msra.mxu0 0.0
      %10472 = vmatprep.subr.mxu0 0.0
      %10473 = vmatpush1.msra.mxu0 0.0
      %10474 = vmatprep.subr.mxu0 0.0
      %10475 = vmatpush1.msra.mxu0 0.0
      %10476 = vmatprep.subr.mxu0 0.0
      %10477 = vmatpush1.msra.mxu0 0.0
      %10478 = vmatprep.subr.mxu0 0.0
      %10479 = vmatpush1.msra.mxu0 0.0
      %10480 = vmatprep.subr.mxu0 0.0
      %10481 = vmatpush1.msra.mxu0 0.0
      %10482 = vmatprep.subr.mxu0 0.0
      %10483 = vmatpush1.msra.mxu0 0.0
      %10484 = vmatprep.subr.mxu0 0.0
      %10485 = vmatpush1.msra.mxu0 0.0
      %10486 = vmatprep.subr.mxu0 0.0
      %10487 = vmatpush1.msra.mxu0 0.0
      %10488 = vmatprep.subr.mxu0 0.0
      %10489 = vmatpush1.msra.mxu0 0.0
      %10490 = vmatprep.subr.mxu0 0.0
      %10491 = vmatpush1.msra.mxu0 0.0
      %10492 = vmatprep.subr.mxu0 0.0
      %10493 = vmatpush1.msra.mxu0 0.0
      %10494 = vmatprep.mubr.f32.mxu0 0.0
      %10495 = vmatmul.mubr.f32.gmra.mrb[0].mxu0 %v10428
      %v10496 = vpop.f32.mrb[0].mxu0
      %v10497 = vadd.f32 0.0, %v10496
      %v10498 = vpop.f32.mrb[0].mxu0
      %10499 = vdwg.mxu0
      %v10500 = vadd.f32 %v10423, %v10497
      %s10501 = scalar_lea.vmem %s5, 48
      %v10502 = vld [vmem:[%s10501] sm:$0xff]
      %v10503 = vld [vmem:[%s10501 + $0x8] sm:$0xff]
      %v10504 = vrot.slane %v10265, 3
      %v10505 = vsel %vm3918, %v10504, 0
      %10507 = vmatprep.subr.mxu0 0.0
      %10508 = vmatpush1.msra.mxu0 %v10502
      %10509 = vmatprep.subr.mxu0 0.0
      %10510 = vmatpush1.msra.mxu0 %v10503
      %10511 = vmatprep.subr.mxu0 0.0
      %10512 = vmatpush1.msra.mxu0 0.0
      %10513 = vmatprep.subr.mxu0 0.0
      %10514 = vmatpush1.msra.mxu0 0.0
      %10515 = vmatprep.subr.mxu0 0.0
      %10516 = vmatpush1.msra.mxu0 0.0
      %10517 = vmatprep.subr.mxu0 0.0
      %10518 = vmatpush1.msra.mxu0 0.0
      %10519 = vmatprep.subr.mxu0 0.0
      %10520 = vmatpush1.msra.mxu0 0.0
      %10521 = vmatprep.subr.mxu0 0.0
      %10522 = vmatpush1.msra.mxu0 0.0
      %10523 = vmatprep.subr.mxu0 0.0
      %10524 = vmatpush1.msra.mxu0 0.0
      %10525 = vmatprep.subr.mxu0 0.0
      %10526 = vmatpush1.msra.mxu0 0.0
      %10527 = vmatprep.subr.mxu0 0.0
      %10528 = vmatpush1.msra.mxu0 0.0
      %10529 = vmatprep.subr.mxu0 0.0
      %10530 = vmatpush1.msra.mxu0 0.0
      %10531 = vmatprep.subr.mxu0 0.0
      %10532 = vmatpush1.msra.mxu0 0.0
      %10533 = vmatprep.subr.mxu0 0.0
      %10534 = vmatpush1.msra.mxu0 0.0
      %10535 = vmatprep.subr.mxu0 0.0
      %10536 = vmatpush1.msra.mxu0 0.0
      %10537 = vmatprep.subr.mxu0 0.0
      %10538 = vmatpush1.msra.mxu0 0.0
      %10539 = vmatprep.subr.mxu0 0.0
      %10540 = vmatpush1.msra.mxu0 0.0
      %10541 = vmatprep.subr.mxu0 0.0
      %10542 = vmatpush1.msra.mxu0 0.0
      %10543 = vmatprep.subr.mxu0 0.0
      %10544 = vmatpush1.msra.mxu0 0.0
      %10545 = vmatprep.subr.mxu0 0.0
      %10546 = vmatpush1.msra.mxu0 0.0
      %10547 = vmatprep.subr.mxu0 0.0
      %10548 = vmatpush1.msra.mxu0 0.0
      %10549 = vmatprep.subr.mxu0 0.0
      %10550 = vmatpush1.msra.mxu0 0.0
      %10551 = vmatprep.subr.mxu0 0.0
      %10552 = vmatpush1.msra.mxu0 0.0
      %10553 = vmatprep.subr.mxu0 0.0
      %10554 = vmatpush1.msra.mxu0 0.0
      %10555 = vmatprep.subr.mxu0 0.0
      %10556 = vmatpush1.msra.mxu0 0.0
      %10557 = vmatprep.subr.mxu0 0.0
      %10558 = vmatpush1.msra.mxu0 0.0
      %10559 = vmatprep.subr.mxu0 0.0
      %10560 = vmatpush1.msra.mxu0 0.0
      %10561 = vmatprep.subr.mxu0 0.0
      %10562 = vmatpush1.msra.mxu0 0.0
      %10563 = vmatprep.subr.mxu0 0.0
      %10564 = vmatpush1.msra.mxu0 0.0
      %10565 = vmatprep.subr.mxu0 0.0
      %10566 = vmatpush1.msra.mxu0 0.0
      %10567 = vmatprep.subr.mxu0 0.0
      %10568 = vmatpush1.msra.mxu0 0.0
      %10569 = vmatprep.subr.mxu0 0.0
      %10570 = vmatpush1.msra.mxu0 0.0
      %10571 = vmatprep.mubr.f32.mxu0 0.0
      %10572 = vmatmul.mubr.f32.gmra.mrb[0].mxu0 %v10505
      %v10573 = vpop.f32.mrb[0].mxu0
      %v10574 = vadd.f32 0.0, %v10573
      %v10575 = vpop.f32.mrb[0].mxu0
      %10576 = vdwg.mxu0
      %v10577 = vadd.f32 %v10500, %v10574
      %s10578 = scalar_lea.vmem %s5, 64
      %v10579 = vld [vmem:[%s10578] sm:$0xff]
      %v10580 = vld [vmem:[%s10578 + $0x8] sm:$0xff]
      %v10581 = vrot.slane %v10265, 4
      %v10582 = vsel %vm3918, %v10581, 0
      %10584 = vmatprep.subr.mxu0 0.0
      %10585 = vmatpush1.msra.mxu0 %v10579
      %10586 = vmatprep.subr.mxu0 0.0
      %10587 = vmatpush1.msra.mxu0 %v10580
      %10588 = vmatprep.subr.mxu0 0.0
      %10589 = vmatpush1.msra.mxu0 0.0
      %10590 = vmatprep.subr.mxu0 0.0
      %10591 = vmatpush1.msra.mxu0 0.0
      %10592 = vmatprep.subr.mxu0 0.0
      %10593 = vmatpush1.msra.mxu0 0.0
      %10594 = vmatprep.subr.mxu0 0.0
      %10595 = vmatpush1.msra.mxu0 0.0
      %10596 = vmatprep.subr.mxu0 0.0
      %10597 = vmatpush1.msra.mxu0 0.0
      %10598 = vmatprep.subr.mxu0 0.0
      %10599 = vmatpush1.msra.mxu0 0.0
      %10600 = vmatprep.subr.mxu0 0.0
      %10601 = vmatpush1.msra.mxu0 0.0
      %10602 = vmatprep.subr.mxu0 0.0
      %10603 = vmatpush1.msra.mxu0 0.0
      %10604 = vmatprep.subr.mxu0 0.0
      %10605 = vmatpush1.msra.mxu0 0.0
      %10606 = vmatprep.subr.mxu0 0.0
      %10607 = vmatpush1.msra.mxu0 0.0
      %10608 = vmatprep.subr.mxu0 0.0
      %10609 = vmatpush1.msra.mxu0 0.0
      %10610 = vmatprep.subr.mxu0 0.0
      %10611 = vmatpush1.msra.mxu0 0.0
      %10612 = vmatprep.subr.mxu0 0.0
      %10613 = vmatpush1.msra.mxu0 0.0
      %10614 = vmatprep.subr.mxu0 0.0
      %10615 = vmatpush1.msra.mxu0 0.0
      %10616 = vmatprep.subr.mxu0 0.0
      %10617 = vmatpush1.msra.mxu0 0.0
      %10618 = vmatprep.subr.mxu0 0.0
      %10619 = vmatpush1.msra.mxu0 0.0
      %10620 = vmatprep.subr.mxu0 0.0
      %10621 = vmatpush1.msra.mxu0 0.0
      %10622 = vmatprep.subr.mxu0 0.0
      %10623 = vmatpush1.msra.mxu0 0.0
      %10624 = vmatprep.subr.mxu0 0.0
      %10625 = vmatpush1.msra.mxu0 0.0
      %10626 = vmatprep.subr.mxu0 0.0
      %10627 = vmatpush1.msra.mxu0 0.0
      %10628 = vmatprep.subr.mxu0 0.0
      %10629 = vmatpush1.msra.mxu0 0.0
      %10630 = vmatprep.subr.mxu0 0.0
      %10631 = vmatpush1.msra.mxu0 0.0
      %10632 = vmatprep.subr.mxu0 0.0
      %10633 = vmatpush1.msra.mxu0 0.0
      %10634 = vmatprep.subr.mxu0 0.0
      %10635 = vmatpush1.msra.mxu0 0.0
      %10636 = vmatprep.subr.mxu0 0.0
      %10637 = vmatpush1.msra.mxu0 0.0
      %10638 = vmatprep.subr.mxu0 0.0
      %10639 = vmatpush1.msra.mxu0 0.0
      %10640 = vmatprep.subr.mxu0 0.0
      %10641 = vmatpush1.msra.mxu0 0.0
      %10642 = vmatprep.subr.mxu0 0.0
      %10643 = vmatpush1.msra.mxu0 0.0
      %10644 = vmatprep.subr.mxu0 0.0
      %10645 = vmatpush1.msra.mxu0 0.0
      %10646 = vmatprep.subr.mxu0 0.0
      %10647 = vmatpush1.msra.mxu0 0.0
      %10648 = vmatprep.mubr.f32.mxu0 0.0
      %10649 = vmatmul.mubr.f32.gmra.mrb[0].mxu0 %v10582
      %v10650 = vpop.f32.mrb[0].mxu0
      %v10651 = vadd.f32 0.0, %v10650
      %v10652 = vpop.f32.mrb[0].mxu0
      %10653 = vdwg.mxu0
      %v10654 = vadd.f32 %v10577, %v10651
      %s10655 = scalar_lea.vmem %s5, 80
      %v10656 = vld [vmem:[%s10655] sm:$0xff]
      %v10657 = vld [vmem:[%s10655 + $0x8] sm:$0xff]
      %v10659 = vsel %vm3918, %v10266, 0
      %10661 = vmatprep.subr.mxu0 0.0
      %10662 = vmatpush1.msra.mxu0 %v10656
      %10663 = vmatprep.subr.mxu0 0.0
      %10664 = vmatpush1.msra.mxu0 %v10657
      %10665 = vmatprep.subr.mxu0 0.0
      %10666 = vmatpush1.msra.mxu0 0.0
      %10667 = vmatprep.subr.mxu0 0.0
      %10668 = vmatpush1.msra.mxu0 0.0
      %10669 = vmatprep.subr.mxu0 0.0
      %10670 = vmatpush1.msra.mxu0 0.0
      %10671 = vmatprep.subr.mxu0 0.0
      %10672 = vmatpush1.msra.mxu0 0.0
      %10673 = vmatprep.subr.mxu0 0.0
      %10674 = vmatpush1.msra.mxu0 0.0
      %10675 = vmatprep.subr.mxu0 0.0
      %10676 = vmatpush1.msra.mxu0 0.0
      %10677 = vmatprep.subr.mxu0 0.0
      %10678 = vmatpush1.msra.mxu0 0.0
      %10679 = vmatprep.subr.mxu0 0.0
      %10680 = vmatpush1.msra.mxu0 0.0
      %10681 = vmatprep.subr.mxu0 0.0
      %10682 = vmatpush1.msra.mxu0 0.0
      %10683 = vmatprep.subr.mxu0 0.0
      %10684 = vmatpush1.msra.mxu0 0.0
      %10685 = vmatprep.subr.mxu0 0.0
      %10686 = vmatpush1.msra.mxu0 0.0
      %10687 = vmatprep.subr.mxu0 0.0
      %10688 = vmatpush1.msra.mxu0 0.0
      %10689 = vmatprep.subr.mxu0 0.0
      %10690 = vmatpush1.msra.mxu0 0.0
      %10691 = vmatprep.subr.mxu0 0.0
      %10692 = vmatpush1.msra.mxu0 0.0
      %10693 = vmatprep.subr.mxu0 0.0
      %10694 = vmatpush1.msra.mxu0 0.0
      %10695 = vmatprep.subr.mxu0 0.0
      %10696 = vmatpush1.msra.mxu0 0.0
      %10697 = vmatprep.subr.mxu0 0.0
      %10698 = vmatpush1.msra.mxu0 0.0
      %10699 = vmatprep.subr.mxu0 0.0
      %10700 = vmatpush1.msra.mxu0 0.0
      %10701 = vmatprep.subr.mxu0 0.0
      %10702 = vmatpush1.msra.mxu0 0.0
      %10703 = vmatprep.subr.mxu0 0.0
      %10704 = vmatpush1.msra.mxu0 0.0
      %10705 = vmatprep.subr.mxu0 0.0
      %10706 = vmatpush1.msra.mxu0 0.0
      %10707 = vmatprep.subr.mxu0 0.0
      %10708 = vmatpush1.msra.mxu0 0.0
      %10709 = vmatprep.subr.mxu0 0.0
      %10710 = vmatpush1.msra.mxu0 0.0
      %10711 = vmatprep.subr.mxu0 0.0
      %10712 = vmatpush1.msra.mxu0 0.0
      %10713 = vmatprep.subr.mxu0 0.0
      %10714 = vmatpush1.msra.mxu0 0.0
      %10715 = vmatprep.subr.mxu0 0.0
      %10716 = vmatpush1.msra.mxu0 0.0
      %10717 = vmatprep.subr.mxu0 0.0
      %10718 = vmatpush1.msra.mxu0 0.0
      %10719 = vmatprep.subr.mxu0 0.0
      %10720 = vmatpush1.msra.mxu0 0.0
      %10721 = vmatprep.subr.mxu0 0.0
      %10722 = vmatpush1.msra.mxu0 0.0
      %10723 = vmatprep.subr.mxu0 0.0
      %10724 = vmatpush1.msra.mxu0 0.0
      %10725 = vmatprep.mubr.f32.mxu0 0.0
      %10726 = vmatmul.mubr.f32.gmra.mrb[0].mxu0 %v10659
      %v10727 = vpop.f32.mrb[0].mxu0
      %v10728 = vadd.f32 0.0, %v10727
      %v10729 = vpop.f32.mrb[0].mxu0
      %10730 = vdwg.mxu0
      %v10731 = vadd.f32 %v10654, %v10728
      %s10732 = scalar_lea.vmem %s5, 96
      %v10733 = vld [vmem:[%s10732] sm:$0xff]
      %v10734 = vld [vmem:[%s10732 + $0x8] sm:$0xff]
      %v10735 = vrot.slane %v10266, 1
      %v10736 = vsel %vm3918, %v10735, 0
      %10738 = vmatprep.subr.mxu0 0.0
      %10739 = vmatpush1.msra.mxu0 %v10733
      %10740 = vmatprep.subr.mxu0 0.0
      %10741 = vmatpush1.msra.mxu0 %v10734
      %10742 = vmatprep.subr.mxu0 0.0
      %10743 = vmatpush1.msra.mxu0 0.0
      %10744 = vmatprep.subr.mxu0 0.0
      %10745 = vmatpush1.msra.mxu0 0.0
      %10746 = vmatprep.subr.mxu0 0.0
      %10747 = vmatpush1.msra.mxu0 0.0
      %10748 = vmatprep.subr.mxu0 0.0
      %10749 = vmatpush1.msra.mxu0 0.0
      %10750 = vmatprep.subr.mxu0 0.0
      %10751 = vmatpush1.msra.mxu0 0.0
      %10752 = vmatprep.subr.mxu0 0.0
      %10753 = vmatpush1.msra.mxu0 0.0
      %10754 = vmatprep.subr.mxu0 0.0
      %10755 = vmatpush1.msra.mxu0 0.0
      %10756 = vmatprep.subr.mxu0 0.0
      %10757 = vmatpush1.msra.mxu0 0.0
      %10758 = vmatprep.subr.mxu0 0.0
      %10759 = vmatpush1.msra.mxu0 0.0
      %10760 = vmatprep.subr.mxu0 0.0
      %10761 = vmatpush1.msra.mxu0 0.0
      %10762 = vmatprep.subr.mxu0 0.0
      %10763 = vmatpush1.msra.mxu0 0.0
      %10764 = vmatprep.subr.mxu0 0.0
      %10765 = vmatpush1.msra.mxu0 0.0
      %10766 = vmatprep.subr.mxu0 0.0
      %10767 = vmatpush1.msra.mxu0 0.0
      %10768 = vmatprep.subr.mxu0 0.0
      %10769 = vmatpush1.msra.mxu0 0.0
      %10770 = vmatprep.subr.mxu0 0.0
      %10771 = vmatpush1.msra.mxu0 0.0
      %10772 = vmatprep.subr.mxu0 0.0
      %10773 = vmatpush1.msra.mxu0 0.0
      %10774 = vmatprep.subr.mxu0 0.0
      %10775 = vmatpush1.msra.mxu0 0.0
      %10776 = vmatprep.subr.mxu0 0.0
      %10777 = vmatpush1.msra.mxu0 0.0
      %10778 = vmatprep.subr.mxu0 0.0
      %10779 = vmatpush1.msra.mxu0 0.0
      %10780 = vmatprep.subr.mxu0 0.0
      %10781 = vmatpush1.msra.mxu0 0.0
      %10782 = vmatprep.subr.mxu0 0.0
      %10783 = vmatpush1.msra.mxu0 0.0
      %10784 = vmatprep.subr.mxu0 0.0
      %10785 = vmatpush1.msra.mxu0 0.0
      %10786 = vmatprep.subr.mxu0 0.0
      %10787 = vmatpush1.msra.mxu0 0.0
      %10788 = vmatprep.subr.mxu0 0.0
      %10789 = vmatpush1.msra.mxu0 0.0
      %10790 = vmatprep.subr.mxu0 0.0
      %10791 = vmatpush1.msra.mxu0 0.0
      %10792 = vmatprep.subr.mxu0 0.0
      %10793 = vmatpush1.msra.mxu0 0.0
      %10794 = vmatprep.subr.mxu0 0.0
      %10795 = vmatpush1.msra.mxu0 0.0
      %10796 = vmatprep.subr.mxu0 0.0
      %10797 = vmatpush1.msra.mxu0 0.0
      %10798 = vmatprep.subr.mxu0 0.0
      %10799 = vmatpush1.msra.mxu0 0.0
      %10800 = vmatprep.subr.mxu0 0.0
      %10801 = vmatpush1.msra.mxu0 0.0
      %10802 = vmatprep.mubr.f32.mxu0 0.0
      %10803 = vmatmul.mubr.f32.gmra.mrb[0].mxu0 %v10736
      %v10804 = vpop.f32.mrb[0].mxu0
      %v10805 = vadd.f32 0.0, %v10804
      %v10806 = vpop.f32.mrb[0].mxu0
      %10807 = vdwg.mxu0
      %v10808 = vadd.f32 %v10731, %v10805
      %s10809 = scalar_lea.vmem %s5, 112
      %v10810 = vld [vmem:[%s10809] sm:$0xff]
      %v10811 = vld [vmem:[%s10809 + $0x8] sm:$0xff]
      %v10812 = vrot.slane %v10266, 2
      %v10813 = vsel %vm3918, %v10812, 0
      %10815 = vmatprep.subr.mxu0 0.0
      %10816 = vmatpush1.msra.mxu0 %v10810
      %10817 = vmatprep.subr.mxu0 0.0
      %10818 = vmatpush1.msra.mxu0 %v10811
      %10819 = vmatprep.subr.mxu0 0.0
      %10820 = vmatpush1.msra.mxu0 0.0
      %10821 = vmatprep.subr.mxu0 0.0
      %10822 = vmatpush1.msra.mxu0 0.0
      %10823 = vmatprep.subr.mxu0 0.0
      %10824 = vmatpush1.msra.mxu0 0.0
      %10825 = vmatprep.subr.mxu0 0.0
      %10826 = vmatpush1.msra.mxu0 0.0
      %10827 = vmatprep.subr.mxu0 0.0
      %10828 = vmatpush1.msra.mxu0 0.0
      %10829 = vmatprep.subr.mxu0 0.0
      %10830 = vmatpush1.msra.mxu0 0.0
      %10831 = vmatprep.subr.mxu0 0.0
      %10832 = vmatpush1.msra.mxu0 0.0
      %10833 = vmatprep.subr.mxu0 0.0
      %10834 = vmatpush1.msra.mxu0 0.0
      %10835 = vmatprep.subr.mxu0 0.0
      %10836 = vmatpush1.msra.mxu0 0.0
      %10837 = vmatprep.subr.mxu0 0.0
      %10838 = vmatpush1.msra.mxu0 0.0
      %10839 = vmatprep.subr.mxu0 0.0
      %10840 = vmatpush1.msra.mxu0 0.0
      %10841 = vmatprep.subr.mxu0 0.0
      %10842 = vmatpush1.msra.mxu0 0.0
      %10843 = vmatprep.subr.mxu0 0.0
      %10844 = vmatpush1.msra.mxu0 0.0
      %10845 = vmatprep.subr.mxu0 0.0
      %10846 = vmatpush1.msra.mxu0 0.0
      %10847 = vmatprep.subr.mxu0 0.0
      %10848 = vmatpush1.msra.mxu0 0.0
      %10849 = vmatprep.subr.mxu0 0.0
      %10850 = vmatpush1.msra.mxu0 0.0
      %10851 = vmatprep.subr.mxu0 0.0
      %10852 = vmatpush1.msra.mxu0 0.0
      %10853 = vmatprep.subr.mxu0 0.0
      %10854 = vmatpush1.msra.mxu0 0.0
      %10855 = vmatprep.subr.mxu0 0.0
      %10856 = vmatpush1.msra.mxu0 0.0
      %10857 = vmatprep.subr.mxu0 0.0
      %10858 = vmatpush1.msra.mxu0 0.0
      %10859 = vmatprep.subr.mxu0 0.0
      %10860 = vmatpush1.msra.mxu0 0.0
      %10861 = vmatprep.subr.mxu0 0.0
      %10862 = vmatpush1.msra.mxu0 0.0
      %10863 = vmatprep.subr.mxu0 0.0
      %10864 = vmatpush1.msra.mxu0 0.0
      %10865 = vmatprep.subr.mxu0 0.0
      %10866 = vmatpush1.msra.mxu0 0.0
      %10867 = vmatprep.subr.mxu0 0.0
      %10868 = vmatpush1.msra.mxu0 0.0
      %10869 = vmatprep.subr.mxu0 0.0
      %10870 = vmatpush1.msra.mxu0 0.0
      %10871 = vmatprep.subr.mxu0 0.0
      %10872 = vmatpush1.msra.mxu0 0.0
      %10873 = vmatprep.subr.mxu0 0.0
      %10874 = vmatpush1.msra.mxu0 0.0
      %10875 = vmatprep.subr.mxu0 0.0
      %10876 = vmatpush1.msra.mxu0 0.0
      %10877 = vmatprep.subr.mxu0 0.0
      %10878 = vmatpush1.msra.mxu0 0.0
      %10879 = vmatprep.mubr.f32.mxu0 0.0
      %10880 = vmatmul.mubr.f32.gmra.mrb[0].mxu0 %v10813
      %v10881 = vpop.f32.mrb[0].mxu0
      %v10882 = vadd.f32 0.0, %v10881
      %v10883 = vpop.f32.mrb[0].mxu0
      %10884 = vdwg.mxu0
      %v10885 = vadd.f32 %v10808, %v10882
      %s10886 = scalar_lea.vmem %s5, 128
      %v10887 = vld [vmem:[%s10886] sm:$0xff]
      %v10888 = vld [vmem:[%s10886 + $0x8] sm:$0xff]
      %v10889 = vrot.slane %v10266, 3
      %v10890 = vsel %vm3918, %v10889, 0
      %10892 = vmatprep.subr.mxu0 0.0
      %10893 = vmatpush1.msra.mxu0 %v10887
      %10894 = vmatprep.subr.mxu0 0.0
      %10895 = vmatpush1.msra.mxu0 %v10888
      %10896 = vmatprep.subr.mxu0 0.0
      %10897 = vmatpush1.msra.mxu0 0.0
      %10898 = vmatprep.subr.mxu0 0.0
      %10899 = vmatpush1.msra.mxu0 0.0
      %10900 = vmatprep.subr.mxu0 0.0
      %10901 = vmatpush1.msra.mxu0 0.0
      %10902 = vmatprep.subr.mxu0 0.0
      %10903 = vmatpush1.msra.mxu0 0.0
      %10904 = vmatprep.subr.mxu0 0.0
      %10905 = vmatpush1.msra.mxu0 0.0
      %10906 = vmatprep.subr.mxu0 0.0
      %10907 = vmatpush1.msra.mxu0 0.0
      %10908 = vmatprep.subr.mxu0 0.0
      %10909 = vmatpush1.msra.mxu0 0.0
      %10910 = vmatprep.subr.mxu0 0.0
      %10911 = vmatpush1.msra.mxu0 0.0
      %10912 = vmatprep.subr.mxu0 0.0
      %10913 = vmatpush1.msra.mxu0 0.0
      %10914 = vmatprep.subr.mxu0 0.0
      %10915 = vmatpush1.msra.mxu0 0.0
      %10916 = vmatprep.subr.mxu0 0.0
      %10917 = vmatpush1.msra.mxu0 0.0
      %10918 = vmatprep.subr.mxu0 0.0
      %10919 = vmatpush1.msra.mxu0 0.0
      %10920 = vmatprep.subr.mxu0 0.0
      %10921 = vmatpush1.msra.mxu0 0.0
      %10922 = vmatprep.subr.mxu0 0.0
      %10923 = vmatpush1.msra.mxu0 0.0
      %10924 = vmatprep.subr.mxu0 0.0
      %10925 = vmatpush1.msra.mxu0 0.0
      %10926 = vmatprep.subr.mxu0 0.0
      %10927 = vmatpush1.msra.mxu0 0.0
      %10928 = vmatprep.subr.mxu0 0.0
      %10929 = vmatpush1.msra.mxu0 0.0
      %10930 = vmatprep.subr.mxu0 0.0
      %10931 = vmatpush1.msra.mxu0 0.0
      %10932 = vmatprep.subr.mxu0 0.0
      %10933 = vmatpush1.msra.mxu0 0.0
      %10934 = vmatprep.subr.mxu0 0.0
      %10935 = vmatpush1.msra.mxu0 0.0
      %10936 = vmatprep.subr.mxu0 0.0
      %10937 = vmatpush1.msra.mxu0 0.0
      %10938 = vmatprep.subr.mxu0 0.0
      %10939 = vmatpush1.msra.mxu0 0.0
      %10940 = vmatprep.subr.mxu0 0.0
      %10941 = vmatpush1.msra.mxu0 0.0
      %10942 = vmatprep.subr.mxu0 0.0
      %10943 = vmatpush1.msra.mxu0 0.0
      %10944 = vmatprep.subr.mxu0 0.0
      %10945 = vmatpush1.msra.mxu0 0.0
      %10946 = vmatprep.subr.mxu0 0.0
      %10947 = vmatpush1.msra.mxu0 0.0
      %10948 = vmatprep.subr.mxu0 0.0
      %10949 = vmatpush1.msra.mxu0 0.0
      %10950 = vmatprep.subr.mxu0 0.0
      %10951 = vmatpush1.msra.mxu0 0.0
      %10952 = vmatprep.subr.mxu0 0.0
      %10953 = vmatpush1.msra.mxu0 0.0
      %10954 = vmatprep.subr.mxu0 0.0
      %10955 = vmatpush1.msra.mxu0 0.0
      %10956 = vmatprep.mubr.f32.mxu0 0.0
      %10957 = vmatmul.mubr.f32.gmra.mrb[0].mxu0 %v10890
      %v10958 = vpop.f32.mrb[0].mxu0
      %v10959 = vadd.f32 0.0, %v10958
      %v10960 = vpop.f32.mrb[0].mxu0
      %10961 = vdwg.mxu0
      %v10962 = vadd.f32 %v10885, %v10959
      %s10963 = scalar_lea.vmem %s5, 144
      %v10964 = vld [vmem:[%s10963] sm:$0xff]
      %v10965 = vld [vmem:[%s10963 + $0x8] sm:$0xff]
      %v10966 = vrot.slane %v10266, 4
      %v10967 = vsel %vm3918, %v10966, 0
      %10969 = vmatprep.subr.mxu0 0.0
      %10970 = vmatpush1.msra.mxu0 %v10964
      %10971 = vmatprep.subr.mxu0 0.0
      %10972 = vmatpush1.msra.mxu0 %v10965
      %10973 = vmatprep.subr.mxu0 0.0
      %10974 = vmatpush1.msra.mxu0 0.0
      %10975 = vmatprep.subr.mxu0 0.0
      %10976 = vmatpush1.msra.mxu0 0.0
      %10977 = vmatprep.subr.mxu0 0.0
      %10978 = vmatpush1.msra.mxu0 0.0
      %10979 = vmatprep.subr.mxu0 0.0
      %10980 = vmatpush1.msra.mxu0 0.0
      %10981 = vmatprep.subr.mxu0 0.0
      %10982 = vmatpush1.msra.mxu0 0.0
      %10983 = vmatprep.subr.mxu0 0.0
      %10984 = vmatpush1.msra.mxu0 0.0
      %10985 = vmatprep.subr.mxu0 0.0
      %10986 = vmatpush1.msra.mxu0 0.0
      %10987 = vmatprep.subr.mxu0 0.0
      %10988 = vmatpush1.msra.mxu0 0.0
      %10989 = vmatprep.subr.mxu0 0.0
      %10990 = vmatpush1.msra.mxu0 0.0
      %10991 = vmatprep.subr.mxu0 0.0
      %10992 = vmatpush1.msra.mxu0 0.0
      %10993 = vmatprep.subr.mxu0 0.0
      %10994 = vmatpush1.msra.mxu0 0.0
      %10995 = vmatprep.subr.mxu0 0.0
      %10996 = vmatpush1.msra.mxu0 0.0
      %10997 = vmatprep.subr.mxu0 0.0
      %10998 = vmatpush1.msra.mxu0 0.0
      %10999 = vmatprep.subr.mxu0 0.0
      %11000 = vmatpush1.msra.mxu0 0.0
      %11001 = vmatprep.subr.mxu0 0.0
      %11002 = vmatpush1.msra.mxu0 0.0
      %11003 = vmatprep.subr.mxu0 0.0
      %11004 = vmatpush1.msra.mxu0 0.0
      %11005 = vmatprep.subr.mxu0 0.0
      %11006 = vmatpush1.msra.mxu0 0.0
      %11007 = vmatprep.subr.mxu0 0.0
      %11008 = vmatpush1.msra.mxu0 0.0
      %11009 = vmatprep.subr.mxu0 0.0
      %11010 = vmatpush1.msra.mxu0 0.0
      %11011 = vmatprep.subr.mxu0 0.0
      %11012 = vmatpush1.msra.mxu0 0.0
      %11013 = vmatprep.subr.mxu0 0.0
      %11014 = vmatpush1.msra.mxu0 0.0
      %11015 = vmatprep.subr.mxu0 0.0
      %11016 = vmatpush1.msra.mxu0 0.0
      %11017 = vmatprep.subr.mxu0 0.0
      %11018 = vmatpush1.msra.mxu0 0.0
      %11019 = vmatprep.subr.mxu0 0.0
      %11020 = vmatpush1.msra.mxu0 0.0
      %11021 = vmatprep.subr.mxu0 0.0
      %11022 = vmatpush1.msra.mxu0 0.0
      %11023 = vmatprep.subr.mxu0 0.0
      %11024 = vmatpush1.msra.mxu0 0.0
      %11025 = vmatprep.subr.mxu0 0.0
      %11026 = vmatpush1.msra.mxu0 0.0
      %11027 = vmatprep.subr.mxu0 0.0
      %11028 = vmatpush1.msra.mxu0 0.0
      %11029 = vmatprep.subr.mxu0 0.0
      %11030 = vmatpush1.msra.mxu0 0.0
      %11031 = vmatprep.subr.mxu0 0.0
      %11032 = vmatpush1.msra.mxu0 0.0
      %11033 = vmatprep.mubr.f32.mxu0 0.0
      %11034 = vmatmul.mubr.f32.gmra.mrb[0].mxu0 %v10967
      %v11035 = vpop.f32.mrb[0].mxu0
      %v11036 = vadd.f32 0.0, %v11035
      %v11037 = vpop.f32.mrb[0].mxu0
      %11038 = vdwg.mxu0
      %v11039 = vadd.f32 %v10962, %v11036
      %s11040 = scalar_lea.vmem %s5, 160
      %v11041 = vld [vmem:[%s11040] sm:$0xff]
      %v11042 = vld [vmem:[%s11040 + $0x8] sm:$0xff]
      %v11044 = vsel %vm3918, %v10267, 0
      %11046 = vmatprep.subr.mxu0 0.0
      %11047 = vmatpush1.msra.mxu0 %v11041
      %11048 = vmatprep.subr.mxu0 0.0
      %11049 = vmatpush1.msra.mxu0 %v11042
      %11050 = vmatprep.subr.mxu0 0.0
      %11051 = vmatpush1.msra.mxu0 0.0
      %11052 = vmatprep.subr.mxu0 0.0
      %11053 = vmatpush1.msra.mxu0 0.0
      %11054 = vmatprep.subr.mxu0 0.0
      %11055 = vmatpush1.msra.mxu0 0.0
      %11056 = vmatprep.subr.mxu0 0.0
      %11057 = vmatpush1.msra.mxu0 0.0
      %11058 = vmatprep.subr.mxu0 0.0
      %11059 = vmatpush1.msra.mxu0 0.0
      %11060 = vmatprep.subr.mxu0 0.0
      %11061 = vmatpush1.msra.mxu0 0.0
      %11062 = vmatprep.subr.mxu0 0.0
      %11063 = vmatpush1.msra.mxu0 0.0
      %11064 = vmatprep.subr.mxu0 0.0
      %11065 = vmatpush1.msra.mxu0 0.0
      %11066 = vmatprep.subr.mxu0 0.0
      %11067 = vmatpush1.msra.mxu0 0.0
      %11068 = vmatprep.subr.mxu0 0.0
      %11069 = vmatpush1.msra.mxu0 0.0
      %11070 = vmatprep.subr.mxu0 0.0
      %11071 = vmatpush1.msra.mxu0 0.0
      %11072 = vmatprep.subr.mxu0 0.0
      %11073 = vmatpush1.msra.mxu0 0.0
      %11074 = vmatprep.subr.mxu0 0.0
      %11075 = vmatpush1.msra.mxu0 0.0
      %11076 = vmatprep.subr.mxu0 0.0
      %11077 = vmatpush1.msra.mxu0 0.0
      %11078 = vmatprep.subr.mxu0 0.0
      %11079 = vmatpush1.msra.mxu0 0.0
      %11080 = vmatprep.subr.mxu0 0.0
      %11081 = vmatpush1.msra.mxu0 0.0
      %11082 = vmatprep.subr.mxu0 0.0
      %11083 = vmatpush1.msra.mxu0 0.0
      %11084 = vmatprep.subr.mxu0 0.0
      %11085 = vmatpush1.msra.mxu0 0.0
      %11086 = vmatprep.subr.mxu0 0.0
      %11087 = vmatpush1.msra.mxu0 0.0
      %11088 = vmatprep.subr.mxu0 0.0
      %11089 = vmatpush1.msra.mxu0 0.0
      %11090 = vmatprep.subr.mxu0 0.0
      %11091 = vmatpush1.msra.mxu0 0.0
      %11092 = vmatprep.subr.mxu0 0.0
      %11093 = vmatpush1.msra.mxu0 0.0
      %11094 = vmatprep.subr.mxu0 0.0
      %11095 = vmatpush1.msra.mxu0 0.0
      %11096 = vmatprep.subr.mxu0 0.0
      %11097 = vmatpush1.msra.mxu0 0.0
      %11098 = vmatprep.subr.mxu0 0.0
      %11099 = vmatpush1.msra.mxu0 0.0
      %11100 = vmatprep.subr.mxu0 0.0
      %11101 = vmatpush1.msra.mxu0 0.0
      %11102 = vmatprep.subr.mxu0 0.0
      %11103 = vmatpush1.msra.mxu0 0.0
      %11104 = vmatprep.subr.mxu0 0.0
      %11105 = vmatpush1.msra.mxu0 0.0
      %11106 = vmatprep.subr.mxu0 0.0
      %11107 = vmatpush1.msra.mxu0 0.0
      %11108 = vmatprep.subr.mxu0 0.0
      %11109 = vmatpush1.msra.mxu0 0.0
      %11110 = vmatprep.mubr.f32.mxu0 0.0
      %11111 = vmatmul.mubr.f32.gmra.mrb[0].mxu0 %v11044
      %v11112 = vpop.f32.mrb[0].mxu0
      %v11113 = vadd.f32 0.0, %v11112
      %v11114 = vpop.f32.mrb[0].mxu0
      %11115 = vdwg.mxu0
      %v11116 = vadd.f32 %v11039, %v11113
      %s11117 = scalar_lea.vmem %s5, 176
      %v11118 = vld [vmem:[%s11117] sm:$0xff]
      %v11119 = vld [vmem:[%s11117 + $0x8] sm:$0xff]
      %v11120 = vrot.slane %v10267, 1
      %v11121 = vsel %vm3918, %v11120, 0
      %11123 = vmatprep.subr.mxu0 0.0
      %11124 = vmatpush1.msra.mxu0 %v11118
      %11125 = vmatprep.subr.mxu0 0.0
      %11126 = vmatpush1.msra.mxu0 %v11119
      %11127 = vmatprep.subr.mxu0 0.0
      %11128 = vmatpush1.msra.mxu0 0.0
      %11129 = vmatprep.subr.mxu0 0.0
      %11130 = vmatpush1.msra.mxu0 0.0
      %11131 = vmatprep.subr.mxu0 0.0
      %11132 = vmatpush1.msra.mxu0 0.0
      %11133 = vmatprep.subr.mxu0 0.0
      %11134 = vmatpush1.msra.mxu0 0.0
      %11135 = vmatprep.subr.mxu0 0.0
      %11136 = vmatpush1.msra.mxu0 0.0
      %11137 = vmatprep.subr.mxu0 0.0
      %11138 = vmatpush1.msra.mxu0 0.0
      %11139 = vmatprep.subr.mxu0 0.0
      %11140 = vmatpush1.msra.mxu0 0.0
      %11141 = vmatprep.subr.mxu0 0.0
      %11142 = vmatpush1.msra.mxu0 0.0
      %11143 = vmatprep.subr.mxu0 0.0
      %11144 = vmatpush1.msra.mxu0 0.0
      %11145 = vmatprep.subr.mxu0 0.0
      %11146 = vmatpush1.msra.mxu0 0.0
      %11147 = vmatprep.subr.mxu0 0.0
      %11148 = vmatpush1.msra.mxu0 0.0
      %11149 = vmatprep.subr.mxu0 0.0
      %11150 = vmatpush1.msra.mxu0 0.0
      %11151 = vmatprep.subr.mxu0 0.0
      %11152 = vmatpush1.msra.mxu0 0.0
      %11153 = vmatprep.subr.mxu0 0.0
      %11154 = vmatpush1.msra.mxu0 0.0
      %11155 = vmatprep.subr.mxu0 0.0
      %11156 = vmatpush1.msra.mxu0 0.0
      %11157 = vmatprep.subr.mxu0 0.0
      %11158 = vmatpush1.msra.mxu0 0.0
      %11159 = vmatprep.subr.mxu0 0.0
      %11160 = vmatpush1.msra.mxu0 0.0
      %11161 = vmatprep.subr.mxu0 0.0
      %11162 = vmatpush1.msra.mxu0 0.0
      %11163 = vmatprep.subr.mxu0 0.0
      %11164 = vmatpush1.msra.mxu0 0.0
      %11165 = vmatprep.subr.mxu0 0.0
      %11166 = vmatpush1.msra.mxu0 0.0
      %11167 = vmatprep.subr.mxu0 0.0
      %11168 = vmatpush1.msra.mxu0 0.0
      %11169 = vmatprep.subr.mxu0 0.0
      %11170 = vmatpush1.msra.mxu0 0.0
      %11171 = vmatprep.subr.mxu0 0.0
      %11172 = vmatpush1.msra.mxu0 0.0
      %11173 = vmatprep.subr.mxu0 0.0
      %11174 = vmatpush1.msra.mxu0 0.0
      %11175 = vmatprep.subr.mxu0 0.0
      %11176 = vmatpush1.msra.mxu0 0.0
      %11177 = vmatprep.subr.mxu0 0.0
      %11178 = vmatpush1.msra.mxu0 0.0
      %11179 = vmatprep.subr.mxu0 0.0
      %11180 = vmatpush1.msra.mxu0 0.0
      %11181 = vmatprep.subr.mxu0 0.0
      %11182 = vmatpush1.msra.mxu0 0.0
      %11183 = vmatprep.subr.mxu0 0.0
      %11184 = vmatpush1.msra.mxu0 0.0
      %11185 = vmatprep.subr.mxu0 0.0
      %11186 = vmatpush1.msra.mxu0 0.0
      %11187 = vmatprep.mubr.f32.mxu0 0.0
      %11188 = vmatmul.mubr.f32.gmra.mrb[0].mxu0 %v11121
      %v11189 = vpop.f32.mrb[0].mxu0
      %v11190 = vadd.f32 0.0, %v11189
      %v11191 = vpop.f32.mrb[0].mxu0
      %11192 = vdwg.mxu0
      %v11193 = vadd.f32 %v11116, %v11190
      %s11194 = scalar_lea.vmem %s5, 192
      %v11195 = vld [vmem:[%s11194] sm:$0xff]
      %v11196 = vld [vmem:[%s11194 + $0x8] sm:$0xff]
      %v11197 = vrot.slane %v10267, 2
      %v11198 = vsel %vm3918, %v11197, 0
      %11200 = vmatprep.subr.mxu0 0.0
      %11201 = vmatpush1.msra.mxu0 %v11195
      %11202 = vmatprep.subr.mxu0 0.0
      %11203 = vmatpush1.msra.mxu0 %v11196
      %11204 = vmatprep.subr.mxu0 0.0
      %11205 = vmatpush1.msra.mxu0 0.0
      %11206 = vmatprep.subr.mxu0 0.0
      %11207 = vmatpush1.msra.mxu0 0.0
      %11208 = vmatprep.subr.mxu0 0.0
      %11209 = vmatpush1.msra.mxu0 0.0
      %11210 = vmatprep.subr.mxu0 0.0
      %11211 = vmatpush1.msra.mxu0 0.0
      %11212 = vmatprep.subr.mxu0 0.0
      %11213 = vmatpush1.msra.mxu0 0.0
      %11214 = vmatprep.subr.mxu0 0.0
      %11215 = vmatpush1.msra.mxu0 0.0
      %11216 = vmatprep.subr.mxu0 0.0
      %11217 = vmatpush1.msra.mxu0 0.0
      %11218 = vmatprep.subr.mxu0 0.0
      %11219 = vmatpush1.msra.mxu0 0.0
      %11220 = vmatprep.subr.mxu0 0.0
      %11221 = vmatpush1.msra.mxu0 0.0
      %11222 = vmatprep.subr.mxu0 0.0
      %11223 = vmatpush1.msra.mxu0 0.0
      %11224 = vmatprep.subr.mxu0 0.0
      %11225 = vmatpush1.msra.mxu0 0.0
      %11226 = vmatprep.subr.mxu0 0.0
      %11227 = vmatpush1.msra.mxu0 0.0
      %11228 = vmatprep.subr.mxu0 0.0
      %11229 = vmatpush1.msra.mxu0 0.0
      %11230 = vmatprep.subr.mxu0 0.0
      %11231 = vmatpush1.msra.mxu0 0.0
      %11232 = vmatprep.subr.mxu0 0.0
      %11233 = vmatpush1.msra.mxu0 0.0
      %11234 = vmatprep.subr.mxu0 0.0
      %11235 = vmatpush1.msra.mxu0 0.0
      %11236 = vmatprep.subr.mxu0 0.0
      %11237 = vmatpush1.msra.mxu0 0.0
      %11238 = vmatprep.subr.mxu0 0.0
      %11239 = vmatpush1.msra.mxu0 0.0
      %11240 = vmatprep.subr.mxu0 0.0
      %11241 = vmatpush1.msra.mxu0 0.0
      %11242 = vmatprep.subr.mxu0 0.0
      %11243 = vmatpush1.msra.mxu0 0.0
      %11244 = vmatprep.subr.mxu0 0.0
      %11245 = vmatpush1.msra.mxu0 0.0
      %11246 = vmatprep.subr.mxu0 0.0
      %11247 = vmatpush1.msra.mxu0 0.0
      %11248 = vmatprep.subr.mxu0 0.0
      %11249 = vmatpush1.msra.mxu0 0.0
      %11250 = vmatprep.subr.mxu0 0.0
      %11251 = vmatpush1.msra.mxu0 0.0
      %11252 = vmatprep.subr.mxu0 0.0
      %11253 = vmatpush1.msra.mxu0 0.0
      %11254 = vmatprep.subr.mxu0 0.0
      %11255 = vmatpush1.msra.mxu0 0.0
      %11256 = vmatprep.subr.mxu0 0.0
      %11257 = vmatpush1.msra.mxu0 0.0
      %11258 = vmatprep.subr.mxu0 0.0
      %11259 = vmatpush1.msra.mxu0 0.0
      %11260 = vmatprep.subr.mxu0 0.0
      %11261 = vmatpush1.msra.mxu0 0.0
      %11262 = vmatprep.subr.mxu0 0.0
      %11263 = vmatpush1.msra.mxu0 0.0
      %11264 = vmatprep.mubr.f32.mxu0 0.0
      %11265 = vmatmul.mubr.f32.gmra.mrb[0].mxu0 %v11198
      %v11266 = vpop.f32.mrb[0].mxu0
      %v11267 = vadd.f32 0.0, %v11266
      %v11268 = vpop.f32.mrb[0].mxu0
      %11269 = vdwg.mxu0
      %v11270 = vadd.f32 %v11193, %v11267
      %s11271 = scalar_lea.vmem %s5, 208
      %v11272 = vld [vmem:[%s11271] sm:$0xff]
      %v11273 = vld [vmem:[%s11271 + $0x8] sm:$0xff]
      %v11274 = vrot.slane %v10267, 3
      %v11275 = vsel %vm3918, %v11274, 0
      %11277 = vmatprep.subr.mxu0 0.0
      %11278 = vmatpush1.msra.mxu0 %v11272
      %11279 = vmatprep.subr.mxu0 0.0
      %11280 = vmatpush1.msra.mxu0 %v11273
      %11281 = vmatprep.subr.mxu0 0.0
      %11282 = vmatpush1.msra.mxu0 0.0
      %11283 = vmatprep.subr.mxu0 0.0
      %11284 = vmatpush1.msra.mxu0 0.0
      %11285 = vmatprep.subr.mxu0 0.0
      %11286 = vmatpush1.msra.mxu0 0.0
      %11287 = vmatprep.subr.mxu0 0.0
      %11288 = vmatpush1.msra.mxu0 0.0
      %11289 = vmatprep.subr.mxu0 0.0
      %11290 = vmatpush1.msra.mxu0 0.0
      %11291 = vmatprep.subr.mxu0 0.0
      %11292 = vmatpush1.msra.mxu0 0.0
      %11293 = vmatprep.subr.mxu0 0.0
      %11294 = vmatpush1.msra.mxu0 0.0
      %11295 = vmatprep.subr.mxu0 0.0
      %11296 = vmatpush1.msra.mxu0 0.0
      %11297 = vmatprep.subr.mxu0 0.0
      %11298 = vmatpush1.msra.mxu0 0.0
      %11299 = vmatprep.subr.mxu0 0.0
      %11300 = vmatpush1.msra.mxu0 0.0
      %11301 = vmatprep.subr.mxu0 0.0
      %11302 = vmatpush1.msra.mxu0 0.0
      %11303 = vmatprep.subr.mxu0 0.0
      %11304 = vmatpush1.msra.mxu0 0.0
      %11305 = vmatprep.subr.mxu0 0.0
      %11306 = vmatpush1.msra.mxu0 0.0
      %11307 = vmatprep.subr.mxu0 0.0
      %11308 = vmatpush1.msra.mxu0 0.0
      %11309 = vmatprep.subr.mxu0 0.0
      %11310 = vmatpush1.msra.mxu0 0.0
      %11311 = vmatprep.subr.mxu0 0.0
      %11312 = vmatpush1.msra.mxu0 0.0
      %11313 = vmatprep.subr.mxu0 0.0
      %11314 = vmatpush1.msra.mxu0 0.0
      %11315 = vmatprep.subr.mxu0 0.0
      %11316 = vmatpush1.msra.mxu0 0.0
      %11317 = vmatprep.subr.mxu0 0.0
      %11318 = vmatpush1.msra.mxu0 0.0
      %11319 = vmatprep.subr.mxu0 0.0
      %11320 = vmatpush1.msra.mxu0 0.0
      %11321 = vmatprep.subr.mxu0 0.0
      %11322 = vmatpush1.msra.mxu0 0.0
      %11323 = vmatprep.subr.mxu0 0.0
      %11324 = vmatpush1.msra.mxu0 0.0
      %11325 = vmatprep.subr.mxu0 0.0
      %11326 = vmatpush1.msra.mxu0 0.0
      %11327 = vmatprep.subr.mxu0 0.0
      %11328 = vmatpush1.msra.mxu0 0.0
      %11329 = vmatprep.subr.mxu0 0.0
      %11330 = vmatpush1.msra.mxu0 0.0
      %11331 = vmatprep.subr.mxu0 0.0
      %11332 = vmatpush1.msra.mxu0 0.0
      %11333 = vmatprep.subr.mxu0 0.0
      %11334 = vmatpush1.msra.mxu0 0.0
      %11335 = vmatprep.subr.mxu0 0.0
      %11336 = vmatpush1.msra.mxu0 0.0
      %11337 = vmatprep.subr.mxu0 0.0
      %11338 = vmatpush1.msra.mxu0 0.0
      %11339 = vmatprep.subr.mxu0 0.0
      %11340 = vmatpush1.msra.mxu0 0.0
      %11341 = vmatprep.mubr.f32.mxu0 0.0
      %11342 = vmatmul.mubr.f32.gmra.mrb[0].mxu0 %v11275
      %v11343 = vpop.f32.mrb[0].mxu0
      %v11344 = vadd.f32 0.0, %v11343
      %v11345 = vpop.f32.mrb[0].mxu0
      %11346 = vdwg.mxu0
      %v11347 = vadd.f32 %v11270, %v11344
      %s11348 = scalar_lea.vmem %s5, 224
      %v11349 = vld [vmem:[%s11348] sm:$0xff]
      %v11350 = vld [vmem:[%s11348 + $0x8] sm:$0xff]
      %v11351 = vrot.slane %v10267, 4
      %v11352 = vsel %vm3918, %v11351, 0
      %11354 = vmatprep.subr.mxu0 0.0
      %11355 = vmatpush1.msra.mxu0 %v11349
      %11356 = vmatprep.subr.mxu0 0.0
      %11357 = vmatpush1.msra.mxu0 %v11350
      %11358 = vmatprep.subr.mxu0 0.0
      %11359 = vmatpush1.msra.mxu0 0.0
      %11360 = vmatprep.subr.mxu0 0.0
      %11361 = vmatpush1.msra.mxu0 0.0
      %11362 = vmatprep.subr.mxu0 0.0
      %11363 = vmatpush1.msra.mxu0 0.0
      %11364 = vmatprep.subr.mxu0 0.0
      %11365 = vmatpush1.msra.mxu0 0.0
      %11366 = vmatprep.subr.mxu0 0.0
      %11367 = vmatpush1.msra.mxu0 0.0
      %11368 = vmatprep.subr.mxu0 0.0
      %11369 = vmatpush1.msra.mxu0 0.0
      %11370 = vmatprep.subr.mxu0 0.0
      %11371 = vmatpush1.msra.mxu0 0.0
      %11372 = vmatprep.subr.mxu0 0.0
      %11373 = vmatpush1.msra.mxu0 0.0
      %11374 = vmatprep.subr.mxu0 0.0
      %11375 = vmatpush1.msra.mxu0 0.0
      %11376 = vmatprep.subr.mxu0 0.0
      %11377 = vmatpush1.msra.mxu0 0.0
      %11378 = vmatprep.subr.mxu0 0.0
      %11379 = vmatpush1.msra.mxu0 0.0
      %11380 = vmatprep.subr.mxu0 0.0
      %11381 = vmatpush1.msra.mxu0 0.0
      %11382 = vmatprep.subr.mxu0 0.0
      %11383 = vmatpush1.msra.mxu0 0.0
      %11384 = vmatprep.subr.mxu0 0.0
      %11385 = vmatpush1.msra.mxu0 0.0
      %11386 = vmatprep.subr.mxu0 0.0
      %11387 = vmatpush1.msra.mxu0 0.0
      %11388 = vmatprep.subr.mxu0 0.0
      %11389 = vmatpush1.msra.mxu0 0.0
      %11390 = vmatprep.subr.mxu0 0.0
      %11391 = vmatpush1.msra.mxu0 0.0
      %11392 = vmatprep.subr.mxu0 0.0
      %11393 = vmatpush1.msra.mxu0 0.0
      %11394 = vmatprep.subr.mxu0 0.0
      %11395 = vmatpush1.msra.mxu0 0.0
      %11396 = vmatprep.subr.mxu0 0.0
      %11397 = vmatpush1.msra.mxu0 0.0
      %11398 = vmatprep.subr.mxu0 0.0
      %11399 = vmatpush1.msra.mxu0 0.0
      %11400 = vmatprep.subr.mxu0 0.0
      %11401 = vmatpush1.msra.mxu0 0.0
      %11402 = vmatprep.subr.mxu0 0.0
      %11403 = vmatpush1.msra.mxu0 0.0
      %11404 = vmatprep.subr.mxu0 0.0
      %11405 = vmatpush1.msra.mxu0 0.0
      %11406 = vmatprep.subr.mxu0 0.0
      %11407 = vmatpush1.msra.mxu0 0.0
      %11408 = vmatprep.subr.mxu0 0.0
      %11409 = vmatpush1.msra.mxu0 0.0
      %11410 = vmatprep.subr.mxu0 0.0
      %11411 = vmatpush1.msra.mxu0 0.0
      %11412 = vmatprep.subr.mxu0 0.0
      %11413 = vmatpush1.msra.mxu0 0.0
      %11414 = vmatprep.subr.mxu0 0.0
      %11415 = vmatpush1.msra.mxu0 0.0
      %11416 = vmatprep.subr.mxu0 0.0
      %11417 = vmatpush1.msra.mxu0 0.0
      %11418 = vmatprep.mubr.f32.mxu0 0.0
      %11419 = vmatmul.mubr.f32.gmra.mrb[0].mxu0 %v11352
      %v11420 = vpop.f32.mrb[0].mxu0
      %v11421 = vadd.f32 0.0, %v11420
      %v11422 = vpop.f32.mrb[0].mxu0
      %11423 = vdwg.mxu0
      %v11424 = vadd.f32 %v11347, %v11421
      %s11425 = scalar_lea.vmem %s5, 240
      %v11426 = vld [vmem:[%s11425] sm:$0xff]
      %v11427 = vld [vmem:[%s11425 + $0x8] sm:$0xff]
      %v11429 = vsel %vm3918, %v10268, 0
      %11431 = vmatprep.subr.mxu0 0.0
      %11432 = vmatpush1.msra.mxu0 %v11426
      %11433 = vmatprep.subr.mxu0 0.0
      %11434 = vmatpush1.msra.mxu0 %v11427
      %11435 = vmatprep.subr.mxu0 0.0
      %11436 = vmatpush1.msra.mxu0 0.0
      %11437 = vmatprep.subr.mxu0 0.0
      %11438 = vmatpush1.msra.mxu0 0.0
      %11439 = vmatprep.subr.mxu0 0.0
      %11440 = vmatpush1.msra.mxu0 0.0
      %11441 = vmatprep.subr.mxu0 0.0
      %11442 = vmatpush1.msra.mxu0 0.0
      %11443 = vmatprep.subr.mxu0 0.0
      %11444 = vmatpush1.msra.mxu0 0.0
      %11445 = vmatprep.subr.mxu0 0.0
      %11446 = vmatpush1.msra.mxu0 0.0
      %11447 = vmatprep.subr.mxu0 0.0
      %11448 = vmatpush1.msra.mxu0 0.0
      %11449 = vmatprep.subr.mxu0 0.0
      %11450 = vmatpush1.msra.mxu0 0.0
      %11451 = vmatprep.subr.mxu0 0.0
      %11452 = vmatpush1.msra.mxu0 0.0
      %11453 = vmatprep.subr.mxu0 0.0
      %11454 = vmatpush1.msra.mxu0 0.0
      %11455 = vmatprep.subr.mxu0 0.0
      %11456 = vmatpush1.msra.mxu0 0.0
      %11457 = vmatprep.subr.mxu0 0.0
      %11458 = vmatpush1.msra.mxu0 0.0
      %11459 = vmatprep.subr.mxu0 0.0
      %11460 = vmatpush1.msra.mxu0 0.0
      %11461 = vmatprep.subr.mxu0 0.0
      %11462 = vmatpush1.msra.mxu0 0.0
      %11463 = vmatprep.subr.mxu0 0.0
      %11464 = vmatpush1.msra.mxu0 0.0
      %11465 = vmatprep.subr.mxu0 0.0
      %11466 = vmatpush1.msra.mxu0 0.0
      %11467 = vmatprep.subr.mxu0 0.0
      %11468 = vmatpush1.msra.mxu0 0.0
      %11469 = vmatprep.subr.mxu0 0.0
      %11470 = vmatpush1.msra.mxu0 0.0
      %11471 = vmatprep.subr.mxu0 0.0
      %11472 = vmatpush1.msra.mxu0 0.0
      %11473 = vmatprep.subr.mxu0 0.0
      %11474 = vmatpush1.msra.mxu0 0.0
      %11475 = vmatprep.subr.mxu0 0.0
      %11476 = vmatpush1.msra.mxu0 0.0
      %11477 = vmatprep.subr.mxu0 0.0
      %11478 = vmatpush1.msra.mxu0 0.0
      %11479 = vmatprep.subr.mxu0 0.0
      %11480 = vmatpush1.msra.mxu0 0.0
      %11481 = vmatprep.subr.mxu0 0.0
      %11482 = vmatpush1.msra.mxu0 0.0
      %11483 = vmatprep.subr.mxu0 0.0
      %11484 = vmatpush1.msra.mxu0 0.0
      %11485 = vmatprep.subr.mxu0 0.0
      %11486 = vmatpush1.msra.mxu0 0.0
      %11487 = vmatprep.subr.mxu0 0.0
      %11488 = vmatpush1.msra.mxu0 0.0
      %11489 = vmatprep.subr.mxu0 0.0
      %11490 = vmatpush1.msra.mxu0 0.0
      %11491 = vmatprep.subr.mxu0 0.0
      %11492 = vmatpush1.msra.mxu0 0.0
      %11493 = vmatprep.subr.mxu0 0.0
      %11494 = vmatpush1.msra.mxu0 0.0
      %11495 = vmatprep.mubr.f32.mxu0 0.0
      %11496 = vmatmul.mubr.f32.gmra.mrb[0].mxu0 %v11429
      %v11497 = vpop.f32.mrb[0].mxu0
      %v11498 = vadd.f32 0.0, %v11497
      %v11499 = vpop.f32.mrb[0].mxu0
      %11500 = vdwg.mxu0
      %v11501 = vadd.f32 %v11424, %v11498
      %s11502 = scalar_lea.vmem %s5, 256
      %v11503 = vld [vmem:[%s11502] sm:$0xff]
      %v11504 = vld [vmem:[%s11502 + $0x8] sm:$0xff]
      %v11505 = vrot.slane %v10268, 1
      %v11506 = vsel %vm3918, %v11505, 0
      %11508 = vmatprep.subr.mxu0 0.0
      %11509 = vmatpush1.msra.mxu0 %v11503
      %11510 = vmatprep.subr.mxu0 0.0
      %11511 = vmatpush1.msra.mxu0 %v11504
      %11512 = vmatprep.subr.mxu0 0.0
      %11513 = vmatpush1.msra.mxu0 0.0
      %11514 = vmatprep.subr.mxu0 0.0
      %11515 = vmatpush1.msra.mxu0 0.0
      %11516 = vmatprep.subr.mxu0 0.0
      %11517 = vmatpush1.msra.mxu0 0.0
      %11518 = vmatprep.subr.mxu0 0.0
      %11519 = vmatpush1.msra.mxu0 0.0
      %11520 = vmatprep.subr.mxu0 0.0
      %11521 = vmatpush1.msra.mxu0 0.0
      %11522 = vmatprep.subr.mxu0 0.0
      %11523 = vmatpush1.msra.mxu0 0.0
      %11524 = vmatprep.subr.mxu0 0.0
      %11525 = vmatpush1.msra.mxu0 0.0
      %11526 = vmatprep.subr.mxu0 0.0
      %11527 = vmatpush1.msra.mxu0 0.0
      %11528 = vmatprep.subr.mxu0 0.0
      %11529 = vmatpush1.msra.mxu0 0.0
      %11530 = vmatprep.subr.mxu0 0.0
      %11531 = vmatpush1.msra.mxu0 0.0
      %11532 = vmatprep.subr.mxu0 0.0
      %11533 = vmatpush1.msra.mxu0 0.0
      %11534 = vmatprep.subr.mxu0 0.0
      %11535 = vmatpush1.msra.mxu0 0.0
      %11536 = vmatprep.subr.mxu0 0.0
      %11537 = vmatpush1.msra.mxu0 0.0
      %11538 = vmatprep.subr.mxu0 0.0
      %11539 = vmatpush1.msra.mxu0 0.0
      %11540 = vmatprep.subr.mxu0 0.0
      %11541 = vmatpush1.msra.mxu0 0.0
      %11542 = vmatprep.subr.mxu0 0.0
      %11543 = vmatpush1.msra.mxu0 0.0
      %11544 = vmatprep.subr.mxu0 0.0
      %11545 = vmatpush1.msra.mxu0 0.0
      %11546 = vmatprep.subr.mxu0 0.0
      %11547 = vmatpush1.msra.mxu0 0.0
      %11548 = vmatprep.subr.mxu0 0.0
      %11549 = vmatpush1.msra.mxu0 0.0
      %11550 = vmatprep.subr.mxu0 0.0
      %11551 = vmatpush1.msra.mxu0 0.0
      %11552 = vmatprep.subr.mxu0 0.0
      %11553 = vmatpush1.msra.mxu0 0.0
      %11554 = vmatprep.subr.mxu0 0.0
      %11555 = vmatpush1.msra.mxu0 0.0
      %11556 = vmatprep.subr.mxu0 0.0
      %11557 = vmatpush1.msra.mxu0 0.0
      %11558 = vmatprep.subr.mxu0 0.0
      %11559 = vmatpush1.msra.mxu0 0.0
      %11560 = vmatprep.subr.mxu0 0.0
      %11561 = vmatpush1.msra.mxu0 0.0
      %11562 = vmatprep.subr.mxu0 0.0
      %11563 = vmatpush1.msra.mxu0 0.0
      %11564 = vmatprep.subr.mxu0 0.0
      %11565 = vmatpush1.msra.mxu0 0.0
      %11566 = vmatprep.subr.mxu0 0.0
      %11567 = vmatpush1.msra.mxu0 0.0
      %11568 = vmatprep.subr.mxu0 0.0
      %11569 = vmatpush1.msra.mxu0 0.0
      %11570 = vmatprep.subr.mxu0 0.0
      %11571 = vmatpush1.msra.mxu0 0.0
      %11572 = vmatprep.mubr.f32.mxu0 0.0
      %11573 = vmatmul.mubr.f32.gmra.mrb[0].mxu0 %v11506
      %v11574 = vpop.f32.mrb[0].mxu0
      %v11575 = vadd.f32 0.0, %v11574
      %v11576 = vpop.f32.mrb[0].mxu0
      %11577 = vdwg.mxu0
      %v11578 = vadd.f32 %v11501, %v11575
      %s11579 = scalar_lea.vmem %s5, 272
      %v11580 = vld [vmem:[%s11579] sm:$0xff]
      %v11581 = vld [vmem:[%s11579 + $0x8] sm:$0xff]
      %v11582 = vrot.slane %v10268, 2
      %v11583 = vsel %vm3918, %v11582, 0
      %11585 = vmatprep.subr.mxu0 0.0
      %11586 = vmatpush1.msra.mxu0 %v11580
      %11587 = vmatprep.subr.mxu0 0.0
      %11588 = vmatpush1.msra.mxu0 %v11581
      %11589 = vmatprep.subr.mxu0 0.0
      %11590 = vmatpush1.msra.mxu0 0.0
      %11591 = vmatprep.subr.mxu0 0.0
      %11592 = vmatpush1.msra.mxu0 0.0
      %11593 = vmatprep.subr.mxu0 0.0
      %11594 = vmatpush1.msra.mxu0 0.0
      %11595 = vmatprep.subr.mxu0 0.0
      %11596 = vmatpush1.msra.mxu0 0.0
      %11597 = vmatprep.subr.mxu0 0.0
      %11598 = vmatpush1.msra.mxu0 0.0
      %11599 = vmatprep.subr.mxu0 0.0
      %11600 = vmatpush1.msra.mxu0 0.0
      %11601 = vmatprep.subr.mxu0 0.0
      %11602 = vmatpush1.msra.mxu0 0.0
      %11603 = vmatprep.subr.mxu0 0.0
      %11604 = vmatpush1.msra.mxu0 0.0
      %11605 = vmatprep.subr.mxu0 0.0
      %11606 = vmatpush1.msra.mxu0 0.0
      %11607 = vmatprep.subr.mxu0 0.0
      %11608 = vmatpush1.msra.mxu0 0.0
      %11609 = vmatprep.subr.mxu0 0.0
      %11610 = vmatpush1.msra.mxu0 0.0
      %11611 = vmatprep.subr.mxu0 0.0
      %11612 = vmatpush1.msra.mxu0 0.0
      %11613 = vmatprep.subr.mxu0 0.0
      %11614 = vmatpush1.msra.mxu0 0.0
      %11615 = vmatprep.subr.mxu0 0.0
      %11616 = vmatpush1.msra.mxu0 0.0
      %11617 = vmatprep.subr.mxu0 0.0
      %11618 = vmatpush1.msra.mxu0 0.0
      %11619 = vmatprep.subr.mxu0 0.0
      %11620 = vmatpush1.msra.mxu0 0.0
      %11621 = vmatprep.subr.mxu0 0.0
      %11622 = vmatpush1.msra.mxu0 0.0
      %11623 = vmatprep.subr.mxu0 0.0
      %11624 = vmatpush1.msra.mxu0 0.0
      %11625 = vmatprep.subr.mxu0 0.0
      %11626 = vmatpush1.msra.mxu0 0.0
      %11627 = vmatprep.subr.mxu0 0.0
      %11628 = vmatpush1.msra.mxu0 0.0
      %11629 = vmatprep.subr.mxu0 0.0
      %11630 = vmatpush1.msra.mxu0 0.0
      %11631 = vmatprep.subr.mxu0 0.0
      %11632 = vmatpush1.msra.mxu0 0.0
      %11633 = vmatprep.subr.mxu0 0.0
      %11634 = vmatpush1.msra.mxu0 0.0
      %11635 = vmatprep.subr.mxu0 0.0
      %11636 = vmatpush1.msra.mxu0 0.0
      %11637 = vmatprep.subr.mxu0 0.0
      %11638 = vmatpush1.msra.mxu0 0.0
      %11639 = vmatprep.subr.mxu0 0.0
      %11640 = vmatpush1.msra.mxu0 0.0
      %11641 = vmatprep.subr.mxu0 0.0
      %11642 = vmatpush1.msra.mxu0 0.0
      %11643 = vmatprep.subr.mxu0 0.0
      %11644 = vmatpush1.msra.mxu0 0.0
      %11645 = vmatprep.subr.mxu0 0.0
      %11646 = vmatpush1.msra.mxu0 0.0
      %11647 = vmatprep.subr.mxu0 0.0
      %11648 = vmatpush1.msra.mxu0 0.0
      %11649 = vmatprep.mubr.f32.mxu0 0.0
      %11650 = vmatmul.mubr.f32.gmra.mrb[0].mxu0 %v11583
      %v11651 = vpop.f32.mrb[0].mxu0
      %v11652 = vadd.f32 0.0, %v11651
      %v11653 = vpop.f32.mrb[0].mxu0
      %11654 = vdwg.mxu0
      %v11655 = vadd.f32 %v11578, %v11652
      %s11656 = scalar_lea.vmem %s5, 288
      %v11657 = vld [vmem:[%s11656] sm:$0xff]
      %v11658 = vld [vmem:[%s11656 + $0x8] sm:$0xff]
      %v11659 = vrot.slane %v10268, 3
      %v11660 = vsel %vm3918, %v11659, 0
      %11662 = vmatprep.subr.mxu0 0.0
      %11663 = vmatpush1.msra.mxu0 %v11657
      %11664 = vmatprep.subr.mxu0 0.0
      %11665 = vmatpush1.msra.mxu0 %v11658
      %11666 = vmatprep.subr.mxu0 0.0
      %11667 = vmatpush1.msra.mxu0 0.0
      %11668 = vmatprep.subr.mxu0 0.0
      %11669 = vmatpush1.msra.mxu0 0.0
      %11670 = vmatprep.subr.mxu0 0.0
      %11671 = vmatpush1.msra.mxu0 0.0
      %11672 = vmatprep.subr.mxu0 0.0
      %11673 = vmatpush1.msra.mxu0 0.0
      %11674 = vmatprep.subr.mxu0 0.0
      %11675 = vmatpush1.msra.mxu0 0.0
      %11676 = vmatprep.subr.mxu0 0.0
      %11677 = vmatpush1.msra.mxu0 0.0
      %11678 = vmatprep.subr.mxu0 0.0
      %11679 = vmatpush1.msra.mxu0 0.0
      %11680 = vmatprep.subr.mxu0 0.0
      %11681 = vmatpush1.msra.mxu0 0.0
      %11682 = vmatprep.subr.mxu0 0.0
      %11683 = vmatpush1.msra.mxu0 0.0
      %11684 = vmatprep.subr.mxu0 0.0
      %11685 = vmatpush1.msra.mxu0 0.0
      %11686 = vmatprep.subr.mxu0 0.0
      %11687 = vmatpush1.msra.mxu0 0.0
      %11688 = vmatprep.subr.mxu0 0.0
      %11689 = vmatpush1.msra.mxu0 0.0
      %11690 = vmatprep.subr.mxu0 0.0
      %11691 = vmatpush1.msra.mxu0 0.0
      %11692 = vmatprep.subr.mxu0 0.0
      %11693 = vmatpush1.msra.mxu0 0.0
      %11694 = vmatprep.subr.mxu0 0.0
      %11695 = vmatpush1.msra.mxu0 0.0
      %11696 = vmatprep.subr.mxu0 0.0
      %11697 = vmatpush1.msra.mxu0 0.0
      %11698 = vmatprep.subr.mxu0 0.0
      %11699 = vmatpush1.msra.mxu0 0.0
      %11700 = vmatprep.subr.mxu0 0.0
      %11701 = vmatpush1.msra.mxu0 0.0
      %11702 = vmatprep.subr.mxu0 0.0
      %11703 = vmatpush1.msra.mxu0 0.0
      %11704 = vmatprep.subr.mxu0 0.0
      %11705 = vmatpush1.msra.mxu0 0.0
      %11706 = vmatprep.subr.mxu0 0.0
      %11707 = vmatpush1.msra.mxu0 0.0
      %11708 = vmatprep.subr.mxu0 0.0
      %11709 = vmatpush1.msra.mxu0 0.0
      %11710 = vmatprep.subr.mxu0 0.0
      %11711 = vmatpush1.msra.mxu0 0.0
      %11712 = vmatprep.subr.mxu0 0.0
      %11713 = vmatpush1.msra.mxu0 0.0
      %11714 = vmatprep.subr.mxu0 0.0
      %11715 = vmatpush1.msra.mxu0 0.0
      %11716 = vmatprep.subr.mxu0 0.0
      %11717 = vmatpush1.msra.mxu0 0.0
      %11718 = vmatprep.subr.mxu0 0.0
      %11719 = vmatpush1.msra.mxu0 0.0
      %11720 = vmatprep.subr.mxu0 0.0
      %11721 = vmatpush1.msra.mxu0 0.0
      %11722 = vmatprep.subr.mxu0 0.0
      %11723 = vmatpush1.msra.mxu0 0.0
      %11724 = vmatprep.subr.mxu0 0.0
      %11725 = vmatpush1.msra.mxu0 0.0
      %11726 = vmatprep.mubr.f32.mxu0 0.0
      %11727 = vmatmul.mubr.f32.gmra.mrb[0].mxu0 %v11660
      %v11728 = vpop.f32.mrb[0].mxu0
      %v11729 = vadd.f32 0.0, %v11728
      %v11730 = vpop.f32.mrb[0].mxu0
      %11731 = vdwg.mxu0
      %v11732 = vadd.f32 %v11655, %v11729
      %s11733 = scalar_lea.vmem %s5, 304
      %v11734 = vld [vmem:[%s11733] sm:$0xff]
      %v11735 = vld [vmem:[%s11733 + $0x8] sm:$0xff]
      %v11736 = vrot.slane %v10268, 4
      %v11737 = vsel %vm3918, %v11736, 0
      %11739 = vmatprep.subr.mxu0 0.0
      %11740 = vmatpush1.msra.mxu0 %v11734
      %11741 = vmatprep.subr.mxu0 0.0
      %11742 = vmatpush1.msra.mxu0 %v11735
      %11743 = vmatprep.subr.mxu0 0.0
      %11744 = vmatpush1.msra.mxu0 0.0
      %11745 = vmatprep.subr.mxu0 0.0
      %11746 = vmatpush1.msra.mxu0 0.0
      %11747 = vmatprep.subr.mxu0 0.0
      %11748 = vmatpush1.msra.mxu0 0.0
      %11749 = vmatprep.subr.mxu0 0.0
      %11750 = vmatpush1.msra.mxu0 0.0
      %11751 = vmatprep.subr.mxu0 0.0
      %11752 = vmatpush1.msra.mxu0 0.0
      %11753 = vmatprep.subr.mxu0 0.0
      %11754 = vmatpush1.msra.mxu0 0.0
      %11755 = vmatprep.subr.mxu0 0.0
      %11756 = vmatpush1.msra.mxu0 0.0
      %11757 = vmatprep.subr.mxu0 0.0
      %11758 = vmatpush1.msra.mxu0 0.0
      %11759 = vmatprep.subr.mxu0 0.0
      %11760 = vmatpush1.msra.mxu0 0.0
      %11761 = vmatprep.subr.mxu0 0.0
      %11762 = vmatpush1.msra.mxu0 0.0
      %11763 = vmatprep.subr.mxu0 0.0
      %11764 = vmatpush1.msra.mxu0 0.0
      %11765 = vmatprep.subr.mxu0 0.0
      %11766 = vmatpush1.msra.mxu0 0.0
      %11767 = vmatprep.subr.mxu0 0.0
      %11768 = vmatpush1.msra.mxu0 0.0
      %11769 = vmatprep.subr.mxu0 0.0
      %11770 = vmatpush1.msra.mxu0 0.0
      %11771 = vmatprep.subr.mxu0 0.0
      %11772 = vmatpush1.msra.mxu0 0.0
      %11773 = vmatprep.subr.mxu0 0.0
      %11774 = vmatpush1.msra.mxu0 0.0
      %11775 = vmatprep.subr.mxu0 0.0
      %11776 = vmatpush1.msra.mxu0 0.0
      %11777 = vmatprep.subr.mxu0 0.0
      %11778 = vmatpush1.msra.mxu0 0.0
      %11779 = vmatprep.subr.mxu0 0.0
      %11780 = vmatpush1.msra.mxu0 0.0
      %11781 = vmatprep.subr.mxu0 0.0
      %11782 = vmatpush1.msra.mxu0 0.0
      %11783 = vmatprep.subr.mxu0 0.0
      %11784 = vmatpush1.msra.mxu0 0.0
      %11785 = vmatprep.subr.mxu0 0.0
      %11786 = vmatpush1.msra.mxu0 0.0
      %11787 = vmatprep.subr.mxu0 0.0
      %11788 = vmatpush1.msra.mxu0 0.0
      %11789 = vmatprep.subr.mxu0 0.0
      %11790 = vmatpush1.msra.mxu0 0.0
      %11791 = vmatprep.subr.mxu0 0.0
      %11792 = vmatpush1.msra.mxu0 0.0
      %11793 = vmatprep.subr.mxu0 0.0
      %11794 = vmatpush1.msra.mxu0 0.0
      %11795 = vmatprep.subr.mxu0 0.0
      %11796 = vmatpush1.msra.mxu0 0.0
      %11797 = vmatprep.subr.mxu0 0.0
      %11798 = vmatpush1.msra.mxu0 0.0
      %11799 = vmatprep.subr.mxu0 0.0
      %11800 = vmatpush1.msra.mxu0 0.0
      %11801 = vmatprep.subr.mxu0 0.0
      %11802 = vmatpush1.msra.mxu0 0.0
      %11803 = vmatprep.mubr.f32.mxu0 0.0
      %11804 = vmatmul.mubr.f32.gmra.mrb[0].mxu0 %v11737
      %v11805 = vpop.f32.mrb[0].mxu0
      %v11806 = vadd.f32 0.0, %v11805
      %v11807 = vpop.f32.mrb[0].mxu0
      %11808 = vdwg.mxu0
      %v11809 = vadd.f32 %v11732, %v11806
      %s11810 = scalar_lea.vmem %s5, 320
      %v11811 = vld [vmem:[%s11810] sm:$0xff]
      %v11812 = vld [vmem:[%s11810 + $0x8] sm:$0xff]
      %v11814 = vsel %vm3918, %v10269, 0
      %11816 = vmatprep.subr.mxu0 0.0
      %11817 = vmatpush1.msra.mxu0 %v11811
      %11818 = vmatprep.subr.mxu0 0.0
      %11819 = vmatpush1.msra.mxu0 %v11812
      %11820 = vmatprep.subr.mxu0 0.0
      %11821 = vmatpush1.msra.mxu0 0.0
      %11822 = vmatprep.subr.mxu0 0.0
      %11823 = vmatpush1.msra.mxu0 0.0
      %11824 = vmatprep.subr.mxu0 0.0
      %11825 = vmatpush1.msra.mxu0 0.0
      %11826 = vmatprep.subr.mxu0 0.0
      %11827 = vmatpush1.msra.mxu0 0.0
      %11828 = vmatprep.subr.mxu0 0.0
      %11829 = vmatpush1.msra.mxu0 0.0
      %11830 = vmatprep.subr.mxu0 0.0
      %11831 = vmatpush1.msra.mxu0 0.0
      %11832 = vmatprep.subr.mxu0 0.0
      %11833 = vmatpush1.msra.mxu0 0.0
      %11834 = vmatprep.subr.mxu0 0.0
      %11835 = vmatpush1.msra.mxu0 0.0
      %11836 = vmatprep.subr.mxu0 0.0
      %11837 = vmatpush1.msra.mxu0 0.0
      %11838 = vmatprep.subr.mxu0 0.0
      %11839 = vmatpush1.msra.mxu0 0.0
      %11840 = vmatprep.subr.mxu0 0.0
      %11841 = vmatpush1.msra.mxu0 0.0
      %11842 = vmatprep.subr.mxu0 0.0
      %11843 = vmatpush1.msra.mxu0 0.0
      %11844 = vmatprep.subr.mxu0 0.0
      %11845 = vmatpush1.msra.mxu0 0.0
      %11846 = vmatprep.subr.mxu0 0.0
      %11847 = vmatpush1.msra.mxu0 0.0
      %11848 = vmatprep.subr.mxu0 0.0
      %11849 = vmatpush1.msra.mxu0 0.0
      %11850 = vmatprep.subr.mxu0 0.0
      %11851 = vmatpush1.msra.mxu0 0.0
      %11852 = vmatprep.subr.mxu0 0.0
      %11853 = vmatpush1.msra.mxu0 0.0
      %11854 = vmatprep.subr.mxu0 0.0
      %11855 = vmatpush1.msra.mxu0 0.0
      %11856 = vmatprep.subr.mxu0 0.0
      %11857 = vmatpush1.msra.mxu0 0.0
      %11858 = vmatprep.subr.mxu0 0.0
      %11859 = vmatpush1.msra.mxu0 0.0
      %11860 = vmatprep.subr.mxu0 0.0
      %11861 = vmatpush1.msra.mxu0 0.0
      %11862 = vmatprep.subr.mxu0 0.0
      %11863 = vmatpush1.msra.mxu0 0.0
      %11864 = vmatprep.subr.mxu0 0.0
      %11865 = vmatpush1.msra.mxu0 0.0
      %11866 = vmatprep.subr.mxu0 0.0
      %11867 = vmatpush1.msra.mxu0 0.0
      %11868 = vmatprep.subr.mxu0 0.0
      %11869 = vmatpush1.msra.mxu0 0.0
      %11870 = vmatprep.subr.mxu0 0.0
      %11871 = vmatpush1.msra.mxu0 0.0
      %11872 = vmatprep.subr.mxu0 0.0
      %11873 = vmatpush1.msra.mxu0 0.0
      %11874 = vmatprep.subr.mxu0 0.0
      %11875 = vmatpush1.msra.mxu0 0.0
      %11876 = vmatprep.subr.mxu0 0.0
      %11877 = vmatpush1.msra.mxu0 0.0
      %11878 = vmatprep.subr.mxu0 0.0
      %11879 = vmatpush1.msra.mxu0 0.0
      %11880 = vmatprep.mubr.f32.mxu0 0.0
      %11881 = vmatmul.mubr.f32.gmra.mrb[0].mxu0 %v11814
      %v11882 = vpop.f32.mrb[0].mxu0
      %v11883 = vadd.f32 0.0, %v11882
      %v11884 = vpop.f32.mrb[0].mxu0
      %11885 = vdwg.mxu0
      %v11886 = vadd.f32 %v11809, %v11883
      %s11887 = scalar_lea.vmem %s5, 336
      %v11888 = vld [vmem:[%s11887] sm:$0xff]
      %v11889 = vld [vmem:[%s11887 + $0x8] sm:$0xff]
      %v11890 = vrot.slane %v10269, 1
      %v11891 = vsel %vm3918, %v11890, 0
      %11893 = vmatprep.subr.mxu0 0.0
      %11894 = vmatpush1.msra.mxu0 %v11888
      %11895 = vmatprep.subr.mxu0 0.0
      %11896 = vmatpush1.msra.mxu0 %v11889
      %11897 = vmatprep.subr.mxu0 0.0
      %11898 = vmatpush1.msra.mxu0 0.0
      %11899 = vmatprep.subr.mxu0 0.0
      %11900 = vmatpush1.msra.mxu0 0.0
      %11901 = vmatprep.subr.mxu0 0.0
      %11902 = vmatpush1.msra.mxu0 0.0
      %11903 = vmatprep.subr.mxu0 0.0
      %11904 = vmatpush1.msra.mxu0 0.0
      %11905 = vmatprep.subr.mxu0 0.0
      %11906 = vmatpush1.msra.mxu0 0.0
      %11907 = vmatprep.subr.mxu0 0.0
      %11908 = vmatpush1.msra.mxu0 0.0
      %11909 = vmatprep.subr.mxu0 0.0
      %11910 = vmatpush1.msra.mxu0 0.0
      %11911 = vmatprep.subr.mxu0 0.0
      %11912 = vmatpush1.msra.mxu0 0.0
      %11913 = vmatprep.subr.mxu0 0.0
      %11914 = vmatpush1.msra.mxu0 0.0
      %11915 = vmatprep.subr.mxu0 0.0
      %11916 = vmatpush1.msra.mxu0 0.0
      %11917 = vmatprep.subr.mxu0 0.0
      %11918 = vmatpush1.msra.mxu0 0.0
      %11919 = vmatprep.subr.mxu0 0.0
      %11920 = vmatpush1.msra.mxu0 0.0
      %11921 = vmatprep.subr.mxu0 0.0
      %11922 = vmatpush1.msra.mxu0 0.0
      %11923 = vmatprep.subr.mxu0 0.0
      %11924 = vmatpush1.msra.mxu0 0.0
      %11925 = vmatprep.subr.mxu0 0.0
      %11926 = vmatpush1.msra.mxu0 0.0
      %11927 = vmatprep.subr.mxu0 0.0
      %11928 = vmatpush1.msra.mxu0 0.0
      %11929 = vmatprep.subr.mxu0 0.0
      %11930 = vmatpush1.msra.mxu0 0.0
      %11931 = vmatprep.subr.mxu0 0.0
      %11932 = vmatpush1.msra.mxu0 0.0
      %11933 = vmatprep.subr.mxu0 0.0
      %11934 = vmatpush1.msra.mxu0 0.0
      %11935 = vmatprep.subr.mxu0 0.0
      %11936 = vmatpush1.msra.mxu0 0.0
      %11937 = vmatprep.subr.mxu0 0.0
      %11938 = vmatpush1.msra.mxu0 0.0
      %11939 = vmatprep.subr.mxu0 0.0
      %11940 = vmatpush1.msra.mxu0 0.0
      %11941 = vmatprep.subr.mxu0 0.0
      %11942 = vmatpush1.msra.mxu0 0.0
      %11943 = vmatprep.subr.mxu0 0.0
      %11944 = vmatpush1.msra.mxu0 0.0
      %11945 = vmatprep.subr.mxu0 0.0
      %11946 = vmatpush1.msra.mxu0 0.0
      %11947 = vmatprep.subr.mxu0 0.0
      %11948 = vmatpush1.msra.mxu0 0.0
      %11949 = vmatprep.subr.mxu0 0.0
      %11950 = vmatpush1.msra.mxu0 0.0
      %11951 = vmatprep.subr.mxu0 0.0
      %11952 = vmatpush1.msra.mxu0 0.0
      %11953 = vmatprep.subr.mxu0 0.0
      %11954 = vmatpush1.msra.mxu0 0.0
      %11955 = vmatprep.subr.mxu0 0.0
      %11956 = vmatpush1.msra.mxu0 0.0
      %11957 = vmatprep.mubr.f32.mxu0 0.0
      %11958 = vmatmul.mubr.f32.gmra.mrb[0].mxu0 %v11891
      %v11959 = vpop.f32.mrb[0].mxu0
      %v11960 = vadd.f32 0.0, %v11959
      %v11961 = vpop.f32.mrb[0].mxu0
      %11962 = vdwg.mxu0
      %v11963 = vadd.f32 %v11886, %v11960
      %s11964 = scalar_lea.vmem %s5, 352
      %v11965 = vld [vmem:[%s11964] sm:$0xff]
      %v11966 = vld [vmem:[%s11964 + $0x8] sm:$0xff]
      %v11967 = vrot.slane %v10269, 2
      %v11968 = vsel %vm3918, %v11967, 0
      %11970 = vmatprep.subr.mxu0 0.0
      %11971 = vmatpush1.msra.mxu0 %v11965
      %11972 = vmatprep.subr.mxu0 0.0
      %11973 = vmatpush1.msra.mxu0 %v11966
      %11974 = vmatprep.subr.mxu0 0.0
      %11975 = vmatpush1.msra.mxu0 0.0
      %11976 = vmatprep.subr.mxu0 0.0
      %11977 = vmatpush1.msra.mxu0 0.0
      %11978 = vmatprep.subr.mxu0 0.0
      %11979 = vmatpush1.msra.mxu0 0.0
      %11980 = vmatprep.subr.mxu0 0.0
      %11981 = vmatpush1.msra.mxu0 0.0
      %11982 = vmatprep.subr.mxu0 0.0
      %11983 = vmatpush1.msra.mxu0 0.0
      %11984 = vmatprep.subr.mxu0 0.0
      %11985 = vmatpush1.msra.mxu0 0.0
      %11986 = vmatprep.subr.mxu0 0.0
      %11987 = vmatpush1.msra.mxu0 0.0
      %11988 = vmatprep.subr.mxu0 0.0
      %11989 = vmatpush1.msra.mxu0 0.0
      %11990 = vmatprep.subr.mxu0 0.0
      %11991 = vmatpush1.msra.mxu0 0.0
      %11992 = vmatprep.subr.mxu0 0.0
      %11993 = vmatpush1.msra.mxu0 0.0
      %11994 = vmatprep.subr.mxu0 0.0
      %11995 = vmatpush1.msra.mxu0 0.0
      %11996 = vmatprep.subr.mxu0 0.0
      %11997 = vmatpush1.msra.mxu0 0.0
      %11998 = vmatprep.subr.mxu0 0.0
      %11999 = vmatpush1.msra.mxu0 0.0
      %12000 = vmatprep.subr.mxu0 0.0
      %12001 = vmatpush1.msra.mxu0 0.0
      %12002 = vmatprep.subr.mxu0 0.0
      %12003 = vmatpush1.msra.mxu0 0.0
      %12004 = vmatprep.subr.mxu0 0.0
      %12005 = vmatpush1.msra.mxu0 0.0
      %12006 = vmatprep.subr.mxu0 0.0
      %12007 = vmatpush1.msra.mxu0 0.0
      %12008 = vmatprep.subr.mxu0 0.0
      %12009 = vmatpush1.msra.mxu0 0.0
      %12010 = vmatprep.subr.mxu0 0.0
      %12011 = vmatpush1.msra.mxu0 0.0
      %12012 = vmatprep.subr.mxu0 0.0
      %12013 = vmatpush1.msra.mxu0 0.0
      %12014 = vmatprep.subr.mxu0 0.0
      %12015 = vmatpush1.msra.mxu0 0.0
      %12016 = vmatprep.subr.mxu0 0.0
      %12017 = vmatpush1.msra.mxu0 0.0
      %12018 = vmatprep.subr.mxu0 0.0
      %12019 = vmatpush1.msra.mxu0 0.0
      %12020 = vmatprep.subr.mxu0 0.0
      %12021 = vmatpush1.msra.mxu0 0.0
      %12022 = vmatprep.subr.mxu0 0.0
      %12023 = vmatpush1.msra.mxu0 0.0
      %12024 = vmatprep.subr.mxu0 0.0
      %12025 = vmatpush1.msra.mxu0 0.0
      %12026 = vmatprep.subr.mxu0 0.0
      %12027 = vmatpush1.msra.mxu0 0.0
      %12028 = vmatprep.subr.mxu0 0.0
      %12029 = vmatpush1.msra.mxu0 0.0
      %12030 = vmatprep.subr.mxu0 0.0
      %12031 = vmatpush1.msra.mxu0 0.0
      %12032 = vmatprep.subr.mxu0 0.0
      %12033 = vmatpush1.msra.mxu0 0.0
      %12034 = vmatprep.mubr.f32.mxu0 0.0
      %12035 = vmatmul.mubr.f32.gmra.mrb[0].mxu0 %v11968
      %v12036 = vpop.f32.mrb[0].mxu0
      %v12037 = vadd.f32 0.0, %v12036
      %v12038 = vpop.f32.mrb[0].mxu0
      %12039 = vdwg.mxu0
      %v12040 = vadd.f32 %v11963, %v12037
      %s12041 = scalar_lea.vmem %s5, 368
      %v12042 = vld [vmem:[%s12041] sm:$0xff]
      %v12043 = vld [vmem:[%s12041 + $0x8] sm:$0xff]
      %v12044 = vrot.slane %v10269, 3
      %v12045 = vsel %vm3918, %v12044, 0
      %12047 = vmatprep.subr.mxu0 0.0
      %12048 = vmatpush1.msra.mxu0 %v12042
      %12049 = vmatprep.subr.mxu0 0.0
      %12050 = vmatpush1.msra.mxu0 %v12043
      %12051 = vmatprep.subr.mxu0 0.0
      %12052 = vmatpush1.msra.mxu0 0.0
      %12053 = vmatprep.subr.mxu0 0.0
      %12054 = vmatpush1.msra.mxu0 0.0
      %12055 = vmatprep.subr.mxu0 0.0
      %12056 = vmatpush1.msra.mxu0 0.0
      %12057 = vmatprep.subr.mxu0 0.0
      %12058 = vmatpush1.msra.mxu0 0.0
      %12059 = vmatprep.subr.mxu0 0.0
      %12060 = vmatpush1.msra.mxu0 0.0
      %12061 = vmatprep.subr.mxu0 0.0
      %12062 = vmatpush1.msra.mxu0 0.0
      %12063 = vmatprep.subr.mxu0 0.0
      %12064 = vmatpush1.msra.mxu0 0.0
      %12065 = vmatprep.subr.mxu0 0.0
      %12066 = vmatpush1.msra.mxu0 0.0
      %12067 = vmatprep.subr.mxu0 0.0
      %12068 = vmatpush1.msra.mxu0 0.0
      %12069 = vmatprep.subr.mxu0 0.0
      %12070 = vmatpush1.msra.mxu0 0.0
      %12071 = vmatprep.subr.mxu0 0.0
      %12072 = vmatpush1.msra.mxu0 0.0
      %12073 = vmatprep.subr.mxu0 0.0
      %12074 = vmatpush1.msra.mxu0 0.0
      %12075 = vmatprep.subr.mxu0 0.0
      %12076 = vmatpush1.msra.mxu0 0.0
      %12077 = vmatprep.subr.mxu0 0.0
      %12078 = vmatpush1.msra.mxu0 0.0
      %12079 = vmatprep.subr.mxu0 0.0
      %12080 = vmatpush1.msra.mxu0 0.0
      %12081 = vmatprep.subr.mxu0 0.0
      %12082 = vmatpush1.msra.mxu0 0.0
      %12083 = vmatprep.subr.mxu0 0.0
      %12084 = vmatpush1.msra.mxu0 0.0
      %12085 = vmatprep.subr.mxu0 0.0
      %12086 = vmatpush1.msra.mxu0 0.0
      %12087 = vmatprep.subr.mxu0 0.0
      %12088 = vmatpush1.msra.mxu0 0.0
      %12089 = vmatprep.subr.mxu0 0.0
      %12090 = vmatpush1.msra.mxu0 0.0
      %12091 = vmatprep.subr.mxu0 0.0
      %12092 = vmatpush1.msra.mxu0 0.0
      %12093 = vmatprep.subr.mxu0 0.0
      %12094 = vmatpush1.msra.mxu0 0.0
      %12095 = vmatprep.subr.mxu0 0.0
      %12096 = vmatpush1.msra.mxu0 0.0
      %12097 = vmatprep.subr.mxu0 0.0
      %12098 = vmatpush1.msra.mxu0 0.0
      %12099 = vmatprep.subr.mxu0 0.0
      %12100 = vmatpush1.msra.mxu0 0.0
      %12101 = vmatprep.subr.mxu0 0.0
      %12102 = vmatpush1.msra.mxu0 0.0
      %12103 = vmatprep.subr.mxu0 0.0
      %12104 = vmatpush1.msra.mxu0 0.0
      %12105 = vmatprep.subr.mxu0 0.0
      %12106 = vmatpush1.msra.mxu0 0.0
      %12107 = vmatprep.subr.mxu0 0.0
      %12108 = vmatpush1.msra.mxu0 0.0
      %12109 = vmatprep.subr.mxu0 0.0
      %12110 = vmatpush1.msra.mxu0 0.0
      %12111 = vmatprep.mubr.f32.mxu0 0.0
      %12112 = vmatmul.mubr.f32.gmra.mrb[0].mxu0 %v12045
      %v12113 = vpop.f32.mrb[0].mxu0
      %v12114 = vadd.f32 0.0, %v12113
      %v12115 = vpop.f32.mrb[0].mxu0
      %12116 = vdwg.mxu0
      %v12117 = vadd.f32 %v12040, %v12114
      %s12118 = scalar_lea.vmem %s5, 384
      %v12119 = vld [vmem:[%s12118] sm:$0xff]
      %v12120 = vld [vmem:[%s12118 + $0x8] sm:$0xff]
      %v12121 = vrot.slane %v10269, 4
      %v12122 = vsel %vm3918, %v12121, 0
      %12124 = vmatprep.subr.mxu0 0.0
      %12125 = vmatpush1.msra.mxu0 %v12119
      %12126 = vmatprep.subr.mxu0 0.0
      %12127 = vmatpush1.msra.mxu0 %v12120
      %12128 = vmatprep.subr.mxu0 0.0
      %12129 = vmatpush1.msra.mxu0 0.0
      %12130 = vmatprep.subr.mxu0 0.0
      %12131 = vmatpush1.msra.mxu0 0.0
      %12132 = vmatprep.subr.mxu0 0.0
      %12133 = vmatpush1.msra.mxu0 0.0
      %12134 = vmatprep.subr.mxu0 0.0
      %12135 = vmatpush1.msra.mxu0 0.0
      %12136 = vmatprep.subr.mxu0 0.0
      %12137 = vmatpush1.msra.mxu0 0.0
      %12138 = vmatprep.subr.mxu0 0.0
      %12139 = vmatpush1.msra.mxu0 0.0
      %12140 = vmatprep.subr.mxu0 0.0
      %12141 = vmatpush1.msra.mxu0 0.0
      %12142 = vmatprep.subr.mxu0 0.0
      %12143 = vmatpush1.msra.mxu0 0.0
      %12144 = vmatprep.subr.mxu0 0.0
      %12145 = vmatpush1.msra.mxu0 0.0
      %12146 = vmatprep.subr.mxu0 0.0
      %12147 = vmatpush1.msra.mxu0 0.0
      %12148 = vmatprep.subr.mxu0 0.0
      %12149 = vmatpush1.msra.mxu0 0.0
      %12150 = vmatprep.subr.mxu0 0.0
      %12151 = vmatpush1.msra.mxu0 0.0
      %12152 = vmatprep.subr.mxu0 0.0
      %12153 = vmatpush1.msra.mxu0 0.0
      %12154 = vmatprep.subr.mxu0 0.0
      %12155 = vmatpush1.msra.mxu0 0.0
      %12156 = vmatprep.subr.mxu0 0.0
      %12157 = vmatpush1.msra.mxu0 0.0
      %12158 = vmatprep.subr.mxu0 0.0
      %12159 = vmatpush1.msra.mxu0 0.0
      %12160 = vmatprep.subr.mxu0 0.0
      %12161 = vmatpush1.msra.mxu0 0.0
      %12162 = vmatprep.subr.mxu0 0.0
      %12163 = vmatpush1.msra.mxu0 0.0
      %12164 = vmatprep.subr.mxu0 0.0
      %12165 = vmatpush1.msra.mxu0 0.0
      %12166 = vmatprep.subr.mxu0 0.0
      %12167 = vmatpush1.msra.mxu0 0.0
      %12168 = vmatprep.subr.mxu0 0.0
      %12169 = vmatpush1.msra.mxu0 0.0
      %12170 = vmatprep.subr.mxu0 0.0
      %12171 = vmatpush1.msra.mxu0 0.0
      %12172 = vmatprep.subr.mxu0 0.0
      %12173 = vmatpush1.msra.mxu0 0.0
      %12174 = vmatprep.subr.mxu0 0.0
      %12175 = vmatpush1.msra.mxu0 0.0
      %12176 = vmatprep.subr.mxu0 0.0
      %12177 = vmatpush1.msra.mxu0 0.0
      %12178 = vmatprep.subr.mxu0 0.0
      %12179 = vmatpush1.msra.mxu0 0.0
      %12180 = vmatprep.subr.mxu0 0.0
      %12181 = vmatpush1.msra.mxu0 0.0
      %12182 = vmatprep.subr.mxu0 0.0
      %12183 = vmatpush1.msra.mxu0 0.0
      %12184 = vmatprep.subr.mxu0 0.0
      %12185 = vmatpush1.msra.mxu0 0.0
      %12186 = vmatprep.subr.mxu0 0.0
      %12187 = vmatpush1.msra.mxu0 0.0
      %12188 = vmatprep.mubr.f32.mxu0 0.0
      %12189 = vmatmul.mubr.f32.gmra.mrb[0].mxu0 %v12122
      %v12190 = vpop.f32.mrb[0].mxu0
      %v12191 = vadd.f32 0.0, %v12190
      %v12192 = vpop.f32.mrb[0].mxu0
      %12193 = vdwg.mxu0
      %v12194 = vadd.f32 %v12117, %v12191
      %v12195 = vmax.f32 %v12194, 0.0
      %v12196 = vld [vmem:[%s7] sm:$0xff]
      %v12197 = vld [vmem:[%s7 + $0x8] sm:$0xff]
      %v12198 = vld [vmem:[%s7 + $0x10] sm:$0xff]
      %v12199 = vld [vmem:[%s7 + $0x18] sm:$0xff]
      %v12200 = vld [vmem:[%s7 + $0x20] sm:$0xff]
      %v12201 = vld [vmem:[%s7 + $0x28] sm:$0xff]
      %v12202 = vld [vmem:[%s7 + $0x30] sm:$0xff]
      %v12203 = vld [vmem:[%s7 + $0x38] sm:$0xff]
      %v12204 = vld [vmem:[%s7 + $0x40] sm:$0xff]
      %v12205 = vld [vmem:[%s7 + $0x48] sm:$0xff]
      %v12206 = vld [vmem:[%s7 + $0x50] sm:$0xff]
      %v12207 = vld [vmem:[%s7 + $0x58] sm:$0xff]
      %v12208 = vld [vmem:[%s7 + $0x60] sm:$0xff]
      %v12209 = vld [vmem:[%s7 + $0x68] sm:$0xff]
      %v12210 = vld [vmem:[%s7 + $0x70] sm:$0xff]
      %v12211 = vld [vmem:[%s7 + $0x78] sm:$0xff]
      %v12212 = vld [vmem:[%s8] sm:$0x1]
      %12213 = vmatprep.subr.mxu0 0.0
      %12214 = vmatpush1.msra.mxu0 %v12196
      %12215 = vmatprep.subr.mxu0 0.0
      %12216 = vmatpush1.msra.mxu0 %v12197
      %12217 = vmatprep.subr.mxu0 0.0
      %12218 = vmatpush1.msra.mxu0 %v12198
      %12219 = vmatprep.subr.mxu0 0.0
      %12220 = vmatpush1.msra.mxu0 %v12199
      %12221 = vmatprep.subr.mxu0 0.0
      %12222 = vmatpush1.msra.mxu0 %v12200
      %12223 = vmatprep.subr.mxu0 0.0
      %12224 = vmatpush1.msra.mxu0 %v12201
      %12225 = vmatprep.subr.mxu0 0.0
      %12226 = vmatpush1.msra.mxu0 %v12202
      %12227 = vmatprep.subr.mxu0 0.0
      %12228 = vmatpush1.msra.mxu0 %v12203
      %12229 = vmatprep.subr.mxu0 0.0
      %12230 = vmatpush1.msra.mxu0 %v12204
      %12231 = vmatprep.subr.mxu0 0.0
      %12232 = vmatpush1.msra.mxu0 %v12205
      %12233 = vmatprep.subr.mxu0 0.0
      %12234 = vmatpush1.msra.mxu0 %v12206
      %12235 = vmatprep.subr.mxu0 0.0
      %12236 = vmatpush1.msra.mxu0 %v12207
      %12237 = vmatprep.subr.mxu0 0.0
      %12238 = vmatpush1.msra.mxu0 %v12208
      %12239 = vmatprep.subr.mxu0 0.0
      %12240 = vmatpush1.msra.mxu0 %v12209
      %12241 = vmatprep.subr.mxu0 0.0
      %12242 = vmatpush1.msra.mxu0 %v12210
      %12243 = vmatprep.subr.mxu0 0.0
      %12244 = vmatpush1.msra.mxu0 %v12211
      %12245 = vmatprep.subr.mxu0 0.0
      %12246 = vmatpush1.msra.mxu0 0.0
      %12247 = vmatprep.subr.mxu0 0.0
      %12248 = vmatpush1.msra.mxu0 0.0
      %12249 = vmatprep.subr.mxu0 0.0
      %12250 = vmatpush1.msra.mxu0 0.0
      %12251 = vmatprep.subr.mxu0 0.0
      %12252 = vmatpush1.msra.mxu0 0.0
      %12253 = vmatprep.subr.mxu0 0.0
      %12254 = vmatpush1.msra.mxu0 0.0
      %12255 = vmatprep.subr.mxu0 0.0
      %12256 = vmatpush1.msra.mxu0 0.0
      %12257 = vmatprep.subr.mxu0 0.0
      %12258 = vmatpush1.msra.mxu0 0.0
      %12259 = vmatprep.subr.mxu0 0.0
      %12260 = vmatpush1.msra.mxu0 0.0
      %12261 = vmatprep.subr.mxu0 0.0
      %12262 = vmatpush1.msra.mxu0 0.0
      %12263 = vmatprep.subr.mxu0 0.0
      %12264 = vmatpush1.msra.mxu0 0.0
      %12265 = vmatprep.subr.mxu0 0.0
      %12266 = vmatpush1.msra.mxu0 0.0
      %12267 = vmatprep.subr.mxu0 0.0
      %12268 = vmatpush1.msra.mxu0 0.0
      %12269 = vmatprep.subr.mxu0 0.0
      %12270 = vmatpush1.msra.mxu0 0.0
      %12271 = vmatprep.subr.mxu0 0.0
      %12272 = vmatpush1.msra.mxu0 0.0
      %12273 = vmatprep.subr.mxu0 0.0
      %12274 = vmatpush1.msra.mxu0 0.0
      %12275 = vmatprep.subr.mxu0 0.0
      %12276 = vmatpush1.msra.mxu0 0.0
      %12277 = vmatprep.mubr.f32.mxu0 0.0
      %12278 = vmatmul.mubr.f32.gmra.mrb[0].mxu0 %v12195
      %v12279 = vpop.f32.mrb[0].mxu0
      %v12280 = vadd.f32 %v12212, %v12279
      %v12281 = vpop.f32.mrb[0].mxu0
      %12282 = vdwg.mxu0
      %v12283 = vmax.f32 %v12280, 0.0
      %v12284 = vld [vmem:[%s9] sm:$0xff]
      %v12285 = vld [vmem:[%s9 + $0x8] sm:$0xff]
      %v12286 = vld [vmem:[%s9 + $0x10] sm:$0xff]
      %v12287 = vld [vmem:[%s9 + $0x18] sm:$0xff]
      %v12288 = vld [vmem:[%s9 + $0x20] sm:$0xff]
      %v12289 = vld [vmem:[%s9 + $0x28] sm:$0xff]
      %v12290 = vld [vmem:[%s9 + $0x30] sm:$0xff]
      %v12291 = vld [vmem:[%s9 + $0x38] sm:$0xff]
      %v12292 = vld [vmem:[%s9 + $0x40] sm:$0xff]
      %v12293 = vld [vmem:[%s9 + $0x48] sm:$0xff]
      %v12294 = vld [vmem:[%s9 + $0x50] sm:$0xff]
      %v12295 = vld [vmem:[%s9 + $0x58] sm:$0xff]
      %v12296 = vld [vmem:[%s9 + $0x60] sm:$0xff]
      %v12297 = vld [vmem:[%s9 + $0x68] sm:$0xff]
      %v12298 = vld [vmem:[%s9 + $0x70] sm:$0xff]
      %v12299 = vld [vmem:[%s9 + $0x78] sm:$0xff]
      %v12300 = vld [vmem:[%s10] sm:$0x1]
      %12301 = vmatprep.subr.mxu0 0.0
      %12302 = vmatpush1.msra.mxu0 %v12284
      %12303 = vmatprep.subr.mxu0 0.0
      %12304 = vmatpush1.msra.mxu0 %v12285
      %12305 = vmatprep.subr.mxu0 0.0
      %12306 = vmatpush1.msra.mxu0 %v12286
      %12307 = vmatprep.subr.mxu0 0.0
      %12308 = vmatpush1.msra.mxu0 %v12287
      %12309 = vmatprep.subr.mxu0 0.0
      %12310 = vmatpush1.msra.mxu0 %v12288
      %12311 = vmatprep.subr.mxu0 0.0
      %12312 = vmatpush1.msra.mxu0 %v12289
      %12313 = vmatprep.subr.mxu0 0.0
      %12314 = vmatpush1.msra.mxu0 %v12290
      %12315 = vmatprep.subr.mxu0 0.0
      %12316 = vmatpush1.msra.mxu0 %v12291
      %12317 = vmatprep.subr.mxu0 0.0
      %12318 = vmatpush1.msra.mxu0 %v12292
      %12319 = vmatprep.subr.mxu0 0.0
      %12320 = vmatpush1.msra.mxu0 %v12293
      %12321 = vmatprep.subr.mxu0 0.0
      %12322 = vmatpush1.msra.mxu0 %v12294
      %12323 = vmatprep.subr.mxu0 0.0
      %12324 = vmatpush1.msra.mxu0 %v12295
      %12325 = vmatprep.subr.mxu0 0.0
      %12326 = vmatpush1.msra.mxu0 %v12296
      %12327 = vmatprep.subr.mxu0 0.0
      %12328 = vmatpush1.msra.mxu0 %v12297
      %12329 = vmatprep.subr.mxu0 0.0
      %12330 = vmatpush1.msra.mxu0 %v12298
      %12331 = vmatprep.subr.mxu0 0.0
      %12332 = vmatpush1.msra.mxu0 %v12299
      %12333 = vmatprep.subr.mxu0 0.0
      %12334 = vmatpush1.msra.mxu0 0.0
      %12335 = vmatprep.subr.mxu0 0.0
      %12336 = vmatpush1.msra.mxu0 0.0
      %12337 = vmatprep.subr.mxu0 0.0
      %12338 = vmatpush1.msra.mxu0 0.0
      %12339 = vmatprep.subr.mxu0 0.0
      %12340 = vmatpush1.msra.mxu0 0.0
      %12341 = vmatprep.subr.mxu0 0.0
      %12342 = vmatpush1.msra.mxu0 0.0
      %12343 = vmatprep.subr.mxu0 0.0
      %12344 = vmatpush1.msra.mxu0 0.0
      %12345 = vmatprep.subr.mxu0 0.0
      %12346 = vmatpush1.msra.mxu0 0.0
      %12347 = vmatprep.subr.mxu0 0.0
      %12348 = vmatpush1.msra.mxu0 0.0
      %12349 = vmatprep.subr.mxu0 0.0
      %12350 = vmatpush1.msra.mxu0 0.0
      %12351 = vmatprep.subr.mxu0 0.0
      %12352 = vmatpush1.msra.mxu0 0.0
      %12353 = vmatprep.subr.mxu0 0.0
      %12354 = vmatpush1.msra.mxu0 0.0
      %12355 = vmatprep.subr.mxu0 0.0
      %12356 = vmatpush1.msra.mxu0 0.0
      %12357 = vmatprep.subr.mxu0 0.0
      %12358 = vmatpush1.msra.mxu0 0.0
      %12359 = vmatprep.subr.mxu0 0.0
      %12360 = vmatpush1.msra.mxu0 0.0
      %12361 = vmatprep.subr.mxu0 0.0
      %12362 = vmatpush1.msra.mxu0 0.0
      %12363 = vmatprep.subr.mxu0 0.0
      %12364 = vmatpush1.msra.mxu0 0.0
      %12365 = vmatprep.mubr.f32.mxu0 0.0
      %12366 = vmatmul.mubr.f32.gmra.mrb[0].mxu0 %v12283
      %v12367 = vpop.f32.mrb[0].mxu0
      %v12368 = vadd.f32 %v12300, %v12367
      %v12369 = vpop.f32.mrb[0].mxu0
      %12370 = vdwg.mxu0
      %v12371 = vlaneseq
      %v12372 = vshrl.u32 %v12371, 7
      %v12373 = vsub.s32 0, %v12372
      %v12374 = vrot.slane %v12368, %v12373
      %12375 = vst [vmem:[%s384] sm:$0xff] %v12374
      %p12376 = scmp.lt.s32.totalorder %s22, 1
      %s12377 = scalar_select %p12376, %s22, 1
      %s12378 = smul.addr %s12377, 8
      %s12379 = scalar_lea.vmem %s11, %s12378
      // Predicated region
      $region65: #{lenet_forward.1} parent=63 // pred_check
        %p12380 = pneg %p276
      $region66: #{lenet_forward.1} parent=63 // pred_check_branch
        %12382 = sbr.rel (%p12380) target = $region68
      $region67: #{lenet_forward.1} parent=63 // pred_region
        _
      $region68: #{lenet_forward.1} parent=63 // pred_fallthru
        _
    $region64: #{lenet_forward.1} parent=5 // pred_fallthru
      _
    %p12383 = scmp.le.s32.totalorder 2, %s17
    // Predicated region
    $region69: #{lenet_forward.1} parent=5 // pred_check
      %p12384 = pneg %p12383
    $region70: #{lenet_forward.1} parent=5 // pred_check_branch
      %12386 = sbr.rel (%p12384) target = $region72
    $region71: #{lenet_forward.1} parent=5 // pred_region
      %s12387 = ssub.s32 %s17, 2
      // Predicated region
      $region73: #{lenet_forward.1} parent=71 // pred_check
        %p12388 = pneg %p282
      $region74: #{lenet_forward.1} parent=71 // pred_check_branch
        %12390 = sbr.rel (%p12388) target = $region76
      $region75: #{lenet_forward.1} parent=71 // pred_region
        %p12391 = scmp.lt.s32.totalorder %s23, 1
        %s12392 = scalar_select %p12391, %s23, 1
        %s12393 = smul.addr %s12392, 8
        %s12394 = scalar_lea.vmem %s11, %s12393
      $region76: #{lenet_forward.1} parent=71 // pred_fallthru
        _
    $region72: #{lenet_forward.1} parent=5 // pred_fallthru
      _
  $region6: #{lenet_forward.1} parent=0 // loop_footer
    %s21 = sadd.s32 1, %s17
  $region7: #{lenet_forward.1} parent=0 // loop_footer_branch
    %16 = sbr.rel target = $region3
  $region8: #{lenet_forward.1} parent=0 // loop_exit
    _

</llo_original>
